<compile_context>
chip_gen: v5e
topology: v5e:2x2
jax: 0.10.0
libtpu: 0.0.40
codegen_flags: <defaults>
</compile_context>

<pallas_src>
import numpy as np
import jax
import jax.numpy as jnp
from jax import lax
from jax.experimental import pallas as pl
from jax.experimental.pallas import tpu as pltpu

EPS = 1e-5
PAD_H = 5      # conv padding along H (all conv*_h layers)
KH = 3         # conv kernel height (all conv*_h layers)
HIGHEST = jax.lax.Precision.HIGHEST   # reference only


# ------------------------------ Pallas kernel -------------------------------

def _make_fused_kernel(layer_shapes, n_layers):
    """layer_shapes: list of (Ho, Wo*Cout) per conv layer (static ints)."""
    nl = n_layers

    def kernel(*refs):
        x_ref = refs[0]                                  # (1, Hp1, Win*Cin) bf16
        t_refs = refs[1:1 + nl]                          # (3, K, N) bf16 each
        s_refs = refs[1 + nl:1 + 2 * nl]                 # (1, N) f32 each
        ph_ref, r_ref, sf_ref = refs[1 + 2 * nl:4 + 2 * nl]
        o_ref = refs[4 + 2 * nl]                         # (1, out_h, out_w*3) f32
        a_refs = refs[5 + 2 * nl:]                       # f32 VMEM scratch buffers

        y = None
        for li in range(nl):
            ho, ncol = layer_shapes[li]
            if li == 0:
                lhs = x_ref[0]                                      # bf16 (ho+2, K)
            else:
                lhs = a_refs[li - 1][...].astype(jnp.bfloat16)      # (ho+2, K)
            t_ref = t_refs[li]
            # Full-height GEMMs against the block-Toeplitz weights; the kh=3 row
            # offsets are applied on the f32 results (cheap sublane shifts).
            z0 = jnp.dot(lhs, t_ref[0], preferred_element_type=jnp.float32)
            z1 = jnp.dot(lhs, t_ref[1], preferred_element_type=jnp.float32)
            z2 = jnp.dot(lhs, t_ref[2], preferred_element_type=jnp.float32)
            acc = z0[0:ho, :] + z1[1:ho + 1, :] + z2[2:ho + 2, :]
            y = jnp.maximum(acc + s_refs[li][...], 0.0)             # (ho, ncol) f32
            if li < nl - 1:
                buf = a_refs[li]                                    # (ho+10, ncol)
                buf[...] = jnp.zeros_like(buf)                      # H padding rows
                buf[pl.ds(PAD_H, ho), :] = y

        # adaptive avg-pool + 1x1 conv + BN + ReLU head (all folded into ph / r / sf)
        pooled = jnp.dot(ph_ref[...], y.astype(jnp.bfloat16),
                         preferred_element_type=jnp.float32)        # (out_h, W6*C6)
        head = jnp.dot(pooled.astype(jnp.bfloat16), r_ref[...],
                       preferred_element_type=jnp.float32)          # (out_h, out_w*3)
        o_ref[0] = jnp.maximum(head + sf_ref[...], 0.0)

    return kernel


# --------------------------- host-side parameter folding --------------------

def _fold_bn(bias, gamma, beta, mean, var):
    scale = gamma / np.sqrt(var + EPS)
    shift = beta + scale * (bias - mean)
    return scale, shift


def _toeplitz(w_oihw, stride_w, w_in, scale):
    """w_oihw: (Cout, Cin, kh, kw).  Returns (kh, w_in*Cin, Wo*Cout) f32 with the
    BatchNorm scale folded into the output columns."""
    cout, cin, kh, kw = w_oihw.shape
    wo = (w_in - kw) // stride_w + 1
    t = np.zeros((kh, w_in * cin, wo * cout), np.float32)
    ws = w_oihw * scale[:, None, None, None]
    for di in range(kh):
        for o in range(wo):
            for dj in range(kw):
                w = o * stride_w + dj
                t[di, w * cin:(w + 1) * cin, o * cout:(o + 1) * cout] = ws[:, :, di, dj].T
    return t, wo


def _adaptive_pool_matrix(in_size, out_size):
    """Exact nn.AdaptiveAvgPool2d bin weights along one axis."""
    p = np.zeros((out_size, in_size), np.float32)
    for o in range(out_size):
        s = (o * in_size) // out_size
        e = -((-(o + 1) * in_size) // out_size)   # ceil
        p[o, s:e] = 1.0 / (e - s)
    return p


def build_crossnet_fn(conv_params, final_params, in_h, in_w, out_h, out_w):
    """Fold parameters and return a jitted forward(x_nchw) -> (N, 3, out_h, out_w)."""
    ts, shifts, layer_shapes, buf_shapes = [], [], [], []
    h, w = in_h, in_w
    for p in conv_params:
        wc = np.asarray(p["W"], np.float32)
        cout, cin, kh, kw = wc.shape
        assert kh == KH and p["stride"][0] == 1 and p["pad"] == (PAD_H, 0)
        scale, shift = _fold_bn(np.asarray(p["b"]), np.asarray(p["gamma"]),
                                np.asarray(p["beta"]), np.asarray(p["mean"]),
                                np.asarray(p["var"]))
        t, wo = _toeplitz(wc, p["stride"][1], w, scale)
        ho = h + 2 * PAD_H - kh + 1
        ts.append(jnp.asarray(t, jnp.bfloat16))
        shifts.append(jnp.asarray(np.tile(shift, wo)[None, :], jnp.float32))
        layer_shapes.append((ho, wo * cout))
        buf_shapes.append((ho + 2 * PAD_H, wo * cout))   # padded input of next layer
        h, w = ho, wo
    c6, h6, w6 = conv_params[-1]["W"].shape[0], h, w

    fp = final_params
    scale_f, shift_f = _fold_bn(np.asarray(fp["b"]), np.asarray(fp["gamma"]),
                                np.asarray(fp["beta"]), np.asarray(fp["mean"]),
                                np.asarray(fp["var"]))
    wf = np.asarray(fp["W"], np.float32)[:, :, 0, 0]                  # (3, c6)
    cf = wf.shape[0]
    ph = _adaptive_pool_matrix(h6, out_h)                             # (out_h, h6)
    pw = _adaptive_pool_matrix(w6, out_w)                             # (out_w, w6)
    wfs = (wf * scale_f[:, None]).T                                   # (c6, cf)
    r = (pw.T[:, None, :, None] * wfs[None, :, None, :]).reshape(w6 * c6, out_w * cf)
    ph_j = jnp.asarray(ph, jnp.bfloat16)
    r_j = jnp.asarray(r, jnp.bfloat16)
    sf_j = jnp.asarray(np.tile(shift_f, out_w)[None, :], jnp.float32)

    nl = len(conv_params)
    kernel = _make_fused_kernel(layer_shapes, nl)
    hp1 = in_h + 2 * PAD_H
    k1 = in_w * conv_params[0]["W"].shape[1]

    in_specs = [pl.BlockSpec((1, hp1, k1), lambda b: (b, 0, 0))]
    for t in ts:
        in_specs.append(pl.BlockSpec(t.shape, lambda b: (0, 0, 0)))
    for s in shifts:
        in_specs.append(pl.BlockSpec(s.shape, lambda b: (0, 0)))
    in_specs += [pl.BlockSpec(ph_j.shape, lambda b: (0, 0)),
                 pl.BlockSpec(r_j.shape, lambda b: (0, 0)),
                 pl.BlockSpec(sf_j.shape, lambda b: (0, 0))]
    scratch = [pltpu.VMEM(s, jnp.float32) for s in buf_shapes[:-1]]

    def forward(x_nchw):
        n = x_nchw.shape[0]
        x = jnp.transpose(x_nchw, (0, 2, 3, 1)).astype(jnp.float32)   # NHWC
        x = jnp.pad(x, ((0, 0), (PAD_H, PAD_H), (0, 0), (0, 0)))
        x = x.reshape(n, hp1, k1).astype(jnp.bfloat16)                # (N, Hp, W*C)
        out = pl.pallas_call(
            kernel,
            out_shape=jax.ShapeDtypeStruct((n, out_h, out_w * cf), jnp.float32),
            grid=(n,),
            in_specs=in_specs,
            out_specs=pl.BlockSpec((1, out_h, out_w * cf), lambda b: (b, 0, 0)),
            scratch_shapes=scratch,
            compiler_params=pltpu.CompilerParams(
                dimension_semantics=("parallel",)),
        )(x, *ts, *shifts, ph_j, r_j, sf_j)
        out = out.reshape(n, out_h, out_w, cf)
        return jnp.transpose(out, (0, 3, 1, 2))                       # NCHW

    return jax.jit(forward)


# --------------------------- parameter construction -------------------------

def init_params(key):
    conv_cfg = [  # (cin, cout, kh, kw, stride) for conv1_h .. conv6_h
        (3, 4, 3, 12, (1, 2)),
        (4, 8, 3, 12, (1, 1)),
        (8, 16, 3, 12, (1, 1)),
        (16, 8, 3, 12, (1, 1)),
        (8, 4, 3, 12, (1, 1)),
        (4, 4, 3, 12, (1, 1)),
    ]
    conv_params = []
    for cin, cout, kh, kw, stride in conv_cfg:
        key, *ks = jax.random.split(key, 7)
        fan_in = cin * kh * kw
        conv_params.append(dict(
            W=jax.random.normal(ks[0], (cout, cin, kh, kw), jnp.float32) / np.sqrt(fan_in),
            b=0.01 * jax.random.normal(ks[1], (cout,), jnp.float32),
            gamma=1.0 + 0.1 * jax.random.normal(ks[2], (cout,), jnp.float32),
            beta=0.1 * jax.random.normal(ks[3], (cout,), jnp.float32),
            mean=0.1 * jax.random.normal(ks[4], (cout,), jnp.float32),
            var=jax.random.uniform(ks[5], (cout,), jnp.float32, 0.5, 1.5),
            stride=stride, pad=(5, 0)))
    key, *ks = jax.random.split(key, 7)
    final_params = dict(
        W=jax.random.normal(ks[0], (3, 4, 1, 1), jnp.float32) / np.sqrt(4.0),
        b=0.01 * jax.random.normal(ks[1], (3,), jnp.float32),
        gamma=1.0 + 0.1 * jax.random.normal(ks[2], (3,), jnp.float32),
        beta=0.1 * jax.random.normal(ks[3], (3,), jnp.float32),
        mean=0.1 * jax.random.normal(ks[4], (3,), jnp.float32),
        var=jax.random.uniform(ks[5], (3,), jnp.float32, 0.5, 1.5))
    return conv_params, final_params


# --------------------------- pure-JAX reference ------------------------------

def _bn(h, p):
    return ((h - p["mean"][None, :, None, None]) /
            jnp.sqrt(p["var"] + EPS)[None, :, None, None]
            * p["gamma"][None, :, None, None] + p["beta"][None, :, None, None])


def reference_forward(x_nchw, conv_params, final_params, out_h, out_w):
    h = x_nchw.astype(jnp.float32)
    for p in conv_params:
        h = lax.conv_general_dilated(
            h, p["W"], window_strides=p["stride"], padding=[(5, 5), (0, 0)],
            dimension_numbers=("NCHW", "OIHW", "NCHW"), precision=HIGHEST)
        h = h + p["b"][None, :, None, None]
        h = jnp.maximum(_bn(h, p), 0.0)
    n, c, hh, ww = h.shape
    assert hh % out_h == 0 and ww % out_w == 0  # divisible pooling case for the check
    h = h.reshape(n, c, out_h, hh // out_h, out_w, ww // out_w).mean(axis=(3, 5))
    h = jnp.einsum("nchw,oc->nohw", h, final_params["W"][:, :, 0, 0],
                   precision=HIGHEST) + final_params["b"][None, :, None, None]
    return jnp.maximum(_bn(h, final_params), 0.0)


# --------------------------------- main --------------------------------------

if __name__ == "__main__":
    key = jax.random.PRNGKey(0)
    kx, kp = jax.random.split(key)
    # NCHW input; W=128 is the smallest-ish width that survives six kw=12 convs.
    x = jax.random.normal(kx, (2, 3, 16, 128), jnp.float32)
    conv_params, final_params = init_params(kp)
    output_height, output_width = 8, 2

    fwd = build_crossnet_fn(conv_params, final_params, 16, 128,
                            output_height, output_width)
    out = jax.block_until_ready(fwd(x))
    assert out.shape == (2, 3, output_height, output_width)

    ref = reference_forward(x, conv_params, final_params, output_height, output_width)
    # Tolerance reflects single-pass bf16 MXU matmuls in the kernel vs. the f32
    # HIGHEST-precision reference across 7 stacked linear stages; structural
    # bugs would produce O(0.3+) errors and still be caught.
    np.testing.assert_allclose(np.asarray(out), np.asarray(ref), rtol=5e-2, atol=5e-2)

    print("KERNEL_OK")
</pallas_src>

<mosaic_0001>
module attributes {stable_mosaic.version = 11 : i64} {
  func.func @kernel(%arg0: i32, %arg1: memref<1x26x384xbf16, #tpu.memory_space<vmem>>, %arg2: memref<3x384x236xbf16, #tpu.memory_space<vmem>>, %arg3: memref<3x236x384xbf16, #tpu.memory_space<vmem>>, %arg4: memref<3x384x592xbf16, #tpu.memory_space<vmem>>, %arg5: memref<3x592x208xbf16, #tpu.memory_space<vmem>>, %arg6: memref<3x208x60xbf16, #tpu.memory_space<vmem>>, %arg7: memref<3x60x16xbf16, #tpu.memory_space<vmem>>, %arg8: memref<1x236xf32, #tpu.memory_space<vmem>>, %arg9: memref<1x384xf32, #tpu.memory_space<vmem>>, %arg10: memref<1x592xf32, #tpu.memory_space<vmem>>, %arg11: memref<1x208xf32, #tpu.memory_space<vmem>>, %arg12: memref<1x60xf32, #tpu.memory_space<vmem>>, %arg13: memref<1x16xf32, #tpu.memory_space<vmem>>, %arg14: memref<8x64xbf16, #tpu.memory_space<vmem>>, %arg15: memref<16x6xbf16, #tpu.memory_space<vmem>>, %arg16: memref<1x6xf32, #tpu.memory_space<vmem>>, %arg17: memref<1x8x6xf32, #tpu.memory_space<vmem>>, %arg18: memref<34x236xf32, #tpu.memory_space<vmem>>, %arg19: memref<42x384xf32, #tpu.memory_space<vmem>>, %arg20: memref<50x592xf32, #tpu.memory_space<vmem>>, %arg21: memref<58x208xf32, #tpu.memory_space<vmem>>, %arg22: memref<66x60xf32, #tpu.memory_space<vmem>>) attributes {dimension_semantics = [#tpu.dimension_semantics<parallel>], iteration_bounds = array<i64: 2>, scalar_prefetch = 0 : i64, scratch_operands = 5 : i64, tpu.core_type = #tpu.core_type<tc>, window_params = [{transform_indices = @transform_0, window_bounds = array<i64: 1, 26, 384>}, {pipeline_mode = #tpu.pipeline_mode<synchronous>, transform_indices = @transform_1, window_bounds = array<i64: 3, 384, 236>}, {pipeline_mode = #tpu.pipeline_mode<synchronous>, transform_indices = @transform_2, window_bounds = array<i64: 3, 236, 384>}, {pipeline_mode = #tpu.pipeline_mode<synchronous>, transform_indices = @transform_3, window_bounds = array<i64: 3, 384, 592>}, {pipeline_mode = #tpu.pipeline_mode<synchronous>, transform_indices = @transform_4, window_bounds = array<i64: 3, 592, 208>}, {pipeline_mode = #tpu.pipeline_mode<synchronous>, transform_indices = @transform_5, window_bounds = array<i64: 3, 208, 60>}, {pipeline_mode = #tpu.pipeline_mode<synchronous>, transform_indices = @transform_6, window_bounds = array<i64: 3, 60, 16>}, {pipeline_mode = #tpu.pipeline_mode<synchronous>, transform_indices = @transform_7, window_bounds = array<i64: 1, 236>}, {pipeline_mode = #tpu.pipeline_mode<synchronous>, transform_indices = @transform_8, window_bounds = array<i64: 1, 384>}, {pipeline_mode = #tpu.pipeline_mode<synchronous>, transform_indices = @transform_9, window_bounds = array<i64: 1, 592>}, {pipeline_mode = #tpu.pipeline_mode<synchronous>, transform_indices = @transform_10, window_bounds = array<i64: 1, 208>}, {pipeline_mode = #tpu.pipeline_mode<synchronous>, transform_indices = @transform_11, window_bounds = array<i64: 1, 60>}, {pipeline_mode = #tpu.pipeline_mode<synchronous>, transform_indices = @transform_12, window_bounds = array<i64: 1, 16>}, {pipeline_mode = #tpu.pipeline_mode<synchronous>, transform_indices = @transform_13, window_bounds = array<i64: 8, 64>}, {pipeline_mode = #tpu.pipeline_mode<synchronous>, transform_indices = @transform_14, window_bounds = array<i64: 16, 6>}, {pipeline_mode = #tpu.pipeline_mode<synchronous>, transform_indices = @transform_15, window_bounds = array<i64: 1, 6>}, {transform_indices = @transform_16, window_bounds = array<i64: 1, 8, 6>}]} {
    %c0 = arith.constant 0 : index
    %c0_0 = arith.constant 0 : index
    %c0_1 = arith.constant 0 : index
    %0 = vector.load %arg1[%c0, %c0_0, %c0_1] : memref<1x26x384xbf16, #tpu.memory_space<vmem>>, vector<1x26x384xbf16>
    %1 = vector.shape_cast %0 : vector<1x26x384xbf16> to vector<26x384xbf16>
    %c0_2 = arith.constant 0 : index
    %c0_3 = arith.constant 0 : index
    %c0_4 = arith.constant 0 : index
    %2 = vector.load %arg2[%c0_2, %c0_3, %c0_4] : memref<3x384x236xbf16, #tpu.memory_space<vmem>>, vector<1x384x236xbf16>
    %3 = vector.shape_cast %2 : vector<1x384x236xbf16> to vector<384x236xbf16>
    %cst = arith.constant dense<0.000000e+00> : vector<26x236xf32>
    %4 = tpu.matmul %1, %3, %cst {dimension_numbers = #tpu.dot_dimension_numbers<[1], [0], [0], [1], [0, 0, 1, 1], [], []>} : vector<26x384xbf16>, vector<384x236xbf16>, vector<26x236xf32> -> vector<26x236xf32>
    %c1 = arith.constant 1 : index
    %c0_5 = arith.constant 0 : index
    %c0_6 = arith.constant 0 : index
    %5 = vector.load %arg2[%c1, %c0_5, %c0_6] : memref<3x384x236xbf16, #tpu.memory_space<vmem>>, vector<1x384x236xbf16>
    %6 = vector.shape_cast %5 : vector<1x384x236xbf16> to vector<384x236xbf16>
    %cst_7 = arith.constant dense<0.000000e+00> : vector<26x236xf32>
    %7 = tpu.matmul %1, %6, %cst_7 {dimension_numbers = #tpu.dot_dimension_numbers<[1], [0], [0], [1], [0, 0, 1, 1], [], []>} : vector<26x384xbf16>, vector<384x236xbf16>, vector<26x236xf32> -> vector<26x236xf32>
    %c2 = arith.constant 2 : index
    %c0_8 = arith.constant 0 : index
    %c0_9 = arith.constant 0 : index
    %8 = vector.load %arg2[%c2, %c0_8, %c0_9] : memref<3x384x236xbf16, #tpu.memory_space<vmem>>, vector<1x384x236xbf16>
    %9 = vector.shape_cast %8 : vector<1x384x236xbf16> to vector<384x236xbf16>
    %cst_10 = arith.constant dense<0.000000e+00> : vector<26x236xf32>
    %10 = tpu.matmul %1, %9, %cst_10 {dimension_numbers = #tpu.dot_dimension_numbers<[1], [0], [0], [1], [0, 0, 1, 1], [], []>} : vector<26x384xbf16>, vector<384x236xbf16>, vector<26x236xf32> -> vector<26x236xf32>
    %11 = vector.extract_strided_slice %4 {offsets = [0, 0], sizes = [24, 236], strides = [1, 1]} : vector<26x236xf32> to vector<24x236xf32>
    %12 = vector.extract_strided_slice %7 {offsets = [1, 0], sizes = [24, 236], strides = [1, 1]} : vector<26x236xf32> to vector<24x236xf32>
    %13 = arith.addf %11, %12 : vector<24x236xf32>
    %14 = vector.extract_strided_slice %10 {offsets = [2, 0], sizes = [24, 236], strides = [1, 1]} : vector<26x236xf32> to vector<24x236xf32>
    %15 = arith.addf %13, %14 : vector<24x236xf32>
    %c0_11 = arith.constant 0 : index
    %c0_12 = arith.constant 0 : index
    %16 = vector.load %arg8[%c0_11, %c0_12] : memref<1x236xf32, #tpu.memory_space<vmem>>, vector<1x236xf32>
    %17 = vector.broadcast %16 : vector<1x236xf32> to vector<24x236xf32>
    %18 = arith.addf %15, %17 : vector<24x236xf32>
    %cst_13 = arith.constant 0.000000e+00 : f32
    %19 = vector.broadcast %cst_13 : f32 to vector<24x236xf32>
    %20 = arith.maximumf %18, %19 : vector<24x236xf32>
    %cst_14 = arith.constant 0.000000e+00 : f32
    %21 = vector.broadcast %cst_14 : f32 to vector<34x236xf32>
    %c0_15 = arith.constant 0 : index
    %c0_16 = arith.constant 0 : index
    %22 = vector.load %arg18[%c0_15, %c0_16] : memref<34x236xf32, #tpu.memory_space<vmem>>, vector<34x236xf32>
    tpu.vector_store %arg18[%c0_15, %c0_16], %21 {strides = array<i32>} : memref<34x236xf32, #tpu.memory_space<vmem>>, vector<34x236xf32>,
    %c5 = arith.constant 5 : index
    %c0_17 = arith.constant 0 : index
    %23 = vector.load %arg18[%c5, %c0_17] : memref<34x236xf32, #tpu.memory_space<vmem>>, vector<24x236xf32>
    tpu.vector_store %arg18[%c5, %c0_17], %20 {strides = array<i32>} : memref<34x236xf32, #tpu.memory_space<vmem>>, vector<24x236xf32>,
    %c0_18 = arith.constant 0 : index
    %c0_19 = arith.constant 0 : index
    %24 = vector.load %arg18[%c0_18, %c0_19] : memref<34x236xf32, #tpu.memory_space<vmem>>, vector<34x236xf32>
    %25 = arith.truncf %24 : vector<34x236xf32> to vector<34x236xbf16>
    %c0_20 = arith.constant 0 : index
    %c0_21 = arith.constant 0 : index
    %c0_22 = arith.constant 0 : index
    %26 = vector.load %arg3[%c0_20, %c0_21, %c0_22] : memref<3x236x384xbf16, #tpu.memory_space<vmem>>, vector<1x236x384xbf16>
    %27 = vector.shape_cast %26 : vector<1x236x384xbf16> to vector<236x384xbf16>
    %cst_23 = arith.constant dense<0.000000e+00> : vector<34x384xf32>
    %28 = tpu.matmul %25, %27, %cst_23 {dimension_numbers = #tpu.dot_dimension_numbers<[1], [0], [0], [1], [0, 0, 1, 1], [], []>} : vector<34x236xbf16>, vector<236x384xbf16>, vector<34x384xf32> -> vector<34x384xf32>
    %c1_24 = arith.constant 1 : index
    %c0_25 = arith.constant 0 : index
    %c0_26 = arith.constant 0 : index
    %29 = vector.load %arg3[%c1_24, %c0_25, %c0_26] : memref<3x236x384xbf16, #tpu.memory_space<vmem>>, vector<1x236x384xbf16>
    %30 = vector.shape_cast %29 : vector<1x236x384xbf16> to vector<236x384xbf16>
    %cst_27 = arith.constant dense<0.000000e+00> : vector<34x384xf32>
    %31 = tpu.matmul %25, %30, %cst_27 {dimension_numbers = #tpu.dot_dimension_numbers<[1], [0], [0], [1], [0, 0, 1, 1], [], []>} : vector<34x236xbf16>, vector<236x384xbf16>, vector<34x384xf32> -> vector<34x384xf32>
    %c2_28 = arith.constant 2 : index
    %c0_29 = arith.constant 0 : index
    %c0_30 = arith.constant 0 : index
    %32 = vector.load %arg3[%c2_28, %c0_29, %c0_30] : memref<3x236x384xbf16, #tpu.memory_space<vmem>>, vector<1x236x384xbf16>
    %33 = vector.shape_cast %32 : vector<1x236x384xbf16> to vector<236x384xbf16>
    %cst_31 = arith.constant dense<0.000000e+00> : vector<34x384xf32>
    %34 = tpu.matmul %25, %33, %cst_31 {dimension_numbers = #tpu.dot_dimension_numbers<[1], [0], [0], [1], [0, 0, 1, 1], [], []>} : vector<34x236xbf16>, vector<236x384xbf16>, vector<34x384xf32> -> vector<34x384xf32>
    %35 = vector.extract_strided_slice %28 {offsets = [0, 0], sizes = [32, 384], strides = [1, 1]} : vector<34x384xf32> to vector<32x384xf32>
    %36 = vector.extract_strided_slice %31 {offsets = [1, 0], sizes = [32, 384], strides = [1, 1]} : vector<34x384xf32> to vector<32x384xf32>
    %37 = arith.addf %35, %36 : vector<32x384xf32>
    %38 = vector.extract_strided_slice %34 {offsets = [2, 0], sizes = [32, 384], strides = [1, 1]} : vector<34x384xf32> to vector<32x384xf32>
    %39 = arith.addf %37, %38 : vector<32x384xf32>
    %c0_32 = arith.constant 0 : index
    %c0_33 = arith.constant 0 : index
    %40 = vector.load %arg9[%c0_32, %c0_33] : memref<1x384xf32, #tpu.memory_space<vmem>>, vector<1x384xf32>
    %41 = vector.broadcast %40 : vector<1x384xf32> to vector<32x384xf32>
    %42 = arith.addf %39, %41 : vector<32x384xf32>
    %cst_34 = arith.constant 0.000000e+00 : f32
    %43 = vector.broadcast %cst_34 : f32 to vector<32x384xf32>
    %44 = arith.maximumf %42, %43 : vector<32x384xf32>
    %cst_35 = arith.constant 0.000000e+00 : f32
    %45 = vector.broadcast %cst_35 : f32 to vector<42x384xf32>
    %c0_36 = arith.constant 0 : index
    %c0_37 = arith.constant 0 : index
    %46 = vector.load %arg19[%c0_36, %c0_37] : memref<42x384xf32, #tpu.memory_space<vmem>>, vector<42x384xf32>
    tpu.vector_store %arg19[%c0_36, %c0_37], %45 {strides = array<i32>} : memref<42x384xf32, #tpu.memory_space<vmem>>, vector<42x384xf32>,
    %c5_38 = arith.constant 5 : index
    %c0_39 = arith.constant 0 : index
    %47 = vector.load %arg19[%c5_38, %c0_39] : memref<42x384xf32, #tpu.memory_space<vmem>>, vector<32x384xf32>
    tpu.vector_store %arg19[%c5_38, %c0_39], %44 {strides = array<i32>} : memref<42x384xf32, #tpu.memory_space<vmem>>, vector<32x384xf32>,
    %c0_40 = arith.constant 0 : index
    %c0_41 = arith.constant 0 : index
    %48 = vector.load %arg19[%c0_40, %c0_41] : memref<42x384xf32, #tpu.memory_space<vmem>>, vector<42x384xf32>
    %49 = arith.truncf %48 : vector<42x384xf32> to vector<42x384xbf16>
    %c0_42 = arith.constant 0 : index
    %c0_43 = arith.constant 0 : index
    %c0_44 = arith.constant 0 : index
    %50 = vector.load %arg4[%c0_42, %c0_43, %c0_44] : memref<3x384x592xbf16, #tpu.memory_space<vmem>>, vector<1x384x592xbf16>
    %51 = vector.shape_cast %50 : vector<1x384x592xbf16> to vector<384x592xbf16>
    %cst_45 = arith.constant dense<0.000000e+00> : vector<42x592xf32>
    %52 = tpu.matmul %49, %51, %cst_45 {dimension_numbers = #tpu.dot_dimension_numbers<[1], [0], [0], [1], [0, 0, 1, 1], [], []>} : vector<42x384xbf16>, vector<384x592xbf16>, vector<42x592xf32> -> vector<42x592xf32>
    %c1_46 = arith.constant 1 : index
    %c0_47 = arith.constant 0 : index
    %c0_48 = arith.constant 0 : index
    %53 = vector.load %arg4[%c1_46, %c0_47, %c0_48] : memref<3x384x592xbf16, #tpu.memory_space<vmem>>, vector<1x384x592xbf16>
    %54 = vector.shape_cast %53 : vector<1x384x592xbf16> to vector<384x592xbf16>
    %cst_49 = arith.constant dense<0.000000e+00> : vector<42x592xf32>
    %55 = tpu.matmul %49, %54, %cst_49 {dimension_numbers = #tpu.dot_dimension_numbers<[1], [0], [0], [1], [0, 0, 1, 1], [], []>} : vector<42x384xbf16>, vector<384x592xbf16>, vector<42x592xf32> -> vector<42x592xf32>
    %c2_50 = arith.constant 2 : index
    %c0_51 = arith.constant 0 : index
    %c0_52 = arith.constant 0 : index
    %56 = vector.load %arg4[%c2_50, %c0_51, %c0_52] : memref<3x384x592xbf16, #tpu.memory_space<vmem>>, vector<1x384x592xbf16>
    %57 = vector.shape_cast %56 : vector<1x384x592xbf16> to vector<384x592xbf16>
    %cst_53 = arith.constant dense<0.000000e+00> : vector<42x592xf32>
    %58 = tpu.matmul %49, %57, %cst_53 {dimension_numbers = #tpu.dot_dimension_numbers<[1], [0], [0], [1], [0, 0, 1, 1], [], []>} : vector<42x384xbf16>, vector<384x592xbf16>, vector<42x592xf32> -> vector<42x592xf32>
    %59 = vector.extract_strided_slice %52 {offsets = [0, 0], sizes = [40, 592], strides = [1, 1]} : vector<42x592xf32> to vector<40x592xf32>
    %60 = vector.extract_strided_slice %55 {offsets = [1, 0], sizes = [40, 592], strides = [1, 1]} : vector<42x592xf32> to vector<40x592xf32>
    %61 = arith.addf %59, %60 : vector<40x592xf32>
    %62 = vector.extract_strided_slice %58 {offsets = [2, 0], sizes = [40, 592], strides = [1, 1]} : vector<42x592xf32> to vector<40x592xf32>
    %63 = arith.addf %61, %62 : vector<40x592xf32>
    %c0_54 = arith.constant 0 : index
    %c0_55 = arith.constant 0 : index
    %64 = vector.load %arg10[%c0_54, %c0_55] : memref<1x592xf32, #tpu.memory_space<vmem>>, vector<1x592xf32>
    %65 = vector.broadcast %64 : vector<1x592xf32> to vector<40x592xf32>
    %66 = arith.addf %63, %65 : vector<40x592xf32>
    %cst_56 = arith.constant 0.000000e+00 : f32
    %67 = vector.broadcast %cst_56 : f32 to vector<40x592xf32>
    %68 = arith.maximumf %66, %67 : vector<40x592xf32>
    %cst_57 = arith.constant 0.000000e+00 : f32
    %69 = vector.broadcast %cst_57 : f32 to vector<50x592xf32>
    %c0_58 = arith.constant 0 : index
    %c0_59 = arith.constant 0 : index
    %70 = vector.load %arg20[%c0_58, %c0_59] : memref<50x592xf32, #tpu.memory_space<vmem>>, vector<50x592xf32>
    tpu.vector_store %arg20[%c0_58, %c0_59], %69 {strides = array<i32>} : memref<50x592xf32, #tpu.memory_space<vmem>>, vector<50x592xf32>,
    %c5_60 = arith.constant 5 : index
    %c0_61 = arith.constant 0 : index
    %71 = vector.load %arg20[%c5_60, %c0_61] : memref<50x592xf32, #tpu.memory_space<vmem>>, vector<40x592xf32>
    tpu.vector_store %arg20[%c5_60, %c0_61], %68 {strides = array<i32>} : memref<50x592xf32, #tpu.memory_space<vmem>>, vector<40x592xf32>,
    %c0_62 = arith.constant 0 : index
    %c0_63 = arith.constant 0 : index
    %72 = vector.load %arg20[%c0_62, %c0_63] : memref<50x592xf32, #tpu.memory_space<vmem>>, vector<50x592xf32>
    %73 = arith.truncf %72 : vector<50x592xf32> to vector<50x592xbf16>
    %c0_64 = arith.constant 0 : index
    %c0_65 = arith.constant 0 : index
    %c0_66 = arith.constant 0 : index
    %74 = vector.load %arg5[%c0_64, %c0_65, %c0_66] : memref<3x592x208xbf16, #tpu.memory_space<vmem>>, vector<1x592x208xbf16>
    %75 = vector.shape_cast %74 : vector<1x592x208xbf16> to vector<592x208xbf16>
    %cst_67 = arith.constant dense<0.000000e+00> : vector<50x208xf32>
    %76 = tpu.matmul %73, %75, %cst_67 {dimension_numbers = #tpu.dot_dimension_numbers<[1], [0], [0], [1], [0, 0, 1, 1], [], []>} : vector<50x592xbf16>, vector<592x208xbf16>, vector<50x208xf32> -> vector<50x208xf32>
    %c1_68 = arith.constant 1 : index
    %c0_69 = arith.constant 0 : index
    %c0_70 = arith.constant 0 : index
    %77 = vector.load %arg5[%c1_68, %c0_69, %c0_70] : memref<3x592x208xbf16, #tpu.memory_space<vmem>>, vector<1x592x208xbf16>
    %78 = vector.shape_cast %77 : vector<1x592x208xbf16> to vector<592x208xbf16>
    %cst_71 = arith.constant dense<0.000000e+00> : vector<50x208xf32>
    %79 = tpu.matmul %73, %78, %cst_71 {dimension_numbers = #tpu.dot_dimension_numbers<[1], [0], [0], [1], [0, 0, 1, 1], [], []>} : vector<50x592xbf16>, vector<592x208xbf16>, vector<50x208xf32> -> vector<50x208xf32>
    %c2_72 = arith.constant 2 : index
    %c0_73 = arith.constant 0 : index
    %c0_74 = arith.constant 0 : index
    %80 = vector.load %arg5[%c2_72, %c0_73, %c0_74] : memref<3x592x208xbf16, #tpu.memory_space<vmem>>, vector<1x592x208xbf16>
    %81 = vector.shape_cast %80 : vector<1x592x208xbf16> to vector<592x208xbf16>
    %cst_75 = arith.constant dense<0.000000e+00> : vector<50x208xf32>
    %82 = tpu.matmul %73, %81, %cst_75 {dimension_numbers = #tpu.dot_dimension_numbers<[1], [0], [0], [1], [0, 0, 1, 1], [], []>} : vector<50x592xbf16>, vector<592x208xbf16>, vector<50x208xf32> -> vector<50x208xf32>
    %83 = vector.extract_strided_slice %76 {offsets = [0, 0], sizes = [48, 208], strides = [1, 1]} : vector<50x208xf32> to vector<48x208xf32>
    %84 = vector.extract_strided_slice %79 {offsets = [1, 0], sizes = [48, 208], strides = [1, 1]} : vector<50x208xf32> to vector<48x208xf32>
    %85 = arith.addf %83, %84 : vector<48x208xf32>
    %86 = vector.extract_strided_slice %82 {offsets = [2, 0], sizes = [48, 208], strides = [1, 1]} : vector<50x208xf32> to vector<48x208xf32>
    %87 = arith.addf %85, %86 : vector<48x208xf32>
    %c0_76 = arith.constant 0 : index
    %c0_77 = arith.constant 0 : index
    %88 = vector.load %arg11[%c0_76, %c0_77] : memref<1x208xf32, #tpu.memory_space<vmem>>, vector<1x208xf32>
    %89 = vector.broadcast %88 : vector<1x208xf32> to vector<48x208xf32>
    %90 = arith.addf %87, %89 : vector<48x208xf32>
    %cst_78 = arith.constant 0.000000e+00 : f32
    %91 = vector.broadcast %cst_78 : f32 to vector<48x208xf32>
    %92 = arith.maximumf %90, %91 : vector<48x208xf32>
    %cst_79 = arith.constant 0.000000e+00 : f32
    %93 = vector.broadcast %cst_79 : f32 to vector<58x208xf32>
    %c0_80 = arith.constant 0 : index
    %c0_81 = arith.constant 0 : index
    %94 = vector.load %arg21[%c0_80, %c0_81] : memref<58x208xf32, #tpu.memory_space<vmem>>, vector<58x208xf32>
    tpu.vector_store %arg21[%c0_80, %c0_81], %93 {strides = array<i32>} : memref<58x208xf32, #tpu.memory_space<vmem>>, vector<58x208xf32>,
    %c5_82 = arith.constant 5 : index
    %c0_83 = arith.constant 0 : index
    %95 = vector.load %arg21[%c5_82, %c0_83] : memref<58x208xf32, #tpu.memory_space<vmem>>, vector<48x208xf32>
    tpu.vector_store %arg21[%c5_82, %c0_83], %92 {strides = array<i32>} : memref<58x208xf32, #tpu.memory_space<vmem>>, vector<48x208xf32>,
    %c0_84 = arith.constant 0 : index
    %c0_85 = arith.constant 0 : index
    %96 = vector.load %arg21[%c0_84, %c0_85] : memref<58x208xf32, #tpu.memory_space<vmem>>, vector<58x208xf32>
    %97 = arith.truncf %96 : vector<58x208xf32> to vector<58x208xbf16>
    %c0_86 = arith.constant 0 : index
    %c0_87 = arith.constant 0 : index
    %c0_88 = arith.constant 0 : index
    %98 = vector.load %arg6[%c0_86, %c0_87, %c0_88] : memref<3x208x60xbf16, #tpu.memory_space<vmem>>, vector<1x208x60xbf16>
    %99 = vector.shape_cast %98 : vector<1x208x60xbf16> to vector<208x60xbf16>
    %cst_89 = arith.constant dense<0.000000e+00> : vector<58x60xf32>
    %100 = tpu.matmul %97, %99, %cst_89 {dimension_numbers = #tpu.dot_dimension_numbers<[1], [0], [0], [1], [0, 0, 1, 1], [], []>} : vector<58x208xbf16>, vector<208x60xbf16>, vector<58x60xf32> -> vector<58x60xf32>
    %c1_90 = arith.constant 1 : index
    %c0_91 = arith.constant 0 : index
    %c0_92 = arith.constant 0 : index
    %101 = vector.load %arg6[%c1_90, %c0_91, %c0_92] : memref<3x208x60xbf16, #tpu.memory_space<vmem>>, vector<1x208x60xbf16>
    %102 = vector.shape_cast %101 : vector<1x208x60xbf16> to vector<208x60xbf16>
    %cst_93 = arith.constant dense<0.000000e+00> : vector<58x60xf32>
    %103 = tpu.matmul %97, %102, %cst_93 {dimension_numbers = #tpu.dot_dimension_numbers<[1], [0], [0], [1], [0, 0, 1, 1], [], []>} : vector<58x208xbf16>, vector<208x60xbf16>, vector<58x60xf32> -> vector<58x60xf32>
    %c2_94 = arith.constant 2 : index
    %c0_95 = arith.constant 0 : index
    %c0_96 = arith.constant 0 : index
    %104 = vector.load %arg6[%c2_94, %c0_95, %c0_96] : memref<3x208x60xbf16, #tpu.memory_space<vmem>>, vector<1x208x60xbf16>
    %105 = vector.shape_cast %104 : vector<1x208x60xbf16> to vector<208x60xbf16>
    %cst_97 = arith.constant dense<0.000000e+00> : vector<58x60xf32>
    %106 = tpu.matmul %97, %105, %cst_97 {dimension_numbers = #tpu.dot_dimension_numbers<[1], [0], [0], [1], [0, 0, 1, 1], [], []>} : vector<58x208xbf16>, vector<208x60xbf16>, vector<58x60xf32> -> vector<58x60xf32>
    %107 = vector.extract_strided_slice %100 {offsets = [0, 0], sizes = [56, 60], strides = [1, 1]} : vector<58x60xf32> to vector<56x60xf32>
    %108 = vector.extract_strided_slice %103 {offsets = [1, 0], sizes = [56, 60], strides = [1, 1]} : vector<58x60xf32> to vector<56x60xf32>
    %109 = arith.addf %107, %108 : vector<56x60xf32>
    %110 = vector.extract_strided_slice %106 {offsets = [2, 0], sizes = [56, 60], strides = [1, 1]} : vector<58x60xf32> to vector<56x60xf32>
    %111 = arith.addf %109, %110 : vector<56x60xf32>
    %c0_98 = arith.constant 0 : index
    %c0_99 = arith.constant 0 : index
    %112 = vector.load %arg12[%c0_98, %c0_99] : memref<1x60xf32, #tpu.memory_space<vmem>>, vector<1x60xf32>
    %113 = vector.broadcast %112 : vector<1x60xf32> to vector<56x60xf32>
    %114 = arith.addf %111, %113 : vector<56x60xf32>
    %cst_100 = arith.constant 0.000000e+00 : f32
    %115 = vector.broadcast %cst_100 : f32 to vector<56x60xf32>
    %116 = arith.maximumf %114, %115 : vector<56x60xf32>
    %cst_101 = arith.constant 0.000000e+00 : f32
    %117 = vector.broadcast %cst_101 : f32 to vector<66x60xf32>
    %c0_102 = arith.constant 0 : index
    %c0_103 = arith.constant 0 : index
    %118 = vector.load %arg22[%c0_102, %c0_103] : memref<66x60xf32, #tpu.memory_space<vmem>>, vector<66x60xf32>
    tpu.vector_store %arg22[%c0_102, %c0_103], %117 {strides = array<i32>} : memref<66x60xf32, #tpu.memory_space<vmem>>, vector<66x60xf32>,
    %c5_104 = arith.constant 5 : index
    %c0_105 = arith.constant 0 : index
    %119 = vector.load %arg22[%c5_104, %c0_105] : memref<66x60xf32, #tpu.memory_space<vmem>>, vector<56x60xf32>
    tpu.vector_store %arg22[%c5_104, %c0_105], %116 {strides = array<i32>} : memref<66x60xf32, #tpu.memory_space<vmem>>, vector<56x60xf32>,
    %c0_106 = arith.constant 0 : index
    %c0_107 = arith.constant 0 : index
    %120 = vector.load %arg22[%c0_106, %c0_107] : memref<66x60xf32, #tpu.memory_space<vmem>>, vector<66x60xf32>
    %121 = arith.truncf %120 : vector<66x60xf32> to vector<66x60xbf16>
    %c0_108 = arith.constant 0 : index
    %c0_109 = arith.constant 0 : index
    %c0_110 = arith.constant 0 : index
    %122 = vector.load %arg7[%c0_108, %c0_109, %c0_110] : memref<3x60x16xbf16, #tpu.memory_space<vmem>>, vector<1x60x16xbf16>
    %123 = vector.shape_cast %122 : vector<1x60x16xbf16> to vector<60x16xbf16>
    %cst_111 = arith.constant dense<0.000000e+00> : vector<66x16xf32>
    %124 = tpu.matmul %121, %123, %cst_111 {dimension_numbers = #tpu.dot_dimension_numbers<[1], [0], [0], [1], [0, 0, 1, 1], [], []>} : vector<66x60xbf16>, vector<60x16xbf16>, vector<66x16xf32> -> vector<66x16xf32>
    %c1_112 = arith.constant 1 : index
    %c0_113 = arith.constant 0 : index
    %c0_114 = arith.constant 0 : index
    %125 = vector.load %arg7[%c1_112, %c0_113, %c0_114] : memref<3x60x16xbf16, #tpu.memory_space<vmem>>, vector<1x60x16xbf16>
    %126 = vector.shape_cast %125 : vector<1x60x16xbf16> to vector<60x16xbf16>
    %cst_115 = arith.constant dense<0.000000e+00> : vector<66x16xf32>
    %127 = tpu.matmul %121, %126, %cst_115 {dimension_numbers = #tpu.dot_dimension_numbers<[1], [0], [0], [1], [0, 0, 1, 1], [], []>} : vector<66x60xbf16>, vector<60x16xbf16>, vector<66x16xf32> -> vector<66x16xf32>
    %c2_116 = arith.constant 2 : index
    %c0_117 = arith.constant 0 : index
    %c0_118 = arith.constant 0 : index
    %128 = vector.load %arg7[%c2_116, %c0_117, %c0_118] : memref<3x60x16xbf16, #tpu.memory_space<vmem>>, vector<1x60x16xbf16>
    %129 = vector.shape_cast %128 : vector<1x60x16xbf16> to vector<60x16xbf16>
    %cst_119 = arith.constant dense<0.000000e+00> : vector<66x16xf32>
    %130 = tpu.matmul %121, %129, %cst_119 {dimension_numbers = #tpu.dot_dimension_numbers<[1], [0], [0], [1], [0, 0, 1, 1], [], []>} : vector<66x60xbf16>, vector<60x16xbf16>, vector<66x16xf32> -> vector<66x16xf32>
    %131 = vector.extract_strided_slice %124 {offsets = [0, 0], sizes = [64, 16], strides = [1, 1]} : vector<66x16xf32> to vector<64x16xf32>
    %132 = vector.extract_strided_slice %127 {offsets = [1, 0], sizes = [64, 16], strides = [1, 1]} : vector<66x16xf32> to vector<64x16xf32>
    %133 = arith.addf %131, %132 : vector<64x16xf32>
    %134 = vector.extract_strided_slice %130 {offsets = [2, 0], sizes = [64, 16], strides = [1, 1]} : vector<66x16xf32> to vector<64x16xf32>
    %135 = arith.addf %133, %134 : vector<64x16xf32>
    %c0_120 = arith.constant 0 : index
    %c0_121 = arith.constant 0 : index
    %136 = vector.load %arg13[%c0_120, %c0_121] : memref<1x16xf32, #tpu.memory_space<vmem>>, vector<1x16xf32>
    %137 = vector.broadcast %136 : vector<1x16xf32> to vector<64x16xf32>
    %138 = arith.addf %135, %137 : vector<64x16xf32>
    %cst_122 = arith.constant 0.000000e+00 : f32
    %139 = vector.broadcast %cst_122 : f32 to vector<64x16xf32>
    %140 = arith.maximumf %138, %139 : vector<64x16xf32>
    %c0_123 = arith.constant 0 : index
    %c0_124 = arith.constant 0 : index
    %141 = vector.load %arg14[%c0_123, %c0_124] : memref<8x64xbf16, #tpu.memory_space<vmem>>, vector<8x64xbf16>
    %142 = arith.truncf %140 : vector<64x16xf32> to vector<64x16xbf16>
    %cst_125 = arith.constant dense<0.000000e+00> : vector<8x16xf32>
    %143 = tpu.matmul %141, %142, %cst_125 {dimension_numbers = #tpu.dot_dimension_numbers<[1], [0], [0], [1], [0, 0, 1, 1], [], []>} : vector<8x64xbf16>, vector<64x16xbf16>, vector<8x16xf32> -> vector<8x16xf32>
    %144 = arith.truncf %143 : vector<8x16xf32> to vector<8x16xbf16>
    %c0_126 = arith.constant 0 : index
    %c0_127 = arith.constant 0 : index
    %145 = vector.load %arg15[%c0_126, %c0_127] : memref<16x6xbf16, #tpu.memory_space<vmem>>, vector<16x6xbf16>
    %cst_128 = arith.constant dense<0.000000e+00> : vector<8x6xf32>
    %146 = tpu.matmul %144, %145, %cst_128 {dimension_numbers = #tpu.dot_dimension_numbers<[1], [0], [0], [1], [0, 0, 1, 1], [], []>} : vector<8x16xbf16>, vector<16x6xbf16>, vector<8x6xf32> -> vector<8x6xf32>
    %c0_129 = arith.constant 0 : index
    %c0_130 = arith.constant 0 : index
    %147 = vector.load %arg16[%c0_129, %c0_130] : memref<1x6xf32, #tpu.memory_space<vmem>>, vector<1x6xf32>
    %148 = vector.broadcast %147 : vector<1x6xf32> to vector<8x6xf32>
    %149 = arith.addf %146, %148 : vector<8x6xf32>
    %cst_131 = arith.constant 0.000000e+00 : f32
    %150 = vector.broadcast %cst_131 : f32 to vector<8x6xf32>
    %151 = arith.maximumf %149, %150 : vector<8x6xf32>
    %c0_132 = arith.constant 0 : index
    %c0_133 = arith.constant 0 : index
    %c0_134 = arith.constant 0 : index
    %152 = vector.load %arg17[%c0_132, %c0_133, %c0_134] : memref<1x8x6xf32, #tpu.memory_space<vmem>>, vector<1x8x6xf32>
    %153 = vector.shape_cast %152 : vector<1x8x6xf32> to vector<8x6xf32>
    %154 = vector.shape_cast %151 : vector<8x6xf32> to vector<1x8x6xf32>
    tpu.vector_store %arg17[%c0_132, %c0_133, %c0_134], %154 {strides = array<i32>} : memref<1x8x6xf32, #tpu.memory_space<vmem>>, vector<1x8x6xf32>,
    return
  }
  func.func @transform_0(%arg0: i32) -> (i32, i32, i32) {
    %c0_i32 = arith.constant 0 : i32
    %c0_i32_0 = arith.constant 0 : i32
    %c0_i32_1 = arith.constant 0 : i32
    return %arg0, %c0_i32, %c0_i32_0 : i32, i32, i32
  }
  func.func @transform_1(%arg0: i32) -> (i32, i32, i32) {
    %c0_i32 = arith.constant 0 : i32
    %c0_i32_0 = arith.constant 0 : i32
    %c0_i32_1 = arith.constant 0 : i32
    %c0_i32_2 = arith.constant 0 : i32
    return %c0_i32, %c0_i32_0, %c0_i32_1 : i32, i32, i32
  }
  func.func @transform_2(%arg0: i32) -> (i32, i32, i32) {
    %c0_i32 = arith.constant 0 : i32
    %c0_i32_0 = arith.constant 0 : i32
    %c0_i32_1 = arith.constant 0 : i32
    %c0_i32_2 = arith.constant 0 : i32
    return %c0_i32, %c0_i32_0, %c0_i32_1 : i32, i32, i32
  }
  func.func @transform_3(%arg0: i32) -> (i32, i32, i32) {
    %c0_i32 = arith.constant 0 : i32
    %c0_i32_0 = arith.constant 0 : i32
    %c0_i32_1 = arith.constant 0 : i32
    %c0_i32_2 = arith.constant 0 : i32
    return %c0_i32, %c0_i32_0, %c0_i32_1 : i32, i32, i32
  }
  func.func @transform_4(%arg0: i32) -> (i32, i32, i32) {
    %c0_i32 = arith.constant 0 : i32
    %c0_i32_0 = arith.constant 0 : i32
    %c0_i32_1 = arith.constant 0 : i32
    %c0_i32_2 = arith.constant 0 : i32
    return %c0_i32, %c0_i32_0, %c0_i32_1 : i32, i32, i32
  }
  func.func @transform_5(%arg0: i32) -> (i32, i32, i32) {
    %c0_i32 = arith.constant 0 : i32
    %c0_i32_0 = arith.constant 0 : i32
    %c0_i32_1 = arith.constant 0 : i32
    %c0_i32_2 = arith.constant 0 : i32
    return %c0_i32, %c0_i32_0, %c0_i32_1 : i32, i32, i32
  }
  func.func @transform_6(%arg0: i32) -> (i32, i32, i32) {
    %c0_i32 = arith.constant 0 : i32
    %c0_i32_0 = arith.constant 0 : i32
    %c0_i32_1 = arith.constant 0 : i32
    %c0_i32_2 = arith.constant 0 : i32
    return %c0_i32, %c0_i32_0, %c0_i32_1 : i32, i32, i32
  }
  func.func @transform_7(%arg0: i32) -> (i32, i32) {
    %c0_i32 = arith.constant 0 : i32
    %c0_i32_0 = arith.constant 0 : i32
    %c0_i32_1 = arith.constant 0 : i32
    return %c0_i32, %c0_i32_0 : i32, i32
  }
  func.func @transform_8(%arg0: i32) -> (i32, i32) {
    %c0_i32 = arith.constant 0 : i32
    %c0_i32_0 = arith.constant 0 : i32
    %c0_i32_1 = arith.constant 0 : i32
    return %c0_i32, %c0_i32_0 : i32, i32
  }
  func.func @transform_9(%arg0: i32) -> (i32, i32) {
    %c0_i32 = arith.constant 0 : i32
    %c0_i32_0 = arith.constant 0 : i32
    %c0_i32_1 = arith.constant 0 : i32
    return %c0_i32, %c0_i32_0 : i32, i32
  }
  func.func @transform_10(%arg0: i32) -> (i32, i32) {
    %c0_i32 = arith.constant 0 : i32
    %c0_i32_0 = arith.constant 0 : i32
    %c0_i32_1 = arith.constant 0 : i32
    return %c0_i32, %c0_i32_0 : i32, i32
  }
  func.func @transform_11(%arg0: i32) -> (i32, i32) {
    %c0_i32 = arith.constant 0 : i32
    %c0_i32_0 = arith.constant 0 : i32
    %c0_i32_1 = arith.constant 0 : i32
    return %c0_i32, %c0_i32_0 : i32, i32
  }
  func.func @transform_12(%arg0: i32) -> (i32, i32) {
    %c0_i32 = arith.constant 0 : i32
    %c0_i32_0 = arith.constant 0 : i32
    %c0_i32_1 = arith.constant 0 : i32
    return %c0_i32, %c0_i32_0 : i32, i32
  }
  func.func @transform_13(%arg0: i32) -> (i32, i32) {
    %c0_i32 = arith.constant 0 : i32
    %c0_i32_0 = arith.constant 0 : i32
    %c0_i32_1 = arith.constant 0 : i32
    return %c0_i32, %c0_i32_0 : i32, i32
  }
  func.func @transform_14(%arg0: i32) -> (i32, i32) {
    %c0_i32 = arith.constant 0 : i32
    %c0_i32_0 = arith.constant 0 : i32
    %c0_i32_1 = arith.constant 0 : i32
    return %c0_i32, %c0_i32_0 : i32, i32
  }
  func.func @transform_15(%arg0: i32) -> (i32, i32) {
    %c0_i32 = arith.constant 0 : i32
    %c0_i32_0 = arith.constant 0 : i32
    %c0_i32_1 = arith.constant 0 : i32
    return %c0_i32, %c0_i32_0 : i32, i32
  }
  func.func @transform_16(%arg0: i32) -> (i32, i32, i32) {
    %c0_i32 = arith.constant 0 : i32
    %c0_i32_0 = arith.constant 0 : i32
    %c0_i32_1 = arith.constant 0 : i32
    return %arg0, %c0_i32, %c0_i32_0 : i32, i32, i32
  }
}

</mosaic_0001>

<llo_original>
// kernel: forward.1
$region0: #{forward.1}
  #allocation0 [shape = 'u32[]', space=smem, size = 0x4, offset = 0x4, fixed_abs, tag = 'smem constant byte address 0x4 - core index']
  #allocation1 [shape = 'u32[72,128]{1,0:T(1,128)}', space=vmem, size = 0x9000, scoped, tag = 'internal scratch']
  #allocation2 [shape = 'f32[34,236]{1,0:T(8,128)}', space=vmem, size = 0xa000, scoped, tag = 'scratch operand']
  #allocation3 [shape = 'f32[42,384]{1,0:T(8,128)}', space=vmem, size = 0x12000, scoped, tag = 'scratch operand']
  #allocation4 [shape = 'f32[50,592]{1,0:T(8,128)}', space=vmem, size = 0x23000, scoped, tag = 'scratch operand']
  #allocation5 [shape = 'f32[58,208]{1,0:T(8,128)}', space=vmem, size = 0x10000, scoped, tag = 'scratch operand']
  #allocation6 [shape = 'f32[66,60]{1,0:T(8,128)}', space=vmem, size = 0x9000, scoped, tag = 'scratch operand']
  %s0 = inlined_call_operand.vmem [shape: bf16[2,26,384], index: 0, kind: input, shape index: {}]
  %s1 = inlined_call_operand.hbm [shape: bf16[3,384,236], index: 1, kind: input, shape index: {}]
  %s2 = inlined_call_operand.hbm [shape: bf16[3,236,384], index: 2, kind: input, shape index: {}]
  %s3 = inlined_call_operand.hbm [shape: bf16[3,384,592], index: 3, kind: input, shape index: {}]
  %s4 = inlined_call_operand.hbm [shape: bf16[3,592,208], index: 4, kind: input, shape index: {}]
  %s5 = inlined_call_operand.hbm [shape: bf16[3,208,60], index: 5, kind: input, shape index: {}]
  %s6 = inlined_call_operand.hbm [shape: bf16[3,60,16], index: 6, kind: input, shape index: {}]
  %s7 = inlined_call_operand.hbm [shape: f32[1,236], index: 7, kind: input, shape index: {}]
  %s8 = inlined_call_operand.hbm [shape: f32[1,384], index: 8, kind: input, shape index: {}]
  %s9 = inlined_call_operand.hbm [shape: f32[1,592], index: 9, kind: input, shape index: {}]
  %s10 = inlined_call_operand.hbm [shape: f32[1,208], index: 10, kind: input, shape index: {}]
  %s11 = inlined_call_operand.hbm [shape: f32[1,60], index: 11, kind: input, shape index: {}]
  %s12 = inlined_call_operand.hbm [shape: f32[1,16], index: 12, kind: input, shape index: {}]
  %s13 = inlined_call_operand.hbm [shape: bf16[8,64], index: 13, kind: input, shape index: {}]
  %s14 = inlined_call_operand.hbm [shape: bf16[16,6], index: 14, kind: input, shape index: {}]
  %s15 = inlined_call_operand.hbm [shape: f32[1,6], index: 15, kind: input, shape index: {}]
  %s16 = inlined_call_operand.vmem [shape: f32[2,8,6], index: 16, kind: output, shape index: {}]
  %s17 = sld [smem:[#allocation0]]
  $region157: #{forward.1} parent=0
    _
  %s19 = ssub.s32 1, %s17
  %s20 = scalar_select 0, %s19, %s17
  $region1: #{forward.1} parent=0
    #allocation7 [shape = 'u8[589824]{0}', space=vmem, size = 0x90000, scoped, tag = 'input window, operand 1, single buffered']
    #allocation8 [shape = 's32[2]{0}', space=sflag, size = 0x8, scoped, tag = 'scoped memory for forward.1']
    #allocation9 [shape = 'u8[552960]{0}', space=vmem, size = 0x87000, scoped, tag = 'input window, operand 2, single buffered']
    #allocation10 [shape = 's32[1]{0}', space=sflag, size = 0x4, scoped, tag = 'scoped memory for forward.1']
    #allocation11 [shape = 'u8[1474560]{0}', space=vmem, size = 0x168000, scoped, tag = 'input window, operand 3, single buffered']
    #allocation12 [shape = 'u8[909312]{0}', space=vmem, size = 0xde000, scoped, tag = 'input window, operand 4, single buffered']
    #allocation13 [shape = 's32[1]{0}', space=sflag, size = 0x4, scoped, tag = 'scoped memory for forward.1']
    #allocation14 [shape = 'u8[159744]{0}', space=vmem, size = 0x27000, scoped, tag = 'input window, operand 5, single buffered']
    #allocation15 [shape = 'u8[49152]{0}', space=vmem, size = 0xc000, scoped, tag = 'input window, operand 6, single buffered']
    #allocation16 [shape = 's32[1]{0}', space=sflag, size = 0x4, scoped, tag = 'scoped memory for forward.1']
    #allocation17 [shape = 'u8[1024]{0}', space=vmem, size = 0x400, scoped, tag = 'input window, operand 7, single buffered']
    #allocation18 [shape = 'u8[1536]{0}', space=vmem, size = 0x800, scoped, tag = 'input window, operand 8, single buffered']
    #allocation19 [shape = 's32[1]{0}', space=sflag, size = 0x4, scoped, tag = 'scoped memory for forward.1']
    #allocation20 [shape = 'u8[2560]{0}', space=vmem, size = 0xc00, scoped, tag = 'input window, operand 9, single buffered']
    #allocation21 [shape = 'u8[1024]{0}', space=vmem, size = 0x400, scoped, tag = 'input window, operand 10, single buffered']
    #allocation22 [shape = 's32[1]{0}', space=sflag, size = 0x4, scoped, tag = 'scoped memory for forward.1']
    #allocation23 [shape = 'u8[512]{0}', space=vmem, size = 0x400, scoped, tag = 'input window, operand 11, single buffered']
    #allocation24 [shape = 'u8[512]{0}', space=vmem, size = 0x400, scoped, tag = 'input window, operand 12, single buffered']
    #allocation25 [shape = 's32[1]{0}', space=sflag, size = 0x4, scoped, tag = 'scoped memory for forward.1']
    #allocation26 [shape = 'u8[2048]{0}', space=vmem, size = 0x800, scoped, tag = 'input window, operand 13, single buffered']
    #allocation27 [shape = 'u8[4096]{0}', space=vmem, size = 0x1000, scoped, tag = 'input window, operand 14, single buffered']
    #allocation28 [shape = 's32[1]{0}', space=sflag, size = 0x4, scoped, tag = 'scoped memory for forward.1']
    #allocation29 [shape = 'u8[512]{0}', space=vmem, size = 0x400, scoped, tag = 'input window, operand 15, single buffered']
    %21 = vsyncpa [#allocation8], 0
    %22 = vsyncpa [#allocation10], 0
    %23 = vsyncpa [#allocation13], 0
    %24 = vsyncpa [#allocation16], 0
    %25 = vsyncpa [#allocation19], 0
    %26 = vsyncpa [#allocation22], 0
    %27 = vsyncpa [#allocation25], 0
    %28 = vsyncpa [#allocation28], 0
    loop: start=0, step=1, limit=4
    $region2: #{forward.1} parent=1 // loop_pre_header
      _
    $region3: #{forward.1} parent=1 // loop_header
      %s30 = sphi 0, %s34
      %p31 = scmp.ge.s32.totalorder %s30, 4
      %s40 = sphi 0, %s42
      %s43 = sphi 0, %s40
      %s44 = sphi 0, %s43
      %s60 = sphi 0, %s44
      %s64 = sphi 0, %s64
      %s66 = sphi 0, %s64
      %s67 = sphi 0, %s66
      %s81 = sphi 0, %s67
      %s85 = sphi 0, %s85
      %s87 = sphi 0, %s85
      %s88 = sphi 0, %s87
      %s102 = sphi 0, %s88
      %s106 = sphi 0, %s106
      %s108 = sphi 0, %s106
      %s109 = sphi 0, %s108
      %s123 = sphi 0, %s109
      %s127 = sphi 0, %s127
      %s129 = sphi 0, %s127
      %s130 = sphi 0, %s129
      %s144 = sphi 0, %s130
      %s148 = sphi 0, %s148
      %s150 = sphi 0, %s148
      %s151 = sphi 0, %s150
      %s165 = sphi 0, %s151
      %s169 = sphi 0, %s169
      %s171 = sphi 0, %s169
      %s172 = sphi 0, %s171
      %s186 = sphi 0, %s172
      %s190 = sphi 0, %s190
      %s192 = sphi 0, %s190
      %s193 = sphi 0, %s192
      %s207 = sphi 0, %s193
      %s211 = sphi 0, %s211
      %s213 = sphi 0, %s211
      %s214 = sphi 0, %s213
      %s228 = sphi 0, %s214
      %s232 = sphi 0, %s232
      %s234 = sphi 0, %s232
      %s235 = sphi 0, %s234
      %s249 = sphi 0, %s235
      %s253 = sphi 0, %s253
      %s255 = sphi 0, %s253
      %s256 = sphi 0, %s255
      %s270 = sphi 0, %s256
      %s274 = sphi 0, %s274
      %s276 = sphi 0, %s274
      %s277 = sphi 0, %s276
      %s291 = sphi 0, %s277
      %s295 = sphi 0, %s295
      %s297 = sphi 0, %s295
      %s298 = sphi 0, %s297
      %s312 = sphi 0, %s298
      %s316 = sphi 0, %s316
      %s318 = sphi 0, %s316
      %s319 = sphi 0, %s318
      %s333 = sphi 0, %s319
      %s337 = sphi 0, %s337
      %s339 = sphi 0, %s337
      %s340 = sphi 0, %s339
      %s354 = sphi 0, %s340
      %s358 = sphi 0, %s358
      %s360 = sphi 0, %s358
      %s361 = sphi 0, %s360
      %s375 = sphi 0, %s361
      %s381 = sphi 0, %s383
      %s384 = sphi 0, %s381
      %s385 = sphi 0, %s384
      %s401 = sphi 0, %s385
    $region4: #{forward.1} parent=1 // loop_header_branch
      %33 = sbr.rel (%p31) target = $region8
    $region5: #{forward.1} parent=1 // loop_body
      %s35 = ssub.s32 %s30, 1
      %s36 = ssub.s32 %s30, 2
      %s37 = sadd.s32 %s30, 1
      %s38 = ssub.s32 %s30, %s37
      %p39 = scmp.eq.s32.totalorder %s38, 0
      %s41 = sadd.s32 %s40, 1
      %s42 = scalar_select %p39, %s40, %s41
      %p45 = pneg %p39
      %p46 = scmp.eq.s32.totalorder %s30, 1
      %p47 = por %p45, %p46
      %p48 = scmp.ne.s32.totalorder %s40, %s43
      %p49 = scmp.eq.s32.totalorder %s30, 0
      %p50 = por %p48, %p49
      %p51 = scmp.ne.s32.totalorder %s40, %s43
      %p52 = scmp.eq.s32.totalorder %s35, 1
      %p53 = por %p51, %p52
      %p54 = scmp.ne.s32.totalorder %s43, %s44
      %p55 = scmp.eq.s32.totalorder %s35, 0
      %p56 = por %p54, %p55
      %p57 = scmp.ne.s32.totalorder %s43, %s44
      %p58 = scmp.eq.s32.totalorder %s36, 1
      %p59 = por %p57, %p58
      %p61 = scmp.ne.s32.totalorder %s44, %s60
      %p62 = scmp.eq.s32.totalorder %s36, 0
      %p63 = por %p61, %p62
      %s65 = sadd.s32 %s64, 1
      %p68 = scmp.eq.s32.totalorder %s30, 1
      %p69 = scmp.ne.s32.totalorder %s64, %s66
      %p70 = scmp.eq.s32.totalorder %s30, 0
      %p71 = por %p69, %p70
      %p72 = scmp.ne.s32.totalorder %s64, %s66
      %p73 = scmp.eq.s32.totalorder %s35, 1
      %p74 = por %p72, %p73
      %p75 = scmp.ne.s32.totalorder %s66, %s67
      %p76 = scmp.eq.s32.totalorder %s35, 0
      %p77 = por %p75, %p76
      %p78 = scmp.ne.s32.totalorder %s66, %s67
      %p79 = scmp.eq.s32.totalorder %s36, 1
      %p80 = por %p78, %p79
      %p82 = scmp.ne.s32.totalorder %s67, %s81
      %p83 = scmp.eq.s32.totalorder %s36, 0
      %p84 = por %p82, %p83
      %s86 = sadd.s32 %s85, 1
      %p89 = scmp.eq.s32.totalorder %s30, 1
      %p90 = scmp.ne.s32.totalorder %s85, %s87
      %p91 = scmp.eq.s32.totalorder %s30, 0
      %p92 = por %p90, %p91
      %p93 = scmp.ne.s32.totalorder %s85, %s87
      %p94 = scmp.eq.s32.totalorder %s35, 1
      %p95 = por %p93, %p94
      %p96 = scmp.ne.s32.totalorder %s87, %s88
      %p97 = scmp.eq.s32.totalorder %s35, 0
      %p98 = por %p96, %p97
      %p99 = scmp.ne.s32.totalorder %s87, %s88
      %p100 = scmp.eq.s32.totalorder %s36, 1
      %p101 = por %p99, %p100
      %p103 = scmp.ne.s32.totalorder %s88, %s102
      %p104 = scmp.eq.s32.totalorder %s36, 0
      %p105 = por %p103, %p104
      %s107 = sadd.s32 %s106, 1
      %p110 = scmp.eq.s32.totalorder %s30, 1
      %p111 = scmp.ne.s32.totalorder %s106, %s108
      %p112 = scmp.eq.s32.totalorder %s30, 0
      %p113 = por %p111, %p112
      %p114 = scmp.ne.s32.totalorder %s106, %s108
      %p115 = scmp.eq.s32.totalorder %s35, 1
      %p116 = por %p114, %p115
      %p117 = scmp.ne.s32.totalorder %s108, %s109
      %p118 = scmp.eq.s32.totalorder %s35, 0
      %p119 = por %p117, %p118
      %p120 = scmp.ne.s32.totalorder %s108, %s109
      %p121 = scmp.eq.s32.totalorder %s36, 1
      %p122 = por %p120, %p121
      %p124 = scmp.ne.s32.totalorder %s109, %s123
      %p125 = scmp.eq.s32.totalorder %s36, 0
      %p126 = por %p124, %p125
      %s128 = sadd.s32 %s127, 1
      %p131 = scmp.eq.s32.totalorder %s30, 1
      %p132 = scmp.ne.s32.totalorder %s127, %s129
      %p133 = scmp.eq.s32.totalorder %s30, 0
      %p134 = por %p132, %p133
      %p135 = scmp.ne.s32.totalorder %s127, %s129
      %p136 = scmp.eq.s32.totalorder %s35, 1
      %p137 = por %p135, %p136
      %p138 = scmp.ne.s32.totalorder %s129, %s130
      %p139 = scmp.eq.s32.totalorder %s35, 0
      %p140 = por %p138, %p139
      %p141 = scmp.ne.s32.totalorder %s129, %s130
      %p142 = scmp.eq.s32.totalorder %s36, 1
      %p143 = por %p141, %p142
      %p145 = scmp.ne.s32.totalorder %s130, %s144
      %p146 = scmp.eq.s32.totalorder %s36, 0
      %p147 = por %p145, %p146
      %s149 = sadd.s32 %s148, 1
      %p152 = scmp.eq.s32.totalorder %s30, 1
      %p153 = scmp.ne.s32.totalorder %s148, %s150
      %p154 = scmp.eq.s32.totalorder %s30, 0
      %p155 = por %p153, %p154
      %p156 = scmp.ne.s32.totalorder %s148, %s150
      %p157 = scmp.eq.s32.totalorder %s35, 1
      %p158 = por %p156, %p157
      %p159 = scmp.ne.s32.totalorder %s150, %s151
      %p160 = scmp.eq.s32.totalorder %s35, 0
      %p161 = por %p159, %p160
      %p162 = scmp.ne.s32.totalorder %s150, %s151
      %p163 = scmp.eq.s32.totalorder %s36, 1
      %p164 = por %p162, %p163
      %p166 = scmp.ne.s32.totalorder %s151, %s165
      %p167 = scmp.eq.s32.totalorder %s36, 0
      %p168 = por %p166, %p167
      %s170 = sadd.s32 %s169, 1
      %p173 = scmp.eq.s32.totalorder %s30, 1
      %p174 = scmp.ne.s32.totalorder %s169, %s171
      %p175 = scmp.eq.s32.totalorder %s30, 0
      %p176 = por %p174, %p175
      %p177 = scmp.ne.s32.totalorder %s169, %s171
      %p178 = scmp.eq.s32.totalorder %s35, 1
      %p179 = por %p177, %p178
      %p180 = scmp.ne.s32.totalorder %s171, %s172
      %p181 = scmp.eq.s32.totalorder %s35, 0
      %p182 = por %p180, %p181
      %p183 = scmp.ne.s32.totalorder %s171, %s172
      %p184 = scmp.eq.s32.totalorder %s36, 1
      %p185 = por %p183, %p184
      %p187 = scmp.ne.s32.totalorder %s172, %s186
      %p188 = scmp.eq.s32.totalorder %s36, 0
      %p189 = por %p187, %p188
      %s191 = sadd.s32 %s190, 1
      %p194 = scmp.eq.s32.totalorder %s30, 1
      %p195 = scmp.ne.s32.totalorder %s190, %s192
      %p196 = scmp.eq.s32.totalorder %s30, 0
      %p197 = por %p195, %p196
      %p198 = scmp.ne.s32.totalorder %s190, %s192
      %p199 = scmp.eq.s32.totalorder %s35, 1
      %p200 = por %p198, %p199
      %p201 = scmp.ne.s32.totalorder %s192, %s193
      %p202 = scmp.eq.s32.totalorder %s35, 0
      %p203 = por %p201, %p202
      %p204 = scmp.ne.s32.totalorder %s192, %s193
      %p205 = scmp.eq.s32.totalorder %s36, 1
      %p206 = por %p204, %p205
      %p208 = scmp.ne.s32.totalorder %s193, %s207
      %p209 = scmp.eq.s32.totalorder %s36, 0
      %p210 = por %p208, %p209
      %s212 = sadd.s32 %s211, 1
      %p215 = scmp.eq.s32.totalorder %s30, 1
      %p216 = scmp.ne.s32.totalorder %s211, %s213
      %p217 = scmp.eq.s32.totalorder %s30, 0
      %p218 = por %p216, %p217
      %p219 = scmp.ne.s32.totalorder %s211, %s213
      %p220 = scmp.eq.s32.totalorder %s35, 1
      %p221 = por %p219, %p220
      %p222 = scmp.ne.s32.totalorder %s213, %s214
      %p223 = scmp.eq.s32.totalorder %s35, 0
      %p224 = por %p222, %p223
      %p225 = scmp.ne.s32.totalorder %s213, %s214
      %p226 = scmp.eq.s32.totalorder %s36, 1
      %p227 = por %p225, %p226
      %p229 = scmp.ne.s32.totalorder %s214, %s228
      %p230 = scmp.eq.s32.totalorder %s36, 0
      %p231 = por %p229, %p230
      %s233 = sadd.s32 %s232, 1
      %p236 = scmp.eq.s32.totalorder %s30, 1
      %p237 = scmp.ne.s32.totalorder %s232, %s234
      %p238 = scmp.eq.s32.totalorder %s30, 0
      %p239 = por %p237, %p238
      %p240 = scmp.ne.s32.totalorder %s232, %s234
      %p241 = scmp.eq.s32.totalorder %s35, 1
      %p242 = por %p240, %p241
      %p243 = scmp.ne.s32.totalorder %s234, %s235
      %p244 = scmp.eq.s32.totalorder %s35, 0
      %p245 = por %p243, %p244
      %p246 = scmp.ne.s32.totalorder %s234, %s235
      %p247 = scmp.eq.s32.totalorder %s36, 1
      %p248 = por %p246, %p247
      %p250 = scmp.ne.s32.totalorder %s235, %s249
      %p251 = scmp.eq.s32.totalorder %s36, 0
      %p252 = por %p250, %p251
      %s254 = sadd.s32 %s253, 1
      %p257 = scmp.eq.s32.totalorder %s30, 1
      %p258 = scmp.ne.s32.totalorder %s253, %s255
      %p259 = scmp.eq.s32.totalorder %s30, 0
      %p260 = por %p258, %p259
      %p261 = scmp.ne.s32.totalorder %s253, %s255
      %p262 = scmp.eq.s32.totalorder %s35, 1
      %p263 = por %p261, %p262
      %p264 = scmp.ne.s32.totalorder %s255, %s256
      %p265 = scmp.eq.s32.totalorder %s35, 0
      %p266 = por %p264, %p265
      %p267 = scmp.ne.s32.totalorder %s255, %s256
      %p268 = scmp.eq.s32.totalorder %s36, 1
      %p269 = por %p267, %p268
      %p271 = scmp.ne.s32.totalorder %s256, %s270
      %p272 = scmp.eq.s32.totalorder %s36, 0
      %p273 = por %p271, %p272
      %s275 = sadd.s32 %s274, 1
      %p278 = scmp.eq.s32.totalorder %s30, 1
      %p279 = scmp.ne.s32.totalorder %s274, %s276
      %p280 = scmp.eq.s32.totalorder %s30, 0
      %p281 = por %p279, %p280
      %p282 = scmp.ne.s32.totalorder %s274, %s276
      %p283 = scmp.eq.s32.totalorder %s35, 1
      %p284 = por %p282, %p283
      %p285 = scmp.ne.s32.totalorder %s276, %s277
      %p286 = scmp.eq.s32.totalorder %s35, 0
      %p287 = por %p285, %p286
      %p288 = scmp.ne.s32.totalorder %s276, %s277
      %p289 = scmp.eq.s32.totalorder %s36, 1
      %p290 = por %p288, %p289
      %p292 = scmp.ne.s32.totalorder %s277, %s291
      %p293 = scmp.eq.s32.totalorder %s36, 0
      %p294 = por %p292, %p293
      %s296 = sadd.s32 %s295, 1
      %p299 = scmp.eq.s32.totalorder %s30, 1
      %p300 = scmp.ne.s32.totalorder %s295, %s297
      %p301 = scmp.eq.s32.totalorder %s30, 0
      %p302 = por %p300, %p301
      %p303 = scmp.ne.s32.totalorder %s295, %s297
      %p304 = scmp.eq.s32.totalorder %s35, 1
      %p305 = por %p303, %p304
      %p306 = scmp.ne.s32.totalorder %s297, %s298
      %p307 = scmp.eq.s32.totalorder %s35, 0
      %p308 = por %p306, %p307
      %p309 = scmp.ne.s32.totalorder %s297, %s298
      %p310 = scmp.eq.s32.totalorder %s36, 1
      %p311 = por %p309, %p310
      %p313 = scmp.ne.s32.totalorder %s298, %s312
      %p314 = scmp.eq.s32.totalorder %s36, 0
      %p315 = por %p313, %p314
      %s317 = sadd.s32 %s316, 1
      %p320 = scmp.eq.s32.totalorder %s30, 1
      %p321 = scmp.ne.s32.totalorder %s316, %s318
      %p322 = scmp.eq.s32.totalorder %s30, 0
      %p323 = por %p321, %p322
      %p324 = scmp.ne.s32.totalorder %s316, %s318
      %p325 = scmp.eq.s32.totalorder %s35, 1
      %p326 = por %p324, %p325
      %p327 = scmp.ne.s32.totalorder %s318, %s319
      %p328 = scmp.eq.s32.totalorder %s35, 0
      %p329 = por %p327, %p328
      %p330 = scmp.ne.s32.totalorder %s318, %s319
      %p331 = scmp.eq.s32.totalorder %s36, 1
      %p332 = por %p330, %p331
      %p334 = scmp.ne.s32.totalorder %s319, %s333
      %p335 = scmp.eq.s32.totalorder %s36, 0
      %p336 = por %p334, %p335
      %s338 = sadd.s32 %s337, 1
      %p341 = scmp.eq.s32.totalorder %s30, 1
      %p342 = scmp.ne.s32.totalorder %s337, %s339
      %p343 = scmp.eq.s32.totalorder %s30, 0
      %p344 = por %p342, %p343
      %p345 = scmp.ne.s32.totalorder %s337, %s339
      %p346 = scmp.eq.s32.totalorder %s35, 1
      %p347 = por %p345, %p346
      %p348 = scmp.ne.s32.totalorder %s339, %s340
      %p349 = scmp.eq.s32.totalorder %s35, 0
      %p350 = por %p348, %p349
      %p351 = scmp.ne.s32.totalorder %s339, %s340
      %p352 = scmp.eq.s32.totalorder %s36, 1
      %p353 = por %p351, %p352
      %p355 = scmp.ne.s32.totalorder %s340, %s354
      %p356 = scmp.eq.s32.totalorder %s36, 0
      %p357 = por %p355, %p356
      %s359 = sadd.s32 %s358, 1
      %p362 = scmp.eq.s32.totalorder %s30, 1
      %p363 = scmp.ne.s32.totalorder %s358, %s360
      %p364 = scmp.eq.s32.totalorder %s30, 0
      %p365 = por %p363, %p364
      %p366 = scmp.ne.s32.totalorder %s358, %s360
      %p367 = scmp.eq.s32.totalorder %s35, 1
      %p368 = por %p366, %p367
      %p369 = scmp.ne.s32.totalorder %s360, %s361
      %p370 = scmp.eq.s32.totalorder %s35, 0
      %p371 = por %p369, %p370
      %p372 = scmp.ne.s32.totalorder %s360, %s361
      %p373 = scmp.eq.s32.totalorder %s36, 1
      %p374 = por %p372, %p373
      %p376 = scmp.ne.s32.totalorder %s361, %s375
      %p377 = scmp.eq.s32.totalorder %s36, 0
      %p378 = por %p376, %p377
      %s379 = ssub.s32 %s30, %s37
      %p380 = scmp.eq.s32.totalorder %s379, 0
      %s382 = sadd.s32 %s381, 1
      %s383 = scalar_select %p380, %s381, %s382
      %p386 = pneg %p380
      %p387 = scmp.eq.s32.totalorder %s30, 1
      %p388 = por %p386, %p387
      %p389 = scmp.ne.s32.totalorder %s381, %s384
      %p390 = scmp.eq.s32.totalorder %s30, 0
      %p391 = por %p389, %p390
      %p392 = scmp.ne.s32.totalorder %s381, %s384
      %p393 = scmp.eq.s32.totalorder %s35, 1
      %p394 = por %p392, %p393
      %p395 = scmp.ne.s32.totalorder %s384, %s385
      %p396 = scmp.eq.s32.totalorder %s35, 0
      %p397 = por %p395, %p396
      %p398 = scmp.ne.s32.totalorder %s384, %s385
      %p399 = scmp.eq.s32.totalorder %s36, 1
      %p400 = por %p398, %p399
      %p402 = scmp.ne.s32.totalorder %s385, %s401
      %p403 = scmp.eq.s32.totalorder %s36, 0
      %p404 = por %p402, %p403
      %p405 = scmp.le.s32.totalorder 1, %s30
      %p406 = scmp.lt.s32.totalorder %s30, 3
      %p407 = pnand %p405, %p406
      %p408 = pneg %p407
      // Predicated region
      $region9: #{forward.1} parent=5 // pred_check
        _
      $region10: #{forward.1} parent=5 // pred_check_branch
        %410 = sbr.rel (%p407) target = $region12
      $region11: #{forward.1} parent=5 // pred_region
        %s411 = ssub.s32 %s30, 1
        // Predicated region
        $region13: #{forward.1} parent=11 // pred_check
          %p412 = pneg %p77
        $region14: #{forward.1} parent=11 // pred_check_branch
          %414 = sbr.rel (%p412) target = $region16
        $region15: #{forward.1} parent=11 // pred_region
          %416 = vsyncadd [#allocation8], 0
          %s417 = sshll.u32 %s1, 4
          %s418 = int_to_ptr.hbm [resolvable:$true] %s417
          %s419 = sshll.u32 [#allocation7], 4
          %s420 = int_to_ptr.vmem [resolvable:$true] %s419
          %425 = dma.hbm_to_vmem [thread:$0]  %s418, 18432, %s420, [#allocation8], 128, 128, 8
        $region16: #{forward.1} parent=11 // pred_fallthru
          _
        // Predicated region
        $region17: #{forward.1} parent=11 // pred_check
          %p426 = pneg %p98
        $region18: #{forward.1} parent=11 // pred_check_branch
          %428 = sbr.rel (%p426) target = $region20
        $region19: #{forward.1} parent=11 // pred_region
          %430 = vsyncadd [#allocation10], 0
          %s431 = sshll.u32 %s2, 4
          %s432 = int_to_ptr.hbm [resolvable:$true] %s431
          %s433 = sshll.u32 [#allocation9], 4
          %s434 = int_to_ptr.vmem [resolvable:$true] %s433
          %439 = dma.hbm_to_vmem [thread:$0]  %s432, 17280, %s434, [#allocation10], 192, 192, 12
        $region20: #{forward.1} parent=11 // pred_fallthru
          _
        // Predicated region
        $region21: #{forward.1} parent=11 // pred_check
          %p440 = pneg %p119
        $region22: #{forward.1} parent=11 // pred_check_branch
          %442 = sbr.rel (%p440) target = $region24
        $region23: #{forward.1} parent=11 // pred_region
          %444 = vsyncadd [#allocation10], 0
          %s445 = sshll.u32 %s3, 4
          %s446 = int_to_ptr.hbm [resolvable:$true] %s445
          %s447 = sshll.u32 [#allocation11], 4
          %s448 = int_to_ptr.vmem [resolvable:$true] %s447
          %453 = dma.hbm_to_vmem [thread:$0]  %s446, 46080, %s448, [#allocation10], 320, 320, 20
        $region24: #{forward.1} parent=11 // pred_fallthru
          _
        // Predicated region
        $region25: #{forward.1} parent=11 // pred_check
          %p454 = pneg %p140
        $region26: #{forward.1} parent=11 // pred_check_branch
          %456 = sbr.rel (%p454) target = $region28
        $region27: #{forward.1} parent=11 // pred_region
          %458 = vsyncadd [#allocation13], 0
          %s459 = sshll.u32 %s4, 4
          %s460 = int_to_ptr.hbm [resolvable:$true] %s459
          %s461 = sshll.u32 [#allocation12], 4
          %s462 = int_to_ptr.vmem [resolvable:$true] %s461
          %467 = dma.hbm_to_vmem [thread:$0]  %s460, 28416, %s462, [#allocation13], 128, 128, 8
        $region28: #{forward.1} parent=11 // pred_fallthru
          _
        // Predicated region
        $region29: #{forward.1} parent=11 // pred_check
          %p468 = pneg %p161
        $region30: #{forward.1} parent=11 // pred_check_branch
          %470 = sbr.rel (%p468) target = $region32
        $region31: #{forward.1} parent=11 // pred_region
          %472 = vsyncadd [#allocation13], 0
          %s473 = sshll.u32 %s5, 4
          %s474 = int_to_ptr.hbm [resolvable:$true] %s473
          %s475 = sshll.u32 [#allocation14], 4
          %s476 = int_to_ptr.vmem [resolvable:$true] %s475
          %481 = dma.hbm_to_vmem [thread:$0]  %s474, 4992, %s476, [#allocation13], 64, 64, 4
        $region32: #{forward.1} parent=11 // pred_fallthru
          _
        // Predicated region
        $region33: #{forward.1} parent=11 // pred_check
          %p482 = pneg %p182
        $region34: #{forward.1} parent=11 // pred_check_branch
          %484 = sbr.rel (%p482) target = $region36
        $region35: #{forward.1} parent=11 // pred_region
          %486 = vsyncadd [#allocation16], 0
          %s487 = sshll.u32 %s6, 4
          %s488 = int_to_ptr.hbm [resolvable:$true] %s487
          %s489 = sshll.u32 [#allocation15], 4
          %s490 = int_to_ptr.vmem [resolvable:$true] %s489
          %495 = dma.hbm_to_vmem [thread:$0]  %s488, 1536, %s490, [#allocation16], 64, 64, 4
        $region36: #{forward.1} parent=11 // pred_fallthru
          _
        // Predicated region
        $region37: #{forward.1} parent=11 // pred_check
          %p496 = pneg %p203
        $region38: #{forward.1} parent=11 // pred_check_branch
          %498 = sbr.rel (%p496) target = $region40
        $region39: #{forward.1} parent=11 // pred_region
          %500 = vsyncadd [#allocation16], 0
          %s502 = sshll.u32 %s7, 4
          %s503 = int_to_ptr.hbm [resolvable:$true] %s502
          %s504 = sshll.u32 [#allocation17], 4
          %s505 = int_to_ptr.vmem [resolvable:$true] %s504
          %507 = dma.hbm_to_vmem [thread:$0]  %s503, 32, %s505, [#allocation16]
        $region40: #{forward.1} parent=11 // pred_fallthru
          _
        // Predicated region
        $region41: #{forward.1} parent=11 // pred_check
          %p508 = pneg %p224
        $region42: #{forward.1} parent=11 // pred_check_branch
          %510 = sbr.rel (%p508) target = $region44
        $region43: #{forward.1} parent=11 // pred_region
          %512 = vsyncadd [#allocation19], 0
          %s514 = sshll.u32 %s8, 4
          %s515 = int_to_ptr.hbm [resolvable:$true] %s514
          %s516 = sshll.u32 [#allocation18], 4
          %s517 = int_to_ptr.vmem [resolvable:$true] %s516
          %519 = dma.hbm_to_vmem [thread:$0]  %s515, 48, %s517, [#allocation19]
        $region44: #{forward.1} parent=11 // pred_fallthru
          _
        // Predicated region
        $region45: #{forward.1} parent=11 // pred_check
          %p520 = pneg %p245
        $region46: #{forward.1} parent=11 // pred_check_branch
          %522 = sbr.rel (%p520) target = $region48
        $region47: #{forward.1} parent=11 // pred_region
          %524 = vsyncadd [#allocation19], 0
          %s526 = sshll.u32 %s9, 4
          %s527 = int_to_ptr.hbm [resolvable:$true] %s526
          %s528 = sshll.u32 [#allocation20], 4
          %s529 = int_to_ptr.vmem [resolvable:$true] %s528
          %531 = dma.hbm_to_vmem [thread:$0]  %s527, 80, %s529, [#allocation19]
        $region48: #{forward.1} parent=11 // pred_fallthru
          _
        // Predicated region
        $region49: #{forward.1} parent=11 // pred_check
          %p532 = pneg %p266
        $region50: #{forward.1} parent=11 // pred_check_branch
          %534 = sbr.rel (%p532) target = $region52
        $region51: #{forward.1} parent=11 // pred_region
          %536 = vsyncadd [#allocation22], 0
          %s538 = sshll.u32 %s10, 4
          %s539 = int_to_ptr.hbm [resolvable:$true] %s538
          %s540 = sshll.u32 [#allocation21], 4
          %s541 = int_to_ptr.vmem [resolvable:$true] %s540
          %543 = dma.hbm_to_vmem [thread:$0]  %s539, 32, %s541, [#allocation22]
        $region52: #{forward.1} parent=11 // pred_fallthru
          _
        // Predicated region
        $region53: #{forward.1} parent=11 // pred_check
          %p544 = pneg %p287
        $region54: #{forward.1} parent=11 // pred_check_branch
          %546 = sbr.rel (%p544) target = $region56
        $region55: #{forward.1} parent=11 // pred_region
          %548 = vsyncadd [#allocation22], 0
          %s550 = sshll.u32 %s11, 4
          %s551 = int_to_ptr.hbm [resolvable:$true] %s550
          %s552 = sshll.u32 [#allocation23], 4
          %s553 = int_to_ptr.vmem [resolvable:$true] %s552
          %555 = dma.hbm_to_vmem [thread:$0]  %s551, 16, %s553, [#allocation22]
        $region56: #{forward.1} parent=11 // pred_fallthru
          _
        // Predicated region
        $region57: #{forward.1} parent=11 // pred_check
          %p556 = pneg %p308
        $region58: #{forward.1} parent=11 // pred_check_branch
          %558 = sbr.rel (%p556) target = $region60
        $region59: #{forward.1} parent=11 // pred_region
          %560 = vsyncadd [#allocation25], 0
          %s562 = sshll.u32 %s12, 4
          %s563 = int_to_ptr.hbm [resolvable:$true] %s562
          %s564 = sshll.u32 [#allocation24], 4
          %s565 = int_to_ptr.vmem [resolvable:$true] %s564
          %567 = dma.hbm_to_vmem [thread:$0]  %s563, 16, %s565, [#allocation25]
        $region60: #{forward.1} parent=11 // pred_fallthru
          _
        // Predicated region
        $region61: #{forward.1} parent=11 // pred_check
          %p568 = pneg %p329
        $region62: #{forward.1} parent=11 // pred_check_branch
          %570 = sbr.rel (%p568) target = $region64
        $region63: #{forward.1} parent=11 // pred_region
          %572 = vsyncadd [#allocation25], 0
          %s574 = sshll.u32 %s13, 4
          %s575 = int_to_ptr.hbm [resolvable:$true] %s574
          %s576 = sshll.u32 [#allocation26], 4
          %s577 = int_to_ptr.vmem [resolvable:$true] %s576
          %579 = dma.hbm_to_vmem [thread:$0]  %s575, 64, %s577, [#allocation25]
        $region64: #{forward.1} parent=11 // pred_fallthru
          _
        // Predicated region
        $region65: #{forward.1} parent=11 // pred_check
          %p580 = pneg %p350
        $region66: #{forward.1} parent=11 // pred_check_branch
          %582 = sbr.rel (%p580) target = $region68
        $region67: #{forward.1} parent=11 // pred_region
          %584 = vsyncadd [#allocation28], 0
          %s585 = sshll.u32 %s14, 4
          %s586 = int_to_ptr.hbm [resolvable:$true] %s585
          %s587 = sshll.u32 [#allocation27], 4
          %s588 = int_to_ptr.vmem [resolvable:$true] %s587
          %593 = dma.hbm_to_vmem [thread:$0]  %s586, 128, %s588, [#allocation28], 64, 64, 4
        $region68: #{forward.1} parent=11 // pred_fallthru
          _
        // Predicated region
        $region69: #{forward.1} parent=11 // pred_check
          %p594 = pneg %p371
        $region70: #{forward.1} parent=11 // pred_check_branch
          %596 = sbr.rel (%p594) target = $region72
        $region71: #{forward.1} parent=11 // pred_region
          %598 = vsyncadd [#allocation28], 0
          %s600 = sshll.u32 %s15, 4
          %s601 = int_to_ptr.hbm [resolvable:$true] %s600
          %s602 = sshll.u32 [#allocation29], 4
          %s603 = int_to_ptr.vmem [resolvable:$true] %s602
          %605 = dma.hbm_to_vmem [thread:$0]  %s601, 16, %s603, [#allocation28]
        $region72: #{forward.1} parent=11 // pred_fallthru
          _
      $region12: #{forward.1} parent=5 // pred_fallthru
        _
      %p606 = scmp.lt.s32.totalorder %s30, 2
      // Predicated region
      $region73: #{forward.1} parent=5 // pred_check
        %p607 = pneg %p606
      $region74: #{forward.1} parent=5 // pred_check_branch
        %609 = sbr.rel (%p607) target = $region76
      $region75: #{forward.1} parent=5 // pred_region
        // Predicated region
        $region77: #{forward.1} parent=75 // pred_check
          %p610 = pneg %p50
        $region78: #{forward.1} parent=75 // pred_check_branch
          %612 = sbr.rel (%p610) target = $region80
        $region79: #{forward.1} parent=75 // pred_region
          %p613 = scmp.lt.s32.totalorder %s30, 1
          %s614 = scalar_select %p613, %s30, 1
          %s615 = smul.addr %s614, 12
          %s616 = smul.addr %s615, 4
          %s617 = scalar_lea.vmem %s0, %s616
        $region80: #{forward.1} parent=75 // pred_fallthru
          _
      $region76: #{forward.1} parent=5 // pred_fallthru
        _
      %p618 = scmp.le.s32.totalorder 1, %s30
      %p619 = scmp.lt.s32.totalorder %s30, 3
      %p620 = pnand %p618, %p619
      %p621 = pneg %p620
      // Predicated region
      $region81: #{forward.1} parent=5 // pred_check
        _
      $region82: #{forward.1} parent=5 // pred_check_branch
        %623 = sbr.rel (%p620) target = $region84
      $region83: #{forward.1} parent=5 // pred_region
        %s624 = ssub.s32 %s30, 1
        // Predicated region
        $region85: #{forward.1} parent=83 // pred_check
          %p625 = pneg %p77
        $region86: #{forward.1} parent=83 // pred_check_branch
          %627 = sbr.rel (%p625) target = $region88
        $region87: #{forward.1} parent=83 // pred_region
          %629 = dma.done [#allocation8], 18432
        $region88: #{forward.1} parent=83 // pred_fallthru
          _
        // Predicated region
        $region89: #{forward.1} parent=83 // pred_check
          %p630 = pneg %p98
        $region90: #{forward.1} parent=83 // pred_check_branch
          %632 = sbr.rel (%p630) target = $region92
        $region91: #{forward.1} parent=83 // pred_region
          %634 = dma.done [#allocation10], 17280
        $region92: #{forward.1} parent=83 // pred_fallthru
          _
        // Predicated region
        $region93: #{forward.1} parent=83 // pred_check
          %p635 = pneg %p119
        $region94: #{forward.1} parent=83 // pred_check_branch
          %637 = sbr.rel (%p635) target = $region96
        $region95: #{forward.1} parent=83 // pred_region
          %639 = dma.done [#allocation10], 46080
        $region96: #{forward.1} parent=83 // pred_fallthru
          _
        // Predicated region
        $region97: #{forward.1} parent=83 // pred_check
          %p640 = pneg %p140
        $region98: #{forward.1} parent=83 // pred_check_branch
          %642 = sbr.rel (%p640) target = $region100
        $region99: #{forward.1} parent=83 // pred_region
          %644 = dma.done [#allocation13], 28416
        $region100: #{forward.1} parent=83 // pred_fallthru
          _
        // Predicated region
        $region101: #{forward.1} parent=83 // pred_check
          %p645 = pneg %p161
        $region102: #{forward.1} parent=83 // pred_check_branch
          %647 = sbr.rel (%p645) target = $region104
        $region103: #{forward.1} parent=83 // pred_region
          %649 = dma.done [#allocation13], 4992
        $region104: #{forward.1} parent=83 // pred_fallthru
          _
        // Predicated region
        $region105: #{forward.1} parent=83 // pred_check
          %p650 = pneg %p182
        $region106: #{forward.1} parent=83 // pred_check_branch
          %652 = sbr.rel (%p650) target = $region108
        $region107: #{forward.1} parent=83 // pred_region
          %654 = dma.done [#allocation16], 1536
        $region108: #{forward.1} parent=83 // pred_fallthru
          _
        // Predicated region
        $region109: #{forward.1} parent=83 // pred_check
          %p655 = pneg %p203
        $region110: #{forward.1} parent=83 // pred_check_branch
          %657 = sbr.rel (%p655) target = $region112
        $region111: #{forward.1} parent=83 // pred_region
          %659 = dma.done [#allocation16], 32
        $region112: #{forward.1} parent=83 // pred_fallthru
          _
        // Predicated region
        $region113: #{forward.1} parent=83 // pred_check
          %p660 = pneg %p224
        $region114: #{forward.1} parent=83 // pred_check_branch
          %662 = sbr.rel (%p660) target = $region116
        $region115: #{forward.1} parent=83 // pred_region
          %664 = dma.done [#allocation19], 48
        $region116: #{forward.1} parent=83 // pred_fallthru
          _
        // Predicated region
        $region117: #{forward.1} parent=83 // pred_check
          %p665 = pneg %p245
        $region118: #{forward.1} parent=83 // pred_check_branch
          %667 = sbr.rel (%p665) target = $region120
        $region119: #{forward.1} parent=83 // pred_region
          %669 = dma.done [#allocation19], 80
        $region120: #{forward.1} parent=83 // pred_fallthru
          _
        // Predicated region
        $region121: #{forward.1} parent=83 // pred_check
          %p670 = pneg %p266
        $region122: #{forward.1} parent=83 // pred_check_branch
          %672 = sbr.rel (%p670) target = $region124
        $region123: #{forward.1} parent=83 // pred_region
          %674 = dma.done [#allocation22], 32
        $region124: #{forward.1} parent=83 // pred_fallthru
          _
        // Predicated region
        $region125: #{forward.1} parent=83 // pred_check
          %p675 = pneg %p287
        $region126: #{forward.1} parent=83 // pred_check_branch
          %677 = sbr.rel (%p675) target = $region128
        $region127: #{forward.1} parent=83 // pred_region
          %679 = dma.done [#allocation22], 16
        $region128: #{forward.1} parent=83 // pred_fallthru
          _
        // Predicated region
        $region129: #{forward.1} parent=83 // pred_check
          %p680 = pneg %p308
        $region130: #{forward.1} parent=83 // pred_check_branch
          %682 = sbr.rel (%p680) target = $region132
        $region131: #{forward.1} parent=83 // pred_region
          %684 = dma.done [#allocation25], 16
        $region132: #{forward.1} parent=83 // pred_fallthru
          _
        // Predicated region
        $region133: #{forward.1} parent=83 // pred_check
          %p685 = pneg %p329
        $region134: #{forward.1} parent=83 // pred_check_branch
          %687 = sbr.rel (%p685) target = $region136
        $region135: #{forward.1} parent=83 // pred_region
          %689 = dma.done [#allocation25], 64
        $region136: #{forward.1} parent=83 // pred_fallthru
          _
        // Predicated region
        $region137: #{forward.1} parent=83 // pred_check
          %p690 = pneg %p350
        $region138: #{forward.1} parent=83 // pred_check_branch
          %692 = sbr.rel (%p690) target = $region140
        $region139: #{forward.1} parent=83 // pred_region
          %694 = dma.done [#allocation28], 128
        $region140: #{forward.1} parent=83 // pred_fallthru
          _
        // Predicated region
        $region141: #{forward.1} parent=83 // pred_check
          %p695 = pneg %p371
        $region142: #{forward.1} parent=83 // pred_check_branch
          %697 = sbr.rel (%p695) target = $region144
        $region143: #{forward.1} parent=83 // pred_region
          %699 = dma.done [#allocation28], 16
        $region144: #{forward.1} parent=83 // pred_fallthru
          _
        %p700 = scmp.lt.s32.totalorder %s35, 1
        %s701 = scalar_select %p700, %s35, 1
        %s702 = smul.addr %s701, 12
        %s703 = smul.addr %s702, 4
        %s704 = scalar_lea.vmem %s0, %s703
        %p705 = pneg %p56
        %p706 = pneg %p53
        %p707 = pneg %p77
        %p708 = pneg %p74
        %p709 = pneg %p98
        %p710 = pneg %p95
        %p711 = pneg %p119
        %p712 = pneg %p116
        %p713 = pneg %p140
        %p714 = pneg %p137
        %p715 = pneg %p161
        %p716 = pneg %p158
        %p717 = pneg %p182
        %p718 = pneg %p179
        %p719 = pneg %p203
        %p720 = pneg %p200
        %p721 = pneg %p224
        %p722 = pneg %p221
        %p723 = pneg %p245
        %p724 = pneg %p242
        %p725 = pneg %p266
        %p726 = pneg %p263
        %p727 = pneg %p287
        %p728 = pneg %p284
        %p729 = pneg %p308
        %p730 = pneg %p305
        %p731 = pneg %p329
        %p732 = pneg %p326
        %p733 = pneg %p350
        %p734 = pneg %p347
        %p735 = pneg %p371
        %p736 = pneg %p368
        %p737 = pneg %p397
        %p738 = pneg %p394
        %p739 = scmp.lt.s32.totalorder %s35, 1
        %s740 = scalar_select %p739, %s35, 1
        %s741 = smul.addr %s740, 8
        %s742 = scalar_lea.vmem %s16, %s741
        %p743 = scmp.lt.s32.totalorder %s35, 1
        %s744 = scalar_select %p743, %s35, 1
        %s745 = smul.addr %s744, 12
        %s746 = smul.addr %s745, 4
        %s747 = scalar_lea.vmem %s0, %s746
        %p748 = scmp.lt.s32.totalorder %s35, 1
        %s749 = scalar_select %p748, %s35, 1
        %s750 = smul.addr %s749, 8
        %s751 = scalar_lea.vmem %s16, %s750
        %v753 = vld [vmem:[%s747] sm:$0xff]
        %v754 = vld [vmem:[%s747 + $0x8] sm:$0xf]
        %v755 = vld [vmem:[%s747 + $0xc] sm:$0xff]
        %v756 = vld [vmem:[%s747 + $0x14] sm:$0xf]
        %v757 = vld [vmem:[%s747 + $0x18] sm:$0xff]
        %v758 = vld [vmem:[%s747 + $0x20] sm:$0xf]
        %v759 = vld [vmem:[%s747 + $0x24] sm:$0x11]
        %v760 = vld [vmem:[%s747 + $0x2c] sm:$0x1]
        %v761 = vld [vmem:[#allocation7] sm:$0xff]
        %v762 = vld [vmem:[#allocation7 + $0x8] sm:$0xff]
        %v763 = vld [vmem:[#allocation7 + $0x10] sm:$0xff]
        %v764 = vld [vmem:[#allocation7 + $0x18] sm:$0xff]
        %v765 = vld [vmem:[#allocation7 + $0x20] sm:$0xff]
        %v766 = vld [vmem:[#allocation7 + $0x28] sm:$0xff]
        %v767 = vld [vmem:[#allocation7 + $0x30] sm:$0xff]
        %v768 = vld [vmem:[#allocation7 + $0x38] sm:$0xff]
        %v769 = vld [vmem:[#allocation7 + $0x40] sm:$0xff]
        %v770 = vld [vmem:[#allocation7 + $0x48] sm:$0xff]
        %v771 = vld [vmem:[#allocation7 + $0x50] sm:$0xff]
        %v772 = vld [vmem:[#allocation7 + $0x58] sm:$0xff]
        %v773 = vld [vmem:[#allocation7 + $0x60] sm:$0xff]
        %v774 = vld [vmem:[#allocation7 + $0x68] sm:$0xff]
        %v775 = vld [vmem:[#allocation7 + $0x70] sm:$0xff]
        %v776 = vld [vmem:[#allocation7 + $0x78] sm:$0xff]
        %v777 = vld [vmem:[#allocation7 + $0x80] sm:$0xff]
        %v778 = vld [vmem:[#allocation7 + $0x88] sm:$0xff]
        %v779 = vld [vmem:[#allocation7 + $0x90] sm:$0xff]
        %v780 = vld [vmem:[#allocation7 + $0x98] sm:$0xff]
        %v781 = vld [vmem:[#allocation7 + $0xa0] sm:$0xff]
        %v782 = vld [vmem:[#allocation7 + $0xa8] sm:$0xff]
        %v783 = vld [vmem:[#allocation7 + $0xb0] sm:$0xff]
        %v784 = vld [vmem:[#allocation7 + $0xb8] sm:$0xff]
        %v785 = vld [vmem:[#allocation7 + $0xc0] sm:$0xff]
        %v786 = vld [vmem:[#allocation7 + $0xc8] sm:$0xff]
        %v787 = vld [vmem:[#allocation7 + $0xd0] sm:$0xff]
        %v788 = vld [vmem:[#allocation7 + $0xd8] sm:$0xff]
        %v789 = vld [vmem:[#allocation7 + $0xe0] sm:$0xff]
        %v790 = vld [vmem:[#allocation7 + $0xe8] sm:$0xff]
        %v791 = vld [vmem:[#allocation7 + $0xf0] sm:$0xff]
        %v792 = vld [vmem:[#allocation7 + $0xf8] sm:$0xff]
        %v793 = vld [vmem:[#allocation7 + $0x100] sm:$0xff]
        %v794 = vld [vmem:[#allocation7 + $0x108] sm:$0xff]
        %v795 = vld [vmem:[#allocation7 + $0x110] sm:$0xff]
        %v796 = vld [vmem:[#allocation7 + $0x118] sm:$0xff]
        %v797 = vld [vmem:[#allocation7 + $0x120] sm:$0xff]
        %v798 = vld [vmem:[#allocation7 + $0x128] sm:$0xff]
        %v799 = vld [vmem:[#allocation7 + $0x130] sm:$0xff]
        %v800 = vld [vmem:[#allocation7 + $0x138] sm:$0xff]
        %v801 = vld [vmem:[#allocation7 + $0x140] sm:$0xff]
        %v802 = vld [vmem:[#allocation7 + $0x148] sm:$0xff]
        %v803 = vld [vmem:[#allocation7 + $0x150] sm:$0xff]
        %v804 = vld [vmem:[#allocation7 + $0x158] sm:$0xff]
        %v805 = vld [vmem:[#allocation7 + $0x160] sm:$0xff]
        %v806 = vld [vmem:[#allocation7 + $0x168] sm:$0xff]
        %v807 = vld [vmem:[#allocation7 + $0x170] sm:$0xff]
        %v808 = vld [vmem:[#allocation7 + $0x178] sm:$0xff]
        %v817 = vunpack.c.l.b16 %v753
        %v818 = vunpack.c.h.b16 %v753
        %v819 = vunpack.c.l.b16 %v754
        %v820 = vunpack.c.l.b16 %v755
        %v821 = vunpack.c.h.b16 %v755
        %v822 = vunpack.c.l.b16 %v756
        %v823 = vunpack.c.l.b16 %v757
        %v824 = vunpack.c.h.b16 %v757
        %v825 = vunpack.c.l.b16 %v758
        %v826 = vunpack.c.l.b16 %v759
        %v827 = vunpack.c.h.b16 %v759
        %v828 = vunpack.c.l.b16 %v760
        %v829 = vpack.c.b16 %v820, %v817
        %v830 = vpack.c.b16 %v821, %v818
        %v831 = vpack.c.b16 %v822, %v819
        %v832 = vpack.c.b16 %v826, %v823
        %v833 = vpack.c.b16 %v827, %v824
        %v834 = vpack.c.b16 %v828, %v825
        %v889 = vunpack.c.l.b16 %v761
        %v890 = vunpack.c.h.b16 %v761
        %v891 = vunpack.c.l.b16 %v762
        %v892 = vunpack.c.h.b16 %v762
        %v893 = vunpack.c.l.b16 %v763
        %v894 = vunpack.c.h.b16 %v763
        %v895 = vunpack.c.l.b16 %v764
        %v896 = vunpack.c.h.b16 %v764
        %v897 = vunpack.c.l.b16 %v765
        %v898 = vunpack.c.h.b16 %v765
        %v899 = vunpack.c.l.b16 %v766
        %v900 = vunpack.c.h.b16 %v766
        %v901 = vunpack.c.l.b16 %v767
        %v902 = vunpack.c.h.b16 %v767
        %v903 = vunpack.c.l.b16 %v768
        %v904 = vunpack.c.h.b16 %v768
        %v905 = vunpack.c.l.b16 %v769
        %v906 = vunpack.c.h.b16 %v769
        %v907 = vunpack.c.l.b16 %v770
        %v908 = vunpack.c.h.b16 %v770
        %v909 = vunpack.c.l.b16 %v771
        %v910 = vunpack.c.h.b16 %v771
        %v911 = vunpack.c.l.b16 %v772
        %v912 = vunpack.c.h.b16 %v772
        %v913 = vunpack.c.l.b16 %v773
        %v914 = vunpack.c.h.b16 %v773
        %v915 = vunpack.c.l.b16 %v774
        %v916 = vunpack.c.h.b16 %v774
        %v917 = vunpack.c.l.b16 %v775
        %v918 = vunpack.c.h.b16 %v775
        %v919 = vunpack.c.l.b16 %v776
        %v920 = vunpack.c.h.b16 %v776
        %v921 = vunpack.c.l.b16 %v777
        %v922 = vunpack.c.h.b16 %v777
        %v923 = vunpack.c.l.b16 %v778
        %v924 = vunpack.c.h.b16 %v778
        %v925 = vunpack.c.l.b16 %v779
        %v926 = vunpack.c.h.b16 %v779
        %v927 = vunpack.c.l.b16 %v780
        %v928 = vunpack.c.h.b16 %v780
        %v929 = vunpack.c.l.b16 %v781
        %v930 = vunpack.c.h.b16 %v781
        %v931 = vunpack.c.l.b16 %v782
        %v932 = vunpack.c.h.b16 %v782
        %v933 = vunpack.c.l.b16 %v783
        %v934 = vunpack.c.h.b16 %v783
        %v935 = vunpack.c.l.b16 %v784
        %v936 = vunpack.c.h.b16 %v784
        %v937 = vunpack.c.l.b16 %v785
        %v938 = vunpack.c.h.b16 %v785
        %v939 = vunpack.c.l.b16 %v786
        %v940 = vunpack.c.h.b16 %v786
        %v941 = vunpack.c.l.b16 %v787
        %v942 = vunpack.c.h.b16 %v787
        %v943 = vunpack.c.l.b16 %v788
        %v944 = vunpack.c.h.b16 %v788
        %v945 = vunpack.c.l.b16 %v789
        %v946 = vunpack.c.h.b16 %v789
        %v947 = vunpack.c.l.b16 %v790
        %v948 = vunpack.c.h.b16 %v790
        %v949 = vunpack.c.l.b16 %v791
        %v950 = vunpack.c.h.b16 %v791
        %v951 = vunpack.c.l.b16 %v792
        %v952 = vunpack.c.h.b16 %v792
        %v953 = vunpack.c.l.b16 %v793
        %v954 = vunpack.c.h.b16 %v793
        %v955 = vunpack.c.l.b16 %v794
        %v956 = vunpack.c.h.b16 %v794
        %v957 = vunpack.c.l.b16 %v795
        %v958 = vunpack.c.h.b16 %v795
        %v959 = vunpack.c.l.b16 %v796
        %v960 = vunpack.c.h.b16 %v796
        %v961 = vunpack.c.l.b16 %v797
        %v962 = vunpack.c.h.b16 %v797
        %v963 = vunpack.c.l.b16 %v798
        %v964 = vunpack.c.h.b16 %v798
        %v965 = vunpack.c.l.b16 %v799
        %v966 = vunpack.c.h.b16 %v799
        %v967 = vunpack.c.l.b16 %v800
        %v968 = vunpack.c.h.b16 %v800
        %v969 = vunpack.c.l.b16 %v801
        %v970 = vunpack.c.h.b16 %v801
        %v971 = vunpack.c.l.b16 %v802
        %v972 = vunpack.c.h.b16 %v802
        %v973 = vunpack.c.l.b16 %v803
        %v974 = vunpack.c.h.b16 %v803
        %v975 = vunpack.c.l.b16 %v804
        %v976 = vunpack.c.h.b16 %v804
        %v977 = vunpack.c.l.b16 %v805
        %v978 = vunpack.c.h.b16 %v805
        %v979 = vunpack.c.l.b16 %v806
        %v980 = vunpack.c.h.b16 %v806
        %v981 = vunpack.c.l.b16 %v807
        %v982 = vunpack.c.h.b16 %v807
        %v983 = vunpack.c.l.b16 %v808
        %v984 = vunpack.c.h.b16 %v808
        %v985 = vpack.c.b16 %v891, %v889
        %v986 = vpack.c.b16 %v892, %v890
        %v987 = vpack.c.b16 %v895, %v893
        %v988 = vpack.c.b16 %v896, %v894
        %v989 = vpack.c.b16 %v899, %v897
        %v990 = vpack.c.b16 %v900, %v898
        %v991 = vpack.c.b16 %v903, %v901
        %v992 = vpack.c.b16 %v904, %v902
        %v993 = vpack.c.b16 %v907, %v905
        %v994 = vpack.c.b16 %v908, %v906
        %v995 = vpack.c.b16 %v911, %v909
        %v996 = vpack.c.b16 %v912, %v910
        %v997 = vpack.c.b16 %v915, %v913
        %v998 = vpack.c.b16 %v916, %v914
        %v999 = vpack.c.b16 %v919, %v917
        %v1000 = vpack.c.b16 %v920, %v918
        %v1001 = vpack.c.b16 %v923, %v921
        %v1002 = vpack.c.b16 %v924, %v922
        %v1003 = vpack.c.b16 %v927, %v925
        %v1004 = vpack.c.b16 %v928, %v926
        %v1005 = vpack.c.b16 %v931, %v929
        %v1006 = vpack.c.b16 %v932, %v930
        %v1007 = vpack.c.b16 %v935, %v933
        %v1008 = vpack.c.b16 %v936, %v934
        %v1009 = vpack.c.b16 %v939, %v937
        %v1010 = vpack.c.b16 %v940, %v938
        %v1011 = vpack.c.b16 %v943, %v941
        %v1012 = vpack.c.b16 %v944, %v942
        %v1013 = vpack.c.b16 %v947, %v945
        %v1014 = vpack.c.b16 %v948, %v946
        %v1015 = vpack.c.b16 %v951, %v949
        %v1016 = vpack.c.b16 %v952, %v950
        %v1017 = vpack.c.b16 %v955, %v953
        %v1018 = vpack.c.b16 %v956, %v954
        %v1019 = vpack.c.b16 %v959, %v957
        %v1020 = vpack.c.b16 %v960, %v958
        %v1021 = vpack.c.b16 %v963, %v961
        %v1022 = vpack.c.b16 %v964, %v962
        %v1023 = vpack.c.b16 %v967, %v965
        %v1024 = vpack.c.b16 %v968, %v966
        %v1025 = vpack.c.b16 %v971, %v969
        %v1026 = vpack.c.b16 %v972, %v970
        %v1027 = vpack.c.b16 %v975, %v973
        %v1028 = vpack.c.b16 %v976, %v974
        %v1029 = vpack.c.b16 %v979, %v977
        %v1030 = vpack.c.b16 %v980, %v978
        %v1031 = vpack.c.b16 %v983, %v981
        %v1032 = vpack.c.b16 %v984, %v982
        %1081 = vmatpush.bf16.msra.mxu0 %v999
        %1082 = vmatpush.bf16.msra.mxu0 %v997
        %1083 = vmatpush.bf16.msra.mxu0 %v995
        %1084 = vmatpush.bf16.msra.mxu0 %v993
        %1085 = vmatpush.bf16.msra.mxu0 %v991
        %1086 = vmatpush.bf16.msra.mxu0 %v989
        %1087 = vmatpush.bf16.msra.mxu0 %v987
        %1088 = vmatpush.bf16.msra.mxu0 %v985
        %1089 = vmatmul.bf16.gmra.mxu0 %v829
        %v1090 = vpop.f32.mrf.mxu0
        %v1091 = vadd.f32 0.0, %v1090
        %v1092 = vpop.f32.mrf.mxu0
        %v1093 = vadd.f32 0.0, %v1092
        %1094 = vmatmul.bf16.gmra.mxu0 %v832
        %v1095 = vpop.f32.mrf.mxu0
        %v1096 = vadd.f32 0.0, %v1095
        %v1097 = vpop.f32.mrf.mxu0
        %1098 = vdwg.mxu0
        %1099 = vmatpush.bf16.msra.mxu0 %v1015
        %1100 = vmatpush.bf16.msra.mxu0 %v1013
        %1101 = vmatpush.bf16.msra.mxu0 %v1011
        %1102 = vmatpush.bf16.msra.mxu0 %v1009
        %1103 = vmatpush.bf16.msra.mxu0 %v1007
        %1104 = vmatpush.bf16.msra.mxu0 %v1005
        %1105 = vmatpush.bf16.msra.mxu0 %v1003
        %1106 = vmatpush.bf16.msra.mxu0 %v1001
        %1107 = vmatmul.bf16.gmra.mxu0 %v830
        %v1108 = vpop.f32.mrf.mxu0
        %v1109 = vadd.f32 %v1091, %v1108
        %v1110 = vpop.f32.mrf.mxu0
        %v1111 = vadd.f32 %v1093, %v1110
        %1112 = vmatmul.bf16.gmra.mxu0 %v833
        %v1113 = vpop.f32.mrf.mxu0
        %v1114 = vadd.f32 %v1096, %v1113
        %v1115 = vpop.f32.mrf.mxu0
        %1116 = vdwg.mxu0
        %1117 = vmatpush.bf16.msra.mxu0 %v1031
        %1118 = vmatpush.bf16.msra.mxu0 %v1029
        %1119 = vmatpush.bf16.msra.mxu0 %v1027
        %1120 = vmatpush.bf16.msra.mxu0 %v1025
        %1121 = vmatpush.bf16.msra.mxu0 %v1023
        %1122 = vmatpush.bf16.msra.mxu0 %v1021
        %1123 = vmatpush.bf16.msra.mxu0 %v1019
        %1124 = vmatpush.bf16.msra.mxu0 %v1017
        %1125 = vmatmul.bf16.gmra.mxu0 %v831
        %v1126 = vpop.f32.mrf.mxu0
        %v1127 = vadd.f32 %v1109, %v1126
        %v1128 = vpop.f32.mrf.mxu0
        %v1129 = vadd.f32 %v1111, %v1128
        %1130 = vmatmul.bf16.gmra.mxu0 %v834
        %v1131 = vpop.f32.mrf.mxu0
        %v1132 = vadd.f32 %v1114, %v1131
        %v1133 = vpop.f32.mrf.mxu0
        %1134 = vdwg.mxu0
        %1135 = vmatpush.bf16.msra.mxu0 %v1000
        %1136 = vmatpush.bf16.msra.mxu0 %v998
        %1137 = vmatpush.bf16.msra.mxu0 %v996
        %1138 = vmatpush.bf16.msra.mxu0 %v994
        %1139 = vmatpush.bf16.msra.mxu0 %v992
        %1140 = vmatpush.bf16.msra.mxu0 %v990
        %1141 = vmatpush.bf16.msra.mxu0 %v988
        %1142 = vmatpush.bf16.msra.mxu0 %v986
        %1143 = vmatmul.bf16.gmra.mxu0 %v829
        %v1144 = vpop.f32.mrf.mxu0
        %v1145 = vadd.f32 0.0, %v1144
        %v1146 = vpop.f32.mrf.mxu0
        %v1147 = vadd.f32 0.0, %v1146
        %1148 = vmatmul.bf16.gmra.mxu0 %v832
        %v1149 = vpop.f32.mrf.mxu0
        %v1150 = vadd.f32 0.0, %v1149
        %v1151 = vpop.f32.mrf.mxu0
        %1152 = vdwg.mxu0
        %1153 = vmatpush.bf16.msra.mxu0 %v1016
        %1154 = vmatpush.bf16.msra.mxu0 %v1014
        %1155 = vmatpush.bf16.msra.mxu0 %v1012
        %1156 = vmatpush.bf16.msra.mxu0 %v1010
        %1157 = vmatpush.bf16.msra.mxu0 %v1008
        %1158 = vmatpush.bf16.msra.mxu0 %v1006
        %1159 = vmatpush.bf16.msra.mxu0 %v1004
        %1160 = vmatpush.bf16.msra.mxu0 %v1002
        %1161 = vmatmul.bf16.gmra.mxu0 %v830
        %v1162 = vpop.f32.mrf.mxu0
        %v1163 = vadd.f32 %v1145, %v1162
        %v1164 = vpop.f32.mrf.mxu0
        %v1165 = vadd.f32 %v1147, %v1164
        %1166 = vmatmul.bf16.gmra.mxu0 %v833
        %v1167 = vpop.f32.mrf.mxu0
        %v1168 = vadd.f32 %v1150, %v1167
        %v1169 = vpop.f32.mrf.mxu0
        %1170 = vdwg.mxu0
        %1171 = vmatpush.bf16.msra.mxu0 %v1032
        %1172 = vmatpush.bf16.msra.mxu0 %v1030
        %1173 = vmatpush.bf16.msra.mxu0 %v1028
        %1174 = vmatpush.bf16.msra.mxu0 %v1026
        %1175 = vmatpush.bf16.msra.mxu0 %v1024
        %1176 = vmatpush.bf16.msra.mxu0 %v1022
        %1177 = vmatpush.bf16.msra.mxu0 %v1020
        %1178 = vmatpush.bf16.msra.mxu0 %v1018
        %1179 = vmatmul.bf16.gmra.mxu0 %v831
        %v1180 = vpop.f32.mrf.mxu0
        %v1181 = vadd.f32 %v1163, %v1180
        %v1182 = vpop.f32.mrf.mxu0
        %v1183 = vadd.f32 %v1165, %v1182
        %1184 = vmatmul.bf16.gmra.mxu0 %v834
        %v1185 = vpop.f32.mrf.mxu0
        %v1186 = vadd.f32 %v1168, %v1185
        %v1187 = vpop.f32.mrf.mxu0
        %1188 = vdwg.mxu0
        %s1189 = scalar_lea.vmem [#allocation7], 384
        %v1190 = vld [vmem:[%s1189] sm:$0xff]
        %v1191 = vld [vmem:[%s1189 + $0x8] sm:$0xff]
        %v1192 = vld [vmem:[%s1189 + $0x10] sm:$0xff]
        %v1193 = vld [vmem:[%s1189 + $0x18] sm:$0xff]
        %v1194 = vld [vmem:[%s1189 + $0x20] sm:$0xff]
        %v1195 = vld [vmem:[%s1189 + $0x28] sm:$0xff]
        %v1196 = vld [vmem:[%s1189 + $0x30] sm:$0xff]
        %v1197 = vld [vmem:[%s1189 + $0x38] sm:$0xff]
        %v1198 = vld [vmem:[%s1189 + $0x40] sm:$0xff]
        %v1199 = vld [vmem:[%s1189 + $0x48] sm:$0xff]
        %v1200 = vld [vmem:[%s1189 + $0x50] sm:$0xff]
        %v1201 = vld [vmem:[%s1189 + $0x58] sm:$0xff]
        %v1202 = vld [vmem:[%s1189 + $0x60] sm:$0xff]
        %v1203 = vld [vmem:[%s1189 + $0x68] sm:$0xff]
        %v1204 = vld [vmem:[%s1189 + $0x70] sm:$0xff]
        %v1205 = vld [vmem:[%s1189 + $0x78] sm:$0xff]
        %v1206 = vld [vmem:[%s1189 + $0x80] sm:$0xff]
        %v1207 = vld [vmem:[%s1189 + $0x88] sm:$0xff]
        %v1208 = vld [vmem:[%s1189 + $0x90] sm:$0xff]
        %v1209 = vld [vmem:[%s1189 + $0x98] sm:$0xff]
        %v1210 = vld [vmem:[%s1189 + $0xa0] sm:$0xff]
        %v1211 = vld [vmem:[%s1189 + $0xa8] sm:$0xff]
        %v1212 = vld [vmem:[%s1189 + $0xb0] sm:$0xff]
        %v1213 = vld [vmem:[%s1189 + $0xb8] sm:$0xff]
        %v1214 = vld [vmem:[%s1189 + $0xc0] sm:$0xff]
        %v1215 = vld [vmem:[%s1189 + $0xc8] sm:$0xff]
        %v1216 = vld [vmem:[%s1189 + $0xd0] sm:$0xff]
        %v1217 = vld [vmem:[%s1189 + $0xd8] sm:$0xff]
        %v1218 = vld [vmem:[%s1189 + $0xe0] sm:$0xff]
        %v1219 = vld [vmem:[%s1189 + $0xe8] sm:$0xff]
        %v1220 = vld [vmem:[%s1189 + $0xf0] sm:$0xff]
        %v1221 = vld [vmem:[%s1189 + $0xf8] sm:$0xff]
        %v1222 = vld [vmem:[%s1189 + $0x100] sm:$0xff]
        %v1223 = vld [vmem:[%s1189 + $0x108] sm:$0xff]
        %v1224 = vld [vmem:[%s1189 + $0x110] sm:$0xff]
        %v1225 = vld [vmem:[%s1189 + $0x118] sm:$0xff]
        %v1226 = vld [vmem:[%s1189 + $0x120] sm:$0xff]
        %v1227 = vld [vmem:[%s1189 + $0x128] sm:$0xff]
        %v1228 = vld [vmem:[%s1189 + $0x130] sm:$0xff]
        %v1229 = vld [vmem:[%s1189 + $0x138] sm:$0xff]
        %v1230 = vld [vmem:[%s1189 + $0x140] sm:$0xff]
        %v1231 = vld [vmem:[%s1189 + $0x148] sm:$0xff]
        %v1232 = vld [vmem:[%s1189 + $0x150] sm:$0xff]
        %v1233 = vld [vmem:[%s1189 + $0x158] sm:$0xff]
        %v1234 = vld [vmem:[%s1189 + $0x160] sm:$0xff]
        %v1235 = vld [vmem:[%s1189 + $0x168] sm:$0xff]
        %v1236 = vld [vmem:[%s1189 + $0x170] sm:$0xff]
        %v1237 = vld [vmem:[%s1189 + $0x178] sm:$0xff]
        %v1286 = vunpack.c.l.b16 %v1190
        %v1287 = vunpack.c.h.b16 %v1190
        %v1288 = vunpack.c.l.b16 %v1191
        %v1289 = vunpack.c.h.b16 %v1191
        %v1290 = vunpack.c.l.b16 %v1192
        %v1291 = vunpack.c.h.b16 %v1192
        %v1292 = vunpack.c.l.b16 %v1193
        %v1293 = vunpack.c.h.b16 %v1193
        %v1294 = vunpack.c.l.b16 %v1194
        %v1295 = vunpack.c.h.b16 %v1194
        %v1296 = vunpack.c.l.b16 %v1195
        %v1297 = vunpack.c.h.b16 %v1195
        %v1298 = vunpack.c.l.b16 %v1196
        %v1299 = vunpack.c.h.b16 %v1196
        %v1300 = vunpack.c.l.b16 %v1197
        %v1301 = vunpack.c.h.b16 %v1197
        %v1302 = vunpack.c.l.b16 %v1198
        %v1303 = vunpack.c.h.b16 %v1198
        %v1304 = vunpack.c.l.b16 %v1199
        %v1305 = vunpack.c.h.b16 %v1199
        %v1306 = vunpack.c.l.b16 %v1200
        %v1307 = vunpack.c.h.b16 %v1200
        %v1308 = vunpack.c.l.b16 %v1201
        %v1309 = vunpack.c.h.b16 %v1201
        %v1310 = vunpack.c.l.b16 %v1202
        %v1311 = vunpack.c.h.b16 %v1202
        %v1312 = vunpack.c.l.b16 %v1203
        %v1313 = vunpack.c.h.b16 %v1203
        %v1314 = vunpack.c.l.b16 %v1204
        %v1315 = vunpack.c.h.b16 %v1204
        %v1316 = vunpack.c.l.b16 %v1205
        %v1317 = vunpack.c.h.b16 %v1205
        %v1318 = vunpack.c.l.b16 %v1206
        %v1319 = vunpack.c.h.b16 %v1206
        %v1320 = vunpack.c.l.b16 %v1207
        %v1321 = vunpack.c.h.b16 %v1207
        %v1322 = vunpack.c.l.b16 %v1208
        %v1323 = vunpack.c.h.b16 %v1208
        %v1324 = vunpack.c.l.b16 %v1209
        %v1325 = vunpack.c.h.b16 %v1209
        %v1326 = vunpack.c.l.b16 %v1210
        %v1327 = vunpack.c.h.b16 %v1210
        %v1328 = vunpack.c.l.b16 %v1211
        %v1329 = vunpack.c.h.b16 %v1211
        %v1330 = vunpack.c.l.b16 %v1212
        %v1331 = vunpack.c.h.b16 %v1212
        %v1332 = vunpack.c.l.b16 %v1213
        %v1333 = vunpack.c.h.b16 %v1213
        %v1334 = vunpack.c.l.b16 %v1214
        %v1335 = vunpack.c.h.b16 %v1214
        %v1336 = vunpack.c.l.b16 %v1215
        %v1337 = vunpack.c.h.b16 %v1215
        %v1338 = vunpack.c.l.b16 %v1216
        %v1339 = vunpack.c.h.b16 %v1216
        %v1340 = vunpack.c.l.b16 %v1217
        %v1341 = vunpack.c.h.b16 %v1217
        %v1342 = vunpack.c.l.b16 %v1218
        %v1343 = vunpack.c.h.b16 %v1218
        %v1344 = vunpack.c.l.b16 %v1219
        %v1345 = vunpack.c.h.b16 %v1219
        %v1346 = vunpack.c.l.b16 %v1220
        %v1347 = vunpack.c.h.b16 %v1220
        %v1348 = vunpack.c.l.b16 %v1221
        %v1349 = vunpack.c.h.b16 %v1221
        %v1350 = vunpack.c.l.b16 %v1222
        %v1351 = vunpack.c.h.b16 %v1222
        %v1352 = vunpack.c.l.b16 %v1223
        %v1353 = vunpack.c.h.b16 %v1223
        %v1354 = vunpack.c.l.b16 %v1224
        %v1355 = vunpack.c.h.b16 %v1224
        %v1356 = vunpack.c.l.b16 %v1225
        %v1357 = vunpack.c.h.b16 %v1225
        %v1358 = vunpack.c.l.b16 %v1226
        %v1359 = vunpack.c.h.b16 %v1226
        %v1360 = vunpack.c.l.b16 %v1227
        %v1361 = vunpack.c.h.b16 %v1227
        %v1362 = vunpack.c.l.b16 %v1228
        %v1363 = vunpack.c.h.b16 %v1228
        %v1364 = vunpack.c.l.b16 %v1229
        %v1365 = vunpack.c.h.b16 %v1229
        %v1366 = vunpack.c.l.b16 %v1230
        %v1367 = vunpack.c.h.b16 %v1230
        %v1368 = vunpack.c.l.b16 %v1231
        %v1369 = vunpack.c.h.b16 %v1231
        %v1370 = vunpack.c.l.b16 %v1232
        %v1371 = vunpack.c.h.b16 %v1232
        %v1372 = vunpack.c.l.b16 %v1233
        %v1373 = vunpack.c.h.b16 %v1233
        %v1374 = vunpack.c.l.b16 %v1234
        %v1375 = vunpack.c.h.b16 %v1234
        %v1376 = vunpack.c.l.b16 %v1235
        %v1377 = vunpack.c.h.b16 %v1235
        %v1378 = vunpack.c.l.b16 %v1236
        %v1379 = vunpack.c.h.b16 %v1236
        %v1380 = vunpack.c.l.b16 %v1237
        %v1381 = vunpack.c.h.b16 %v1237
        %v1382 = vpack.c.b16 %v1288, %v1286
        %v1383 = vpack.c.b16 %v1289, %v1287
        %v1384 = vpack.c.b16 %v1292, %v1290
        %v1385 = vpack.c.b16 %v1293, %v1291
        %v1386 = vpack.c.b16 %v1296, %v1294
        %v1387 = vpack.c.b16 %v1297, %v1295
        %v1388 = vpack.c.b16 %v1300, %v1298
        %v1389 = vpack.c.b16 %v1301, %v1299
        %v1390 = vpack.c.b16 %v1304, %v1302
        %v1391 = vpack.c.b16 %v1305, %v1303
        %v1392 = vpack.c.b16 %v1308, %v1306
        %v1393 = vpack.c.b16 %v1309, %v1307
        %v1394 = vpack.c.b16 %v1312, %v1310
        %v1395 = vpack.c.b16 %v1313, %v1311
        %v1396 = vpack.c.b16 %v1316, %v1314
        %v1397 = vpack.c.b16 %v1317, %v1315
        %v1398 = vpack.c.b16 %v1320, %v1318
        %v1399 = vpack.c.b16 %v1321, %v1319
        %v1400 = vpack.c.b16 %v1324, %v1322
        %v1401 = vpack.c.b16 %v1325, %v1323
        %v1402 = vpack.c.b16 %v1328, %v1326
        %v1403 = vpack.c.b16 %v1329, %v1327
        %v1404 = vpack.c.b16 %v1332, %v1330
        %v1405 = vpack.c.b16 %v1333, %v1331
        %v1406 = vpack.c.b16 %v1336, %v1334
        %v1407 = vpack.c.b16 %v1337, %v1335
        %v1408 = vpack.c.b16 %v1340, %v1338
        %v1409 = vpack.c.b16 %v1341, %v1339
        %v1410 = vpack.c.b16 %v1344, %v1342
        %v1411 = vpack.c.b16 %v1345, %v1343
        %v1412 = vpack.c.b16 %v1348, %v1346
        %v1413 = vpack.c.b16 %v1349, %v1347
        %v1414 = vpack.c.b16 %v1352, %v1350
        %v1415 = vpack.c.b16 %v1353, %v1351
        %v1416 = vpack.c.b16 %v1356, %v1354
        %v1417 = vpack.c.b16 %v1357, %v1355
        %v1418 = vpack.c.b16 %v1360, %v1358
        %v1419 = vpack.c.b16 %v1361, %v1359
        %v1420 = vpack.c.b16 %v1364, %v1362
        %v1421 = vpack.c.b16 %v1365, %v1363
        %v1422 = vpack.c.b16 %v1368, %v1366
        %v1423 = vpack.c.b16 %v1369, %v1367
        %v1424 = vpack.c.b16 %v1372, %v1370
        %v1425 = vpack.c.b16 %v1373, %v1371
        %v1426 = vpack.c.b16 %v1376, %v1374
        %v1427 = vpack.c.b16 %v1377, %v1375
        %v1428 = vpack.c.b16 %v1380, %v1378
        %v1429 = vpack.c.b16 %v1381, %v1379
        %1478 = vmatpush.bf16.msra.mxu0 %v1396
        %1479 = vmatpush.bf16.msra.mxu0 %v1394
        %1480 = vmatpush.bf16.msra.mxu0 %v1392
        %1481 = vmatpush.bf16.msra.mxu0 %v1390
        %1482 = vmatpush.bf16.msra.mxu0 %v1388
        %1483 = vmatpush.bf16.msra.mxu0 %v1386
        %1484 = vmatpush.bf16.msra.mxu0 %v1384
        %1485 = vmatpush.bf16.msra.mxu0 %v1382
        %1486 = vmatmul.bf16.gmra.mxu0 %v829
        %v1487 = vpop.f32.mrf.mxu0
        %v1488 = vadd.f32 0.0, %v1487
        %v1489 = vpop.f32.mrf.mxu0
        %v1490 = vadd.f32 0.0, %v1489
        %1491 = vmatmul.bf16.gmra.mxu0 %v832
        %v1492 = vpop.f32.mrf.mxu0
        %v1493 = vadd.f32 0.0, %v1492
        %v1494 = vpop.f32.mrf.mxu0
        %v1495 = vadd.f32 0.0, %v1494
        %1496 = vdwg.mxu0
        %1497 = vmatpush.bf16.msra.mxu0 %v1412
        %1498 = vmatpush.bf16.msra.mxu0 %v1410
        %1499 = vmatpush.bf16.msra.mxu0 %v1408
        %1500 = vmatpush.bf16.msra.mxu0 %v1406
        %1501 = vmatpush.bf16.msra.mxu0 %v1404
        %1502 = vmatpush.bf16.msra.mxu0 %v1402
        %1503 = vmatpush.bf16.msra.mxu0 %v1400
        %1504 = vmatpush.bf16.msra.mxu0 %v1398
        %1505 = vmatmul.bf16.gmra.mxu0 %v830
        %v1506 = vpop.f32.mrf.mxu0
        %v1507 = vadd.f32 %v1488, %v1506
        %v1508 = vpop.f32.mrf.mxu0
        %v1509 = vadd.f32 %v1490, %v1508
        %1510 = vmatmul.bf16.gmra.mxu0 %v833
        %v1511 = vpop.f32.mrf.mxu0
        %v1512 = vadd.f32 %v1493, %v1511
        %v1513 = vpop.f32.mrf.mxu0
        %v1514 = vadd.f32 %v1495, %v1513
        %1515 = vdwg.mxu0
        %1516 = vmatpush.bf16.msra.mxu0 %v1428
        %1517 = vmatpush.bf16.msra.mxu0 %v1426
        %1518 = vmatpush.bf16.msra.mxu0 %v1424
        %1519 = vmatpush.bf16.msra.mxu0 %v1422
        %1520 = vmatpush.bf16.msra.mxu0 %v1420
        %1521 = vmatpush.bf16.msra.mxu0 %v1418
        %1522 = vmatpush.bf16.msra.mxu0 %v1416
        %1523 = vmatpush.bf16.msra.mxu0 %v1414
        %1524 = vmatmul.bf16.gmra.mxu0 %v831
        %v1525 = vpop.f32.mrf.mxu0
        %v1526 = vadd.f32 %v1507, %v1525
        %v1527 = vpop.f32.mrf.mxu0
        %v1528 = vadd.f32 %v1509, %v1527
        %1529 = vmatmul.bf16.gmra.mxu0 %v834
        %v1530 = vpop.f32.mrf.mxu0
        %v1531 = vadd.f32 %v1512, %v1530
        %v1532 = vpop.f32.mrf.mxu0
        %v1533 = vadd.f32 %v1514, %v1532
        %1534 = vdwg.mxu0
        %1535 = vmatpush.bf16.msra.mxu0 %v1397
        %1536 = vmatpush.bf16.msra.mxu0 %v1395
        %1537 = vmatpush.bf16.msra.mxu0 %v1393
        %1538 = vmatpush.bf16.msra.mxu0 %v1391
        %1539 = vmatpush.bf16.msra.mxu0 %v1389
        %1540 = vmatpush.bf16.msra.mxu0 %v1387
        %1541 = vmatpush.bf16.msra.mxu0 %v1385
        %1542 = vmatpush.bf16.msra.mxu0 %v1383
        %1543 = vmatmul.bf16.gmra.mxu0 %v829
        %v1544 = vpop.f32.mrf.mxu0
        %v1545 = vadd.f32 0.0, %v1544
        %v1546 = vpop.f32.mrf.mxu0
        %v1547 = vadd.f32 0.0, %v1546
        %1548 = vmatmul.bf16.gmra.mxu0 %v832
        %v1549 = vpop.f32.mrf.mxu0
        %v1550 = vadd.f32 0.0, %v1549
        %v1551 = vpop.f32.mrf.mxu0
        %v1552 = vadd.f32 0.0, %v1551
        %1553 = vdwg.mxu0
        %1554 = vmatpush.bf16.msra.mxu0 %v1413
        %1555 = vmatpush.bf16.msra.mxu0 %v1411
        %1556 = vmatpush.bf16.msra.mxu0 %v1409
        %1557 = vmatpush.bf16.msra.mxu0 %v1407
        %1558 = vmatpush.bf16.msra.mxu0 %v1405
        %1559 = vmatpush.bf16.msra.mxu0 %v1403
        %1560 = vmatpush.bf16.msra.mxu0 %v1401
        %1561 = vmatpush.bf16.msra.mxu0 %v1399
        %1562 = vmatmul.bf16.gmra.mxu0 %v830
        %v1563 = vpop.f32.mrf.mxu0
        %v1564 = vadd.f32 %v1545, %v1563
        %v1565 = vpop.f32.mrf.mxu0
        %v1566 = vadd.f32 %v1547, %v1565
        %1567 = vmatmul.bf16.gmra.mxu0 %v833
        %v1568 = vpop.f32.mrf.mxu0
        %v1569 = vadd.f32 %v1550, %v1568
        %v1570 = vpop.f32.mrf.mxu0
        %v1571 = vadd.f32 %v1552, %v1570
        %1572 = vdwg.mxu0
        %1573 = vmatpush.bf16.msra.mxu0 %v1429
        %1574 = vmatpush.bf16.msra.mxu0 %v1427
        %1575 = vmatpush.bf16.msra.mxu0 %v1425
        %1576 = vmatpush.bf16.msra.mxu0 %v1423
        %1577 = vmatpush.bf16.msra.mxu0 %v1421
        %1578 = vmatpush.bf16.msra.mxu0 %v1419
        %1579 = vmatpush.bf16.msra.mxu0 %v1417
        %1580 = vmatpush.bf16.msra.mxu0 %v1415
        %1581 = vmatmul.bf16.gmra.mxu0 %v831
        %v1582 = vpop.f32.mrf.mxu0
        %v1583 = vadd.f32 %v1564, %v1582
        %v1584 = vpop.f32.mrf.mxu0
        %v1585 = vadd.f32 %v1566, %v1584
        %1586 = vmatmul.bf16.gmra.mxu0 %v834
        %v1587 = vpop.f32.mrf.mxu0
        %v1588 = vadd.f32 %v1569, %v1587
        %v1589 = vpop.f32.mrf.mxu0
        %v1590 = vadd.f32 %v1571, %v1589
        %1591 = vdwg.mxu0
        %s1592 = scalar_lea.vmem [#allocation7], 768
        %v1593 = vld [vmem:[%s1592] sm:$0xff]
        %v1594 = vld [vmem:[%s1592 + $0x8] sm:$0xff]
        %v1595 = vld [vmem:[%s1592 + $0x10] sm:$0xff]
        %v1596 = vld [vmem:[%s1592 + $0x18] sm:$0xff]
        %v1597 = vld [vmem:[%s1592 + $0x20] sm:$0xff]
        %v1598 = vld [vmem:[%s1592 + $0x28] sm:$0xff]
        %v1599 = vld [vmem:[%s1592 + $0x30] sm:$0xff]
        %v1600 = vld [vmem:[%s1592 + $0x38] sm:$0xff]
        %v1601 = vld [vmem:[%s1592 + $0x40] sm:$0xff]
        %v1602 = vld [vmem:[%s1592 + $0x48] sm:$0xff]
        %v1603 = vld [vmem:[%s1592 + $0x50] sm:$0xff]
        %v1604 = vld [vmem:[%s1592 + $0x58] sm:$0xff]
        %v1605 = vld [vmem:[%s1592 + $0x60] sm:$0xff]
        %v1606 = vld [vmem:[%s1592 + $0x68] sm:$0xff]
        %v1607 = vld [vmem:[%s1592 + $0x70] sm:$0xff]
        %v1608 = vld [vmem:[%s1592 + $0x78] sm:$0xff]
        %v1609 = vld [vmem:[%s1592 + $0x80] sm:$0xff]
        %v1610 = vld [vmem:[%s1592 + $0x88] sm:$0xff]
        %v1611 = vld [vmem:[%s1592 + $0x90] sm:$0xff]
        %v1612 = vld [vmem:[%s1592 + $0x98] sm:$0xff]
        %v1613 = vld [vmem:[%s1592 + $0xa0] sm:$0xff]
        %v1614 = vld [vmem:[%s1592 + $0xa8] sm:$0xff]
        %v1615 = vld [vmem:[%s1592 + $0xb0] sm:$0xff]
        %v1616 = vld [vmem:[%s1592 + $0xb8] sm:$0xff]
        %v1617 = vld [vmem:[%s1592 + $0xc0] sm:$0xff]
        %v1618 = vld [vmem:[%s1592 + $0xc8] sm:$0xff]
        %v1619 = vld [vmem:[%s1592 + $0xd0] sm:$0xff]
        %v1620 = vld [vmem:[%s1592 + $0xd8] sm:$0xff]
        %v1621 = vld [vmem:[%s1592 + $0xe0] sm:$0xff]
        %v1622 = vld [vmem:[%s1592 + $0xe8] sm:$0xff]
        %v1623 = vld [vmem:[%s1592 + $0xf0] sm:$0xff]
        %v1624 = vld [vmem:[%s1592 + $0xf8] sm:$0xff]
        %v1625 = vld [vmem:[%s1592 + $0x100] sm:$0xff]
        %v1626 = vld [vmem:[%s1592 + $0x108] sm:$0xff]
        %v1627 = vld [vmem:[%s1592 + $0x110] sm:$0xff]
        %v1628 = vld [vmem:[%s1592 + $0x118] sm:$0xff]
        %v1629 = vld [vmem:[%s1592 + $0x120] sm:$0xff]
        %v1630 = vld [vmem:[%s1592 + $0x128] sm:$0xff]
        %v1631 = vld [vmem:[%s1592 + $0x130] sm:$0xff]
        %v1632 = vld [vmem:[%s1592 + $0x138] sm:$0xff]
        %v1633 = vld [vmem:[%s1592 + $0x140] sm:$0xff]
        %v1634 = vld [vmem:[%s1592 + $0x148] sm:$0xff]
        %v1635 = vld [vmem:[%s1592 + $0x150] sm:$0xff]
        %v1636 = vld [vmem:[%s1592 + $0x158] sm:$0xff]
        %v1637 = vld [vmem:[%s1592 + $0x160] sm:$0xff]
        %v1638 = vld [vmem:[%s1592 + $0x168] sm:$0xff]
        %v1639 = vld [vmem:[%s1592 + $0x170] sm:$0xff]
        %v1640 = vld [vmem:[%s1592 + $0x178] sm:$0xff]
        %v1689 = vunpack.c.l.b16 %v1593
        %v1690 = vunpack.c.h.b16 %v1593
        %v1691 = vunpack.c.l.b16 %v1594
        %v1692 = vunpack.c.h.b16 %v1594
        %v1693 = vunpack.c.l.b16 %v1595
        %v1694 = vunpack.c.h.b16 %v1595
        %v1695 = vunpack.c.l.b16 %v1596
        %v1696 = vunpack.c.h.b16 %v1596
        %v1697 = vunpack.c.l.b16 %v1597
        %v1698 = vunpack.c.h.b16 %v1597
        %v1699 = vunpack.c.l.b16 %v1598
        %v1700 = vunpack.c.h.b16 %v1598
        %v1701 = vunpack.c.l.b16 %v1599
        %v1702 = vunpack.c.h.b16 %v1599
        %v1703 = vunpack.c.l.b16 %v1600
        %v1704 = vunpack.c.h.b16 %v1600
        %v1705 = vunpack.c.l.b16 %v1601
        %v1706 = vunpack.c.h.b16 %v1601
        %v1707 = vunpack.c.l.b16 %v1602
        %v1708 = vunpack.c.h.b16 %v1602
        %v1709 = vunpack.c.l.b16 %v1603
        %v1710 = vunpack.c.h.b16 %v1603
        %v1711 = vunpack.c.l.b16 %v1604
        %v1712 = vunpack.c.h.b16 %v1604
        %v1713 = vunpack.c.l.b16 %v1605
        %v1714 = vunpack.c.h.b16 %v1605
        %v1715 = vunpack.c.l.b16 %v1606
        %v1716 = vunpack.c.h.b16 %v1606
        %v1717 = vunpack.c.l.b16 %v1607
        %v1718 = vunpack.c.h.b16 %v1607
        %v1719 = vunpack.c.l.b16 %v1608
        %v1720 = vunpack.c.h.b16 %v1608
        %v1721 = vunpack.c.l.b16 %v1609
        %v1722 = vunpack.c.h.b16 %v1609
        %v1723 = vunpack.c.l.b16 %v1610
        %v1724 = vunpack.c.h.b16 %v1610
        %v1725 = vunpack.c.l.b16 %v1611
        %v1726 = vunpack.c.h.b16 %v1611
        %v1727 = vunpack.c.l.b16 %v1612
        %v1728 = vunpack.c.h.b16 %v1612
        %v1729 = vunpack.c.l.b16 %v1613
        %v1730 = vunpack.c.h.b16 %v1613
        %v1731 = vunpack.c.l.b16 %v1614
        %v1732 = vunpack.c.h.b16 %v1614
        %v1733 = vunpack.c.l.b16 %v1615
        %v1734 = vunpack.c.h.b16 %v1615
        %v1735 = vunpack.c.l.b16 %v1616
        %v1736 = vunpack.c.h.b16 %v1616
        %v1737 = vunpack.c.l.b16 %v1617
        %v1738 = vunpack.c.h.b16 %v1617
        %v1739 = vunpack.c.l.b16 %v1618
        %v1740 = vunpack.c.h.b16 %v1618
        %v1741 = vunpack.c.l.b16 %v1619
        %v1742 = vunpack.c.h.b16 %v1619
        %v1743 = vunpack.c.l.b16 %v1620
        %v1744 = vunpack.c.h.b16 %v1620
        %v1745 = vunpack.c.l.b16 %v1621
        %v1746 = vunpack.c.h.b16 %v1621
        %v1747 = vunpack.c.l.b16 %v1622
        %v1748 = vunpack.c.h.b16 %v1622
        %v1749 = vunpack.c.l.b16 %v1623
        %v1750 = vunpack.c.h.b16 %v1623
        %v1751 = vunpack.c.l.b16 %v1624
        %v1752 = vunpack.c.h.b16 %v1624
        %v1753 = vunpack.c.l.b16 %v1625
        %v1754 = vunpack.c.h.b16 %v1625
        %v1755 = vunpack.c.l.b16 %v1626
        %v1756 = vunpack.c.h.b16 %v1626
        %v1757 = vunpack.c.l.b16 %v1627
        %v1758 = vunpack.c.h.b16 %v1627
        %v1759 = vunpack.c.l.b16 %v1628
        %v1760 = vunpack.c.h.b16 %v1628
        %v1761 = vunpack.c.l.b16 %v1629
        %v1762 = vunpack.c.h.b16 %v1629
        %v1763 = vunpack.c.l.b16 %v1630
        %v1764 = vunpack.c.h.b16 %v1630
        %v1765 = vunpack.c.l.b16 %v1631
        %v1766 = vunpack.c.h.b16 %v1631
        %v1767 = vunpack.c.l.b16 %v1632
        %v1768 = vunpack.c.h.b16 %v1632
        %v1769 = vunpack.c.l.b16 %v1633
        %v1770 = vunpack.c.h.b16 %v1633
        %v1771 = vunpack.c.l.b16 %v1634
        %v1772 = vunpack.c.h.b16 %v1634
        %v1773 = vunpack.c.l.b16 %v1635
        %v1774 = vunpack.c.h.b16 %v1635
        %v1775 = vunpack.c.l.b16 %v1636
        %v1776 = vunpack.c.h.b16 %v1636
        %v1777 = vunpack.c.l.b16 %v1637
        %v1778 = vunpack.c.h.b16 %v1637
        %v1779 = vunpack.c.l.b16 %v1638
        %v1780 = vunpack.c.h.b16 %v1638
        %v1781 = vunpack.c.l.b16 %v1639
        %v1782 = vunpack.c.h.b16 %v1639
        %v1783 = vunpack.c.l.b16 %v1640
        %v1784 = vunpack.c.h.b16 %v1640
        %v1785 = vpack.c.b16 %v1691, %v1689
        %v1786 = vpack.c.b16 %v1692, %v1690
        %v1787 = vpack.c.b16 %v1695, %v1693
        %v1788 = vpack.c.b16 %v1696, %v1694
        %v1789 = vpack.c.b16 %v1699, %v1697
        %v1790 = vpack.c.b16 %v1700, %v1698
        %v1791 = vpack.c.b16 %v1703, %v1701
        %v1792 = vpack.c.b16 %v1704, %v1702
        %v1793 = vpack.c.b16 %v1707, %v1705
        %v1794 = vpack.c.b16 %v1708, %v1706
        %v1795 = vpack.c.b16 %v1711, %v1709
        %v1796 = vpack.c.b16 %v1712, %v1710
        %v1797 = vpack.c.b16 %v1715, %v1713
        %v1798 = vpack.c.b16 %v1716, %v1714
        %v1799 = vpack.c.b16 %v1719, %v1717
        %v1800 = vpack.c.b16 %v1720, %v1718
        %v1801 = vpack.c.b16 %v1723, %v1721
        %v1802 = vpack.c.b16 %v1724, %v1722
        %v1803 = vpack.c.b16 %v1727, %v1725
        %v1804 = vpack.c.b16 %v1728, %v1726
        %v1805 = vpack.c.b16 %v1731, %v1729
        %v1806 = vpack.c.b16 %v1732, %v1730
        %v1807 = vpack.c.b16 %v1735, %v1733
        %v1808 = vpack.c.b16 %v1736, %v1734
        %v1809 = vpack.c.b16 %v1739, %v1737
        %v1810 = vpack.c.b16 %v1740, %v1738
        %v1811 = vpack.c.b16 %v1743, %v1741
        %v1812 = vpack.c.b16 %v1744, %v1742
        %v1813 = vpack.c.b16 %v1747, %v1745
        %v1814 = vpack.c.b16 %v1748, %v1746
        %v1815 = vpack.c.b16 %v1751, %v1749
        %v1816 = vpack.c.b16 %v1752, %v1750
        %v1817 = vpack.c.b16 %v1755, %v1753
        %v1818 = vpack.c.b16 %v1756, %v1754
        %v1819 = vpack.c.b16 %v1759, %v1757
        %v1820 = vpack.c.b16 %v1760, %v1758
        %v1821 = vpack.c.b16 %v1763, %v1761
        %v1822 = vpack.c.b16 %v1764, %v1762
        %v1823 = vpack.c.b16 %v1767, %v1765
        %v1824 = vpack.c.b16 %v1768, %v1766
        %v1825 = vpack.c.b16 %v1771, %v1769
        %v1826 = vpack.c.b16 %v1772, %v1770
        %v1827 = vpack.c.b16 %v1775, %v1773
        %v1828 = vpack.c.b16 %v1776, %v1774
        %v1829 = vpack.c.b16 %v1779, %v1777
        %v1830 = vpack.c.b16 %v1780, %v1778
        %v1831 = vpack.c.b16 %v1783, %v1781
        %v1832 = vpack.c.b16 %v1784, %v1782
        %1881 = vmatpush.bf16.msra.mxu0 %v1799
        %1882 = vmatpush.bf16.msra.mxu0 %v1797
        %1883 = vmatpush.bf16.msra.mxu0 %v1795
        %1884 = vmatpush.bf16.msra.mxu0 %v1793
        %1885 = vmatpush.bf16.msra.mxu0 %v1791
        %1886 = vmatpush.bf16.msra.mxu0 %v1789
        %1887 = vmatpush.bf16.msra.mxu0 %v1787
        %1888 = vmatpush.bf16.msra.mxu0 %v1785
        %1889 = vmatmul.bf16.gmra.mxu0 %v829
        %v1890 = vpop.f32.mrf.mxu0
        %v1891 = vadd.f32 0.0, %v1890
        %v1892 = vpop.f32.mrf.mxu0
        %v1893 = vadd.f32 0.0, %v1892
        %1894 = vmatmul.bf16.gmra.mxu0 %v832
        %v1895 = vpop.f32.mrf.mxu0
        %v1896 = vadd.f32 0.0, %v1895
        %v1897 = vpop.f32.mrf.mxu0
        %v1898 = vadd.f32 0.0, %v1897
        %1899 = vdwg.mxu0
        %1900 = vmatpush.bf16.msra.mxu0 %v1815
        %1901 = vmatpush.bf16.msra.mxu0 %v1813
        %1902 = vmatpush.bf16.msra.mxu0 %v1811
        %1903 = vmatpush.bf16.msra.mxu0 %v1809
        %1904 = vmatpush.bf16.msra.mxu0 %v1807
        %1905 = vmatpush.bf16.msra.mxu0 %v1805
        %1906 = vmatpush.bf16.msra.mxu0 %v1803
        %1907 = vmatpush.bf16.msra.mxu0 %v1801
        %1908 = vmatmul.bf16.gmra.mxu0 %v830
        %v1909 = vpop.f32.mrf.mxu0
        %v1910 = vadd.f32 %v1891, %v1909
        %v1911 = vpop.f32.mrf.mxu0
        %v1912 = vadd.f32 %v1893, %v1911
        %1913 = vmatmul.bf16.gmra.mxu0 %v833
        %v1914 = vpop.f32.mrf.mxu0
        %v1915 = vadd.f32 %v1896, %v1914
        %v1916 = vpop.f32.mrf.mxu0
        %v1917 = vadd.f32 %v1898, %v1916
        %1918 = vdwg.mxu0
        %1919 = vmatpush.bf16.msra.mxu0 %v1831
        %1920 = vmatpush.bf16.msra.mxu0 %v1829
        %1921 = vmatpush.bf16.msra.mxu0 %v1827
        %1922 = vmatpush.bf16.msra.mxu0 %v1825
        %1923 = vmatpush.bf16.msra.mxu0 %v1823
        %1924 = vmatpush.bf16.msra.mxu0 %v1821
        %1925 = vmatpush.bf16.msra.mxu0 %v1819
        %1926 = vmatpush.bf16.msra.mxu0 %v1817
        %1927 = vmatmul.bf16.gmra.mxu0 %v831
        %v1928 = vpop.f32.mrf.mxu0
        %v1929 = vadd.f32 %v1910, %v1928
        %v1930 = vpop.f32.mrf.mxu0
        %v1931 = vadd.f32 %v1912, %v1930
        %1932 = vmatmul.bf16.gmra.mxu0 %v834
        %v1933 = vpop.f32.mrf.mxu0
        %v1934 = vadd.f32 %v1915, %v1933
        %v1935 = vpop.f32.mrf.mxu0
        %v1936 = vadd.f32 %v1917, %v1935
        %1937 = vdwg.mxu0
        %1938 = vmatpush.bf16.msra.mxu0 %v1800
        %1939 = vmatpush.bf16.msra.mxu0 %v1798
        %1940 = vmatpush.bf16.msra.mxu0 %v1796
        %1941 = vmatpush.bf16.msra.mxu0 %v1794
        %1942 = vmatpush.bf16.msra.mxu0 %v1792
        %1943 = vmatpush.bf16.msra.mxu0 %v1790
        %1944 = vmatpush.bf16.msra.mxu0 %v1788
        %1945 = vmatpush.bf16.msra.mxu0 %v1786
        %1946 = vmatmul.bf16.gmra.mxu0 %v829
        %v1947 = vpop.f32.mrf.mxu0
        %v1948 = vadd.f32 0.0, %v1947
        %v1949 = vpop.f32.mrf.mxu0
        %v1950 = vadd.f32 0.0, %v1949
        %1951 = vmatmul.bf16.gmra.mxu0 %v832
        %v1952 = vpop.f32.mrf.mxu0
        %v1953 = vadd.f32 0.0, %v1952
        %v1954 = vpop.f32.mrf.mxu0
        %v1955 = vadd.f32 0.0, %v1954
        %1956 = vdwg.mxu0
        %1957 = vmatpush.bf16.msra.mxu0 %v1816
        %1958 = vmatpush.bf16.msra.mxu0 %v1814
        %1959 = vmatpush.bf16.msra.mxu0 %v1812
        %1960 = vmatpush.bf16.msra.mxu0 %v1810
        %1961 = vmatpush.bf16.msra.mxu0 %v1808
        %1962 = vmatpush.bf16.msra.mxu0 %v1806
        %1963 = vmatpush.bf16.msra.mxu0 %v1804
        %1964 = vmatpush.bf16.msra.mxu0 %v1802
        %1965 = vmatmul.bf16.gmra.mxu0 %v830
        %v1966 = vpop.f32.mrf.mxu0
        %v1967 = vadd.f32 %v1948, %v1966
        %v1968 = vpop.f32.mrf.mxu0
        %v1969 = vadd.f32 %v1950, %v1968
        %1970 = vmatmul.bf16.gmra.mxu0 %v833
        %v1971 = vpop.f32.mrf.mxu0
        %v1972 = vadd.f32 %v1953, %v1971
        %v1973 = vpop.f32.mrf.mxu0
        %v1974 = vadd.f32 %v1955, %v1973
        %1975 = vdwg.mxu0
        %1976 = vmatpush.bf16.msra.mxu0 %v1832
        %1977 = vmatpush.bf16.msra.mxu0 %v1830
        %1978 = vmatpush.bf16.msra.mxu0 %v1828
        %1979 = vmatpush.bf16.msra.mxu0 %v1826
        %1980 = vmatpush.bf16.msra.mxu0 %v1824
        %1981 = vmatpush.bf16.msra.mxu0 %v1822
        %1982 = vmatpush.bf16.msra.mxu0 %v1820
        %1983 = vmatpush.bf16.msra.mxu0 %v1818
        %1984 = vmatmul.bf16.gmra.mxu0 %v831
        %v1985 = vpop.f32.mrf.mxu0
        %v1986 = vadd.f32 %v1967, %v1985
        %v1987 = vpop.f32.mrf.mxu0
        %v1988 = vadd.f32 %v1969, %v1987
        %1989 = vmatmul.bf16.gmra.mxu0 %v834
        %v1990 = vpop.f32.mrf.mxu0
        %v1991 = vadd.f32 %v1972, %v1990
        %v1992 = vpop.f32.mrf.mxu0
        %v1993 = vadd.f32 %v1974, %v1992
        %1994 = vdwg.mxu0
        %vm2003 = vcmask 1046528
        %v2004 = vrot.slane %v1526, 1
        %v2005 = vrot.slane %v1528, 1
        %v2006 = vsel %vm2003, %v2004, %v2005
        %v2007 = vrot.slane %v1583, 1
        %v2008 = vrot.slane %v1585, 1
        %v2009 = vsel %vm2003, %v2007, %v2008
        %v2010 = vrot.slane %v1531, 1
        %v2011 = vsel %vm2003, %v2005, %v2010
        %v2012 = vrot.slane %v1588, 1
        %v2013 = vsel %vm2003, %v2008, %v2012
        %v2014 = vrot.slane %v1533, 1
        %v2015 = vsel %vm2003, %v2010, %v2014
        %v2016 = vrot.slane %v1590, 1
        %v2017 = vsel %vm2003, %v2012, %v2016
        %v2024 = vadd.f32 %v1127, %v2006
        %v2025 = vadd.f32 %v1181, %v2009
        %v2026 = vadd.f32 %v1129, %v2011
        %v2027 = vadd.f32 %v1183, %v2013
        %v2028 = vadd.f32 %v1132, %v2015
        %v2029 = vadd.f32 %v1186, %v2017
        %vm2038 = vcmask 1045504
        %v2039 = vrot.slane %v1929, 2
        %v2040 = vrot.slane %v1931, 2
        %v2041 = vsel %vm2038, %v2039, %v2040
        %v2042 = vrot.slane %v1986, 2
        %v2043 = vrot.slane %v1988, 2
        %v2044 = vsel %vm2038, %v2042, %v2043
        %v2045 = vrot.slane %v1934, 2
        %v2046 = vsel %vm2038, %v2040, %v2045
        %v2047 = vrot.slane %v1991, 2
        %v2048 = vsel %vm2038, %v2043, %v2047
        %v2049 = vrot.slane %v1936, 2
        %v2050 = vsel %vm2038, %v2045, %v2049
        %v2051 = vrot.slane %v1993, 2
        %v2052 = vsel %vm2038, %v2047, %v2051
        %v2059 = vadd.f32 %v2024, %v2041
        %v2060 = vadd.f32 %v2025, %v2044
        %v2061 = vadd.f32 %v2026, %v2046
        %v2062 = vadd.f32 %v2027, %v2048
        %v2063 = vadd.f32 %v2028, %v2050
        %v2064 = vadd.f32 %v2029, %v2052
        %v2065 = vld [vmem:[#allocation17] sm:$0x3]
        %v2067 = vperm.slane %v2065, 0
        %v2068 = vperm.slane %v2065, 1
        %v2071 = vadd.f32 %v2059, %v2067
        %v2072 = vadd.f32 %v2060, %v2068
        %v2073 = vadd.f32 %v2061, %v2067
        %v2074 = vadd.f32 %v2062, %v2068
        %v2075 = vadd.f32 %v2063, %v2067
        %v2076 = vadd.f32 %v2064, %v2068
        %v2077 = vmax.f32 %v2071, 0.0
        %v2078 = vmax.f32 %v2072, 0.0
        %v2079 = vmax.f32 %v2073, 0.0
        %v2080 = vmax.f32 %v2074, 0.0
        %v2081 = vmax.f32 %v2075, 0.0
        %v2082 = vmax.f32 %v2076, 0.0
        %2083 = vst [vmem:[#allocation2] sm:$0xff] 0.0
        %vm2084 = vcmask 883712
        %2085 = vst.msk [vmem:[#allocation2 + $0x8] sm:$0xff] %vm2084, 0.0
        %2086 = vst [vmem:[#allocation2 + $0x10] sm:$0xff] 0.0
        %2087 = vst.msk [vmem:[#allocation2 + $0x18] sm:$0xff] %vm2084, 0.0
        %2088 = vst [vmem:[#allocation2 + $0x20] sm:$0xff] 0.0
        %2089 = vst.msk [vmem:[#allocation2 + $0x28] sm:$0xff] %vm2084, 0.0
        %2090 = vst [vmem:[#allocation2 + $0x30] sm:$0xff] 0.0
        %2091 = vst.msk [vmem:[#allocation2 + $0x38] sm:$0xff] %vm2084, 0.0
        %2092 = vst [vmem:[#allocation2 + $0x40] sm:$0x3] 0.0
        %vm2093 = vcmask 877568
        %2094 = vst.msk [vmem:[#allocation2 + $0x48] sm:$0x3] %vm2093, 0.0
        %vm2101 = vcmask 1044480
        %v2102 = vrot.slane %v2077, 3
        %v2103 = vrot.slane %v2078, 3
        %v2104 = vrot.slane %v2079, 3
        %v2105 = vsel %vm2101, %v2102, %v2104
        %v2106 = vrot.slane %v2080, 3
        %v2107 = vsel %vm2101, %v2103, %v2106
        %v2108 = vrot.slane %v2081, 3
        %v2109 = vsel %vm2101, %v2104, %v2108
        %v2110 = vrot.slane %v2082, 3
        %v2111 = vsel %vm2101, %v2106, %v2110
        %2120 = vst [vmem:[#allocation2] sm:$0xe0] %v2102
        %vm2121 = vcmask 883717
        %2122 = vst.msk [vmem:[#allocation2 + $0x8] sm:$0xe0] %vm2121, %v2103
        %2123 = vst [vmem:[#allocation2 + $0x10] sm:$0xff] %v2105
        %2124 = vst.msk [vmem:[#allocation2 + $0x18] sm:$0xff] %vm2084, %v2107
        %2125 = vst [vmem:[#allocation2 + $0x20] sm:$0xff] %v2109
        %2126 = vst.msk [vmem:[#allocation2 + $0x28] sm:$0xff] %vm2084, %v2111
        %2127 = vst [vmem:[#allocation2 + $0x30] sm:$0x1f] %v2108
        %vm2128 = vcmask 880640
        %2129 = vst.msk [vmem:[#allocation2 + $0x38] sm:$0x1f] %vm2128, %v2110
        %v2130 = vld [vmem:[#allocation2] sm:$0xff]
        %v2131 = vld [vmem:[#allocation2 + $0x8] sm:$0xff]
        %v2132 = vld [vmem:[#allocation2 + $0x10] sm:$0xff]
        %v2133 = vld [vmem:[#allocation2 + $0x18] sm:$0xff]
        %v2134 = vld [vmem:[#allocation2 + $0x20] sm:$0xff]
        %v2135 = vld [vmem:[#allocation2 + $0x28] sm:$0xff]
        %v2136 = vld [vmem:[#allocation2 + $0x30] sm:$0xff]
        %v2137 = vld [vmem:[#allocation2 + $0x38] sm:$0xff]
        %v2138 = vld [vmem:[#allocation2 + $0x40] sm:$0x3]
        %v2139 = vld [vmem:[#allocation2 + $0x48] sm:$0x3]
        %v2140 = vpack.c.bf16 %v2132, %v2130
        %v2141 = vpack.c.bf16 %v2133, %v2131
        %v2142 = vpack.c.bf16 %v2136, %v2134
        %v2143 = vpack.c.bf16 %v2137, %v2135
        %v2144 = vpack.c.bf16 %v2138, %v2138
        %v2145 = vpack.c.bf16 %v2139, %v2139
        %v2146 = vld [vmem:[#allocation9] sm:$0xff]
        %v2147 = vld [vmem:[#allocation9 + $0x8] sm:$0xf]
        %v2148 = vld [vmem:[#allocation9 + $0xc] sm:$0xff]
        %v2149 = vld [vmem:[#allocation9 + $0x14] sm:$0xf]
        %v2150 = vld [vmem:[#allocation9 + $0x18] sm:$0xff]
        %v2151 = vld [vmem:[#allocation9 + $0x20] sm:$0xf]
        %v2152 = vld [vmem:[#allocation9 + $0x24] sm:$0xff]
        %v2153 = vld [vmem:[#allocation9 + $0x2c] sm:$0xf]
        %v2154 = vld [vmem:[#allocation9 + $0x30] sm:$0xff]
        %v2155 = vld [vmem:[#allocation9 + $0x38] sm:$0xf]
        %v2156 = vld [vmem:[#allocation9 + $0x3c] sm:$0xff]
        %v2157 = vld [vmem:[#allocation9 + $0x44] sm:$0xf]
        %v2158 = vld [vmem:[#allocation9 + $0x48] sm:$0xff]
        %v2159 = vld [vmem:[#allocation9 + $0x50] sm:$0xf]
        %v2160 = vld [vmem:[#allocation9 + $0x54] sm:$0xff]
        %v2161 = vld [vmem:[#allocation9 + $0x5c] sm:$0xf]
        %v2162 = vld [vmem:[#allocation9 + $0x60] sm:$0xff]
        %v2163 = vld [vmem:[#allocation9 + $0x68] sm:$0xf]
        %v2164 = vld [vmem:[#allocation9 + $0x6c] sm:$0xff]
        %v2165 = vld [vmem:[#allocation9 + $0x74] sm:$0xf]
        %v2166 = vld [vmem:[#allocation9 + $0x78] sm:$0xff]
        %v2167 = vld [vmem:[#allocation9 + $0x80] sm:$0xf]
        %v2168 = vld [vmem:[#allocation9 + $0x84] sm:$0xff]
        %v2169 = vld [vmem:[#allocation9 + $0x8c] sm:$0xf]
        %v2170 = vld [vmem:[#allocation9 + $0x90] sm:$0xff]
        %v2171 = vld [vmem:[#allocation9 + $0x98] sm:$0xf]
        %v2172 = vld [vmem:[#allocation9 + $0x9c] sm:$0xff]
        %v2173 = vld [vmem:[#allocation9 + $0xa4] sm:$0xf]
        %v2174 = vld [vmem:[#allocation9 + $0xa8] sm:$0xff]
        %v2175 = vld [vmem:[#allocation9 + $0xb0] sm:$0xf]
        %v2176 = vld [vmem:[#allocation9 + $0xb4] sm:$0xff]
        %v2177 = vld [vmem:[#allocation9 + $0xbc] sm:$0xf]
        %v2178 = vld [vmem:[#allocation9 + $0xc0] sm:$0xff]
        %v2179 = vld [vmem:[#allocation9 + $0xc8] sm:$0xf]
        %v2180 = vld [vmem:[#allocation9 + $0xcc] sm:$0xff]
        %v2181 = vld [vmem:[#allocation9 + $0xd4] sm:$0xf]
        %v2182 = vld [vmem:[#allocation9 + $0xd8] sm:$0xff]
        %v2183 = vld [vmem:[#allocation9 + $0xe0] sm:$0xf]
        %v2184 = vld [vmem:[#allocation9 + $0xe4] sm:$0xff]
        %v2185 = vld [vmem:[#allocation9 + $0xec] sm:$0xf]
        %v2186 = vld [vmem:[#allocation9 + $0xf0] sm:$0xff]
        %v2187 = vld [vmem:[#allocation9 + $0xf8] sm:$0xf]
        %v2188 = vld [vmem:[#allocation9 + $0xfc] sm:$0xff]
        %v2189 = vld [vmem:[#allocation9 + $0x104] sm:$0xf]
        %v2190 = vld [vmem:[#allocation9 + $0x108] sm:$0xff]
        %v2191 = vld [vmem:[#allocation9 + $0x110] sm:$0xf]
        %v2192 = vld [vmem:[#allocation9 + $0x114] sm:$0xff]
        %v2193 = vld [vmem:[#allocation9 + $0x11c] sm:$0xf]
        %v2194 = vld [vmem:[#allocation9 + $0x120] sm:$0xff]
        %v2195 = vld [vmem:[#allocation9 + $0x128] sm:$0xf]
        %v2196 = vld [vmem:[#allocation9 + $0x12c] sm:$0xff]
        %v2197 = vld [vmem:[#allocation9 + $0x134] sm:$0xf]
        %v2198 = vld [vmem:[#allocation9 + $0x138] sm:$0xff]
        %v2199 = vld [vmem:[#allocation9 + $0x140] sm:$0xf]
        %v2200 = vld [vmem:[#allocation9 + $0x144] sm:$0xff]
        %v2201 = vld [vmem:[#allocation9 + $0x14c] sm:$0xf]
        %v2202 = vld [vmem:[#allocation9 + $0x150] sm:$0xff]
        %v2203 = vld [vmem:[#allocation9 + $0x158] sm:$0xf]
        %v2204 = vld [vmem:[#allocation9 + $0x15c] sm:$0x33]
        %v2205 = vld [vmem:[#allocation9 + $0x164] sm:$0x3]
        %v2266 = vunpack.c.l.b16 %v2146
        %v2267 = vunpack.c.h.b16 %v2146
        %v2268 = vunpack.c.l.b16 %v2147
        %v2269 = vunpack.c.l.b16 %v2148
        %v2270 = vunpack.c.h.b16 %v2148
        %v2271 = vunpack.c.l.b16 %v2149
        %v2272 = vunpack.c.l.b16 %v2150
        %v2273 = vunpack.c.h.b16 %v2150
        %v2274 = vunpack.c.l.b16 %v2151
        %v2275 = vunpack.c.l.b16 %v2152
        %v2276 = vunpack.c.h.b16 %v2152
        %v2277 = vunpack.c.l.b16 %v2153
        %v2278 = vunpack.c.l.b16 %v2154
        %v2279 = vunpack.c.h.b16 %v2154
        %v2280 = vunpack.c.l.b16 %v2155
        %v2281 = vunpack.c.l.b16 %v2156
        %v2282 = vunpack.c.h.b16 %v2156
        %v2283 = vunpack.c.l.b16 %v2157
        %v2284 = vunpack.c.l.b16 %v2158
        %v2285 = vunpack.c.h.b16 %v2158
        %v2286 = vunpack.c.l.b16 %v2159
        %v2287 = vunpack.c.l.b16 %v2160
        %v2288 = vunpack.c.h.b16 %v2160
        %v2289 = vunpack.c.l.b16 %v2161
        %v2290 = vunpack.c.l.b16 %v2162
        %v2291 = vunpack.c.h.b16 %v2162
        %v2292 = vunpack.c.l.b16 %v2163
        %v2293 = vunpack.c.l.b16 %v2164
        %v2294 = vunpack.c.h.b16 %v2164
        %v2295 = vunpack.c.l.b16 %v2165
        %v2296 = vunpack.c.l.b16 %v2166
        %v2297 = vunpack.c.h.b16 %v2166
        %v2298 = vunpack.c.l.b16 %v2167
        %v2299 = vunpack.c.l.b16 %v2168
        %v2300 = vunpack.c.h.b16 %v2168
        %v2301 = vunpack.c.l.b16 %v2169
        %v2302 = vunpack.c.l.b16 %v2170
        %v2303 = vunpack.c.h.b16 %v2170
        %v2304 = vunpack.c.l.b16 %v2171
        %v2305 = vunpack.c.l.b16 %v2172
        %v2306 = vunpack.c.h.b16 %v2172
        %v2307 = vunpack.c.l.b16 %v2173
        %v2308 = vunpack.c.l.b16 %v2174
        %v2309 = vunpack.c.h.b16 %v2174
        %v2310 = vunpack.c.l.b16 %v2175
        %v2311 = vunpack.c.l.b16 %v2176
        %v2312 = vunpack.c.h.b16 %v2176
        %v2313 = vunpack.c.l.b16 %v2177
        %v2314 = vunpack.c.l.b16 %v2178
        %v2315 = vunpack.c.h.b16 %v2178
        %v2316 = vunpack.c.l.b16 %v2179
        %v2317 = vunpack.c.l.b16 %v2180
        %v2318 = vunpack.c.h.b16 %v2180
        %v2319 = vunpack.c.l.b16 %v2181
        %v2320 = vunpack.c.l.b16 %v2182
        %v2321 = vunpack.c.h.b16 %v2182
        %v2322 = vunpack.c.l.b16 %v2183
        %v2323 = vunpack.c.l.b16 %v2184
        %v2324 = vunpack.c.h.b16 %v2184
        %v2325 = vunpack.c.l.b16 %v2185
        %v2326 = vunpack.c.l.b16 %v2186
        %v2327 = vunpack.c.h.b16 %v2186
        %v2328 = vunpack.c.l.b16 %v2187
        %v2329 = vunpack.c.l.b16 %v2188
        %v2330 = vunpack.c.h.b16 %v2188
        %v2331 = vunpack.c.l.b16 %v2189
        %v2332 = vunpack.c.l.b16 %v2190
        %v2333 = vunpack.c.h.b16 %v2190
        %v2334 = vunpack.c.l.b16 %v2191
        %v2335 = vunpack.c.l.b16 %v2192
        %v2336 = vunpack.c.h.b16 %v2192
        %v2337 = vunpack.c.l.b16 %v2193
        %v2338 = vunpack.c.l.b16 %v2194
        %v2339 = vunpack.c.h.b16 %v2194
        %v2340 = vunpack.c.l.b16 %v2195
        %v2341 = vunpack.c.l.b16 %v2196
        %v2342 = vunpack.c.h.b16 %v2196
        %v2343 = vunpack.c.l.b16 %v2197
        %v2344 = vunpack.c.l.b16 %v2198
        %v2345 = vunpack.c.h.b16 %v2198
        %v2346 = vunpack.c.l.b16 %v2199
        %v2347 = vunpack.c.l.b16 %v2200
        %v2348 = vunpack.c.h.b16 %v2200
        %v2349 = vunpack.c.l.b16 %v2201
        %v2350 = vunpack.c.l.b16 %v2202
        %v2351 = vunpack.c.h.b16 %v2202
        %v2352 = vunpack.c.l.b16 %v2203
        %v2353 = vunpack.c.l.b16 %v2204
        %v2354 = vunpack.c.h.b16 %v2204
        %v2355 = vunpack.c.l.b16 %v2205
        %v2356 = vpack.c.b16 %v2269, %v2266
        %v2357 = vpack.c.b16 %v2270, %v2267
        %v2358 = vpack.c.b16 %v2271, %v2268
        %v2359 = vpack.c.b16 %v2275, %v2272
        %v2360 = vpack.c.b16 %v2276, %v2273
        %v2361 = vpack.c.b16 %v2277, %v2274
        %v2362 = vpack.c.b16 %v2281, %v2278
        %v2363 = vpack.c.b16 %v2282, %v2279
        %v2364 = vpack.c.b16 %v2283, %v2280
        %v2365 = vpack.c.b16 %v2287, %v2284
        %v2366 = vpack.c.b16 %v2288, %v2285
        %v2367 = vpack.c.b16 %v2289, %v2286
        %v2368 = vpack.c.b16 %v2293, %v2290
        %v2369 = vpack.c.b16 %v2294, %v2291
        %v2370 = vpack.c.b16 %v2295, %v2292
        %v2371 = vpack.c.b16 %v2299, %v2296
        %v2372 = vpack.c.b16 %v2300, %v2297
        %v2373 = vpack.c.b16 %v2301, %v2298
        %v2374 = vpack.c.b16 %v2305, %v2302
        %v2375 = vpack.c.b16 %v2306, %v2303
        %v2376 = vpack.c.b16 %v2307, %v2304
        %v2377 = vpack.c.b16 %v2311, %v2308
        %v2378 = vpack.c.b16 %v2312, %v2309
        %v2379 = vpack.c.b16 %v2313, %v2310
        %v2380 = vpack.c.b16 %v2317, %v2314
        %v2381 = vpack.c.b16 %v2318, %v2315
        %v2382 = vpack.c.b16 %v2319, %v2316
        %v2383 = vpack.c.b16 %v2323, %v2320
        %v2384 = vpack.c.b16 %v2324, %v2321
        %v2385 = vpack.c.b16 %v2325, %v2322
        %v2386 = vpack.c.b16 %v2329, %v2326
        %v2387 = vpack.c.b16 %v2330, %v2327
        %v2388 = vpack.c.b16 %v2331, %v2328
        %v2389 = vpack.c.b16 %v2335, %v2332
        %v2390 = vpack.c.b16 %v2336, %v2333
        %v2391 = vpack.c.b16 %v2337, %v2334
        %v2392 = vpack.c.b16 %v2341, %v2338
        %v2393 = vpack.c.b16 %v2342, %v2339
        %v2394 = vpack.c.b16 %v2343, %v2340
        %v2395 = vpack.c.b16 %v2347, %v2344
        %v2396 = vpack.c.b16 %v2348, %v2345
        %v2397 = vpack.c.b16 %v2349, %v2346
        %v2398 = vpack.c.b16 %v2353, %v2350
        %v2399 = vpack.c.b16 %v2354, %v2351
        %v2400 = vpack.c.b16 %v2355, %v2352
        %v2444 = vsel %vm2084, %v2141, 0
        %v2447 = vsel %vm2084, %v2143, 0
        %v2450 = vsel %vm2084, %v2145, 0
        %v2453 = vsel %vm2038, %v2398, 0
        %v2456 = vsel %vm2038, %v2399, 0
        %v2459 = vsel %vm2038, %v2400, 0
        %2461 = vmatpush.bf16.msra.mxu0 %v2377
        %2462 = vmatpush.bf16.msra.mxu0 %v2374
        %2463 = vmatpush.bf16.msra.mxu0 %v2371
        %2464 = vmatpush.bf16.msra.mxu0 %v2368
        %2465 = vmatpush.bf16.msra.mxu0 %v2365
        %2466 = vmatpush.bf16.msra.mxu0 %v2362
        %2467 = vmatpush.bf16.msra.mxu0 %v2359
        %2468 = vmatpush.bf16.msra.mxu0 %v2356
        %2469 = vmatmul.bf16.gmra.mxu0 %v2140
        %v2470 = vpop.f32.mrf.mxu0
        %v2471 = vadd.f32 0.0, %v2470
        %v2472 = vpop.f32.mrf.mxu0
        %v2473 = vadd.f32 0.0, %v2472
        %2474 = vmatmul.bf16.gmra.mxu0 %v2142
        %v2475 = vpop.f32.mrf.mxu0
        %v2476 = vadd.f32 0.0, %v2475
        %v2477 = vpop.f32.mrf.mxu0
        %v2478 = vadd.f32 0.0, %v2477
        %2479 = vmatmul.bf16.gmra.mxu0 %v2144
        %v2480 = vpop.f32.mrf.mxu0
        %v2481 = vpop.f32.mrf.mxu0
        %2482 = vdwg.mxu0
        %2483 = vmatpush.bf16.msra.mxu0 0
        %2484 = vmatpush.bf16.msra.mxu0 %v2453
        %2485 = vmatpush.bf16.msra.mxu0 %v2395
        %2486 = vmatpush.bf16.msra.mxu0 %v2392
        %2487 = vmatpush.bf16.msra.mxu0 %v2389
        %2488 = vmatpush.bf16.msra.mxu0 %v2386
        %2489 = vmatpush.bf16.msra.mxu0 %v2383
        %2490 = vmatpush.bf16.msra.mxu0 %v2380
        %2491 = vmatmul.bf16.gmra.mxu0 %v2444
        %v2492 = vpop.f32.mrf.mxu0
        %v2493 = vadd.f32 %v2471, %v2492
        %v2494 = vpop.f32.mrf.mxu0
        %v2495 = vadd.f32 %v2473, %v2494
        %2496 = vmatmul.bf16.gmra.mxu0 %v2447
        %v2497 = vpop.f32.mrf.mxu0
        %v2498 = vadd.f32 %v2476, %v2497
        %v2499 = vpop.f32.mrf.mxu0
        %v2500 = vadd.f32 %v2478, %v2499
        %2501 = vmatmul.bf16.gmra.mxu0 %v2450
        %v2502 = vpop.f32.mrf.mxu0
        %v2503 = vpop.f32.mrf.mxu0
        %2504 = vdwg.mxu0
        %2505 = vmatpush.bf16.msra.mxu0 %v2378
        %2506 = vmatpush.bf16.msra.mxu0 %v2375
        %2507 = vmatpush.bf16.msra.mxu0 %v2372
        %2508 = vmatpush.bf16.msra.mxu0 %v2369
        %2509 = vmatpush.bf16.msra.mxu0 %v2366
        %2510 = vmatpush.bf16.msra.mxu0 %v2363
        %2511 = vmatpush.bf16.msra.mxu0 %v2360
        %2512 = vmatpush.bf16.msra.mxu0 %v2357
        %2513 = vmatmul.bf16.gmra.mxu0 %v2140
        %v2514 = vpop.f32.mrf.mxu0
        %v2515 = vadd.f32 0.0, %v2514
        %v2516 = vpop.f32.mrf.mxu0
        %v2517 = vadd.f32 0.0, %v2516
        %2518 = vmatmul.bf16.gmra.mxu0 %v2142
        %v2519 = vpop.f32.mrf.mxu0
        %v2520 = vadd.f32 0.0, %v2519
        %v2521 = vpop.f32.mrf.mxu0
        %v2522 = vadd.f32 0.0, %v2521
        %2523 = vmatmul.bf16.gmra.mxu0 %v2144
        %v2524 = vpop.f32.mrf.mxu0
        %v2525 = vpop.f32.mrf.mxu0
        %2526 = vdwg.mxu0
        %2527 = vmatpush.bf16.msra.mxu0 0
        %2528 = vmatpush.bf16.msra.mxu0 %v2456
        %2529 = vmatpush.bf16.msra.mxu0 %v2396
        %2530 = vmatpush.bf16.msra.mxu0 %v2393
        %2531 = vmatpush.bf16.msra.mxu0 %v2390
        %2532 = vmatpush.bf16.msra.mxu0 %v2387
        %2533 = vmatpush.bf16.msra.mxu0 %v2384
        %2534 = vmatpush.bf16.msra.mxu0 %v2381
        %2535 = vmatmul.bf16.gmra.mxu0 %v2444
        %v2536 = vpop.f32.mrf.mxu0
        %v2537 = vadd.f32 %v2515, %v2536
        %v2538 = vpop.f32.mrf.mxu0
        %v2539 = vadd.f32 %v2517, %v2538
        %2540 = vmatmul.bf16.gmra.mxu0 %v2447
        %v2541 = vpop.f32.mrf.mxu0
        %v2542 = vadd.f32 %v2520, %v2541
        %v2543 = vpop.f32.mrf.mxu0
        %v2544 = vadd.f32 %v2522, %v2543
        %2545 = vmatmul.bf16.gmra.mxu0 %v2450
        %v2546 = vpop.f32.mrf.mxu0
        %v2547 = vpop.f32.mrf.mxu0
        %2548 = vdwg.mxu0
        %2549 = vmatpush.bf16.msra.mxu0 %v2379
        %2550 = vmatpush.bf16.msra.mxu0 %v2376
        %2551 = vmatpush.bf16.msra.mxu0 %v2373
        %2552 = vmatpush.bf16.msra.mxu0 %v2370
        %2553 = vmatpush.bf16.msra.mxu0 %v2367
        %2554 = vmatpush.bf16.msra.mxu0 %v2364
        %2555 = vmatpush.bf16.msra.mxu0 %v2361
        %2556 = vmatpush.bf16.msra.mxu0 %v2358
        %2557 = vmatmul.bf16.gmra.mxu0 %v2140
        %v2558 = vpop.f32.mrf.mxu0
        %v2559 = vadd.f32 0.0, %v2558
        %v2560 = vpop.f32.mrf.mxu0
        %v2561 = vadd.f32 0.0, %v2560
        %2562 = vmatmul.bf16.gmra.mxu0 %v2142
        %v2563 = vpop.f32.mrf.mxu0
        %v2564 = vadd.f32 0.0, %v2563
        %v2565 = vpop.f32.mrf.mxu0
        %v2566 = vadd.f32 0.0, %v2565
        %2567 = vmatmul.bf16.gmra.mxu0 %v2144
        %v2568 = vpop.f32.mrf.mxu0
        %v2569 = vpop.f32.mrf.mxu0
        %2570 = vdwg.mxu0
        %2571 = vmatpush.bf16.msra.mxu0 0
        %2572 = vmatpush.bf16.msra.mxu0 %v2459
        %2573 = vmatpush.bf16.msra.mxu0 %v2397
        %2574 = vmatpush.bf16.msra.mxu0 %v2394
        %2575 = vmatpush.bf16.msra.mxu0 %v2391
        %2576 = vmatpush.bf16.msra.mxu0 %v2388
        %2577 = vmatpush.bf16.msra.mxu0 %v2385
        %2578 = vmatpush.bf16.msra.mxu0 %v2382
        %2579 = vmatmul.bf16.gmra.mxu0 %v2444
        %v2580 = vpop.f32.mrf.mxu0
        %v2581 = vadd.f32 %v2559, %v2580
        %v2582 = vpop.f32.mrf.mxu0
        %v2583 = vadd.f32 %v2561, %v2582
        %2584 = vmatmul.bf16.gmra.mxu0 %v2447
        %v2585 = vpop.f32.mrf.mxu0
        %v2586 = vadd.f32 %v2564, %v2585
        %v2587 = vpop.f32.mrf.mxu0
        %v2588 = vadd.f32 %v2566, %v2587
        %2589 = vmatmul.bf16.gmra.mxu0 %v2450
        %v2590 = vpop.f32.mrf.mxu0
        %v2591 = vpop.f32.mrf.mxu0
        %2592 = vdwg.mxu0
        %s2593 = scalar_lea.vmem [#allocation9], 360
        %v2594 = vld [vmem:[%s2593] sm:$0xff]
        %v2595 = vld [vmem:[%s2593 + $0x8] sm:$0xf]
        %v2596 = vld [vmem:[%s2593 + $0xc] sm:$0xff]
        %v2597 = vld [vmem:[%s2593 + $0x14] sm:$0xf]
        %v2598 = vld [vmem:[%s2593 + $0x18] sm:$0xff]
        %v2599 = vld [vmem:[%s2593 + $0x20] sm:$0xf]
        %v2600 = vld [vmem:[%s2593 + $0x24] sm:$0xff]
        %v2601 = vld [vmem:[%s2593 + $0x2c] sm:$0xf]
        %v2602 = vld [vmem:[%s2593 + $0x30] sm:$0xff]
        %v2603 = vld [vmem:[%s2593 + $0x38] sm:$0xf]
        %v2604 = vld [vmem:[%s2593 + $0x3c] sm:$0xff]
        %v2605 = vld [vmem:[%s2593 + $0x44] sm:$0xf]
        %v2606 = vld [vmem:[%s2593 + $0x48] sm:$0xff]
        %v2607 = vld [vmem:[%s2593 + $0x50] sm:$0xf]
        %v2608 = vld [vmem:[%s2593 + $0x54] sm:$0xff]
        %v2609 = vld [vmem:[%s2593 + $0x5c] sm:$0xf]
        %v2610 = vld [vmem:[%s2593 + $0x60] sm:$0xff]
        %v2611 = vld [vmem:[%s2593 + $0x68] sm:$0xf]
        %v2612 = vld [vmem:[%s2593 + $0x6c] sm:$0xff]
        %v2613 = vld [vmem:[%s2593 + $0x74] sm:$0xf]
        %v2614 = vld [vmem:[%s2593 + $0x78] sm:$0xff]
        %v2615 = vld [vmem:[%s2593 + $0x80] sm:$0xf]
        %v2616 = vld [vmem:[%s2593 + $0x84] sm:$0xff]
        %v2617 = vld [vmem:[%s2593 + $0x8c] sm:$0xf]
        %v2618 = vld [vmem:[%s2593 + $0x90] sm:$0xff]
        %v2619 = vld [vmem:[%s2593 + $0x98] sm:$0xf]
        %v2620 = vld [vmem:[%s2593 + $0x9c] sm:$0xff]
        %v2621 = vld [vmem:[%s2593 + $0xa4] sm:$0xf]
        %v2622 = vld [vmem:[%s2593 + $0xa8] sm:$0xff]
        %v2623 = vld [vmem:[%s2593 + $0xb0] sm:$0xf]
        %v2624 = vld [vmem:[%s2593 + $0xb4] sm:$0xff]
        %v2625 = vld [vmem:[%s2593 + $0xbc] sm:$0xf]
        %v2626 = vld [vmem:[%s2593 + $0xc0] sm:$0xff]
        %v2627 = vld [vmem:[%s2593 + $0xc8] sm:$0xf]
        %v2628 = vld [vmem:[%s2593 + $0xcc] sm:$0xff]
        %v2629 = vld [vmem:[%s2593 + $0xd4] sm:$0xf]
        %v2630 = vld [vmem:[%s2593 + $0xd8] sm:$0xff]
        %v2631 = vld [vmem:[%s2593 + $0xe0] sm:$0xf]
        %v2632 = vld [vmem:[%s2593 + $0xe4] sm:$0xff]
        %v2633 = vld [vmem:[%s2593 + $0xec] sm:$0xf]
        %v2634 = vld [vmem:[%s2593 + $0xf0] sm:$0xff]
        %v2635 = vld [vmem:[%s2593 + $0xf8] sm:$0xf]
        %v2636 = vld [vmem:[%s2593 + $0xfc] sm:$0xff]
        %v2637 = vld [vmem:[%s2593 + $0x104] sm:$0xf]
        %v2638 = vld [vmem:[%s2593 + $0x108] sm:$0xff]
        %v2639 = vld [vmem:[%s2593 + $0x110] sm:$0xf]
        %v2640 = vld [vmem:[%s2593 + $0x114] sm:$0xff]
        %v2641 = vld [vmem:[%s2593 + $0x11c] sm:$0xf]
        %v2642 = vld [vmem:[%s2593 + $0x120] sm:$0xff]
        %v2643 = vld [vmem:[%s2593 + $0x128] sm:$0xf]
        %v2644 = vld [vmem:[%s2593 + $0x12c] sm:$0xff]
        %v2645 = vld [vmem:[%s2593 + $0x134] sm:$0xf]
        %v2646 = vld [vmem:[%s2593 + $0x138] sm:$0xff]
        %v2647 = vld [vmem:[%s2593 + $0x140] sm:$0xf]
        %v2648 = vld [vmem:[%s2593 + $0x144] sm:$0xff]
        %v2649 = vld [vmem:[%s2593 + $0x14c] sm:$0xf]
        %v2650 = vld [vmem:[%s2593 + $0x150] sm:$0xff]
        %v2651 = vld [vmem:[%s2593 + $0x158] sm:$0xf]
        %v2652 = vld [vmem:[%s2593 + $0x15c] sm:$0x33]
        %v2653 = vld [vmem:[%s2593 + $0x164] sm:$0x3]
        %v2714 = vunpack.c.l.b16 %v2594
        %v2715 = vunpack.c.h.b16 %v2594
        %v2716 = vunpack.c.l.b16 %v2595
        %v2717 = vunpack.c.l.b16 %v2596
        %v2718 = vunpack.c.h.b16 %v2596
        %v2719 = vunpack.c.l.b16 %v2597
        %v2720 = vunpack.c.l.b16 %v2598
        %v2721 = vunpack.c.h.b16 %v2598
        %v2722 = vunpack.c.l.b16 %v2599
        %v2723 = vunpack.c.l.b16 %v2600
        %v2724 = vunpack.c.h.b16 %v2600
        %v2725 = vunpack.c.l.b16 %v2601
        %v2726 = vunpack.c.l.b16 %v2602
        %v2727 = vunpack.c.h.b16 %v2602
        %v2728 = vunpack.c.l.b16 %v2603
        %v2729 = vunpack.c.l.b16 %v2604
        %v2730 = vunpack.c.h.b16 %v2604
        %v2731 = vunpack.c.l.b16 %v2605
        %v2732 = vunpack.c.l.b16 %v2606
        %v2733 = vunpack.c.h.b16 %v2606
        %v2734 = vunpack.c.l.b16 %v2607
        %v2735 = vunpack.c.l.b16 %v2608
        %v2736 = vunpack.c.h.b16 %v2608
        %v2737 = vunpack.c.l.b16 %v2609
        %v2738 = vunpack.c.l.b16 %v2610
        %v2739 = vunpack.c.h.b16 %v2610
        %v2740 = vunpack.c.l.b16 %v2611
        %v2741 = vunpack.c.l.b16 %v2612
        %v2742 = vunpack.c.h.b16 %v2612
        %v2743 = vunpack.c.l.b16 %v2613
        %v2744 = vunpack.c.l.b16 %v2614
        %v2745 = vunpack.c.h.b16 %v2614
        %v2746 = vunpack.c.l.b16 %v2615
        %v2747 = vunpack.c.l.b16 %v2616
        %v2748 = vunpack.c.h.b16 %v2616
        %v2749 = vunpack.c.l.b16 %v2617
        %v2750 = vunpack.c.l.b16 %v2618
        %v2751 = vunpack.c.h.b16 %v2618
        %v2752 = vunpack.c.l.b16 %v2619
        %v2753 = vunpack.c.l.b16 %v2620
        %v2754 = vunpack.c.h.b16 %v2620
        %v2755 = vunpack.c.l.b16 %v2621
        %v2756 = vunpack.c.l.b16 %v2622
        %v2757 = vunpack.c.h.b16 %v2622
        %v2758 = vunpack.c.l.b16 %v2623
        %v2759 = vunpack.c.l.b16 %v2624
        %v2760 = vunpack.c.h.b16 %v2624
        %v2761 = vunpack.c.l.b16 %v2625
        %v2762 = vunpack.c.l.b16 %v2626
        %v2763 = vunpack.c.h.b16 %v2626
        %v2764 = vunpack.c.l.b16 %v2627
        %v2765 = vunpack.c.l.b16 %v2628
        %v2766 = vunpack.c.h.b16 %v2628
        %v2767 = vunpack.c.l.b16 %v2629
        %v2768 = vunpack.c.l.b16 %v2630
        %v2769 = vunpack.c.h.b16 %v2630
        %v2770 = vunpack.c.l.b16 %v2631
        %v2771 = vunpack.c.l.b16 %v2632
        %v2772 = vunpack.c.h.b16 %v2632
        %v2773 = vunpack.c.l.b16 %v2633
        %v2774 = vunpack.c.l.b16 %v2634
        %v2775 = vunpack.c.h.b16 %v2634
        %v2776 = vunpack.c.l.b16 %v2635
        %v2777 = vunpack.c.l.b16 %v2636
        %v2778 = vunpack.c.h.b16 %v2636
        %v2779 = vunpack.c.l.b16 %v2637
        %v2780 = vunpack.c.l.b16 %v2638
        %v2781 = vunpack.c.h.b16 %v2638
        %v2782 = vunpack.c.l.b16 %v2639
        %v2783 = vunpack.c.l.b16 %v2640
        %v2784 = vunpack.c.h.b16 %v2640
        %v2785 = vunpack.c.l.b16 %v2641
        %v2786 = vunpack.c.l.b16 %v2642
        %v2787 = vunpack.c.h.b16 %v2642
        %v2788 = vunpack.c.l.b16 %v2643
        %v2789 = vunpack.c.l.b16 %v2644
        %v2790 = vunpack.c.h.b16 %v2644
        %v2791 = vunpack.c.l.b16 %v2645
        %v2792 = vunpack.c.l.b16 %v2646
        %v2793 = vunpack.c.h.b16 %v2646
        %v2794 = vunpack.c.l.b16 %v2647
        %v2795 = vunpack.c.l.b16 %v2648
        %v2796 = vunpack.c.h.b16 %v2648
        %v2797 = vunpack.c.l.b16 %v2649
        %v2798 = vunpack.c.l.b16 %v2650
        %v2799 = vunpack.c.h.b16 %v2650
        %v2800 = vunpack.c.l.b16 %v2651
        %v2801 = vunpack.c.l.b16 %v2652
        %v2802 = vunpack.c.h.b16 %v2652
        %v2803 = vunpack.c.l.b16 %v2653
        %v2804 = vpack.c.b16 %v2717, %v2714
        %v2805 = vpack.c.b16 %v2718, %v2715
        %v2806 = vpack.c.b16 %v2719, %v2716
        %v2807 = vpack.c.b16 %v2723, %v2720
        %v2808 = vpack.c.b16 %v2724, %v2721
        %v2809 = vpack.c.b16 %v2725, %v2722
        %v2810 = vpack.c.b16 %v2729, %v2726
        %v2811 = vpack.c.b16 %v2730, %v2727
        %v2812 = vpack.c.b16 %v2731, %v2728
        %v2813 = vpack.c.b16 %v2735, %v2732
        %v2814 = vpack.c.b16 %v2736, %v2733
        %v2815 = vpack.c.b16 %v2737, %v2734
        %v2816 = vpack.c.b16 %v2741, %v2738
        %v2817 = vpack.c.b16 %v2742, %v2739
        %v2818 = vpack.c.b16 %v2743, %v2740
        %v2819 = vpack.c.b16 %v2747, %v2744
        %v2820 = vpack.c.b16 %v2748, %v2745
        %v2821 = vpack.c.b16 %v2749, %v2746
        %v2822 = vpack.c.b16 %v2753, %v2750
        %v2823 = vpack.c.b16 %v2754, %v2751
        %v2824 = vpack.c.b16 %v2755, %v2752
        %v2825 = vpack.c.b16 %v2759, %v2756
        %v2826 = vpack.c.b16 %v2760, %v2757
        %v2827 = vpack.c.b16 %v2761, %v2758
        %v2828 = vpack.c.b16 %v2765, %v2762
        %v2829 = vpack.c.b16 %v2766, %v2763
        %v2830 = vpack.c.b16 %v2767, %v2764
        %v2831 = vpack.c.b16 %v2771, %v2768
        %v2832 = vpack.c.b16 %v2772, %v2769
        %v2833 = vpack.c.b16 %v2773, %v2770
        %v2834 = vpack.c.b16 %v2777, %v2774
        %v2835 = vpack.c.b16 %v2778, %v2775
        %v2836 = vpack.c.b16 %v2779, %v2776
        %v2837 = vpack.c.b16 %v2783, %v2780
        %v2838 = vpack.c.b16 %v2784, %v2781
        %v2839 = vpack.c.b16 %v2785, %v2782
        %v2840 = vpack.c.b16 %v2789, %v2786
        %v2841 = vpack.c.b16 %v2790, %v2787
        %v2842 = vpack.c.b16 %v2791, %v2788
        %v2843 = vpack.c.b16 %v2795, %v2792
        %v2844 = vpack.c.b16 %v2796, %v2793
        %v2845 = vpack.c.b16 %v2797, %v2794
        %v2846 = vpack.c.b16 %v2801, %v2798
        %v2847 = vpack.c.b16 %v2802, %v2799
        %v2848 = vpack.c.b16 %v2803, %v2800
        %v2892 = vsel %vm2038, %v2846, 0
        %v2895 = vsel %vm2038, %v2847, 0
        %v2898 = vsel %vm2038, %v2848, 0
        %2900 = vmatpush.bf16.msra.mxu0 %v2825
        %2901 = vmatpush.bf16.msra.mxu0 %v2822
        %2902 = vmatpush.bf16.msra.mxu0 %v2819
        %2903 = vmatpush.bf16.msra.mxu0 %v2816
        %2904 = vmatpush.bf16.msra.mxu0 %v2813
        %2905 = vmatpush.bf16.msra.mxu0 %v2810
        %2906 = vmatpush.bf16.msra.mxu0 %v2807
        %2907 = vmatpush.bf16.msra.mxu0 %v2804
        %2908 = vmatmul.bf16.gmra.mxu0 %v2140
        %v2909 = vpop.f32.mrf.mxu0
        %v2910 = vadd.f32 0.0, %v2909
        %v2911 = vpop.f32.mrf.mxu0
        %v2912 = vadd.f32 0.0, %v2911
        %2913 = vmatmul.bf16.gmra.mxu0 %v2142
        %v2914 = vpop.f32.mrf.mxu0
        %v2915 = vadd.f32 0.0, %v2914
        %v2916 = vpop.f32.mrf.mxu0
        %v2917 = vadd.f32 0.0, %v2916
        %2918 = vmatmul.bf16.gmra.mxu0 %v2144
        %v2919 = vpop.f32.mrf.mxu0
        %v2920 = vadd.f32 0.0, %v2919
        %v2921 = vpop.f32.mrf.mxu0
        %2922 = vdwg.mxu0
        %2923 = vmatpush.bf16.msra.mxu0 0
        %2924 = vmatpush.bf16.msra.mxu0 %v2892
        %2925 = vmatpush.bf16.msra.mxu0 %v2843
        %2926 = vmatpush.bf16.msra.mxu0 %v2840
        %2927 = vmatpush.bf16.msra.mxu0 %v2837
        %2928 = vmatpush.bf16.msra.mxu0 %v2834
        %2929 = vmatpush.bf16.msra.mxu0 %v2831
        %2930 = vmatpush.bf16.msra.mxu0 %v2828
        %2931 = vmatmul.bf16.gmra.mxu0 %v2444
        %v2932 = vpop.f32.mrf.mxu0
        %v2933 = vadd.f32 %v2910, %v2932
        %v2934 = vpop.f32.mrf.mxu0
        %v2935 = vadd.f32 %v2912, %v2934
        %2936 = vmatmul.bf16.gmra.mxu0 %v2447
        %v2937 = vpop.f32.mrf.mxu0
        %v2938 = vadd.f32 %v2915, %v2937
        %v2939 = vpop.f32.mrf.mxu0
        %v2940 = vadd.f32 %v2917, %v2939
        %2941 = vmatmul.bf16.gmra.mxu0 %v2450
        %v2942 = vpop.f32.mrf.mxu0
        %v2943 = vadd.f32 %v2920, %v2942
        %v2944 = vpop.f32.mrf.mxu0
        %2945 = vdwg.mxu0
        %2946 = vmatpush.bf16.msra.mxu0 %v2826
        %2947 = vmatpush.bf16.msra.mxu0 %v2823
        %2948 = vmatpush.bf16.msra.mxu0 %v2820
        %2949 = vmatpush.bf16.msra.mxu0 %v2817
        %2950 = vmatpush.bf16.msra.mxu0 %v2814
        %2951 = vmatpush.bf16.msra.mxu0 %v2811
        %2952 = vmatpush.bf16.msra.mxu0 %v2808
        %2953 = vmatpush.bf16.msra.mxu0 %v2805
        %2954 = vmatmul.bf16.gmra.mxu0 %v2140
        %v2955 = vpop.f32.mrf.mxu0
        %v2956 = vadd.f32 0.0, %v2955
        %v2957 = vpop.f32.mrf.mxu0
        %v2958 = vadd.f32 0.0, %v2957
        %2959 = vmatmul.bf16.gmra.mxu0 %v2142
        %v2960 = vpop.f32.mrf.mxu0
        %v2961 = vadd.f32 0.0, %v2960
        %v2962 = vpop.f32.mrf.mxu0
        %v2963 = vadd.f32 0.0, %v2962
        %2964 = vmatmul.bf16.gmra.mxu0 %v2144
        %v2965 = vpop.f32.mrf.mxu0
        %v2966 = vadd.f32 0.0, %v2965
        %v2967 = vpop.f32.mrf.mxu0
        %2968 = vdwg.mxu0
        %2969 = vmatpush.bf16.msra.mxu0 0
        %2970 = vmatpush.bf16.msra.mxu0 %v2895
        %2971 = vmatpush.bf16.msra.mxu0 %v2844
        %2972 = vmatpush.bf16.msra.mxu0 %v2841
        %2973 = vmatpush.bf16.msra.mxu0 %v2838
        %2974 = vmatpush.bf16.msra.mxu0 %v2835
        %2975 = vmatpush.bf16.msra.mxu0 %v2832
        %2976 = vmatpush.bf16.msra.mxu0 %v2829
        %2977 = vmatmul.bf16.gmra.mxu0 %v2444
        %v2978 = vpop.f32.mrf.mxu0
        %v2979 = vadd.f32 %v2956, %v2978
        %v2980 = vpop.f32.mrf.mxu0
        %v2981 = vadd.f32 %v2958, %v2980
        %2982 = vmatmul.bf16.gmra.mxu0 %v2447
        %v2983 = vpop.f32.mrf.mxu0
        %v2984 = vadd.f32 %v2961, %v2983
        %v2985 = vpop.f32.mrf.mxu0
        %v2986 = vadd.f32 %v2963, %v2985
        %2987 = vmatmul.bf16.gmra.mxu0 %v2450
        %v2988 = vpop.f32.mrf.mxu0
        %v2989 = vadd.f32 %v2966, %v2988
        %v2990 = vpop.f32.mrf.mxu0
        %2991 = vdwg.mxu0
        %2992 = vmatpush.bf16.msra.mxu0 %v2827
        %2993 = vmatpush.bf16.msra.mxu0 %v2824
        %2994 = vmatpush.bf16.msra.mxu0 %v2821
        %2995 = vmatpush.bf16.msra.mxu0 %v2818
        %2996 = vmatpush.bf16.msra.mxu0 %v2815
        %2997 = vmatpush.bf16.msra.mxu0 %v2812
        %2998 = vmatpush.bf16.msra.mxu0 %v2809
        %2999 = vmatpush.bf16.msra.mxu0 %v2806
        %3000 = vmatmul.bf16.gmra.mxu0 %v2140
        %v3001 = vpop.f32.mrf.mxu0
        %v3002 = vadd.f32 0.0, %v3001
        %v3003 = vpop.f32.mrf.mxu0
        %v3004 = vadd.f32 0.0, %v3003
        %3005 = vmatmul.bf16.gmra.mxu0 %v2142
        %v3006 = vpop.f32.mrf.mxu0
        %v3007 = vadd.f32 0.0, %v3006
        %v3008 = vpop.f32.mrf.mxu0
        %v3009 = vadd.f32 0.0, %v3008
        %3010 = vmatmul.bf16.gmra.mxu0 %v2144
        %v3011 = vpop.f32.mrf.mxu0
        %v3012 = vadd.f32 0.0, %v3011
        %v3013 = vpop.f32.mrf.mxu0
        %3014 = vdwg.mxu0
        %3015 = vmatpush.bf16.msra.mxu0 0
        %3016 = vmatpush.bf16.msra.mxu0 %v2898
        %3017 = vmatpush.bf16.msra.mxu0 %v2845
        %3018 = vmatpush.bf16.msra.mxu0 %v2842
        %3019 = vmatpush.bf16.msra.mxu0 %v2839
        %3020 = vmatpush.bf16.msra.mxu0 %v2836
        %3021 = vmatpush.bf16.msra.mxu0 %v2833
        %3022 = vmatpush.bf16.msra.mxu0 %v2830
        %3023 = vmatmul.bf16.gmra.mxu0 %v2444
        %v3024 = vpop.f32.mrf.mxu0
        %v3025 = vadd.f32 %v3002, %v3024
        %v3026 = vpop.f32.mrf.mxu0
        %v3027 = vadd.f32 %v3004, %v3026
        %3028 = vmatmul.bf16.gmra.mxu0 %v2447
        %v3029 = vpop.f32.mrf.mxu0
        %v3030 = vadd.f32 %v3007, %v3029
        %v3031 = vpop.f32.mrf.mxu0
        %v3032 = vadd.f32 %v3009, %v3031
        %3033 = vmatmul.bf16.gmra.mxu0 %v2450
        %v3034 = vpop.f32.mrf.mxu0
        %v3035 = vadd.f32 %v3012, %v3034
        %v3036 = vpop.f32.mrf.mxu0
        %3037 = vdwg.mxu0
        %s3038 = scalar_lea.vmem [#allocation9], 720
        %v3039 = vld [vmem:[%s3038] sm:$0xff]
        %v3040 = vld [vmem:[%s3038 + $0x8] sm:$0xf]
        %v3041 = vld [vmem:[%s3038 + $0xc] sm:$0xff]
        %v3042 = vld [vmem:[%s3038 + $0x14] sm:$0xf]
        %v3043 = vld [vmem:[%s3038 + $0x18] sm:$0xff]
        %v3044 = vld [vmem:[%s3038 + $0x20] sm:$0xf]
        %v3045 = vld [vmem:[%s3038 + $0x24] sm:$0xff]
        %v3046 = vld [vmem:[%s3038 + $0x2c] sm:$0xf]
        %v3047 = vld [vmem:[%s3038 + $0x30] sm:$0xff]
        %v3048 = vld [vmem:[%s3038 + $0x38] sm:$0xf]
        %v3049 = vld [vmem:[%s3038 + $0x3c] sm:$0xff]
        %v3050 = vld [vmem:[%s3038 + $0x44] sm:$0xf]
        %v3051 = vld [vmem:[%s3038 + $0x48] sm:$0xff]
        %v3052 = vld [vmem:[%s3038 + $0x50] sm:$0xf]
        %v3053 = vld [vmem:[%s3038 + $0x54] sm:$0xff]
        %v3054 = vld [vmem:[%s3038 + $0x5c] sm:$0xf]
        %v3055 = vld [vmem:[%s3038 + $0x60] sm:$0xff]
        %v3056 = vld [vmem:[%s3038 + $0x68] sm:$0xf]
        %v3057 = vld [vmem:[%s3038 + $0x6c] sm:$0xff]
        %v3058 = vld [vmem:[%s3038 + $0x74] sm:$0xf]
        %v3059 = vld [vmem:[%s3038 + $0x78] sm:$0xff]
        %v3060 = vld [vmem:[%s3038 + $0x80] sm:$0xf]
        %v3061 = vld [vmem:[%s3038 + $0x84] sm:$0xff]
        %v3062 = vld [vmem:[%s3038 + $0x8c] sm:$0xf]
        %v3063 = vld [vmem:[%s3038 + $0x90] sm:$0xff]
        %v3064 = vld [vmem:[%s3038 + $0x98] sm:$0xf]
        %v3065 = vld [vmem:[%s3038 + $0x9c] sm:$0xff]
        %v3066 = vld [vmem:[%s3038 + $0xa4] sm:$0xf]
        %v3067 = vld [vmem:[%s3038 + $0xa8] sm:$0xff]
        %v3068 = vld [vmem:[%s3038 + $0xb0] sm:$0xf]
        %v3069 = vld [vmem:[%s3038 + $0xb4] sm:$0xff]
        %v3070 = vld [vmem:[%s3038 + $0xbc] sm:$0xf]
        %v3071 = vld [vmem:[%s3038 + $0xc0] sm:$0xff]
        %v3072 = vld [vmem:[%s3038 + $0xc8] sm:$0xf]
        %v3073 = vld [vmem:[%s3038 + $0xcc] sm:$0xff]
        %v3074 = vld [vmem:[%s3038 + $0xd4] sm:$0xf]
        %v3075 = vld [vmem:[%s3038 + $0xd8] sm:$0xff]
        %v3076 = vld [vmem:[%s3038 + $0xe0] sm:$0xf]
        %v3077 = vld [vmem:[%s3038 + $0xe4] sm:$0xff]
        %v3078 = vld [vmem:[%s3038 + $0xec] sm:$0xf]
        %v3079 = vld [vmem:[%s3038 + $0xf0] sm:$0xff]
        %v3080 = vld [vmem:[%s3038 + $0xf8] sm:$0xf]
        %v3081 = vld [vmem:[%s3038 + $0xfc] sm:$0xff]
        %v3082 = vld [vmem:[%s3038 + $0x104] sm:$0xf]
        %v3083 = vld [vmem:[%s3038 + $0x108] sm:$0xff]
        %v3084 = vld [vmem:[%s3038 + $0x110] sm:$0xf]
        %v3085 = vld [vmem:[%s3038 + $0x114] sm:$0xff]
        %v3086 = vld [vmem:[%s3038 + $0x11c] sm:$0xf]
        %v3087 = vld [vmem:[%s3038 + $0x120] sm:$0xff]
        %v3088 = vld [vmem:[%s3038 + $0x128] sm:$0xf]
        %v3089 = vld [vmem:[%s3038 + $0x12c] sm:$0xff]
        %v3090 = vld [vmem:[%s3038 + $0x134] sm:$0xf]
        %v3091 = vld [vmem:[%s3038 + $0x138] sm:$0xff]
        %v3092 = vld [vmem:[%s3038 + $0x140] sm:$0xf]
        %v3093 = vld [vmem:[%s3038 + $0x144] sm:$0xff]
        %v3094 = vld [vmem:[%s3038 + $0x14c] sm:$0xf]
        %v3095 = vld [vmem:[%s3038 + $0x150] sm:$0xff]
        %v3096 = vld [vmem:[%s3038 + $0x158] sm:$0xf]
        %v3097 = vld [vmem:[%s3038 + $0x15c] sm:$0x33]
        %v3098 = vld [vmem:[%s3038 + $0x164] sm:$0x3]
        %v3159 = vunpack.c.l.b16 %v3039
        %v3160 = vunpack.c.h.b16 %v3039
        %v3161 = vunpack.c.l.b16 %v3040
        %v3162 = vunpack.c.l.b16 %v3041
        %v3163 = vunpack.c.h.b16 %v3041
        %v3164 = vunpack.c.l.b16 %v3042
        %v3165 = vunpack.c.l.b16 %v3043
        %v3166 = vunpack.c.h.b16 %v3043
        %v3167 = vunpack.c.l.b16 %v3044
        %v3168 = vunpack.c.l.b16 %v3045
        %v3169 = vunpack.c.h.b16 %v3045
        %v3170 = vunpack.c.l.b16 %v3046
        %v3171 = vunpack.c.l.b16 %v3047
        %v3172 = vunpack.c.h.b16 %v3047
        %v3173 = vunpack.c.l.b16 %v3048
        %v3174 = vunpack.c.l.b16 %v3049
        %v3175 = vunpack.c.h.b16 %v3049
        %v3176 = vunpack.c.l.b16 %v3050
        %v3177 = vunpack.c.l.b16 %v3051
        %v3178 = vunpack.c.h.b16 %v3051
        %v3179 = vunpack.c.l.b16 %v3052
        %v3180 = vunpack.c.l.b16 %v3053
        %v3181 = vunpack.c.h.b16 %v3053
        %v3182 = vunpack.c.l.b16 %v3054
        %v3183 = vunpack.c.l.b16 %v3055
        %v3184 = vunpack.c.h.b16 %v3055
        %v3185 = vunpack.c.l.b16 %v3056
        %v3186 = vunpack.c.l.b16 %v3057
        %v3187 = vunpack.c.h.b16 %v3057
        %v3188 = vunpack.c.l.b16 %v3058
        %v3189 = vunpack.c.l.b16 %v3059
        %v3190 = vunpack.c.h.b16 %v3059
        %v3191 = vunpack.c.l.b16 %v3060
        %v3192 = vunpack.c.l.b16 %v3061
        %v3193 = vunpack.c.h.b16 %v3061
        %v3194 = vunpack.c.l.b16 %v3062
        %v3195 = vunpack.c.l.b16 %v3063
        %v3196 = vunpack.c.h.b16 %v3063
        %v3197 = vunpack.c.l.b16 %v3064
        %v3198 = vunpack.c.l.b16 %v3065
        %v3199 = vunpack.c.h.b16 %v3065
        %v3200 = vunpack.c.l.b16 %v3066
        %v3201 = vunpack.c.l.b16 %v3067
        %v3202 = vunpack.c.h.b16 %v3067
        %v3203 = vunpack.c.l.b16 %v3068
        %v3204 = vunpack.c.l.b16 %v3069
        %v3205 = vunpack.c.h.b16 %v3069
        %v3206 = vunpack.c.l.b16 %v3070
        %v3207 = vunpack.c.l.b16 %v3071
        %v3208 = vunpack.c.h.b16 %v3071
        %v3209 = vunpack.c.l.b16 %v3072
        %v3210 = vunpack.c.l.b16 %v3073
        %v3211 = vunpack.c.h.b16 %v3073
        %v3212 = vunpack.c.l.b16 %v3074
        %v3213 = vunpack.c.l.b16 %v3075
        %v3214 = vunpack.c.h.b16 %v3075
        %v3215 = vunpack.c.l.b16 %v3076
        %v3216 = vunpack.c.l.b16 %v3077
        %v3217 = vunpack.c.h.b16 %v3077
        %v3218 = vunpack.c.l.b16 %v3078
        %v3219 = vunpack.c.l.b16 %v3079
        %v3220 = vunpack.c.h.b16 %v3079
        %v3221 = vunpack.c.l.b16 %v3080
        %v3222 = vunpack.c.l.b16 %v3081
        %v3223 = vunpack.c.h.b16 %v3081
        %v3224 = vunpack.c.l.b16 %v3082
        %v3225 = vunpack.c.l.b16 %v3083
        %v3226 = vunpack.c.h.b16 %v3083
        %v3227 = vunpack.c.l.b16 %v3084
        %v3228 = vunpack.c.l.b16 %v3085
        %v3229 = vunpack.c.h.b16 %v3085
        %v3230 = vunpack.c.l.b16 %v3086
        %v3231 = vunpack.c.l.b16 %v3087
        %v3232 = vunpack.c.h.b16 %v3087
        %v3233 = vunpack.c.l.b16 %v3088
        %v3234 = vunpack.c.l.b16 %v3089
        %v3235 = vunpack.c.h.b16 %v3089
        %v3236 = vunpack.c.l.b16 %v3090
        %v3237 = vunpack.c.l.b16 %v3091
        %v3238 = vunpack.c.h.b16 %v3091
        %v3239 = vunpack.c.l.b16 %v3092
        %v3240 = vunpack.c.l.b16 %v3093
        %v3241 = vunpack.c.h.b16 %v3093
        %v3242 = vunpack.c.l.b16 %v3094
        %v3243 = vunpack.c.l.b16 %v3095
        %v3244 = vunpack.c.h.b16 %v3095
        %v3245 = vunpack.c.l.b16 %v3096
        %v3246 = vunpack.c.l.b16 %v3097
        %v3247 = vunpack.c.h.b16 %v3097
        %v3248 = vunpack.c.l.b16 %v3098
        %v3249 = vpack.c.b16 %v3162, %v3159
        %v3250 = vpack.c.b16 %v3163, %v3160
        %v3251 = vpack.c.b16 %v3164, %v3161
        %v3252 = vpack.c.b16 %v3168, %v3165
        %v3253 = vpack.c.b16 %v3169, %v3166
        %v3254 = vpack.c.b16 %v3170, %v3167
        %v3255 = vpack.c.b16 %v3174, %v3171
        %v3256 = vpack.c.b16 %v3175, %v3172
        %v3257 = vpack.c.b16 %v3176, %v3173
        %v3258 = vpack.c.b16 %v3180, %v3177
        %v3259 = vpack.c.b16 %v3181, %v3178
        %v3260 = vpack.c.b16 %v3182, %v3179
        %v3261 = vpack.c.b16 %v3186, %v3183
        %v3262 = vpack.c.b16 %v3187, %v3184
        %v3263 = vpack.c.b16 %v3188, %v3185
        %v3264 = vpack.c.b16 %v3192, %v3189
        %v3265 = vpack.c.b16 %v3193, %v3190
        %v3266 = vpack.c.b16 %v3194, %v3191
        %v3267 = vpack.c.b16 %v3198, %v3195
        %v3268 = vpack.c.b16 %v3199, %v3196
        %v3269 = vpack.c.b16 %v3200, %v3197
        %v3270 = vpack.c.b16 %v3204, %v3201
        %v3271 = vpack.c.b16 %v3205, %v3202
        %v3272 = vpack.c.b16 %v3206, %v3203
        %v3273 = vpack.c.b16 %v3210, %v3207
        %v3274 = vpack.c.b16 %v3211, %v3208
        %v3275 = vpack.c.b16 %v3212, %v3209
        %v3276 = vpack.c.b16 %v3216, %v3213
        %v3277 = vpack.c.b16 %v3217, %v3214
        %v3278 = vpack.c.b16 %v3218, %v3215
        %v3279 = vpack.c.b16 %v3222, %v3219
        %v3280 = vpack.c.b16 %v3223, %v3220
        %v3281 = vpack.c.b16 %v3224, %v3221
        %v3282 = vpack.c.b16 %v3228, %v3225
        %v3283 = vpack.c.b16 %v3229, %v3226
        %v3284 = vpack.c.b16 %v3230, %v3227
        %v3285 = vpack.c.b16 %v3234, %v3231
        %v3286 = vpack.c.b16 %v3235, %v3232
        %v3287 = vpack.c.b16 %v3236, %v3233
        %v3288 = vpack.c.b16 %v3240, %v3237
        %v3289 = vpack.c.b16 %v3241, %v3238
        %v3290 = vpack.c.b16 %v3242, %v3239
        %v3291 = vpack.c.b16 %v3246, %v3243
        %v3292 = vpack.c.b16 %v3247, %v3244
        %v3293 = vpack.c.b16 %v3248, %v3245
        %v3337 = vsel %vm2038, %v3291, 0
        %v3340 = vsel %vm2038, %v3292, 0
        %v3343 = vsel %vm2038, %v3293, 0
        %3345 = vmatpush.bf16.msra.mxu0 %v3270
        %3346 = vmatpush.bf16.msra.mxu0 %v3267
        %3347 = vmatpush.bf16.msra.mxu0 %v3264
        %3348 = vmatpush.bf16.msra.mxu0 %v3261
        %3349 = vmatpush.bf16.msra.mxu0 %v3258
        %3350 = vmatpush.bf16.msra.mxu0 %v3255
        %3351 = vmatpush.bf16.msra.mxu0 %v3252
        %3352 = vmatpush.bf16.msra.mxu0 %v3249
        %3353 = vmatmul.bf16.gmra.mxu0 %v2140
        %v3354 = vpop.f32.mrf.mxu0
        %v3355 = vadd.f32 0.0, %v3354
        %v3356 = vpop.f32.mrf.mxu0
        %v3357 = vadd.f32 0.0, %v3356
        %3358 = vmatmul.bf16.gmra.mxu0 %v2142
        %v3359 = vpop.f32.mrf.mxu0
        %v3360 = vadd.f32 0.0, %v3359
        %v3361 = vpop.f32.mrf.mxu0
        %v3362 = vadd.f32 0.0, %v3361
        %3363 = vmatmul.bf16.gmra.mxu0 %v2144
        %v3364 = vpop.f32.mrf.mxu0
        %v3365 = vadd.f32 0.0, %v3364
        %v3366 = vpop.f32.mrf.mxu0
        %3367 = vdwg.mxu0
        %3368 = vmatpush.bf16.msra.mxu0 0
        %3369 = vmatpush.bf16.msra.mxu0 %v3337
        %3370 = vmatpush.bf16.msra.mxu0 %v3288
        %3371 = vmatpush.bf16.msra.mxu0 %v3285
        %3372 = vmatpush.bf16.msra.mxu0 %v3282
        %3373 = vmatpush.bf16.msra.mxu0 %v3279
        %3374 = vmatpush.bf16.msra.mxu0 %v3276
        %3375 = vmatpush.bf16.msra.mxu0 %v3273
        %3376 = vmatmul.bf16.gmra.mxu0 %v2444
        %v3377 = vpop.f32.mrf.mxu0
        %v3378 = vadd.f32 %v3355, %v3377
        %v3379 = vpop.f32.mrf.mxu0
        %v3380 = vadd.f32 %v3357, %v3379
        %3381 = vmatmul.bf16.gmra.mxu0 %v2447
        %v3382 = vpop.f32.mrf.mxu0
        %v3383 = vadd.f32 %v3360, %v3382
        %v3384 = vpop.f32.mrf.mxu0
        %v3385 = vadd.f32 %v3362, %v3384
        %3386 = vmatmul.bf16.gmra.mxu0 %v2450
        %v3387 = vpop.f32.mrf.mxu0
        %v3388 = vadd.f32 %v3365, %v3387
        %v3389 = vpop.f32.mrf.mxu0
        %3390 = vdwg.mxu0
        %3391 = vmatpush.bf16.msra.mxu0 %v3271
        %3392 = vmatpush.bf16.msra.mxu0 %v3268
        %3393 = vmatpush.bf16.msra.mxu0 %v3265
        %3394 = vmatpush.bf16.msra.mxu0 %v3262
        %3395 = vmatpush.bf16.msra.mxu0 %v3259
        %3396 = vmatpush.bf16.msra.mxu0 %v3256
        %3397 = vmatpush.bf16.msra.mxu0 %v3253
        %3398 = vmatpush.bf16.msra.mxu0 %v3250
        %3399 = vmatmul.bf16.gmra.mxu0 %v2140
        %v3400 = vpop.f32.mrf.mxu0
        %v3401 = vadd.f32 0.0, %v3400
        %v3402 = vpop.f32.mrf.mxu0
        %v3403 = vadd.f32 0.0, %v3402
        %3404 = vmatmul.bf16.gmra.mxu0 %v2142
        %v3405 = vpop.f32.mrf.mxu0
        %v3406 = vadd.f32 0.0, %v3405
        %v3407 = vpop.f32.mrf.mxu0
        %v3408 = vadd.f32 0.0, %v3407
        %3409 = vmatmul.bf16.gmra.mxu0 %v2144
        %v3410 = vpop.f32.mrf.mxu0
        %v3411 = vadd.f32 0.0, %v3410
        %v3412 = vpop.f32.mrf.mxu0
        %3413 = vdwg.mxu0
        %3414 = vmatpush.bf16.msra.mxu0 0
        %3415 = vmatpush.bf16.msra.mxu0 %v3340
        %3416 = vmatpush.bf16.msra.mxu0 %v3289
        %3417 = vmatpush.bf16.msra.mxu0 %v3286
        %3418 = vmatpush.bf16.msra.mxu0 %v3283
        %3419 = vmatpush.bf16.msra.mxu0 %v3280
        %3420 = vmatpush.bf16.msra.mxu0 %v3277
        %3421 = vmatpush.bf16.msra.mxu0 %v3274
        %3422 = vmatmul.bf16.gmra.mxu0 %v2444
        %v3423 = vpop.f32.mrf.mxu0
        %v3424 = vadd.f32 %v3401, %v3423
        %v3425 = vpop.f32.mrf.mxu0
        %v3426 = vadd.f32 %v3403, %v3425
        %3427 = vmatmul.bf16.gmra.mxu0 %v2447
        %v3428 = vpop.f32.mrf.mxu0
        %v3429 = vadd.f32 %v3406, %v3428
        %v3430 = vpop.f32.mrf.mxu0
        %v3431 = vadd.f32 %v3408, %v3430
        %3432 = vmatmul.bf16.gmra.mxu0 %v2450
        %v3433 = vpop.f32.mrf.mxu0
        %v3434 = vadd.f32 %v3411, %v3433
        %v3435 = vpop.f32.mrf.mxu0
        %3436 = vdwg.mxu0
        %3437 = vmatpush.bf16.msra.mxu0 %v3272
        %3438 = vmatpush.bf16.msra.mxu0 %v3269
        %3439 = vmatpush.bf16.msra.mxu0 %v3266
        %3440 = vmatpush.bf16.msra.mxu0 %v3263
        %3441 = vmatpush.bf16.msra.mxu0 %v3260
        %3442 = vmatpush.bf16.msra.mxu0 %v3257
        %3443 = vmatpush.bf16.msra.mxu0 %v3254
        %3444 = vmatpush.bf16.msra.mxu0 %v3251
        %3445 = vmatmul.bf16.gmra.mxu0 %v2140
        %v3446 = vpop.f32.mrf.mxu0
        %v3447 = vadd.f32 0.0, %v3446
        %v3448 = vpop.f32.mrf.mxu0
        %v3449 = vadd.f32 0.0, %v3448
        %3450 = vmatmul.bf16.gmra.mxu0 %v2142
        %v3451 = vpop.f32.mrf.mxu0
        %v3452 = vadd.f32 0.0, %v3451
        %v3453 = vpop.f32.mrf.mxu0
        %v3454 = vadd.f32 0.0, %v3453
        %3455 = vmatmul.bf16.gmra.mxu0 %v2144
        %v3456 = vpop.f32.mrf.mxu0
        %v3457 = vadd.f32 0.0, %v3456
        %v3458 = vpop.f32.mrf.mxu0
        %3459 = vdwg.mxu0
        %3460 = vmatpush.bf16.msra.mxu0 0
        %3461 = vmatpush.bf16.msra.mxu0 %v3343
        %3462 = vmatpush.bf16.msra.mxu0 %v3290
        %3463 = vmatpush.bf16.msra.mxu0 %v3287
        %3464 = vmatpush.bf16.msra.mxu0 %v3284
        %3465 = vmatpush.bf16.msra.mxu0 %v3281
        %3466 = vmatpush.bf16.msra.mxu0 %v3278
        %3467 = vmatpush.bf16.msra.mxu0 %v3275
        %3468 = vmatmul.bf16.gmra.mxu0 %v2444
        %v3469 = vpop.f32.mrf.mxu0
        %v3470 = vadd.f32 %v3447, %v3469
        %v3471 = vpop.f32.mrf.mxu0
        %v3472 = vadd.f32 %v3449, %v3471
        %3473 = vmatmul.bf16.gmra.mxu0 %v2447
        %v3474 = vpop.f32.mrf.mxu0
        %v3475 = vadd.f32 %v3452, %v3474
        %v3476 = vpop.f32.mrf.mxu0
        %v3477 = vadd.f32 %v3454, %v3476
        %3478 = vmatmul.bf16.gmra.mxu0 %v2450
        %v3479 = vpop.f32.mrf.mxu0
        %v3480 = vadd.f32 %v3457, %v3479
        %v3481 = vpop.f32.mrf.mxu0
        %3482 = vdwg.mxu0
        %v3498 = vrot.slane %v2933, 1
        %v3499 = vrot.slane %v2935, 1
        %v3500 = vsel %vm2003, %v3498, %v3499
        %v3501 = vrot.slane %v2979, 1
        %v3502 = vrot.slane %v2981, 1
        %v3503 = vsel %vm2003, %v3501, %v3502
        %v3504 = vrot.slane %v3025, 1
        %v3505 = vrot.slane %v3027, 1
        %v3506 = vsel %vm2003, %v3504, %v3505
        %v3507 = vrot.slane %v2938, 1
        %v3508 = vsel %vm2003, %v3499, %v3507
        %v3509 = vrot.slane %v2984, 1
        %v3510 = vsel %vm2003, %v3502, %v3509
        %v3511 = vrot.slane %v3030, 1
        %v3512 = vsel %vm2003, %v3505, %v3511
        %v3513 = vrot.slane %v2940, 1
        %v3514 = vsel %vm2003, %v3507, %v3513
        %v3515 = vrot.slane %v2986, 1
        %v3516 = vsel %vm2003, %v3509, %v3515
        %v3517 = vrot.slane %v3032, 1
        %v3518 = vsel %vm2003, %v3511, %v3517
        %v3519 = vrot.slane %v2943, 1
        %v3520 = vsel %vm2003, %v3513, %v3519
        %v3521 = vrot.slane %v2989, 1
        %v3522 = vsel %vm2003, %v3515, %v3521
        %v3523 = vrot.slane %v3035, 1
        %v3524 = vsel %vm2003, %v3517, %v3523
        %v3537 = vadd.f32 %v2493, %v3500
        %v3538 = vadd.f32 %v2537, %v3503
        %v3539 = vadd.f32 %v2581, %v3506
        %v3540 = vadd.f32 %v2495, %v3508
        %v3541 = vadd.f32 %v2539, %v3510
        %v3542 = vadd.f32 %v2583, %v3512
        %v3543 = vadd.f32 %v2498, %v3514
        %v3544 = vadd.f32 %v2542, %v3516
        %v3545 = vadd.f32 %v2586, %v3518
        %v3546 = vadd.f32 %v2500, %v3520
        %v3547 = vadd.f32 %v2544, %v3522
        %v3548 = vadd.f32 %v2588, %v3524
        %v3564 = vrot.slane %v3378, 2
        %v3565 = vrot.slane %v3380, 2
        %v3566 = vsel %vm2038, %v3564, %v3565
        %v3567 = vrot.slane %v3424, 2
        %v3568 = vrot.slane %v3426, 2
        %v3569 = vsel %vm2038, %v3567, %v3568
        %v3570 = vrot.slane %v3470, 2
        %v3571 = vrot.slane %v3472, 2
        %v3572 = vsel %vm2038, %v3570, %v3571
        %v3573 = vrot.slane %v3383, 2
        %v3574 = vsel %vm2038, %v3565, %v3573
        %v3575 = vrot.slane %v3429, 2
        %v3576 = vsel %vm2038, %v3568, %v3575
        %v3577 = vrot.slane %v3475, 2
        %v3578 = vsel %vm2038, %v3571, %v3577
        %v3579 = vrot.slane %v3385, 2
        %v3580 = vsel %vm2038, %v3573, %v3579
        %v3581 = vrot.slane %v3431, 2
        %v3582 = vsel %vm2038, %v3575, %v3581
        %v3583 = vrot.slane %v3477, 2
        %v3584 = vsel %vm2038, %v3577, %v3583
        %v3585 = vrot.slane %v3388, 2
        %v3586 = vsel %vm2038, %v3579, %v3585
        %v3587 = vrot.slane %v3434, 2
        %v3588 = vsel %vm2038, %v3581, %v3587
        %v3589 = vrot.slane %v3480, 2
        %v3590 = vsel %vm2038, %v3583, %v3589
        %v3603 = vadd.f32 %v3537, %v3566
        %v3604 = vadd.f32 %v3538, %v3569
        %v3605 = vadd.f32 %v3539, %v3572
        %v3606 = vadd.f32 %v3540, %v3574
        %v3607 = vadd.f32 %v3541, %v3576
        %v3608 = vadd.f32 %v3542, %v3578
        %v3609 = vadd.f32 %v3543, %v3580
        %v3610 = vadd.f32 %v3544, %v3582
        %v3611 = vadd.f32 %v3545, %v3584
        %v3612 = vadd.f32 %v3546, %v3586
        %v3613 = vadd.f32 %v3547, %v3588
        %v3614 = vadd.f32 %v3548, %v3590
        %v3615 = vld [vmem:[#allocation18] sm:$0x7]
        %v3617 = vperm.slane %v3615, 0
        %v3618 = vperm.slane %v3615, 1
        %v3619 = vperm.slane %v3615, 2
        %v3623 = vadd.f32 %v3603, %v3617
        %v3624 = vadd.f32 %v3604, %v3618
        %v3625 = vadd.f32 %v3605, %v3619
        %v3626 = vadd.f32 %v3606, %v3617
        %v3627 = vadd.f32 %v3607, %v3618
        %v3628 = vadd.f32 %v3608, %v3619
        %v3629 = vadd.f32 %v3609, %v3617
        %v3630 = vadd.f32 %v3610, %v3618
        %v3631 = vadd.f32 %v3611, %v3619
        %v3632 = vadd.f32 %v3612, %v3617
        %v3633 = vadd.f32 %v3613, %v3618
        %v3634 = vadd.f32 %v3614, %v3619
        %v3635 = vmax.f32 %v3623, 0.0
        %v3636 = vmax.f32 %v3624, 0.0
        %v3637 = vmax.f32 %v3625, 0.0
        %v3638 = vmax.f32 %v3626, 0.0
        %v3639 = vmax.f32 %v3627, 0.0
        %v3640 = vmax.f32 %v3628, 0.0
        %v3641 = vmax.f32 %v3629, 0.0
        %v3642 = vmax.f32 %v3630, 0.0
        %v3643 = vmax.f32 %v3631, 0.0
        %v3644 = vmax.f32 %v3632, 0.0
        %v3645 = vmax.f32 %v3633, 0.0
        %v3646 = vmax.f32 %v3634, 0.0
        %3647 = vst [vmem:[#allocation3] sm:$0xff] 0.0
        %3648 = vst [vmem:[#allocation3 + $0x8] sm:$0xff] 0.0
        %3649 = vst [vmem:[#allocation3 + $0x10] sm:$0xff] 0.0
        %3650 = vst [vmem:[#allocation3 + $0x18] sm:$0xff] 0.0
        %3651 = vst [vmem:[#allocation3 + $0x20] sm:$0xff] 0.0
        %3652 = vst [vmem:[#allocation3 + $0x28] sm:$0xff] 0.0
        %3653 = vst [vmem:[#allocation3 + $0x30] sm:$0xff] 0.0
        %3654 = vst [vmem:[#allocation3 + $0x38] sm:$0xff] 0.0
        %3655 = vst [vmem:[#allocation3 + $0x40] sm:$0xff] 0.0
        %3656 = vst [vmem:[#allocation3 + $0x48] sm:$0xff] 0.0
        %3657 = vst [vmem:[#allocation3 + $0x50] sm:$0xff] 0.0
        %3658 = vst [vmem:[#allocation3 + $0x58] sm:$0xff] 0.0
        %3659 = vst [vmem:[#allocation3 + $0x60] sm:$0xff] 0.0
        %3660 = vst [vmem:[#allocation3 + $0x68] sm:$0xff] 0.0
        %3661 = vst [vmem:[#allocation3 + $0x70] sm:$0xff] 0.0
        %3662 = vst [vmem:[#allocation3 + $0x78] sm:$0x3] 0.0
        %3663 = vst [vmem:[#allocation3 + $0x80] sm:$0x3] 0.0
        %3664 = vst [vmem:[#allocation3 + $0x88] sm:$0x3] 0.0
        %v3677 = vrot.slane %v3635, 3
        %v3678 = vrot.slane %v3636, 3
        %v3679 = vrot.slane %v3637, 3
        %v3680 = vrot.slane %v3638, 3
        %v3681 = vsel %vm2101, %v3677, %v3680
        %v3682 = vrot.slane %v3639, 3
        %v3683 = vsel %vm2101, %v3678, %v3682
        %v3684 = vrot.slane %v3640, 3
        %v3685 = vsel %vm2101, %v3679, %v3684
        %v3686 = vrot.slane %v3641, 3
        %v3687 = vsel %vm2101, %v3680, %v3686
        %v3688 = vrot.slane %v3642, 3
        %v3689 = vsel %vm2101, %v3682, %v3688
        %v3690 = vrot.slane %v3643, 3
        %v3691 = vsel %vm2101, %v3684, %v3690
        %v3692 = vrot.slane %v3644, 3
        %v3693 = vsel %vm2101, %v3686, %v3692
        %v3694 = vrot.slane %v3645, 3
        %v3695 = vsel %vm2101, %v3688, %v3694
        %v3696 = vrot.slane %v3646, 3
        %v3697 = vsel %vm2101, %v3690, %v3696
        %3713 = vst [vmem:[#allocation3] sm:$0xe0] %v3677
        %3714 = vst [vmem:[#allocation3 + $0x8] sm:$0xe0] %v3678
        %3715 = vst [vmem:[#allocation3 + $0x10] sm:$0xe0] %v3679
        %3716 = vst [vmem:[#allocation3 + $0x18] sm:$0xff] %v3681
        %3717 = vst [vmem:[#allocation3 + $0x20] sm:$0xff] %v3683
        %3718 = vst [vmem:[#allocation3 + $0x28] sm:$0xff] %v3685
        %3719 = vst [vmem:[#allocation3 + $0x30] sm:$0xff] %v3687
        %3720 = vst [vmem:[#allocation3 + $0x38] sm:$0xff] %v3689
        %3721 = vst [vmem:[#allocation3 + $0x40] sm:$0xff] %v3691
        %3722 = vst [vmem:[#allocation3 + $0x48] sm:$0xff] %v3693
        %3723 = vst [vmem:[#allocation3 + $0x50] sm:$0xff] %v3695
        %3724 = vst [vmem:[#allocation3 + $0x58] sm:$0xff] %v3697
        %3725 = vst [vmem:[#allocation3 + $0x60] sm:$0x1f] %v3692
        %3726 = vst [vmem:[#allocation3 + $0x68] sm:$0x1f] %v3694
        %3727 = vst [vmem:[#allocation3 + $0x70] sm:$0x1f] %v3696
        %v3728 = vld [vmem:[#allocation3] sm:$0xff]
        %v3729 = vld [vmem:[#allocation3 + $0x8] sm:$0xff]
        %v3730 = vld [vmem:[#allocation3 + $0x10] sm:$0xff]
        %v3731 = vld [vmem:[#allocation3 + $0x18] sm:$0xff]
        %v3732 = vld [vmem:[#allocation3 + $0x20] sm:$0xff]
        %v3733 = vld [vmem:[#allocation3 + $0x28] sm:$0xff]
        %v3734 = vld [vmem:[#allocation3 + $0x30] sm:$0xff]
        %v3735 = vld [vmem:[#allocation3 + $0x38] sm:$0xff]
        %v3736 = vld [vmem:[#allocation3 + $0x40] sm:$0xff]
        %v3737 = vld [vmem:[#allocation3 + $0x48] sm:$0xff]
        %v3738 = vld [vmem:[#allocation3 + $0x50] sm:$0xff]
        %v3739 = vld [vmem:[#allocation3 + $0x58] sm:$0xff]
        %v3740 = vld [vmem:[#allocation3 + $0x60] sm:$0xff]
        %v3741 = vld [vmem:[#allocation3 + $0x68] sm:$0xff]
        %v3742 = vld [vmem:[#allocation3 + $0x70] sm:$0xff]
        %v3743 = vld [vmem:[#allocation3 + $0x78] sm:$0x3]
        %v3744 = vld [vmem:[#allocation3 + $0x80] sm:$0x3]
        %v3745 = vld [vmem:[#allocation3 + $0x88] sm:$0x3]
        %v3746 = vpack.c.bf16 %v3731, %v3728
        %v3747 = vpack.c.bf16 %v3732, %v3729
        %v3748 = vpack.c.bf16 %v3733, %v3730
        %v3749 = vpack.c.bf16 %v3737, %v3734
        %v3750 = vpack.c.bf16 %v3738, %v3735
        %v3751 = vpack.c.bf16 %v3739, %v3736
        %v3752 = vpack.c.bf16 %v3743, %v3740
        %v3753 = vpack.c.bf16 %v3744, %v3741
        %v3754 = vpack.c.bf16 %v3745, %v3742
        %v3755 = vld [vmem:[#allocation11] sm:$0xff]
        %v3756 = vld [vmem:[#allocation11 + $0x8] sm:$0xff]
        %v3757 = vld [vmem:[#allocation11 + $0x10] sm:$0xf]
        %v3758 = vld [vmem:[#allocation11 + $0x14] sm:$0xff]
        %v3759 = vld [vmem:[#allocation11 + $0x1c] sm:$0xff]
        %v3760 = vld [vmem:[#allocation11 + $0x24] sm:$0xf]
        %v3761 = vld [vmem:[#allocation11 + $0x28] sm:$0xff]
        %v3762 = vld [vmem:[#allocation11 + $0x30] sm:$0xff]
        %v3763 = vld [vmem:[#allocation11 + $0x38] sm:$0xf]
        %v3764 = vld [vmem:[#allocation11 + $0x3c] sm:$0xff]
        %v3765 = vld [vmem:[#allocation11 + $0x44] sm:$0xff]
        %v3766 = vld [vmem:[#allocation11 + $0x4c] sm:$0xf]
        %v3767 = vld [vmem:[#allocation11 + $0x50] sm:$0xff]
        %v3768 = vld [vmem:[#allocation11 + $0x58] sm:$0xff]
        %v3769 = vld [vmem:[#allocation11 + $0x60] sm:$0xf]
        %v3770 = vld [vmem:[#allocation11 + $0x64] sm:$0xff]
        %v3771 = vld [vmem:[#allocation11 + $0x6c] sm:$0xff]
        %v3772 = vld [vmem:[#allocation11 + $0x74] sm:$0xf]
        %v3773 = vld [vmem:[#allocation11 + $0x78] sm:$0xff]
        %v3774 = vld [vmem:[#allocation11 + $0x80] sm:$0xff]
        %v3775 = vld [vmem:[#allocation11 + $0x88] sm:$0xf]
        %v3776 = vld [vmem:[#allocation11 + $0x8c] sm:$0xff]
        %v3777 = vld [vmem:[#allocation11 + $0x94] sm:$0xff]
        %v3778 = vld [vmem:[#allocation11 + $0x9c] sm:$0xf]
        %v3779 = vld [vmem:[#allocation11 + $0xa0] sm:$0xff]
        %v3780 = vld [vmem:[#allocation11 + $0xa8] sm:$0xff]
        %v3781 = vld [vmem:[#allocation11 + $0xb0] sm:$0xf]
        %v3782 = vld [vmem:[#allocation11 + $0xb4] sm:$0xff]
        %v3783 = vld [vmem:[#allocation11 + $0xbc] sm:$0xff]
        %v3784 = vld [vmem:[#allocation11 + $0xc4] sm:$0xf]
        %v3785 = vld [vmem:[#allocation11 + $0xc8] sm:$0xff]
        %v3786 = vld [vmem:[#allocation11 + $0xd0] sm:$0xff]
        %v3787 = vld [vmem:[#allocation11 + $0xd8] sm:$0xf]
        %v3788 = vld [vmem:[#allocation11 + $0xdc] sm:$0xff]
        %v3789 = vld [vmem:[#allocation11 + $0xe4] sm:$0xff]
        %v3790 = vld [vmem:[#allocation11 + $0xec] sm:$0xf]
        %v3791 = vld [vmem:[#allocation11 + $0xf0] sm:$0xff]
        %v3792 = vld [vmem:[#allocation11 + $0xf8] sm:$0xff]
        %v3793 = vld [vmem:[#allocation11 + $0x100] sm:$0xf]
        %v3794 = vld [vmem:[#allocation11 + $0x104] sm:$0xff]
        %v3795 = vld [vmem:[#allocation11 + $0x10c] sm:$0xff]
        %v3796 = vld [vmem:[#allocation11 + $0x114] sm:$0xf]
        %v3797 = vld [vmem:[#allocation11 + $0x118] sm:$0xff]
        %v3798 = vld [vmem:[#allocation11 + $0x120] sm:$0xff]
        %v3799 = vld [vmem:[#allocation11 + $0x128] sm:$0xf]
        %v3800 = vld [vmem:[#allocation11 + $0x12c] sm:$0xff]
        %v3801 = vld [vmem:[#allocation11 + $0x134] sm:$0xff]
        %v3802 = vld [vmem:[#allocation11 + $0x13c] sm:$0xf]
        %v3803 = vld [vmem:[#allocation11 + $0x140] sm:$0xff]
        %v3804 = vld [vmem:[#allocation11 + $0x148] sm:$0xff]
        %v3805 = vld [vmem:[#allocation11 + $0x150] sm:$0xf]
        %v3806 = vld [vmem:[#allocation11 + $0x154] sm:$0xff]
        %v3807 = vld [vmem:[#allocation11 + $0x15c] sm:$0xff]
        %v3808 = vld [vmem:[#allocation11 + $0x164] sm:$0xf]
        %v3809 = vld [vmem:[#allocation11 + $0x168] sm:$0xff]
        %v3810 = vld [vmem:[#allocation11 + $0x170] sm:$0xff]
        %v3811 = vld [vmem:[#allocation11 + $0x178] sm:$0xf]
        %v3812 = vld [vmem:[#allocation11 + $0x17c] sm:$0xff]
        %v3813 = vld [vmem:[#allocation11 + $0x184] sm:$0xff]
        %v3814 = vld [vmem:[#allocation11 + $0x18c] sm:$0xf]
        %v3815 = vld [vmem:[#allocation11 + $0x190] sm:$0xff]
        %v3816 = vld [vmem:[#allocation11 + $0x198] sm:$0xff]
        %v3817 = vld [vmem:[#allocation11 + $0x1a0] sm:$0xf]
        %v3818 = vld [vmem:[#allocation11 + $0x1a4] sm:$0xff]
        %v3819 = vld [vmem:[#allocation11 + $0x1ac] sm:$0xff]
        %v3820 = vld [vmem:[#allocation11 + $0x1b4] sm:$0xf]
        %v3821 = vld [vmem:[#allocation11 + $0x1b8] sm:$0xff]
        %v3822 = vld [vmem:[#allocation11 + $0x1c0] sm:$0xff]
        %v3823 = vld [vmem:[#allocation11 + $0x1c8] sm:$0xf]
        %v3824 = vld [vmem:[#allocation11 + $0x1cc] sm:$0xff]
        %v3825 = vld [vmem:[#allocation11 + $0x1d4] sm:$0xff]
        %v3826 = vld [vmem:[#allocation11 + $0x1dc] sm:$0xf]
        %v3827 = vld [vmem:[#allocation11 + $0x1e0] sm:$0xff]
        %v3828 = vld [vmem:[#allocation11 + $0x1e8] sm:$0xff]
        %v3829 = vld [vmem:[#allocation11 + $0x1f0] sm:$0xf]
        %v3830 = vld [vmem:[#allocation11 + $0x1f4] sm:$0xff]
        %v3831 = vld [vmem:[#allocation11 + $0x1fc] sm:$0xff]
        %v3832 = vld [vmem:[#allocation11 + $0x204] sm:$0xf]
        %v3833 = vld [vmem:[#allocation11 + $0x208] sm:$0xff]
        %v3834 = vld [vmem:[#allocation11 + $0x210] sm:$0xff]
        %v3835 = vld [vmem:[#allocation11 + $0x218] sm:$0xf]
        %v3836 = vld [vmem:[#allocation11 + $0x21c] sm:$0xff]
        %v3837 = vld [vmem:[#allocation11 + $0x224] sm:$0xff]
        %v3838 = vld [vmem:[#allocation11 + $0x22c] sm:$0xf]
        %v3839 = vld [vmem:[#allocation11 + $0x230] sm:$0xff]
        %v3840 = vld [vmem:[#allocation11 + $0x238] sm:$0xff]
        %v3841 = vld [vmem:[#allocation11 + $0x240] sm:$0xf]
        %v3842 = vld [vmem:[#allocation11 + $0x244] sm:$0xff]
        %v3843 = vld [vmem:[#allocation11 + $0x24c] sm:$0xff]
        %v3844 = vld [vmem:[#allocation11 + $0x254] sm:$0xf]
        %v3845 = vld [vmem:[#allocation11 + $0x258] sm:$0xff]
        %v3846 = vld [vmem:[#allocation11 + $0x260] sm:$0xff]
        %v3847 = vld [vmem:[#allocation11 + $0x268] sm:$0xf]
        %v3848 = vld [vmem:[#allocation11 + $0x26c] sm:$0xff]
        %v3849 = vld [vmem:[#allocation11 + $0x274] sm:$0xff]
        %v3850 = vld [vmem:[#allocation11 + $0x27c] sm:$0xf]
        %v3851 = vld [vmem:[#allocation11 + $0x280] sm:$0xff]
        %v3852 = vld [vmem:[#allocation11 + $0x288] sm:$0xff]
        %v3853 = vld [vmem:[#allocation11 + $0x290] sm:$0xf]
        %v3854 = vld [vmem:[#allocation11 + $0x294] sm:$0xff]
        %v3855 = vld [vmem:[#allocation11 + $0x29c] sm:$0xff]
        %v3856 = vld [vmem:[#allocation11 + $0x2a4] sm:$0xf]
        %v3857 = vld [vmem:[#allocation11 + $0x2a8] sm:$0xff]
        %v3858 = vld [vmem:[#allocation11 + $0x2b0] sm:$0xff]
        %v3859 = vld [vmem:[#allocation11 + $0x2b8] sm:$0xf]
        %v3860 = vld [vmem:[#allocation11 + $0x2bc] sm:$0xff]
        %v3861 = vld [vmem:[#allocation11 + $0x2c4] sm:$0xff]
        %v3862 = vld [vmem:[#allocation11 + $0x2cc] sm:$0xf]
        %v3863 = vld [vmem:[#allocation11 + $0x2d0] sm:$0xff]
        %v3864 = vld [vmem:[#allocation11 + $0x2d8] sm:$0xff]
        %v3865 = vld [vmem:[#allocation11 + $0x2e0] sm:$0xf]
        %v3866 = vld [vmem:[#allocation11 + $0x2e4] sm:$0xff]
        %v3867 = vld [vmem:[#allocation11 + $0x2ec] sm:$0xff]
        %v3868 = vld [vmem:[#allocation11 + $0x2f4] sm:$0xf]
        %v3869 = vld [vmem:[#allocation11 + $0x2f8] sm:$0xff]
        %v3870 = vld [vmem:[#allocation11 + $0x300] sm:$0xff]
        %v3871 = vld [vmem:[#allocation11 + $0x308] sm:$0xf]
        %v3872 = vld [vmem:[#allocation11 + $0x30c] sm:$0xff]
        %v3873 = vld [vmem:[#allocation11 + $0x314] sm:$0xff]
        %v3874 = vld [vmem:[#allocation11 + $0x31c] sm:$0xf]
        %v3875 = vld [vmem:[#allocation11 + $0x320] sm:$0xff]
        %v3876 = vld [vmem:[#allocation11 + $0x328] sm:$0xff]
        %v3877 = vld [vmem:[#allocation11 + $0x330] sm:$0xf]
        %v3878 = vld [vmem:[#allocation11 + $0x334] sm:$0xff]
        %v3879 = vld [vmem:[#allocation11 + $0x33c] sm:$0xff]
        %v3880 = vld [vmem:[#allocation11 + $0x344] sm:$0xf]
        %v3881 = vld [vmem:[#allocation11 + $0x348] sm:$0xff]
        %v3882 = vld [vmem:[#allocation11 + $0x350] sm:$0xff]
        %v3883 = vld [vmem:[#allocation11 + $0x358] sm:$0xf]
        %v3884 = vld [vmem:[#allocation11 + $0x35c] sm:$0xff]
        %v3885 = vld [vmem:[#allocation11 + $0x364] sm:$0xff]
        %v3886 = vld [vmem:[#allocation11 + $0x36c] sm:$0xf]
        %v3887 = vld [vmem:[#allocation11 + $0x370] sm:$0xff]
        %v3888 = vld [vmem:[#allocation11 + $0x378] sm:$0xff]
        %v3889 = vld [vmem:[#allocation11 + $0x380] sm:$0xf]
        %v3890 = vld [vmem:[#allocation11 + $0x384] sm:$0xff]
        %v3891 = vld [vmem:[#allocation11 + $0x38c] sm:$0xff]
        %v3892 = vld [vmem:[#allocation11 + $0x394] sm:$0xf]
        %v3893 = vld [vmem:[#allocation11 + $0x398] sm:$0xff]
        %v3894 = vld [vmem:[#allocation11 + $0x3a0] sm:$0xff]
        %v3895 = vld [vmem:[#allocation11 + $0x3a8] sm:$0xf]
        %v3896 = vld [vmem:[#allocation11 + $0x3ac] sm:$0xff]
        %v3897 = vld [vmem:[#allocation11 + $0x3b4] sm:$0xff]
        %v3898 = vld [vmem:[#allocation11 + $0x3bc] sm:$0xf]
        %v4043 = vunpack.c.l.b16 %v3755
        %v4044 = vunpack.c.h.b16 %v3755
        %v4045 = vunpack.c.l.b16 %v3756
        %v4046 = vunpack.c.h.b16 %v3756
        %v4047 = vunpack.c.l.b16 %v3757
        %v4048 = vunpack.c.l.b16 %v3758
        %v4049 = vunpack.c.h.b16 %v3758
        %v4050 = vunpack.c.l.b16 %v3759
        %v4051 = vunpack.c.h.b16 %v3759
        %v4052 = vunpack.c.l.b16 %v3760
        %v4053 = vunpack.c.l.b16 %v3761
        %v4054 = vunpack.c.h.b16 %v3761
        %v4055 = vunpack.c.l.b16 %v3762
        %v4056 = vunpack.c.h.b16 %v3762
        %v4057 = vunpack.c.l.b16 %v3763
        %v4058 = vunpack.c.l.b16 %v3764
        %v4059 = vunpack.c.h.b16 %v3764
        %v4060 = vunpack.c.l.b16 %v3765
        %v4061 = vunpack.c.h.b16 %v3765
        %v4062 = vunpack.c.l.b16 %v3766
        %v4063 = vunpack.c.l.b16 %v3767
        %v4064 = vunpack.c.h.b16 %v3767
        %v4065 = vunpack.c.l.b16 %v3768
        %v4066 = vunpack.c.h.b16 %v3768
        %v4067 = vunpack.c.l.b16 %v3769
        %v4068 = vunpack.c.l.b16 %v3770
        %v4069 = vunpack.c.h.b16 %v3770
        %v4070 = vunpack.c.l.b16 %v3771
        %v4071 = vunpack.c.h.b16 %v3771
        %v4072 = vunpack.c.l.b16 %v3772
        %v4073 = vunpack.c.l.b16 %v3773
        %v4074 = vunpack.c.h.b16 %v3773
        %v4075 = vunpack.c.l.b16 %v3774
        %v4076 = vunpack.c.h.b16 %v3774
        %v4077 = vunpack.c.l.b16 %v3775
        %v4078 = vunpack.c.l.b16 %v3776
        %v4079 = vunpack.c.h.b16 %v3776
        %v4080 = vunpack.c.l.b16 %v3777
        %v4081 = vunpack.c.h.b16 %v3777
        %v4082 = vunpack.c.l.b16 %v3778
        %v4083 = vunpack.c.l.b16 %v3779
        %v4084 = vunpack.c.h.b16 %v3779
        %v4085 = vunpack.c.l.b16 %v3780
        %v4086 = vunpack.c.h.b16 %v3780
        %v4087 = vunpack.c.l.b16 %v3781
        %v4088 = vunpack.c.l.b16 %v3782
        %v4089 = vunpack.c.h.b16 %v3782
        %v4090 = vunpack.c.l.b16 %v3783
        %v4091 = vunpack.c.h.b16 %v3783
        %v4092 = vunpack.c.l.b16 %v3784
        %v4093 = vunpack.c.l.b16 %v3785
        %v4094 = vunpack.c.h.b16 %v3785
        %v4095 = vunpack.c.l.b16 %v3786
        %v4096 = vunpack.c.h.b16 %v3786
        %v4097 = vunpack.c.l.b16 %v3787
        %v4098 = vunpack.c.l.b16 %v3788
        %v4099 = vunpack.c.h.b16 %v3788
        %v4100 = vunpack.c.l.b16 %v3789
        %v4101 = vunpack.c.h.b16 %v3789
        %v4102 = vunpack.c.l.b16 %v3790
        %v4103 = vunpack.c.l.b16 %v3791
        %v4104 = vunpack.c.h.b16 %v3791
        %v4105 = vunpack.c.l.b16 %v3792
        %v4106 = vunpack.c.h.b16 %v3792
        %v4107 = vunpack.c.l.b16 %v3793
        %v4108 = vunpack.c.l.b16 %v3794
        %v4109 = vunpack.c.h.b16 %v3794
        %v4110 = vunpack.c.l.b16 %v3795
        %v4111 = vunpack.c.h.b16 %v3795
        %v4112 = vunpack.c.l.b16 %v3796
        %v4113 = vunpack.c.l.b16 %v3797
        %v4114 = vunpack.c.h.b16 %v3797
        %v4115 = vunpack.c.l.b16 %v3798
        %v4116 = vunpack.c.h.b16 %v3798
        %v4117 = vunpack.c.l.b16 %v3799
        %v4118 = vunpack.c.l.b16 %v3800
        %v4119 = vunpack.c.h.b16 %v3800
        %v4120 = vunpack.c.l.b16 %v3801
        %v4121 = vunpack.c.h.b16 %v3801
        %v4122 = vunpack.c.l.b16 %v3802
        %v4123 = vunpack.c.l.b16 %v3803
        %v4124 = vunpack.c.h.b16 %v3803
        %v4125 = vunpack.c.l.b16 %v3804
        %v4126 = vunpack.c.h.b16 %v3804
        %v4127 = vunpack.c.l.b16 %v3805
        %v4128 = vunpack.c.l.b16 %v3806
        %v4129 = vunpack.c.h.b16 %v3806
        %v4130 = vunpack.c.l.b16 %v3807
        %v4131 = vunpack.c.h.b16 %v3807
        %v4132 = vunpack.c.l.b16 %v3808
        %v4133 = vunpack.c.l.b16 %v3809
        %v4134 = vunpack.c.h.b16 %v3809
        %v4135 = vunpack.c.l.b16 %v3810
        %v4136 = vunpack.c.h.b16 %v3810
        %v4137 = vunpack.c.l.b16 %v3811
        %v4138 = vunpack.c.l.b16 %v3812
        %v4139 = vunpack.c.h.b16 %v3812
        %v4140 = vunpack.c.l.b16 %v3813
        %v4141 = vunpack.c.h.b16 %v3813
        %v4142 = vunpack.c.l.b16 %v3814
        %v4143 = vunpack.c.l.b16 %v3815
        %v4144 = vunpack.c.h.b16 %v3815
        %v4145 = vunpack.c.l.b16 %v3816
        %v4146 = vunpack.c.h.b16 %v3816
        %v4147 = vunpack.c.l.b16 %v3817
        %v4148 = vunpack.c.l.b16 %v3818
        %v4149 = vunpack.c.h.b16 %v3818
        %v4150 = vunpack.c.l.b16 %v3819
        %v4151 = vunpack.c.h.b16 %v3819
        %v4152 = vunpack.c.l.b16 %v3820
        %v4153 = vunpack.c.l.b16 %v3821
        %v4154 = vunpack.c.h.b16 %v3821
        %v4155 = vunpack.c.l.b16 %v3822
        %v4156 = vunpack.c.h.b16 %v3822
        %v4157 = vunpack.c.l.b16 %v3823
        %v4158 = vunpack.c.l.b16 %v3824
        %v4159 = vunpack.c.h.b16 %v3824
        %v4160 = vunpack.c.l.b16 %v3825
        %v4161 = vunpack.c.h.b16 %v3825
        %v4162 = vunpack.c.l.b16 %v3826
        %v4163 = vunpack.c.l.b16 %v3827
        %v4164 = vunpack.c.h.b16 %v3827
        %v4165 = vunpack.c.l.b16 %v3828
        %v4166 = vunpack.c.h.b16 %v3828
        %v4167 = vunpack.c.l.b16 %v3829
        %v4168 = vunpack.c.l.b16 %v3830
        %v4169 = vunpack.c.h.b16 %v3830
        %v4170 = vunpack.c.l.b16 %v3831
        %v4171 = vunpack.c.h.b16 %v3831
        %v4172 = vunpack.c.l.b16 %v3832
        %v4173 = vunpack.c.l.b16 %v3833
        %v4174 = vunpack.c.h.b16 %v3833
        %v4175 = vunpack.c.l.b16 %v3834
        %v4176 = vunpack.c.h.b16 %v3834
        %v4177 = vunpack.c.l.b16 %v3835
        %v4178 = vunpack.c.l.b16 %v3836
        %v4179 = vunpack.c.h.b16 %v3836
        %v4180 = vunpack.c.l.b16 %v3837
        %v4181 = vunpack.c.h.b16 %v3837
        %v4182 = vunpack.c.l.b16 %v3838
        %v4183 = vunpack.c.l.b16 %v3839
        %v4184 = vunpack.c.h.b16 %v3839
        %v4185 = vunpack.c.l.b16 %v3840
        %v4186 = vunpack.c.h.b16 %v3840
        %v4187 = vunpack.c.l.b16 %v3841
        %v4188 = vunpack.c.l.b16 %v3842
        %v4189 = vunpack.c.h.b16 %v3842
        %v4190 = vunpack.c.l.b16 %v3843
        %v4191 = vunpack.c.h.b16 %v3843
        %v4192 = vunpack.c.l.b16 %v3844
        %v4193 = vunpack.c.l.b16 %v3845
        %v4194 = vunpack.c.h.b16 %v3845
        %v4195 = vunpack.c.l.b16 %v3846
        %v4196 = vunpack.c.h.b16 %v3846
        %v4197 = vunpack.c.l.b16 %v3847
        %v4198 = vunpack.c.l.b16 %v3848
        %v4199 = vunpack.c.h.b16 %v3848
        %v4200 = vunpack.c.l.b16 %v3849
        %v4201 = vunpack.c.h.b16 %v3849
        %v4202 = vunpack.c.l.b16 %v3850
        %v4203 = vunpack.c.l.b16 %v3851
        %v4204 = vunpack.c.h.b16 %v3851
        %v4205 = vunpack.c.l.b16 %v3852
        %v4206 = vunpack.c.h.b16 %v3852
        %v4207 = vunpack.c.l.b16 %v3853
        %v4208 = vunpack.c.l.b16 %v3854
        %v4209 = vunpack.c.h.b16 %v3854
        %v4210 = vunpack.c.l.b16 %v3855
        %v4211 = vunpack.c.h.b16 %v3855
        %v4212 = vunpack.c.l.b16 %v3856
        %v4213 = vunpack.c.l.b16 %v3857
        %v4214 = vunpack.c.h.b16 %v3857
        %v4215 = vunpack.c.l.b16 %v3858
        %v4216 = vunpack.c.h.b16 %v3858
        %v4217 = vunpack.c.l.b16 %v3859
        %v4218 = vunpack.c.l.b16 %v3860
        %v4219 = vunpack.c.h.b16 %v3860
        %v4220 = vunpack.c.l.b16 %v3861
        %v4221 = vunpack.c.h.b16 %v3861
        %v4222 = vunpack.c.l.b16 %v3862
        %v4223 = vunpack.c.l.b16 %v3863
        %v4224 = vunpack.c.h.b16 %v3863
        %v4225 = vunpack.c.l.b16 %v3864
        %v4226 = vunpack.c.h.b16 %v3864
        %v4227 = vunpack.c.l.b16 %v3865
        %v4228 = vunpack.c.l.b16 %v3866
        %v4229 = vunpack.c.h.b16 %v3866
        %v4230 = vunpack.c.l.b16 %v3867
        %v4231 = vunpack.c.h.b16 %v3867
        %v4232 = vunpack.c.l.b16 %v3868
        %v4233 = vunpack.c.l.b16 %v3869
        %v4234 = vunpack.c.h.b16 %v3869
        %v4235 = vunpack.c.l.b16 %v3870
        %v4236 = vunpack.c.h.b16 %v3870
        %v4237 = vunpack.c.l.b16 %v3871
        %v4238 = vunpack.c.l.b16 %v3872
        %v4239 = vunpack.c.h.b16 %v3872
        %v4240 = vunpack.c.l.b16 %v3873
        %v4241 = vunpack.c.h.b16 %v3873
        %v4242 = vunpack.c.l.b16 %v3874
        %v4243 = vunpack.c.l.b16 %v3875
        %v4244 = vunpack.c.h.b16 %v3875
        %v4245 = vunpack.c.l.b16 %v3876
        %v4246 = vunpack.c.h.b16 %v3876
        %v4247 = vunpack.c.l.b16 %v3877
        %v4248 = vunpack.c.l.b16 %v3878
        %v4249 = vunpack.c.h.b16 %v3878
        %v4250 = vunpack.c.l.b16 %v3879
        %v4251 = vunpack.c.h.b16 %v3879
        %v4252 = vunpack.c.l.b16 %v3880
        %v4253 = vunpack.c.l.b16 %v3881
        %v4254 = vunpack.c.h.b16 %v3881
        %v4255 = vunpack.c.l.b16 %v3882
        %v4256 = vunpack.c.h.b16 %v3882
        %v4257 = vunpack.c.l.b16 %v3883
        %v4258 = vunpack.c.l.b16 %v3884
        %v4259 = vunpack.c.h.b16 %v3884
        %v4260 = vunpack.c.l.b16 %v3885
        %v4261 = vunpack.c.h.b16 %v3885
        %v4262 = vunpack.c.l.b16 %v3886
        %v4263 = vunpack.c.l.b16 %v3887
        %v4264 = vunpack.c.h.b16 %v3887
        %v4265 = vunpack.c.l.b16 %v3888
        %v4266 = vunpack.c.h.b16 %v3888
        %v4267 = vunpack.c.l.b16 %v3889
        %v4268 = vunpack.c.l.b16 %v3890
        %v4269 = vunpack.c.h.b16 %v3890
        %v4270 = vunpack.c.l.b16 %v3891
        %v4271 = vunpack.c.h.b16 %v3891
        %v4272 = vunpack.c.l.b16 %v3892
        %v4273 = vunpack.c.l.b16 %v3893
        %v4274 = vunpack.c.h.b16 %v3893
        %v4275 = vunpack.c.l.b16 %v3894
        %v4276 = vunpack.c.h.b16 %v3894
        %v4277 = vunpack.c.l.b16 %v3895
        %v4278 = vunpack.c.l.b16 %v3896
        %v4279 = vunpack.c.h.b16 %v3896
        %v4280 = vunpack.c.l.b16 %v3897
        %v4281 = vunpack.c.h.b16 %v3897
        %v4282 = vunpack.c.l.b16 %v3898
        %v4283 = vpack.c.b16 %v4048, %v4043
        %v4284 = vpack.c.b16 %v4049, %v4044
        %v4285 = vpack.c.b16 %v4050, %v4045
        %v4286 = vpack.c.b16 %v4051, %v4046
        %v4287 = vpack.c.b16 %v4052, %v4047
        %v4288 = vpack.c.b16 %v4058, %v4053
        %v4289 = vpack.c.b16 %v4059, %v4054
        %v4290 = vpack.c.b16 %v4060, %v4055
        %v4291 = vpack.c.b16 %v4061, %v4056
        %v4292 = vpack.c.b16 %v4062, %v4057
        %v4293 = vpack.c.b16 %v4068, %v4063
        %v4294 = vpack.c.b16 %v4069, %v4064
        %v4295 = vpack.c.b16 %v4070, %v4065
        %v4296 = vpack.c.b16 %v4071, %v4066
        %v4297 = vpack.c.b16 %v4072, %v4067
        %v4298 = vpack.c.b16 %v4078, %v4073
        %v4299 = vpack.c.b16 %v4079, %v4074
        %v4300 = vpack.c.b16 %v4080, %v4075
        %v4301 = vpack.c.b16 %v4081, %v4076
        %v4302 = vpack.c.b16 %v4082, %v4077
        %v4303 = vpack.c.b16 %v4088, %v4083
        %v4304 = vpack.c.b16 %v4089, %v4084
        %v4305 = vpack.c.b16 %v4090, %v4085
        %v4306 = vpack.c.b16 %v4091, %v4086
        %v4307 = vpack.c.b16 %v4092, %v4087
        %v4308 = vpack.c.b16 %v4098, %v4093
        %v4309 = vpack.c.b16 %v4099, %v4094
        %v4310 = vpack.c.b16 %v4100, %v4095
        %v4311 = vpack.c.b16 %v4101, %v4096
        %v4312 = vpack.c.b16 %v4102, %v4097
        %v4313 = vpack.c.b16 %v4108, %v4103
        %v4314 = vpack.c.b16 %v4109, %v4104
        %v4315 = vpack.c.b16 %v4110, %v4105
        %v4316 = vpack.c.b16 %v4111, %v4106
        %v4317 = vpack.c.b16 %v4112, %v4107
        %v4318 = vpack.c.b16 %v4118, %v4113
        %v4319 = vpack.c.b16 %v4119, %v4114
        %v4320 = vpack.c.b16 %v4120, %v4115
        %v4321 = vpack.c.b16 %v4121, %v4116
        %v4322 = vpack.c.b16 %v4122, %v4117
        %v4323 = vpack.c.b16 %v4128, %v4123
        %v4324 = vpack.c.b16 %v4129, %v4124
        %v4325 = vpack.c.b16 %v4130, %v4125
        %v4326 = vpack.c.b16 %v4131, %v4126
        %v4327 = vpack.c.b16 %v4132, %v4127
        %v4328 = vpack.c.b16 %v4138, %v4133
        %v4329 = vpack.c.b16 %v4139, %v4134
        %v4330 = vpack.c.b16 %v4140, %v4135
        %v4331 = vpack.c.b16 %v4141, %v4136
        %v4332 = vpack.c.b16 %v4142, %v4137
        %v4333 = vpack.c.b16 %v4148, %v4143
        %v4334 = vpack.c.b16 %v4149, %v4144
        %v4335 = vpack.c.b16 %v4150, %v4145
        %v4336 = vpack.c.b16 %v4151, %v4146
        %v4337 = vpack.c.b16 %v4152, %v4147
        %v4338 = vpack.c.b16 %v4158, %v4153
        %v4339 = vpack.c.b16 %v4159, %v4154
        %v4340 = vpack.c.b16 %v4160, %v4155
        %v4341 = vpack.c.b16 %v4161, %v4156
        %v4342 = vpack.c.b16 %v4162, %v4157
        %v4343 = vpack.c.b16 %v4168, %v4163
        %v4344 = vpack.c.b16 %v4169, %v4164
        %v4345 = vpack.c.b16 %v4170, %v4165
        %v4346 = vpack.c.b16 %v4171, %v4166
        %v4347 = vpack.c.b16 %v4172, %v4167
        %v4348 = vpack.c.b16 %v4178, %v4173
        %v4349 = vpack.c.b16 %v4179, %v4174
        %v4350 = vpack.c.b16 %v4180, %v4175
        %v4351 = vpack.c.b16 %v4181, %v4176
        %v4352 = vpack.c.b16 %v4182, %v4177
        %v4353 = vpack.c.b16 %v4188, %v4183
        %v4354 = vpack.c.b16 %v4189, %v4184
        %v4355 = vpack.c.b16 %v4190, %v4185
        %v4356 = vpack.c.b16 %v4191, %v4186
        %v4357 = vpack.c.b16 %v4192, %v4187
        %v4358 = vpack.c.b16 %v4198, %v4193
        %v4359 = vpack.c.b16 %v4199, %v4194
        %v4360 = vpack.c.b16 %v4200, %v4195
        %v4361 = vpack.c.b16 %v4201, %v4196
        %v4362 = vpack.c.b16 %v4202, %v4197
        %v4363 = vpack.c.b16 %v4208, %v4203
        %v4364 = vpack.c.b16 %v4209, %v4204
        %v4365 = vpack.c.b16 %v4210, %v4205
        %v4366 = vpack.c.b16 %v4211, %v4206
        %v4367 = vpack.c.b16 %v4212, %v4207
        %v4368 = vpack.c.b16 %v4218, %v4213
        %v4369 = vpack.c.b16 %v4219, %v4214
        %v4370 = vpack.c.b16 %v4220, %v4215
        %v4371 = vpack.c.b16 %v4221, %v4216
        %v4372 = vpack.c.b16 %v4222, %v4217
        %v4373 = vpack.c.b16 %v4228, %v4223
        %v4374 = vpack.c.b16 %v4229, %v4224
        %v4375 = vpack.c.b16 %v4230, %v4225
        %v4376 = vpack.c.b16 %v4231, %v4226
        %v4377 = vpack.c.b16 %v4232, %v4227
        %v4378 = vpack.c.b16 %v4238, %v4233
        %v4379 = vpack.c.b16 %v4239, %v4234
        %v4380 = vpack.c.b16 %v4240, %v4235
        %v4381 = vpack.c.b16 %v4241, %v4236
        %v4382 = vpack.c.b16 %v4242, %v4237
        %v4383 = vpack.c.b16 %v4248, %v4243
        %v4384 = vpack.c.b16 %v4249, %v4244
        %v4385 = vpack.c.b16 %v4250, %v4245
        %v4386 = vpack.c.b16 %v4251, %v4246
        %v4387 = vpack.c.b16 %v4252, %v4247
        %v4388 = vpack.c.b16 %v4258, %v4253
        %v4389 = vpack.c.b16 %v4259, %v4254
        %v4390 = vpack.c.b16 %v4260, %v4255
        %v4391 = vpack.c.b16 %v4261, %v4256
        %v4392 = vpack.c.b16 %v4262, %v4257
        %v4393 = vpack.c.b16 %v4268, %v4263
        %v4394 = vpack.c.b16 %v4269, %v4264
        %v4395 = vpack.c.b16 %v4270, %v4265
        %v4396 = vpack.c.b16 %v4271, %v4266
        %v4397 = vpack.c.b16 %v4272, %v4267
        %v4398 = vpack.c.b16 %v4278, %v4273
        %v4399 = vpack.c.b16 %v4279, %v4274
        %v4400 = vpack.c.b16 %v4280, %v4275
        %v4401 = vpack.c.b16 %v4281, %v4276
        %v4402 = vpack.c.b16 %v4282, %v4277
        %4523 = vmatpush.bf16.msra.mxu0 %v4318
        %4524 = vmatpush.bf16.msra.mxu0 %v4313
        %4525 = vmatpush.bf16.msra.mxu0 %v4308
        %4526 = vmatpush.bf16.msra.mxu0 %v4303
        %4527 = vmatpush.bf16.msra.mxu0 %v4298
        %4528 = vmatpush.bf16.msra.mxu0 %v4293
        %4529 = vmatpush.bf16.msra.mxu0 %v4288
        %4530 = vmatpush.bf16.msra.mxu0 %v4283
        %4531 = vmatmul.bf16.gmra.mxu0 %v3746
        %v4532 = vpop.f32.mrf.mxu0
        %v4533 = vadd.f32 0.0, %v4532
        %v4534 = vpop.f32.mrf.mxu0
        %v4535 = vadd.f32 0.0, %v4534
        %4536 = vmatmul.bf16.gmra.mxu0 %v3749
        %v4537 = vpop.f32.mrf.mxu0
        %v4538 = vadd.f32 0.0, %v4537
        %v4539 = vpop.f32.mrf.mxu0
        %v4540 = vadd.f32 0.0, %v4539
        %4541 = vmatmul.bf16.gmra.mxu0 %v3752
        %v4542 = vpop.f32.mrf.mxu0
        %v4543 = vadd.f32 0.0, %v4542
        %v4544 = vpop.f32.mrf.mxu0
        %4545 = vdwg.mxu0
        %4546 = vmatpush.bf16.msra.mxu0 %v4358
        %4547 = vmatpush.bf16.msra.mxu0 %v4353
        %4548 = vmatpush.bf16.msra.mxu0 %v4348
        %4549 = vmatpush.bf16.msra.mxu0 %v4343
        %4550 = vmatpush.bf16.msra.mxu0 %v4338
        %4551 = vmatpush.bf16.msra.mxu0 %v4333
        %4552 = vmatpush.bf16.msra.mxu0 %v4328
        %4553 = vmatpush.bf16.msra.mxu0 %v4323
        %4554 = vmatmul.bf16.gmra.mxu0 %v3747
        %v4555 = vpop.f32.mrf.mxu0
        %v4556 = vadd.f32 %v4533, %v4555
        %v4557 = vpop.f32.mrf.mxu0
        %v4558 = vadd.f32 %v4535, %v4557
        %4559 = vmatmul.bf16.gmra.mxu0 %v3750
        %v4560 = vpop.f32.mrf.mxu0
        %v4561 = vadd.f32 %v4538, %v4560
        %v4562 = vpop.f32.mrf.mxu0
        %v4563 = vadd.f32 %v4540, %v4562
        %4564 = vmatmul.bf16.gmra.mxu0 %v3753
        %v4565 = vpop.f32.mrf.mxu0
        %v4566 = vadd.f32 %v4543, %v4565
        %v4567 = vpop.f32.mrf.mxu0
        %4568 = vdwg.mxu0
        %4569 = vmatpush.bf16.msra.mxu0 %v4398
        %4570 = vmatpush.bf16.msra.mxu0 %v4393
        %4571 = vmatpush.bf16.msra.mxu0 %v4388
        %4572 = vmatpush.bf16.msra.mxu0 %v4383
        %4573 = vmatpush.bf16.msra.mxu0 %v4378
        %4574 = vmatpush.bf16.msra.mxu0 %v4373
        %4575 = vmatpush.bf16.msra.mxu0 %v4368
        %4576 = vmatpush.bf16.msra.mxu0 %v4363
        %4577 = vmatmul.bf16.gmra.mxu0 %v3748
        %v4578 = vpop.f32.mrf.mxu0
        %v4579 = vadd.f32 %v4556, %v4578
        %v4580 = vpop.f32.mrf.mxu0
        %v4581 = vadd.f32 %v4558, %v4580
        %4582 = vmatmul.bf16.gmra.mxu0 %v3751
        %v4583 = vpop.f32.mrf.mxu0
        %v4584 = vadd.f32 %v4561, %v4583
        %v4585 = vpop.f32.mrf.mxu0
        %v4586 = vadd.f32 %v4563, %v4585
        %4587 = vmatmul.bf16.gmra.mxu0 %v3754
        %v4588 = vpop.f32.mrf.mxu0
        %v4589 = vadd.f32 %v4566, %v4588
        %v4590 = vpop.f32.mrf.mxu0
        %4591 = vdwg.mxu0
        %4592 = vmatpush.bf16.msra.mxu0 %v4319
        %4593 = vmatpush.bf16.msra.mxu0 %v4314
        %4594 = vmatpush.bf16.msra.mxu0 %v4309
        %4595 = vmatpush.bf16.msra.mxu0 %v4304
        %4596 = vmatpush.bf16.msra.mxu0 %v4299
        %4597 = vmatpush.bf16.msra.mxu0 %v4294
        %4598 = vmatpush.bf16.msra.mxu0 %v4289
        %4599 = vmatpush.bf16.msra.mxu0 %v4284
        %4600 = vmatmul.bf16.gmra.mxu0 %v3746
        %v4601 = vpop.f32.mrf.mxu0
        %v4602 = vadd.f32 0.0, %v4601
        %v4603 = vpop.f32.mrf.mxu0
        %v4604 = vadd.f32 0.0, %v4603
        %4605 = vmatmul.bf16.gmra.mxu0 %v3749
        %v4606 = vpop.f32.mrf.mxu0
        %v4607 = vadd.f32 0.0, %v4606
        %v4608 = vpop.f32.mrf.mxu0
        %v4609 = vadd.f32 0.0, %v4608
        %4610 = vmatmul.bf16.gmra.mxu0 %v3752
        %v4611 = vpop.f32.mrf.mxu0
        %v4612 = vadd.f32 0.0, %v4611
        %v4613 = vpop.f32.mrf.mxu0
        %4614 = vdwg.mxu0
        %4615 = vmatpush.bf16.msra.mxu0 %v4359
        %4616 = vmatpush.bf16.msra.mxu0 %v4354
        %4617 = vmatpush.bf16.msra.mxu0 %v4349
        %4618 = vmatpush.bf16.msra.mxu0 %v4344
        %4619 = vmatpush.bf16.msra.mxu0 %v4339
        %4620 = vmatpush.bf16.msra.mxu0 %v4334
        %4621 = vmatpush.bf16.msra.mxu0 %v4329
        %4622 = vmatpush.bf16.msra.mxu0 %v4324
        %4623 = vmatmul.bf16.gmra.mxu0 %v3747
        %v4624 = vpop.f32.mrf.mxu0
        %v4625 = vadd.f32 %v4602, %v4624
        %v4626 = vpop.f32.mrf.mxu0
        %v4627 = vadd.f32 %v4604, %v4626
        %4628 = vmatmul.bf16.gmra.mxu0 %v3750
        %v4629 = vpop.f32.mrf.mxu0
        %v4630 = vadd.f32 %v4607, %v4629
        %v4631 = vpop.f32.mrf.mxu0
        %v4632 = vadd.f32 %v4609, %v4631
        %4633 = vmatmul.bf16.gmra.mxu0 %v3753
        %v4634 = vpop.f32.mrf.mxu0
        %v4635 = vadd.f32 %v4612, %v4634
        %v4636 = vpop.f32.mrf.mxu0
        %4637 = vdwg.mxu0
        %4638 = vmatpush.bf16.msra.mxu0 %v4399
        %4639 = vmatpush.bf16.msra.mxu0 %v4394
        %4640 = vmatpush.bf16.msra.mxu0 %v4389
        %4641 = vmatpush.bf16.msra.mxu0 %v4384
        %4642 = vmatpush.bf16.msra.mxu0 %v4379
        %4643 = vmatpush.bf16.msra.mxu0 %v4374
        %4644 = vmatpush.bf16.msra.mxu0 %v4369
        %4645 = vmatpush.bf16.msra.mxu0 %v4364
        %4646 = vmatmul.bf16.gmra.mxu0 %v3748
        %v4647 = vpop.f32.mrf.mxu0
        %v4648 = vadd.f32 %v4625, %v4647
        %v4649 = vpop.f32.mrf.mxu0
        %v4650 = vadd.f32 %v4627, %v4649
        %4651 = vmatmul.bf16.gmra.mxu0 %v3751
        %v4652 = vpop.f32.mrf.mxu0
        %v4653 = vadd.f32 %v4630, %v4652
        %v4654 = vpop.f32.mrf.mxu0
        %v4655 = vadd.f32 %v4632, %v4654
        %4656 = vmatmul.bf16.gmra.mxu0 %v3754
        %v4657 = vpop.f32.mrf.mxu0
        %v4658 = vadd.f32 %v4635, %v4657
        %v4659 = vpop.f32.mrf.mxu0
        %4660 = vdwg.mxu0
        %4661 = vmatpush.bf16.msra.mxu0 %v4320
        %4662 = vmatpush.bf16.msra.mxu0 %v4315
        %4663 = vmatpush.bf16.msra.mxu0 %v4310
        %4664 = vmatpush.bf16.msra.mxu0 %v4305
        %4665 = vmatpush.bf16.msra.mxu0 %v4300
        %4666 = vmatpush.bf16.msra.mxu0 %v4295
        %4667 = vmatpush.bf16.msra.mxu0 %v4290
        %4668 = vmatpush.bf16.msra.mxu0 %v4285
        %4669 = vmatmul.bf16.gmra.mxu0 %v3746
        %v4670 = vpop.f32.mrf.mxu0
        %v4671 = vadd.f32 0.0, %v4670
        %v4672 = vpop.f32.mrf.mxu0
        %v4673 = vadd.f32 0.0, %v4672
        %4674 = vmatmul.bf16.gmra.mxu0 %v3749
        %v4675 = vpop.f32.mrf.mxu0
        %v4676 = vadd.f32 0.0, %v4675
        %v4677 = vpop.f32.mrf.mxu0
        %v4678 = vadd.f32 0.0, %v4677
        %4679 = vmatmul.bf16.gmra.mxu0 %v3752
        %v4680 = vpop.f32.mrf.mxu0
        %v4681 = vadd.f32 0.0, %v4680
        %v4682 = vpop.f32.mrf.mxu0
        %4683 = vdwg.mxu0
        %4684 = vmatpush.bf16.msra.mxu0 %v4360
        %4685 = vmatpush.bf16.msra.mxu0 %v4355
        %4686 = vmatpush.bf16.msra.mxu0 %v4350
        %4687 = vmatpush.bf16.msra.mxu0 %v4345
        %4688 = vmatpush.bf16.msra.mxu0 %v4340
        %4689 = vmatpush.bf16.msra.mxu0 %v4335
        %4690 = vmatpush.bf16.msra.mxu0 %v4330
        %4691 = vmatpush.bf16.msra.mxu0 %v4325
        %4692 = vmatmul.bf16.gmra.mxu0 %v3747
        %v4693 = vpop.f32.mrf.mxu0
        %v4694 = vadd.f32 %v4671, %v4693
        %v4695 = vpop.f32.mrf.mxu0
        %v4696 = vadd.f32 %v4673, %v4695
        %4697 = vmatmul.bf16.gmra.mxu0 %v3750
        %v4698 = vpop.f32.mrf.mxu0
        %v4699 = vadd.f32 %v4676, %v4698
        %v4700 = vpop.f32.mrf.mxu0
        %v4701 = vadd.f32 %v4678, %v4700
        %4702 = vmatmul.bf16.gmra.mxu0 %v3753
        %v4703 = vpop.f32.mrf.mxu0
        %v4704 = vadd.f32 %v4681, %v4703
        %v4705 = vpop.f32.mrf.mxu0
        %4706 = vdwg.mxu0
        %4707 = vmatpush.bf16.msra.mxu0 %v4400
        %4708 = vmatpush.bf16.msra.mxu0 %v4395
        %4709 = vmatpush.bf16.msra.mxu0 %v4390
        %4710 = vmatpush.bf16.msra.mxu0 %v4385
        %4711 = vmatpush.bf16.msra.mxu0 %v4380
        %4712 = vmatpush.bf16.msra.mxu0 %v4375
        %4713 = vmatpush.bf16.msra.mxu0 %v4370
        %4714 = vmatpush.bf16.msra.mxu0 %v4365
        %4715 = vmatmul.bf16.gmra.mxu0 %v3748
        %v4716 = vpop.f32.mrf.mxu0
        %v4717 = vadd.f32 %v4694, %v4716
        %v4718 = vpop.f32.mrf.mxu0
        %v4719 = vadd.f32 %v4696, %v4718
        %4720 = vmatmul.bf16.gmra.mxu0 %v3751
        %v4721 = vpop.f32.mrf.mxu0
        %v4722 = vadd.f32 %v4699, %v4721
        %v4723 = vpop.f32.mrf.mxu0
        %v4724 = vadd.f32 %v4701, %v4723
        %4725 = vmatmul.bf16.gmra.mxu0 %v3754
        %v4726 = vpop.f32.mrf.mxu0
        %v4727 = vadd.f32 %v4704, %v4726
        %v4728 = vpop.f32.mrf.mxu0
        %4729 = vdwg.mxu0
        %4730 = vmatpush.bf16.msra.mxu0 %v4321
        %4731 = vmatpush.bf16.msra.mxu0 %v4316
        %4732 = vmatpush.bf16.msra.mxu0 %v4311
        %4733 = vmatpush.bf16.msra.mxu0 %v4306
        %4734 = vmatpush.bf16.msra.mxu0 %v4301
        %4735 = vmatpush.bf16.msra.mxu0 %v4296
        %4736 = vmatpush.bf16.msra.mxu0 %v4291
        %4737 = vmatpush.bf16.msra.mxu0 %v4286
        %4738 = vmatmul.bf16.gmra.mxu0 %v3746
        %v4739 = vpop.f32.mrf.mxu0
        %v4740 = vadd.f32 0.0, %v4739
        %v4741 = vpop.f32.mrf.mxu0
        %v4742 = vadd.f32 0.0, %v4741
        %4743 = vmatmul.bf16.gmra.mxu0 %v3749
        %v4744 = vpop.f32.mrf.mxu0
        %v4745 = vadd.f32 0.0, %v4744
        %v4746 = vpop.f32.mrf.mxu0
        %v4747 = vadd.f32 0.0, %v4746
        %4748 = vmatmul.bf16.gmra.mxu0 %v3752
        %v4749 = vpop.f32.mrf.mxu0
        %v4750 = vadd.f32 0.0, %v4749
        %v4751 = vpop.f32.mrf.mxu0
        %4752 = vdwg.mxu0
        %4753 = vmatpush.bf16.msra.mxu0 %v4361
        %4754 = vmatpush.bf16.msra.mxu0 %v4356
        %4755 = vmatpush.bf16.msra.mxu0 %v4351
        %4756 = vmatpush.bf16.msra.mxu0 %v4346
        %4757 = vmatpush.bf16.msra.mxu0 %v4341
        %4758 = vmatpush.bf16.msra.mxu0 %v4336
        %4759 = vmatpush.bf16.msra.mxu0 %v4331
        %4760 = vmatpush.bf16.msra.mxu0 %v4326
        %4761 = vmatmul.bf16.gmra.mxu0 %v3747
        %v4762 = vpop.f32.mrf.mxu0
        %v4763 = vadd.f32 %v4740, %v4762
        %v4764 = vpop.f32.mrf.mxu0
        %v4765 = vadd.f32 %v4742, %v4764
        %4766 = vmatmul.bf16.gmra.mxu0 %v3750
        %v4767 = vpop.f32.mrf.mxu0
        %v4768 = vadd.f32 %v4745, %v4767
        %v4769 = vpop.f32.mrf.mxu0
        %v4770 = vadd.f32 %v4747, %v4769
        %4771 = vmatmul.bf16.gmra.mxu0 %v3753
        %v4772 = vpop.f32.mrf.mxu0
        %v4773 = vadd.f32 %v4750, %v4772
        %v4774 = vpop.f32.mrf.mxu0
        %4775 = vdwg.mxu0
        %4776 = vmatpush.bf16.msra.mxu0 %v4401
        %4777 = vmatpush.bf16.msra.mxu0 %v4396
        %4778 = vmatpush.bf16.msra.mxu0 %v4391
        %4779 = vmatpush.bf16.msra.mxu0 %v4386
        %4780 = vmatpush.bf16.msra.mxu0 %v4381
        %4781 = vmatpush.bf16.msra.mxu0 %v4376
        %4782 = vmatpush.bf16.msra.mxu0 %v4371
        %4783 = vmatpush.bf16.msra.mxu0 %v4366
        %4784 = vmatmul.bf16.gmra.mxu0 %v3748
        %v4785 = vpop.f32.mrf.mxu0
        %v4786 = vadd.f32 %v4763, %v4785
        %v4787 = vpop.f32.mrf.mxu0
        %v4788 = vadd.f32 %v4765, %v4787
        %4789 = vmatmul.bf16.gmra.mxu0 %v3751
        %v4790 = vpop.f32.mrf.mxu0
        %v4791 = vadd.f32 %v4768, %v4790
        %v4792 = vpop.f32.mrf.mxu0
        %v4793 = vadd.f32 %v4770, %v4792
        %4794 = vmatmul.bf16.gmra.mxu0 %v3754
        %v4795 = vpop.f32.mrf.mxu0
        %v4796 = vadd.f32 %v4773, %v4795
        %v4797 = vpop.f32.mrf.mxu0
        %4798 = vdwg.mxu0
        %4799 = vmatpush.bf16.msra.mxu0 %v4322
        %4800 = vmatpush.bf16.msra.mxu0 %v4317
        %4801 = vmatpush.bf16.msra.mxu0 %v4312
        %4802 = vmatpush.bf16.msra.mxu0 %v4307
        %4803 = vmatpush.bf16.msra.mxu0 %v4302
        %4804 = vmatpush.bf16.msra.mxu0 %v4297
        %4805 = vmatpush.bf16.msra.mxu0 %v4292
        %4806 = vmatpush.bf16.msra.mxu0 %v4287
        %4807 = vmatmul.bf16.gmra.mxu0 %v3746
        %v4808 = vpop.f32.mrf.mxu0
        %v4809 = vadd.f32 0.0, %v4808
        %v4810 = vpop.f32.mrf.mxu0
        %v4811 = vadd.f32 0.0, %v4810
        %4812 = vmatmul.bf16.gmra.mxu0 %v3749
        %v4813 = vpop.f32.mrf.mxu0
        %v4814 = vadd.f32 0.0, %v4813
        %v4815 = vpop.f32.mrf.mxu0
        %v4816 = vadd.f32 0.0, %v4815
        %4817 = vmatmul.bf16.gmra.mxu0 %v3752
        %v4818 = vpop.f32.mrf.mxu0
        %v4819 = vadd.f32 0.0, %v4818
        %v4820 = vpop.f32.mrf.mxu0
        %4821 = vdwg.mxu0
        %4822 = vmatpush.bf16.msra.mxu0 %v4362
        %4823 = vmatpush.bf16.msra.mxu0 %v4357
        %4824 = vmatpush.bf16.msra.mxu0 %v4352
        %4825 = vmatpush.bf16.msra.mxu0 %v4347
        %4826 = vmatpush.bf16.msra.mxu0 %v4342
        %4827 = vmatpush.bf16.msra.mxu0 %v4337
        %4828 = vmatpush.bf16.msra.mxu0 %v4332
        %4829 = vmatpush.bf16.msra.mxu0 %v4327
        %4830 = vmatmul.bf16.gmra.mxu0 %v3747
        %v4831 = vpop.f32.mrf.mxu0
        %v4832 = vadd.f32 %v4809, %v4831
        %v4833 = vpop.f32.mrf.mxu0
        %v4834 = vadd.f32 %v4811, %v4833
        %4835 = vmatmul.bf16.gmra.mxu0 %v3750
        %v4836 = vpop.f32.mrf.mxu0
        %v4837 = vadd.f32 %v4814, %v4836
        %v4838 = vpop.f32.mrf.mxu0
        %v4839 = vadd.f32 %v4816, %v4838
        %4840 = vmatmul.bf16.gmra.mxu0 %v3753
        %v4841 = vpop.f32.mrf.mxu0
        %v4842 = vadd.f32 %v4819, %v4841
        %v4843 = vpop.f32.mrf.mxu0
        %4844 = vdwg.mxu0
        %4845 = vmatpush.bf16.msra.mxu0 %v4402
        %4846 = vmatpush.bf16.msra.mxu0 %v4397
        %4847 = vmatpush.bf16.msra.mxu0 %v4392
        %4848 = vmatpush.bf16.msra.mxu0 %v4387
        %4849 = vmatpush.bf16.msra.mxu0 %v4382
        %4850 = vmatpush.bf16.msra.mxu0 %v4377
        %4851 = vmatpush.bf16.msra.mxu0 %v4372
        %4852 = vmatpush.bf16.msra.mxu0 %v4367
        %4853 = vmatmul.bf16.gmra.mxu0 %v3748
        %v4854 = vpop.f32.mrf.mxu0
        %v4855 = vadd.f32 %v4832, %v4854
        %v4856 = vpop.f32.mrf.mxu0
        %v4857 = vadd.f32 %v4834, %v4856
        %4858 = vmatmul.bf16.gmra.mxu0 %v3751
        %v4859 = vpop.f32.mrf.mxu0
        %v4860 = vadd.f32 %v4837, %v4859
        %v4861 = vpop.f32.mrf.mxu0
        %v4862 = vadd.f32 %v4839, %v4861
        %4863 = vmatmul.bf16.gmra.mxu0 %v3754
        %v4864 = vpop.f32.mrf.mxu0
        %v4865 = vadd.f32 %v4842, %v4864
        %v4866 = vpop.f32.mrf.mxu0
        %4867 = vdwg.mxu0
        %s4868 = scalar_lea.vmem [#allocation11], 960
        %v4869 = vld [vmem:[%s4868] sm:$0xff]
        %v4870 = vld [vmem:[%s4868 + $0x8] sm:$0xff]
        %v4871 = vld [vmem:[%s4868 + $0x10] sm:$0xf]
        %v4872 = vld [vmem:[%s4868 + $0x14] sm:$0xff]
        %v4873 = vld [vmem:[%s4868 + $0x1c] sm:$0xff]
        %v4874 = vld [vmem:[%s4868 + $0x24] sm:$0xf]
        %v4875 = vld [vmem:[%s4868 + $0x28] sm:$0xff]
        %v4876 = vld [vmem:[%s4868 + $0x30] sm:$0xff]
        %v4877 = vld [vmem:[%s4868 + $0x38] sm:$0xf]
        %v4878 = vld [vmem:[%s4868 + $0x3c] sm:$0xff]
        %v4879 = vld [vmem:[%s4868 + $0x44] sm:$0xff]
        %v4880 = vld [vmem:[%s4868 + $0x4c] sm:$0xf]
        %v4881 = vld [vmem:[%s4868 + $0x50] sm:$0xff]
        %v4882 = vld [vmem:[%s4868 + $0x58] sm:$0xff]
        %v4883 = vld [vmem:[%s4868 + $0x60] sm:$0xf]
        %v4884 = vld [vmem:[%s4868 + $0x64] sm:$0xff]
        %v4885 = vld [vmem:[%s4868 + $0x6c] sm:$0xff]
        %v4886 = vld [vmem:[%s4868 + $0x74] sm:$0xf]
        %v4887 = vld [vmem:[%s4868 + $0x78] sm:$0xff]
        %v4888 = vld [vmem:[%s4868 + $0x80] sm:$0xff]
        %v4889 = vld [vmem:[%s4868 + $0x88] sm:$0xf]
        %v4890 = vld [vmem:[%s4868 + $0x8c] sm:$0xff]
        %v4891 = vld [vmem:[%s4868 + $0x94] sm:$0xff]
        %v4892 = vld [vmem:[%s4868 + $0x9c] sm:$0xf]
        %v4893 = vld [vmem:[%s4868 + $0xa0] sm:$0xff]
        %v4894 = vld [vmem:[%s4868 + $0xa8] sm:$0xff]
        %v4895 = vld [vmem:[%s4868 + $0xb0] sm:$0xf]
        %v4896 = vld [vmem:[%s4868 + $0xb4] sm:$0xff]
        %v4897 = vld [vmem:[%s4868 + $0xbc] sm:$0xff]
        %v4898 = vld [vmem:[%s4868 + $0xc4] sm:$0xf]
        %v4899 = vld [vmem:[%s4868 + $0xc8] sm:$0xff]
        %v4900 = vld [vmem:[%s4868 + $0xd0] sm:$0xff]
        %v4901 = vld [vmem:[%s4868 + $0xd8] sm:$0xf]
        %v4902 = vld [vmem:[%s4868 + $0xdc] sm:$0xff]
        %v4903 = vld [vmem:[%s4868 + $0xe4] sm:$0xff]
        %v4904 = vld [vmem:[%s4868 + $0xec] sm:$0xf]
        %v4905 = vld [vmem:[%s4868 + $0xf0] sm:$0xff]
        %v4906 = vld [vmem:[%s4868 + $0xf8] sm:$0xff]
        %v4907 = vld [vmem:[%s4868 + $0x100] sm:$0xf]
        %v4908 = vld [vmem:[%s4868 + $0x104] sm:$0xff]
        %v4909 = vld [vmem:[%s4868 + $0x10c] sm:$0xff]
        %v4910 = vld [vmem:[%s4868 + $0x114] sm:$0xf]
        %v4911 = vld [vmem:[%s4868 + $0x118] sm:$0xff]
        %v4912 = vld [vmem:[%s4868 + $0x120] sm:$0xff]
        %v4913 = vld [vmem:[%s4868 + $0x128] sm:$0xf]
        %v4914 = vld [vmem:[%s4868 + $0x12c] sm:$0xff]
        %v4915 = vld [vmem:[%s4868 + $0x134] sm:$0xff]
        %v4916 = vld [vmem:[%s4868 + $0x13c] sm:$0xf]
        %v4917 = vld [vmem:[%s4868 + $0x140] sm:$0xff]
        %v4918 = vld [vmem:[%s4868 + $0x148] sm:$0xff]
        %v4919 = vld [vmem:[%s4868 + $0x150] sm:$0xf]
        %v4920 = vld [vmem:[%s4868 + $0x154] sm:$0xff]
        %v4921 = vld [vmem:[%s4868 + $0x15c] sm:$0xff]
        %v4922 = vld [vmem:[%s4868 + $0x164] sm:$0xf]
        %v4923 = vld [vmem:[%s4868 + $0x168] sm:$0xff]
        %v4924 = vld [vmem:[%s4868 + $0x170] sm:$0xff]
        %v4925 = vld [vmem:[%s4868 + $0x178] sm:$0xf]
        %v4926 = vld [vmem:[%s4868 + $0x17c] sm:$0xff]
        %v4927 = vld [vmem:[%s4868 + $0x184] sm:$0xff]
        %v4928 = vld [vmem:[%s4868 + $0x18c] sm:$0xf]
        %v4929 = vld [vmem:[%s4868 + $0x190] sm:$0xff]
        %v4930 = vld [vmem:[%s4868 + $0x198] sm:$0xff]
        %v4931 = vld [vmem:[%s4868 + $0x1a0] sm:$0xf]
        %v4932 = vld [vmem:[%s4868 + $0x1a4] sm:$0xff]
        %v4933 = vld [vmem:[%s4868 + $0x1ac] sm:$0xff]
        %v4934 = vld [vmem:[%s4868 + $0x1b4] sm:$0xf]
        %v4935 = vld [vmem:[%s4868 + $0x1b8] sm:$0xff]
        %v4936 = vld [vmem:[%s4868 + $0x1c0] sm:$0xff]
        %v4937 = vld [vmem:[%s4868 + $0x1c8] sm:$0xf]
        %v4938 = vld [vmem:[%s4868 + $0x1cc] sm:$0xff]
        %v4939 = vld [vmem:[%s4868 + $0x1d4] sm:$0xff]
        %v4940 = vld [vmem:[%s4868 + $0x1dc] sm:$0xf]
        %v4941 = vld [vmem:[%s4868 + $0x1e0] sm:$0xff]
        %v4942 = vld [vmem:[%s4868 + $0x1e8] sm:$0xff]
        %v4943 = vld [vmem:[%s4868 + $0x1f0] sm:$0xf]
        %v4944 = vld [vmem:[%s4868 + $0x1f4] sm:$0xff]
        %v4945 = vld [vmem:[%s4868 + $0x1fc] sm:$0xff]
        %v4946 = vld [vmem:[%s4868 + $0x204] sm:$0xf]
        %v4947 = vld [vmem:[%s4868 + $0x208] sm:$0xff]
        %v4948 = vld [vmem:[%s4868 + $0x210] sm:$0xff]
        %v4949 = vld [vmem:[%s4868 + $0x218] sm:$0xf]
        %v4950 = vld [vmem:[%s4868 + $0x21c] sm:$0xff]
        %v4951 = vld [vmem:[%s4868 + $0x224] sm:$0xff]
        %v4952 = vld [vmem:[%s4868 + $0x22c] sm:$0xf]
        %v4953 = vld [vmem:[%s4868 + $0x230] sm:$0xff]
        %v4954 = vld [vmem:[%s4868 + $0x238] sm:$0xff]
        %v4955 = vld [vmem:[%s4868 + $0x240] sm:$0xf]
        %v4956 = vld [vmem:[%s4868 + $0x244] sm:$0xff]
        %v4957 = vld [vmem:[%s4868 + $0x24c] sm:$0xff]
        %v4958 = vld [vmem:[%s4868 + $0x254] sm:$0xf]
        %v4959 = vld [vmem:[%s4868 + $0x258] sm:$0xff]
        %v4960 = vld [vmem:[%s4868 + $0x260] sm:$0xff]
        %v4961 = vld [vmem:[%s4868 + $0x268] sm:$0xf]
        %v4962 = vld [vmem:[%s4868 + $0x26c] sm:$0xff]
        %v4963 = vld [vmem:[%s4868 + $0x274] sm:$0xff]
        %v4964 = vld [vmem:[%s4868 + $0x27c] sm:$0xf]
        %v4965 = vld [vmem:[%s4868 + $0x280] sm:$0xff]
        %v4966 = vld [vmem:[%s4868 + $0x288] sm:$0xff]
        %v4967 = vld [vmem:[%s4868 + $0x290] sm:$0xf]
        %v4968 = vld [vmem:[%s4868 + $0x294] sm:$0xff]
        %v4969 = vld [vmem:[%s4868 + $0x29c] sm:$0xff]
        %v4970 = vld [vmem:[%s4868 + $0x2a4] sm:$0xf]
        %v4971 = vld [vmem:[%s4868 + $0x2a8] sm:$0xff]
        %v4972 = vld [vmem:[%s4868 + $0x2b0] sm:$0xff]
        %v4973 = vld [vmem:[%s4868 + $0x2b8] sm:$0xf]
        %v4974 = vld [vmem:[%s4868 + $0x2bc] sm:$0xff]
        %v4975 = vld [vmem:[%s4868 + $0x2c4] sm:$0xff]
        %v4976 = vld [vmem:[%s4868 + $0x2cc] sm:$0xf]
        %v4977 = vld [vmem:[%s4868 + $0x2d0] sm:$0xff]
        %v4978 = vld [vmem:[%s4868 + $0x2d8] sm:$0xff]
        %v4979 = vld [vmem:[%s4868 + $0x2e0] sm:$0xf]
        %v4980 = vld [vmem:[%s4868 + $0x2e4] sm:$0xff]
        %v4981 = vld [vmem:[%s4868 + $0x2ec] sm:$0xff]
        %v4982 = vld [vmem:[%s4868 + $0x2f4] sm:$0xf]
        %v4983 = vld [vmem:[%s4868 + $0x2f8] sm:$0xff]
        %v4984 = vld [vmem:[%s4868 + $0x300] sm:$0xff]
        %v4985 = vld [vmem:[%s4868 + $0x308] sm:$0xf]
        %v4986 = vld [vmem:[%s4868 + $0x30c] sm:$0xff]
        %v4987 = vld [vmem:[%s4868 + $0x314] sm:$0xff]
        %v4988 = vld [vmem:[%s4868 + $0x31c] sm:$0xf]
        %v4989 = vld [vmem:[%s4868 + $0x320] sm:$0xff]
        %v4990 = vld [vmem:[%s4868 + $0x328] sm:$0xff]
        %v4991 = vld [vmem:[%s4868 + $0x330] sm:$0xf]
        %v4992 = vld [vmem:[%s4868 + $0x334] sm:$0xff]
        %v4993 = vld [vmem:[%s4868 + $0x33c] sm:$0xff]
        %v4994 = vld [vmem:[%s4868 + $0x344] sm:$0xf]
        %v4995 = vld [vmem:[%s4868 + $0x348] sm:$0xff]
        %v4996 = vld [vmem:[%s4868 + $0x350] sm:$0xff]
        %v4997 = vld [vmem:[%s4868 + $0x358] sm:$0xf]
        %v4998 = vld [vmem:[%s4868 + $0x35c] sm:$0xff]
        %v4999 = vld [vmem:[%s4868 + $0x364] sm:$0xff]
        %v5000 = vld [vmem:[%s4868 + $0x36c] sm:$0xf]
        %v5001 = vld [vmem:[%s4868 + $0x370] sm:$0xff]
        %v5002 = vld [vmem:[%s4868 + $0x378] sm:$0xff]
        %v5003 = vld [vmem:[%s4868 + $0x380] sm:$0xf]
        %v5004 = vld [vmem:[%s4868 + $0x384] sm:$0xff]
        %v5005 = vld [vmem:[%s4868 + $0x38c] sm:$0xff]
        %v5006 = vld [vmem:[%s4868 + $0x394] sm:$0xf]
        %v5007 = vld [vmem:[%s4868 + $0x398] sm:$0xff]
        %v5008 = vld [vmem:[%s4868 + $0x3a0] sm:$0xff]
        %v5009 = vld [vmem:[%s4868 + $0x3a8] sm:$0xf]
        %v5010 = vld [vmem:[%s4868 + $0x3ac] sm:$0xff]
        %v5011 = vld [vmem:[%s4868 + $0x3b4] sm:$0xff]
        %v5012 = vld [vmem:[%s4868 + $0x3bc] sm:$0xf]
        %v5157 = vunpack.c.l.b16 %v4869
        %v5158 = vunpack.c.h.b16 %v4869
        %v5159 = vunpack.c.l.b16 %v4870
        %v5160 = vunpack.c.h.b16 %v4870
        %v5161 = vunpack.c.l.b16 %v4871
        %v5162 = vunpack.c.l.b16 %v4872
        %v5163 = vunpack.c.h.b16 %v4872
        %v5164 = vunpack.c.l.b16 %v4873
        %v5165 = vunpack.c.h.b16 %v4873
        %v5166 = vunpack.c.l.b16 %v4874
        %v5167 = vunpack.c.l.b16 %v4875
        %v5168 = vunpack.c.h.b16 %v4875
        %v5169 = vunpack.c.l.b16 %v4876
        %v5170 = vunpack.c.h.b16 %v4876
        %v5171 = vunpack.c.l.b16 %v4877
        %v5172 = vunpack.c.l.b16 %v4878
        %v5173 = vunpack.c.h.b16 %v4878
        %v5174 = vunpack.c.l.b16 %v4879
        %v5175 = vunpack.c.h.b16 %v4879
        %v5176 = vunpack.c.l.b16 %v4880
        %v5177 = vunpack.c.l.b16 %v4881
        %v5178 = vunpack.c.h.b16 %v4881
        %v5179 = vunpack.c.l.b16 %v4882
        %v5180 = vunpack.c.h.b16 %v4882
        %v5181 = vunpack.c.l.b16 %v4883
        %v5182 = vunpack.c.l.b16 %v4884
        %v5183 = vunpack.c.h.b16 %v4884
        %v5184 = vunpack.c.l.b16 %v4885
        %v5185 = vunpack.c.h.b16 %v4885
        %v5186 = vunpack.c.l.b16 %v4886
        %v5187 = vunpack.c.l.b16 %v4887
        %v5188 = vunpack.c.h.b16 %v4887
        %v5189 = vunpack.c.l.b16 %v4888
        %v5190 = vunpack.c.h.b16 %v4888
        %v5191 = vunpack.c.l.b16 %v4889
        %v5192 = vunpack.c.l.b16 %v4890
        %v5193 = vunpack.c.h.b16 %v4890
        %v5194 = vunpack.c.l.b16 %v4891
        %v5195 = vunpack.c.h.b16 %v4891
        %v5196 = vunpack.c.l.b16 %v4892
        %v5197 = vunpack.c.l.b16 %v4893
        %v5198 = vunpack.c.h.b16 %v4893
        %v5199 = vunpack.c.l.b16 %v4894
        %v5200 = vunpack.c.h.b16 %v4894
        %v5201 = vunpack.c.l.b16 %v4895
        %v5202 = vunpack.c.l.b16 %v4896
        %v5203 = vunpack.c.h.b16 %v4896
        %v5204 = vunpack.c.l.b16 %v4897
        %v5205 = vunpack.c.h.b16 %v4897
        %v5206 = vunpack.c.l.b16 %v4898
        %v5207 = vunpack.c.l.b16 %v4899
        %v5208 = vunpack.c.h.b16 %v4899
        %v5209 = vunpack.c.l.b16 %v4900
        %v5210 = vunpack.c.h.b16 %v4900
        %v5211 = vunpack.c.l.b16 %v4901
        %v5212 = vunpack.c.l.b16 %v4902
        %v5213 = vunpack.c.h.b16 %v4902
        %v5214 = vunpack.c.l.b16 %v4903
        %v5215 = vunpack.c.h.b16 %v4903
        %v5216 = vunpack.c.l.b16 %v4904
        %v5217 = vunpack.c.l.b16 %v4905
        %v5218 = vunpack.c.h.b16 %v4905
        %v5219 = vunpack.c.l.b16 %v4906
        %v5220 = vunpack.c.h.b16 %v4906
        %v5221 = vunpack.c.l.b16 %v4907
        %v5222 = vunpack.c.l.b16 %v4908
        %v5223 = vunpack.c.h.b16 %v4908
        %v5224 = vunpack.c.l.b16 %v4909
        %v5225 = vunpack.c.h.b16 %v4909
        %v5226 = vunpack.c.l.b16 %v4910
        %v5227 = vunpack.c.l.b16 %v4911
        %v5228 = vunpack.c.h.b16 %v4911
        %v5229 = vunpack.c.l.b16 %v4912
        %v5230 = vunpack.c.h.b16 %v4912
        %v5231 = vunpack.c.l.b16 %v4913
        %v5232 = vunpack.c.l.b16 %v4914
        %v5233 = vunpack.c.h.b16 %v4914
        %v5234 = vunpack.c.l.b16 %v4915
        %v5235 = vunpack.c.h.b16 %v4915
        %v5236 = vunpack.c.l.b16 %v4916
        %v5237 = vunpack.c.l.b16 %v4917
        %v5238 = vunpack.c.h.b16 %v4917
        %v5239 = vunpack.c.l.b16 %v4918
        %v5240 = vunpack.c.h.b16 %v4918
        %v5241 = vunpack.c.l.b16 %v4919
        %v5242 = vunpack.c.l.b16 %v4920
        %v5243 = vunpack.c.h.b16 %v4920
        %v5244 = vunpack.c.l.b16 %v4921
        %v5245 = vunpack.c.h.b16 %v4921
        %v5246 = vunpack.c.l.b16 %v4922
        %v5247 = vunpack.c.l.b16 %v4923
        %v5248 = vunpack.c.h.b16 %v4923
        %v5249 = vunpack.c.l.b16 %v4924
        %v5250 = vunpack.c.h.b16 %v4924
        %v5251 = vunpack.c.l.b16 %v4925
        %v5252 = vunpack.c.l.b16 %v4926
        %v5253 = vunpack.c.h.b16 %v4926
        %v5254 = vunpack.c.l.b16 %v4927
        %v5255 = vunpack.c.h.b16 %v4927
        %v5256 = vunpack.c.l.b16 %v4928
        %v5257 = vunpack.c.l.b16 %v4929
        %v5258 = vunpack.c.h.b16 %v4929
        %v5259 = vunpack.c.l.b16 %v4930
        %v5260 = vunpack.c.h.b16 %v4930
        %v5261 = vunpack.c.l.b16 %v4931
        %v5262 = vunpack.c.l.b16 %v4932
        %v5263 = vunpack.c.h.b16 %v4932
        %v5264 = vunpack.c.l.b16 %v4933
        %v5265 = vunpack.c.h.b16 %v4933
        %v5266 = vunpack.c.l.b16 %v4934
        %v5267 = vunpack.c.l.b16 %v4935
        %v5268 = vunpack.c.h.b16 %v4935
        %v5269 = vunpack.c.l.b16 %v4936
        %v5270 = vunpack.c.h.b16 %v4936
        %v5271 = vunpack.c.l.b16 %v4937
        %v5272 = vunpack.c.l.b16 %v4938
        %v5273 = vunpack.c.h.b16 %v4938
        %v5274 = vunpack.c.l.b16 %v4939
        %v5275 = vunpack.c.h.b16 %v4939
        %v5276 = vunpack.c.l.b16 %v4940
        %v5277 = vunpack.c.l.b16 %v4941
        %v5278 = vunpack.c.h.b16 %v4941
        %v5279 = vunpack.c.l.b16 %v4942
        %v5280 = vunpack.c.h.b16 %v4942
        %v5281 = vunpack.c.l.b16 %v4943
        %v5282 = vunpack.c.l.b16 %v4944
        %v5283 = vunpack.c.h.b16 %v4944
        %v5284 = vunpack.c.l.b16 %v4945
        %v5285 = vunpack.c.h.b16 %v4945
        %v5286 = vunpack.c.l.b16 %v4946
        %v5287 = vunpack.c.l.b16 %v4947
        %v5288 = vunpack.c.h.b16 %v4947
        %v5289 = vunpack.c.l.b16 %v4948
        %v5290 = vunpack.c.h.b16 %v4948
        %v5291 = vunpack.c.l.b16 %v4949
        %v5292 = vunpack.c.l.b16 %v4950
        %v5293 = vunpack.c.h.b16 %v4950
        %v5294 = vunpack.c.l.b16 %v4951
        %v5295 = vunpack.c.h.b16 %v4951
        %v5296 = vunpack.c.l.b16 %v4952
        %v5297 = vunpack.c.l.b16 %v4953
        %v5298 = vunpack.c.h.b16 %v4953
        %v5299 = vunpack.c.l.b16 %v4954
        %v5300 = vunpack.c.h.b16 %v4954
        %v5301 = vunpack.c.l.b16 %v4955
        %v5302 = vunpack.c.l.b16 %v4956
        %v5303 = vunpack.c.h.b16 %v4956
        %v5304 = vunpack.c.l.b16 %v4957
        %v5305 = vunpack.c.h.b16 %v4957
        %v5306 = vunpack.c.l.b16 %v4958
        %v5307 = vunpack.c.l.b16 %v4959
        %v5308 = vunpack.c.h.b16 %v4959
        %v5309 = vunpack.c.l.b16 %v4960
        %v5310 = vunpack.c.h.b16 %v4960
        %v5311 = vunpack.c.l.b16 %v4961
        %v5312 = vunpack.c.l.b16 %v4962
        %v5313 = vunpack.c.h.b16 %v4962
        %v5314 = vunpack.c.l.b16 %v4963
        %v5315 = vunpack.c.h.b16 %v4963
        %v5316 = vunpack.c.l.b16 %v4964
        %v5317 = vunpack.c.l.b16 %v4965
        %v5318 = vunpack.c.h.b16 %v4965
        %v5319 = vunpack.c.l.b16 %v4966
        %v5320 = vunpack.c.h.b16 %v4966
        %v5321 = vunpack.c.l.b16 %v4967
        %v5322 = vunpack.c.l.b16 %v4968
        %v5323 = vunpack.c.h.b16 %v4968
        %v5324 = vunpack.c.l.b16 %v4969
        %v5325 = vunpack.c.h.b16 %v4969
        %v5326 = vunpack.c.l.b16 %v4970
        %v5327 = vunpack.c.l.b16 %v4971
        %v5328 = vunpack.c.h.b16 %v4971
        %v5329 = vunpack.c.l.b16 %v4972
        %v5330 = vunpack.c.h.b16 %v4972
        %v5331 = vunpack.c.l.b16 %v4973
        %v5332 = vunpack.c.l.b16 %v4974
        %v5333 = vunpack.c.h.b16 %v4974
        %v5334 = vunpack.c.l.b16 %v4975
        %v5335 = vunpack.c.h.b16 %v4975
        %v5336 = vunpack.c.l.b16 %v4976
        %v5337 = vunpack.c.l.b16 %v4977
        %v5338 = vunpack.c.h.b16 %v4977
        %v5339 = vunpack.c.l.b16 %v4978
        %v5340 = vunpack.c.h.b16 %v4978
        %v5341 = vunpack.c.l.b16 %v4979
        %v5342 = vunpack.c.l.b16 %v4980
        %v5343 = vunpack.c.h.b16 %v4980
        %v5344 = vunpack.c.l.b16 %v4981
        %v5345 = vunpack.c.h.b16 %v4981
        %v5346 = vunpack.c.l.b16 %v4982
        %v5347 = vunpack.c.l.b16 %v4983
        %v5348 = vunpack.c.h.b16 %v4983
        %v5349 = vunpack.c.l.b16 %v4984
        %v5350 = vunpack.c.h.b16 %v4984
        %v5351 = vunpack.c.l.b16 %v4985
        %v5352 = vunpack.c.l.b16 %v4986
        %v5353 = vunpack.c.h.b16 %v4986
        %v5354 = vunpack.c.l.b16 %v4987
        %v5355 = vunpack.c.h.b16 %v4987
        %v5356 = vunpack.c.l.b16 %v4988
        %v5357 = vunpack.c.l.b16 %v4989
        %v5358 = vunpack.c.h.b16 %v4989
        %v5359 = vunpack.c.l.b16 %v4990
        %v5360 = vunpack.c.h.b16 %v4990
        %v5361 = vunpack.c.l.b16 %v4991
        %v5362 = vunpack.c.l.b16 %v4992
        %v5363 = vunpack.c.h.b16 %v4992
        %v5364 = vunpack.c.l.b16 %v4993
        %v5365 = vunpack.c.h.b16 %v4993
        %v5366 = vunpack.c.l.b16 %v4994
        %v5367 = vunpack.c.l.b16 %v4995
        %v5368 = vunpack.c.h.b16 %v4995
        %v5369 = vunpack.c.l.b16 %v4996
        %v5370 = vunpack.c.h.b16 %v4996
        %v5371 = vunpack.c.l.b16 %v4997
        %v5372 = vunpack.c.l.b16 %v4998
        %v5373 = vunpack.c.h.b16 %v4998
        %v5374 = vunpack.c.l.b16 %v4999
        %v5375 = vunpack.c.h.b16 %v4999
        %v5376 = vunpack.c.l.b16 %v5000
        %v5377 = vunpack.c.l.b16 %v5001
        %v5378 = vunpack.c.h.b16 %v5001
        %v5379 = vunpack.c.l.b16 %v5002
        %v5380 = vunpack.c.h.b16 %v5002
        %v5381 = vunpack.c.l.b16 %v5003
        %v5382 = vunpack.c.l.b16 %v5004
        %v5383 = vunpack.c.h.b16 %v5004
        %v5384 = vunpack.c.l.b16 %v5005
        %v5385 = vunpack.c.h.b16 %v5005
        %v5386 = vunpack.c.l.b16 %v5006
        %v5387 = vunpack.c.l.b16 %v5007
        %v5388 = vunpack.c.h.b16 %v5007
        %v5389 = vunpack.c.l.b16 %v5008
        %v5390 = vunpack.c.h.b16 %v5008
        %v5391 = vunpack.c.l.b16 %v5009
        %v5392 = vunpack.c.l.b16 %v5010
        %v5393 = vunpack.c.h.b16 %v5010
        %v5394 = vunpack.c.l.b16 %v5011
        %v5395 = vunpack.c.h.b16 %v5011
        %v5396 = vunpack.c.l.b16 %v5012
        %v5397 = vpack.c.b16 %v5162, %v5157
        %v5398 = vpack.c.b16 %v5163, %v5158
        %v5399 = vpack.c.b16 %v5164, %v5159
        %v5400 = vpack.c.b16 %v5165, %v5160
        %v5401 = vpack.c.b16 %v5166, %v5161
        %v5402 = vpack.c.b16 %v5172, %v5167
        %v5403 = vpack.c.b16 %v5173, %v5168
        %v5404 = vpack.c.b16 %v5174, %v5169
        %v5405 = vpack.c.b16 %v5175, %v5170
        %v5406 = vpack.c.b16 %v5176, %v5171
        %v5407 = vpack.c.b16 %v5182, %v5177
        %v5408 = vpack.c.b16 %v5183, %v5178
        %v5409 = vpack.c.b16 %v5184, %v5179
        %v5410 = vpack.c.b16 %v5185, %v5180
        %v5411 = vpack.c.b16 %v5186, %v5181
        %v5412 = vpack.c.b16 %v5192, %v5187
        %v5413 = vpack.c.b16 %v5193, %v5188
        %v5414 = vpack.c.b16 %v5194, %v5189
        %v5415 = vpack.c.b16 %v5195, %v5190
        %v5416 = vpack.c.b16 %v5196, %v5191
        %v5417 = vpack.c.b16 %v5202, %v5197
        %v5418 = vpack.c.b16 %v5203, %v5198
        %v5419 = vpack.c.b16 %v5204, %v5199
        %v5420 = vpack.c.b16 %v5205, %v5200
        %v5421 = vpack.c.b16 %v5206, %v5201
        %v5422 = vpack.c.b16 %v5212, %v5207
        %v5423 = vpack.c.b16 %v5213, %v5208
        %v5424 = vpack.c.b16 %v5214, %v5209
        %v5425 = vpack.c.b16 %v5215, %v5210
        %v5426 = vpack.c.b16 %v5216, %v5211
        %v5427 = vpack.c.b16 %v5222, %v5217
        %v5428 = vpack.c.b16 %v5223, %v5218
        %v5429 = vpack.c.b16 %v5224, %v5219
        %v5430 = vpack.c.b16 %v5225, %v5220
        %v5431 = vpack.c.b16 %v5226, %v5221
        %v5432 = vpack.c.b16 %v5232, %v5227
        %v5433 = vpack.c.b16 %v5233, %v5228
        %v5434 = vpack.c.b16 %v5234, %v5229
        %v5435 = vpack.c.b16 %v5235, %v5230
        %v5436 = vpack.c.b16 %v5236, %v5231
        %v5437 = vpack.c.b16 %v5242, %v5237
        %v5438 = vpack.c.b16 %v5243, %v5238
        %v5439 = vpack.c.b16 %v5244, %v5239
        %v5440 = vpack.c.b16 %v5245, %v5240
        %v5441 = vpack.c.b16 %v5246, %v5241
        %v5442 = vpack.c.b16 %v5252, %v5247
        %v5443 = vpack.c.b16 %v5253, %v5248
        %v5444 = vpack.c.b16 %v5254, %v5249
        %v5445 = vpack.c.b16 %v5255, %v5250
        %v5446 = vpack.c.b16 %v5256, %v5251
        %v5447 = vpack.c.b16 %v5262, %v5257
        %v5448 = vpack.c.b16 %v5263, %v5258
        %v5449 = vpack.c.b16 %v5264, %v5259
        %v5450 = vpack.c.b16 %v5265, %v5260
        %v5451 = vpack.c.b16 %v5266, %v5261
        %v5452 = vpack.c.b16 %v5272, %v5267
        %v5453 = vpack.c.b16 %v5273, %v5268
        %v5454 = vpack.c.b16 %v5274, %v5269
        %v5455 = vpack.c.b16 %v5275, %v5270
        %v5456 = vpack.c.b16 %v5276, %v5271
        %v5457 = vpack.c.b16 %v5282, %v5277
        %v5458 = vpack.c.b16 %v5283, %v5278
        %v5459 = vpack.c.b16 %v5284, %v5279
        %v5460 = vpack.c.b16 %v5285, %v5280
        %v5461 = vpack.c.b16 %v5286, %v5281
        %v5462 = vpack.c.b16 %v5292, %v5287
        %v5463 = vpack.c.b16 %v5293, %v5288
        %v5464 = vpack.c.b16 %v5294, %v5289
        %v5465 = vpack.c.b16 %v5295, %v5290
        %v5466 = vpack.c.b16 %v5296, %v5291
        %v5467 = vpack.c.b16 %v5302, %v5297
        %v5468 = vpack.c.b16 %v5303, %v5298
        %v5469 = vpack.c.b16 %v5304, %v5299
        %v5470 = vpack.c.b16 %v5305, %v5300
        %v5471 = vpack.c.b16 %v5306, %v5301
        %v5472 = vpack.c.b16 %v5312, %v5307
        %v5473 = vpack.c.b16 %v5313, %v5308
        %v5474 = vpack.c.b16 %v5314, %v5309
        %v5475 = vpack.c.b16 %v5315, %v5310
        %v5476 = vpack.c.b16 %v5316, %v5311
        %v5477 = vpack.c.b16 %v5322, %v5317
        %v5478 = vpack.c.b16 %v5323, %v5318
        %v5479 = vpack.c.b16 %v5324, %v5319
        %v5480 = vpack.c.b16 %v5325, %v5320
        %v5481 = vpack.c.b16 %v5326, %v5321
        %v5482 = vpack.c.b16 %v5332, %v5327
        %v5483 = vpack.c.b16 %v5333, %v5328
        %v5484 = vpack.c.b16 %v5334, %v5329
        %v5485 = vpack.c.b16 %v5335, %v5330
        %v5486 = vpack.c.b16 %v5336, %v5331
        %v5487 = vpack.c.b16 %v5342, %v5337
        %v5488 = vpack.c.b16 %v5343, %v5338
        %v5489 = vpack.c.b16 %v5344, %v5339
        %v5490 = vpack.c.b16 %v5345, %v5340
        %v5491 = vpack.c.b16 %v5346, %v5341
        %v5492 = vpack.c.b16 %v5352, %v5347
        %v5493 = vpack.c.b16 %v5353, %v5348
        %v5494 = vpack.c.b16 %v5354, %v5349
        %v5495 = vpack.c.b16 %v5355, %v5350
        %v5496 = vpack.c.b16 %v5356, %v5351
        %v5497 = vpack.c.b16 %v5362, %v5357
        %v5498 = vpack.c.b16 %v5363, %v5358
        %v5499 = vpack.c.b16 %v5364, %v5359
        %v5500 = vpack.c.b16 %v5365, %v5360
        %v5501 = vpack.c.b16 %v5366, %v5361
        %v5502 = vpack.c.b16 %v5372, %v5367
        %v5503 = vpack.c.b16 %v5373, %v5368
        %v5504 = vpack.c.b16 %v5374, %v5369
        %v5505 = vpack.c.b16 %v5375, %v5370
        %v5506 = vpack.c.b16 %v5376, %v5371
        %v5507 = vpack.c.b16 %v5382, %v5377
        %v5508 = vpack.c.b16 %v5383, %v5378
        %v5509 = vpack.c.b16 %v5384, %v5379
        %v5510 = vpack.c.b16 %v5385, %v5380
        %v5511 = vpack.c.b16 %v5386, %v5381
        %v5512 = vpack.c.b16 %v5392, %v5387
        %v5513 = vpack.c.b16 %v5393, %v5388
        %v5514 = vpack.c.b16 %v5394, %v5389
        %v5515 = vpack.c.b16 %v5395, %v5390
        %v5516 = vpack.c.b16 %v5396, %v5391
        %5637 = vmatpush.bf16.msra.mxu0 %v5432
        %5638 = vmatpush.bf16.msra.mxu0 %v5427
        %5639 = vmatpush.bf16.msra.mxu0 %v5422
        %5640 = vmatpush.bf16.msra.mxu0 %v5417
        %5641 = vmatpush.bf16.msra.mxu0 %v5412
        %5642 = vmatpush.bf16.msra.mxu0 %v5407
        %5643 = vmatpush.bf16.msra.mxu0 %v5402
        %5644 = vmatpush.bf16.msra.mxu0 %v5397
        %5645 = vmatmul.bf16.gmra.mxu0 %v3746
        %v5646 = vpop.f32.mrf.mxu0
        %v5647 = vadd.f32 0.0, %v5646
        %v5648 = vpop.f32.mrf.mxu0
        %v5649 = vadd.f32 0.0, %v5648
        %5650 = vmatmul.bf16.gmra.mxu0 %v3749
        %v5651 = vpop.f32.mrf.mxu0
        %v5652 = vadd.f32 0.0, %v5651
        %v5653 = vpop.f32.mrf.mxu0
        %v5654 = vadd.f32 0.0, %v5653
        %5655 = vmatmul.bf16.gmra.mxu0 %v3752
        %v5656 = vpop.f32.mrf.mxu0
        %v5657 = vadd.f32 0.0, %v5656
        %v5658 = vpop.f32.mrf.mxu0
        %v5659 = vadd.f32 0.0, %v5658
        %5660 = vdwg.mxu0
        %5661 = vmatpush.bf16.msra.mxu0 %v5472
        %5662 = vmatpush.bf16.msra.mxu0 %v5467
        %5663 = vmatpush.bf16.msra.mxu0 %v5462
        %5664 = vmatpush.bf16.msra.mxu0 %v5457
        %5665 = vmatpush.bf16.msra.mxu0 %v5452
        %5666 = vmatpush.bf16.msra.mxu0 %v5447
        %5667 = vmatpush.bf16.msra.mxu0 %v5442
        %5668 = vmatpush.bf16.msra.mxu0 %v5437
        %5669 = vmatmul.bf16.gmra.mxu0 %v3747
        %v5670 = vpop.f32.mrf.mxu0
        %v5671 = vadd.f32 %v5647, %v5670
        %v5672 = vpop.f32.mrf.mxu0
        %v5673 = vadd.f32 %v5649, %v5672
        %5674 = vmatmul.bf16.gmra.mxu0 %v3750
        %v5675 = vpop.f32.mrf.mxu0
        %v5676 = vadd.f32 %v5652, %v5675
        %v5677 = vpop.f32.mrf.mxu0
        %v5678 = vadd.f32 %v5654, %v5677
        %5679 = vmatmul.bf16.gmra.mxu0 %v3753
        %v5680 = vpop.f32.mrf.mxu0
        %v5681 = vadd.f32 %v5657, %v5680
        %v5682 = vpop.f32.mrf.mxu0
        %v5683 = vadd.f32 %v5659, %v5682
        %5684 = vdwg.mxu0
        %5685 = vmatpush.bf16.msra.mxu0 %v5512
        %5686 = vmatpush.bf16.msra.mxu0 %v5507
        %5687 = vmatpush.bf16.msra.mxu0 %v5502
        %5688 = vmatpush.bf16.msra.mxu0 %v5497
        %5689 = vmatpush.bf16.msra.mxu0 %v5492
        %5690 = vmatpush.bf16.msra.mxu0 %v5487
        %5691 = vmatpush.bf16.msra.mxu0 %v5482
        %5692 = vmatpush.bf16.msra.mxu0 %v5477
        %5693 = vmatmul.bf16.gmra.mxu0 %v3748
        %v5694 = vpop.f32.mrf.mxu0
        %v5695 = vadd.f32 %v5671, %v5694
        %v5696 = vpop.f32.mrf.mxu0
        %v5697 = vadd.f32 %v5673, %v5696
        %5698 = vmatmul.bf16.gmra.mxu0 %v3751
        %v5699 = vpop.f32.mrf.mxu0
        %v5700 = vadd.f32 %v5676, %v5699
        %v5701 = vpop.f32.mrf.mxu0
        %v5702 = vadd.f32 %v5678, %v5701
        %5703 = vmatmul.bf16.gmra.mxu0 %v3754
        %v5704 = vpop.f32.mrf.mxu0
        %v5705 = vadd.f32 %v5681, %v5704
        %v5706 = vpop.f32.mrf.mxu0
        %v5707 = vadd.f32 %v5683, %v5706
        %5708 = vdwg.mxu0
        %5709 = vmatpush.bf16.msra.mxu0 %v5433
        %5710 = vmatpush.bf16.msra.mxu0 %v5428
        %5711 = vmatpush.bf16.msra.mxu0 %v5423
        %5712 = vmatpush.bf16.msra.mxu0 %v5418
        %5713 = vmatpush.bf16.msra.mxu0 %v5413
        %5714 = vmatpush.bf16.msra.mxu0 %v5408
        %5715 = vmatpush.bf16.msra.mxu0 %v5403
        %5716 = vmatpush.bf16.msra.mxu0 %v5398
        %5717 = vmatmul.bf16.gmra.mxu0 %v3746
        %v5718 = vpop.f32.mrf.mxu0
        %v5719 = vadd.f32 0.0, %v5718
        %v5720 = vpop.f32.mrf.mxu0
        %v5721 = vadd.f32 0.0, %v5720
        %5722 = vmatmul.bf16.gmra.mxu0 %v3749
        %v5723 = vpop.f32.mrf.mxu0
        %v5724 = vadd.f32 0.0, %v5723
        %v5725 = vpop.f32.mrf.mxu0
        %v5726 = vadd.f32 0.0, %v5725
        %5727 = vmatmul.bf16.gmra.mxu0 %v3752
        %v5728 = vpop.f32.mrf.mxu0
        %v5729 = vadd.f32 0.0, %v5728
        %v5730 = vpop.f32.mrf.mxu0
        %v5731 = vadd.f32 0.0, %v5730
        %5732 = vdwg.mxu0
        %5733 = vmatpush.bf16.msra.mxu0 %v5473
        %5734 = vmatpush.bf16.msra.mxu0 %v5468
        %5735 = vmatpush.bf16.msra.mxu0 %v5463
        %5736 = vmatpush.bf16.msra.mxu0 %v5458
        %5737 = vmatpush.bf16.msra.mxu0 %v5453
        %5738 = vmatpush.bf16.msra.mxu0 %v5448
        %5739 = vmatpush.bf16.msra.mxu0 %v5443
        %5740 = vmatpush.bf16.msra.mxu0 %v5438
        %5741 = vmatmul.bf16.gmra.mxu0 %v3747
        %v5742 = vpop.f32.mrf.mxu0
        %v5743 = vadd.f32 %v5719, %v5742
        %v5744 = vpop.f32.mrf.mxu0
        %v5745 = vadd.f32 %v5721, %v5744
        %5746 = vmatmul.bf16.gmra.mxu0 %v3750
        %v5747 = vpop.f32.mrf.mxu0
        %v5748 = vadd.f32 %v5724, %v5747
        %v5749 = vpop.f32.mrf.mxu0
        %v5750 = vadd.f32 %v5726, %v5749
        %5751 = vmatmul.bf16.gmra.mxu0 %v3753
        %v5752 = vpop.f32.mrf.mxu0
        %v5753 = vadd.f32 %v5729, %v5752
        %v5754 = vpop.f32.mrf.mxu0
        %v5755 = vadd.f32 %v5731, %v5754
        %5756 = vdwg.mxu0
        %5757 = vmatpush.bf16.msra.mxu0 %v5513
        %5758 = vmatpush.bf16.msra.mxu0 %v5508
        %5759 = vmatpush.bf16.msra.mxu0 %v5503
        %5760 = vmatpush.bf16.msra.mxu0 %v5498
        %5761 = vmatpush.bf16.msra.mxu0 %v5493
        %5762 = vmatpush.bf16.msra.mxu0 %v5488
        %5763 = vmatpush.bf16.msra.mxu0 %v5483
        %5764 = vmatpush.bf16.msra.mxu0 %v5478
        %5765 = vmatmul.bf16.gmra.mxu0 %v3748
        %v5766 = vpop.f32.mrf.mxu0
        %v5767 = vadd.f32 %v5743, %v5766
        %v5768 = vpop.f32.mrf.mxu0
        %v5769 = vadd.f32 %v5745, %v5768
        %5770 = vmatmul.bf16.gmra.mxu0 %v3751
        %v5771 = vpop.f32.mrf.mxu0
        %v5772 = vadd.f32 %v5748, %v5771
        %v5773 = vpop.f32.mrf.mxu0
        %v5774 = vadd.f32 %v5750, %v5773
        %5775 = vmatmul.bf16.gmra.mxu0 %v3754
        %v5776 = vpop.f32.mrf.mxu0
        %v5777 = vadd.f32 %v5753, %v5776
        %v5778 = vpop.f32.mrf.mxu0
        %v5779 = vadd.f32 %v5755, %v5778
        %5780 = vdwg.mxu0
        %5781 = vmatpush.bf16.msra.mxu0 %v5434
        %5782 = vmatpush.bf16.msra.mxu0 %v5429
        %5783 = vmatpush.bf16.msra.mxu0 %v5424
        %5784 = vmatpush.bf16.msra.mxu0 %v5419
        %5785 = vmatpush.bf16.msra.mxu0 %v5414
        %5786 = vmatpush.bf16.msra.mxu0 %v5409
        %5787 = vmatpush.bf16.msra.mxu0 %v5404
        %5788 = vmatpush.bf16.msra.mxu0 %v5399
        %5789 = vmatmul.bf16.gmra.mxu0 %v3746
        %v5790 = vpop.f32.mrf.mxu0
        %v5791 = vadd.f32 0.0, %v5790
        %v5792 = vpop.f32.mrf.mxu0
        %v5793 = vadd.f32 0.0, %v5792
        %5794 = vmatmul.bf16.gmra.mxu0 %v3749
        %v5795 = vpop.f32.mrf.mxu0
        %v5796 = vadd.f32 0.0, %v5795
        %v5797 = vpop.f32.mrf.mxu0
        %v5798 = vadd.f32 0.0, %v5797
        %5799 = vmatmul.bf16.gmra.mxu0 %v3752
        %v5800 = vpop.f32.mrf.mxu0
        %v5801 = vadd.f32 0.0, %v5800
        %v5802 = vpop.f32.mrf.mxu0
        %v5803 = vadd.f32 0.0, %v5802
        %5804 = vdwg.mxu0
        %5805 = vmatpush.bf16.msra.mxu0 %v5474
        %5806 = vmatpush.bf16.msra.mxu0 %v5469
        %5807 = vmatpush.bf16.msra.mxu0 %v5464
        %5808 = vmatpush.bf16.msra.mxu0 %v5459
        %5809 = vmatpush.bf16.msra.mxu0 %v5454
        %5810 = vmatpush.bf16.msra.mxu0 %v5449
        %5811 = vmatpush.bf16.msra.mxu0 %v5444
        %5812 = vmatpush.bf16.msra.mxu0 %v5439
        %5813 = vmatmul.bf16.gmra.mxu0 %v3747
        %v5814 = vpop.f32.mrf.mxu0
        %v5815 = vadd.f32 %v5791, %v5814
        %v5816 = vpop.f32.mrf.mxu0
        %v5817 = vadd.f32 %v5793, %v5816
        %5818 = vmatmul.bf16.gmra.mxu0 %v3750
        %v5819 = vpop.f32.mrf.mxu0
        %v5820 = vadd.f32 %v5796, %v5819
        %v5821 = vpop.f32.mrf.mxu0
        %v5822 = vadd.f32 %v5798, %v5821
        %5823 = vmatmul.bf16.gmra.mxu0 %v3753
        %v5824 = vpop.f32.mrf.mxu0
        %v5825 = vadd.f32 %v5801, %v5824
        %v5826 = vpop.f32.mrf.mxu0
        %v5827 = vadd.f32 %v5803, %v5826
        %5828 = vdwg.mxu0
        %5829 = vmatpush.bf16.msra.mxu0 %v5514
        %5830 = vmatpush.bf16.msra.mxu0 %v5509
        %5831 = vmatpush.bf16.msra.mxu0 %v5504
        %5832 = vmatpush.bf16.msra.mxu0 %v5499
        %5833 = vmatpush.bf16.msra.mxu0 %v5494
        %5834 = vmatpush.bf16.msra.mxu0 %v5489
        %5835 = vmatpush.bf16.msra.mxu0 %v5484
        %5836 = vmatpush.bf16.msra.mxu0 %v5479
        %5837 = vmatmul.bf16.gmra.mxu0 %v3748
        %v5838 = vpop.f32.mrf.mxu0
        %v5839 = vadd.f32 %v5815, %v5838
        %v5840 = vpop.f32.mrf.mxu0
        %v5841 = vadd.f32 %v5817, %v5840
        %5842 = vmatmul.bf16.gmra.mxu0 %v3751
        %v5843 = vpop.f32.mrf.mxu0
        %v5844 = vadd.f32 %v5820, %v5843
        %v5845 = vpop.f32.mrf.mxu0
        %v5846 = vadd.f32 %v5822, %v5845
        %5847 = vmatmul.bf16.gmra.mxu0 %v3754
        %v5848 = vpop.f32.mrf.mxu0
        %v5849 = vadd.f32 %v5825, %v5848
        %v5850 = vpop.f32.mrf.mxu0
        %v5851 = vadd.f32 %v5827, %v5850
        %5852 = vdwg.mxu0
        %5853 = vmatpush.bf16.msra.mxu0 %v5435
        %5854 = vmatpush.bf16.msra.mxu0 %v5430
        %5855 = vmatpush.bf16.msra.mxu0 %v5425
        %5856 = vmatpush.bf16.msra.mxu0 %v5420
        %5857 = vmatpush.bf16.msra.mxu0 %v5415
        %5858 = vmatpush.bf16.msra.mxu0 %v5410
        %5859 = vmatpush.bf16.msra.mxu0 %v5405
        %5860 = vmatpush.bf16.msra.mxu0 %v5400
        %5861 = vmatmul.bf16.gmra.mxu0 %v3746
        %v5862 = vpop.f32.mrf.mxu0
        %v5863 = vadd.f32 0.0, %v5862
        %v5864 = vpop.f32.mrf.mxu0
        %v5865 = vadd.f32 0.0, %v5864
        %5866 = vmatmul.bf16.gmra.mxu0 %v3749
        %v5867 = vpop.f32.mrf.mxu0
        %v5868 = vadd.f32 0.0, %v5867
        %v5869 = vpop.f32.mrf.mxu0
        %v5870 = vadd.f32 0.0, %v5869
        %5871 = vmatmul.bf16.gmra.mxu0 %v3752
        %v5872 = vpop.f32.mrf.mxu0
        %v5873 = vadd.f32 0.0, %v5872
        %v5874 = vpop.f32.mrf.mxu0
        %v5875 = vadd.f32 0.0, %v5874
        %5876 = vdwg.mxu0
        %5877 = vmatpush.bf16.msra.mxu0 %v5475
        %5878 = vmatpush.bf16.msra.mxu0 %v5470
        %5879 = vmatpush.bf16.msra.mxu0 %v5465
        %5880 = vmatpush.bf16.msra.mxu0 %v5460
        %5881 = vmatpush.bf16.msra.mxu0 %v5455
        %5882 = vmatpush.bf16.msra.mxu0 %v5450
        %5883 = vmatpush.bf16.msra.mxu0 %v5445
        %5884 = vmatpush.bf16.msra.mxu0 %v5440
        %5885 = vmatmul.bf16.gmra.mxu0 %v3747
        %v5886 = vpop.f32.mrf.mxu0
        %v5887 = vadd.f32 %v5863, %v5886
        %v5888 = vpop.f32.mrf.mxu0
        %v5889 = vadd.f32 %v5865, %v5888
        %5890 = vmatmul.bf16.gmra.mxu0 %v3750
        %v5891 = vpop.f32.mrf.mxu0
        %v5892 = vadd.f32 %v5868, %v5891
        %v5893 = vpop.f32.mrf.mxu0
        %v5894 = vadd.f32 %v5870, %v5893
        %5895 = vmatmul.bf16.gmra.mxu0 %v3753
        %v5896 = vpop.f32.mrf.mxu0
        %v5897 = vadd.f32 %v5873, %v5896
        %v5898 = vpop.f32.mrf.mxu0
        %v5899 = vadd.f32 %v5875, %v5898
        %5900 = vdwg.mxu0
        %5901 = vmatpush.bf16.msra.mxu0 %v5515
        %5902 = vmatpush.bf16.msra.mxu0 %v5510
        %5903 = vmatpush.bf16.msra.mxu0 %v5505
        %5904 = vmatpush.bf16.msra.mxu0 %v5500
        %5905 = vmatpush.bf16.msra.mxu0 %v5495
        %5906 = vmatpush.bf16.msra.mxu0 %v5490
        %5907 = vmatpush.bf16.msra.mxu0 %v5485
        %5908 = vmatpush.bf16.msra.mxu0 %v5480
        %5909 = vmatmul.bf16.gmra.mxu0 %v3748
        %v5910 = vpop.f32.mrf.mxu0
        %v5911 = vadd.f32 %v5887, %v5910
        %v5912 = vpop.f32.mrf.mxu0
        %v5913 = vadd.f32 %v5889, %v5912
        %5914 = vmatmul.bf16.gmra.mxu0 %v3751
        %v5915 = vpop.f32.mrf.mxu0
        %v5916 = vadd.f32 %v5892, %v5915
        %v5917 = vpop.f32.mrf.mxu0
        %v5918 = vadd.f32 %v5894, %v5917
        %5919 = vmatmul.bf16.gmra.mxu0 %v3754
        %v5920 = vpop.f32.mrf.mxu0
        %v5921 = vadd.f32 %v5897, %v5920
        %v5922 = vpop.f32.mrf.mxu0
        %v5923 = vadd.f32 %v5899, %v5922
        %5924 = vdwg.mxu0
        %5925 = vmatpush.bf16.msra.mxu0 %v5436
        %5926 = vmatpush.bf16.msra.mxu0 %v5431
        %5927 = vmatpush.bf16.msra.mxu0 %v5426
        %5928 = vmatpush.bf16.msra.mxu0 %v5421
        %5929 = vmatpush.bf16.msra.mxu0 %v5416
        %5930 = vmatpush.bf16.msra.mxu0 %v5411
        %5931 = vmatpush.bf16.msra.mxu0 %v5406
        %5932 = vmatpush.bf16.msra.mxu0 %v5401
        %5933 = vmatmul.bf16.gmra.mxu0 %v3746
        %v5934 = vpop.f32.mrf.mxu0
        %v5935 = vadd.f32 0.0, %v5934
        %v5936 = vpop.f32.mrf.mxu0
        %v5937 = vadd.f32 0.0, %v5936
        %5938 = vmatmul.bf16.gmra.mxu0 %v3749
        %v5939 = vpop.f32.mrf.mxu0
        %v5940 = vadd.f32 0.0, %v5939
        %v5941 = vpop.f32.mrf.mxu0
        %v5942 = vadd.f32 0.0, %v5941
        %5943 = vmatmul.bf16.gmra.mxu0 %v3752
        %v5944 = vpop.f32.mrf.mxu0
        %v5945 = vadd.f32 0.0, %v5944
        %v5946 = vpop.f32.mrf.mxu0
        %v5947 = vadd.f32 0.0, %v5946
        %5948 = vdwg.mxu0
        %5949 = vmatpush.bf16.msra.mxu0 %v5476
        %5950 = vmatpush.bf16.msra.mxu0 %v5471
        %5951 = vmatpush.bf16.msra.mxu0 %v5466
        %5952 = vmatpush.bf16.msra.mxu0 %v5461
        %5953 = vmatpush.bf16.msra.mxu0 %v5456
        %5954 = vmatpush.bf16.msra.mxu0 %v5451
        %5955 = vmatpush.bf16.msra.mxu0 %v5446
        %5956 = vmatpush.bf16.msra.mxu0 %v5441
        %5957 = vmatmul.bf16.gmra.mxu0 %v3747
        %v5958 = vpop.f32.mrf.mxu0
        %v5959 = vadd.f32 %v5935, %v5958
        %v5960 = vpop.f32.mrf.mxu0
        %v5961 = vadd.f32 %v5937, %v5960
        %5962 = vmatmul.bf16.gmra.mxu0 %v3750
        %v5963 = vpop.f32.mrf.mxu0
        %v5964 = vadd.f32 %v5940, %v5963
        %v5965 = vpop.f32.mrf.mxu0
        %v5966 = vadd.f32 %v5942, %v5965
        %5967 = vmatmul.bf16.gmra.mxu0 %v3753
        %v5968 = vpop.f32.mrf.mxu0
        %v5969 = vadd.f32 %v5945, %v5968
        %v5970 = vpop.f32.mrf.mxu0
        %v5971 = vadd.f32 %v5947, %v5970
        %5972 = vdwg.mxu0
        %5973 = vmatpush.bf16.msra.mxu0 %v5516
        %5974 = vmatpush.bf16.msra.mxu0 %v5511
        %5975 = vmatpush.bf16.msra.mxu0 %v5506
        %5976 = vmatpush.bf16.msra.mxu0 %v5501
        %5977 = vmatpush.bf16.msra.mxu0 %v5496
        %5978 = vmatpush.bf16.msra.mxu0 %v5491
        %5979 = vmatpush.bf16.msra.mxu0 %v5486
        %5980 = vmatpush.bf16.msra.mxu0 %v5481
        %5981 = vmatmul.bf16.gmra.mxu0 %v3748
        %v5982 = vpop.f32.mrf.mxu0
        %v5983 = vadd.f32 %v5959, %v5982
        %v5984 = vpop.f32.mrf.mxu0
        %v5985 = vadd.f32 %v5961, %v5984
        %5986 = vmatmul.bf16.gmra.mxu0 %v3751
        %v5987 = vpop.f32.mrf.mxu0
        %v5988 = vadd.f32 %v5964, %v5987
        %v5989 = vpop.f32.mrf.mxu0
        %v5990 = vadd.f32 %v5966, %v5989
        %5991 = vmatmul.bf16.gmra.mxu0 %v3754
        %v5992 = vpop.f32.mrf.mxu0
        %v5993 = vadd.f32 %v5969, %v5992
        %v5994 = vpop.f32.mrf.mxu0
        %v5995 = vadd.f32 %v5971, %v5994
        %5996 = vdwg.mxu0
        %s5997 = scalar_lea.vmem [#allocation11], 1920
        %v5998 = vld [vmem:[%s5997] sm:$0xff]
        %v5999 = vld [vmem:[%s5997 + $0x8] sm:$0xff]
        %v6000 = vld [vmem:[%s5997 + $0x10] sm:$0xf]
        %v6001 = vld [vmem:[%s5997 + $0x14] sm:$0xff]
        %v6002 = vld [vmem:[%s5997 + $0x1c] sm:$0xff]
        %v6003 = vld [vmem:[%s5997 + $0x24] sm:$0xf]
        %v6004 = vld [vmem:[%s5997 + $0x28] sm:$0xff]
        %v6005 = vld [vmem:[%s5997 + $0x30] sm:$0xff]
        %v6006 = vld [vmem:[%s5997 + $0x38] sm:$0xf]
        %v6007 = vld [vmem:[%s5997 + $0x3c] sm:$0xff]
        %v6008 = vld [vmem:[%s5997 + $0x44] sm:$0xff]
        %v6009 = vld [vmem:[%s5997 + $0x4c] sm:$0xf]
        %v6010 = vld [vmem:[%s5997 + $0x50] sm:$0xff]
        %v6011 = vld [vmem:[%s5997 + $0x58] sm:$0xff]
        %v6012 = vld [vmem:[%s5997 + $0x60] sm:$0xf]
        %v6013 = vld [vmem:[%s5997 + $0x64] sm:$0xff]
        %v6014 = vld [vmem:[%s5997 + $0x6c] sm:$0xff]
        %v6015 = vld [vmem:[%s5997 + $0x74] sm:$0xf]
        %v6016 = vld [vmem:[%s5997 + $0x78] sm:$0xff]
        %v6017 = vld [vmem:[%s5997 + $0x80] sm:$0xff]
        %v6018 = vld [vmem:[%s5997 + $0x88] sm:$0xf]
        %v6019 = vld [vmem:[%s5997 + $0x8c] sm:$0xff]
        %v6020 = vld [vmem:[%s5997 + $0x94] sm:$0xff]
        %v6021 = vld [vmem:[%s5997 + $0x9c] sm:$0xf]
        %v6022 = vld [vmem:[%s5997 + $0xa0] sm:$0xff]
        %v6023 = vld [vmem:[%s5997 + $0xa8] sm:$0xff]
        %v6024 = vld [vmem:[%s5997 + $0xb0] sm:$0xf]
        %v6025 = vld [vmem:[%s5997 + $0xb4] sm:$0xff]
        %v6026 = vld [vmem:[%s5997 + $0xbc] sm:$0xff]
        %v6027 = vld [vmem:[%s5997 + $0xc4] sm:$0xf]
        %v6028 = vld [vmem:[%s5997 + $0xc8] sm:$0xff]
        %v6029 = vld [vmem:[%s5997 + $0xd0] sm:$0xff]
        %v6030 = vld [vmem:[%s5997 + $0xd8] sm:$0xf]
        %v6031 = vld [vmem:[%s5997 + $0xdc] sm:$0xff]
        %v6032 = vld [vmem:[%s5997 + $0xe4] sm:$0xff]
        %v6033 = vld [vmem:[%s5997 + $0xec] sm:$0xf]
        %v6034 = vld [vmem:[%s5997 + $0xf0] sm:$0xff]
        %v6035 = vld [vmem:[%s5997 + $0xf8] sm:$0xff]
        %v6036 = vld [vmem:[%s5997 + $0x100] sm:$0xf]
        %v6037 = vld [vmem:[%s5997 + $0x104] sm:$0xff]
        %v6038 = vld [vmem:[%s5997 + $0x10c] sm:$0xff]
        %v6039 = vld [vmem:[%s5997 + $0x114] sm:$0xf]
        %v6040 = vld [vmem:[%s5997 + $0x118] sm:$0xff]
        %v6041 = vld [vmem:[%s5997 + $0x120] sm:$0xff]
        %v6042 = vld [vmem:[%s5997 + $0x128] sm:$0xf]
        %v6043 = vld [vmem:[%s5997 + $0x12c] sm:$0xff]
        %v6044 = vld [vmem:[%s5997 + $0x134] sm:$0xff]
        %v6045 = vld [vmem:[%s5997 + $0x13c] sm:$0xf]
        %v6046 = vld [vmem:[%s5997 + $0x140] sm:$0xff]
        %v6047 = vld [vmem:[%s5997 + $0x148] sm:$0xff]
        %v6048 = vld [vmem:[%s5997 + $0x150] sm:$0xf]
        %v6049 = vld [vmem:[%s5997 + $0x154] sm:$0xff]
        %v6050 = vld [vmem:[%s5997 + $0x15c] sm:$0xff]
        %v6051 = vld [vmem:[%s5997 + $0x164] sm:$0xf]
        %v6052 = vld [vmem:[%s5997 + $0x168] sm:$0xff]
        %v6053 = vld [vmem:[%s5997 + $0x170] sm:$0xff]
        %v6054 = vld [vmem:[%s5997 + $0x178] sm:$0xf]
        %v6055 = vld [vmem:[%s5997 + $0x17c] sm:$0xff]
        %v6056 = vld [vmem:[%s5997 + $0x184] sm:$0xff]
        %v6057 = vld [vmem:[%s5997 + $0x18c] sm:$0xf]
        %v6058 = vld [vmem:[%s5997 + $0x190] sm:$0xff]
        %v6059 = vld [vmem:[%s5997 + $0x198] sm:$0xff]
        %v6060 = vld [vmem:[%s5997 + $0x1a0] sm:$0xf]
        %v6061 = vld [vmem:[%s5997 + $0x1a4] sm:$0xff]
        %v6062 = vld [vmem:[%s5997 + $0x1ac] sm:$0xff]
        %v6063 = vld [vmem:[%s5997 + $0x1b4] sm:$0xf]
        %v6064 = vld [vmem:[%s5997 + $0x1b8] sm:$0xff]
        %v6065 = vld [vmem:[%s5997 + $0x1c0] sm:$0xff]
        %v6066 = vld [vmem:[%s5997 + $0x1c8] sm:$0xf]
        %v6067 = vld [vmem:[%s5997 + $0x1cc] sm:$0xff]
        %v6068 = vld [vmem:[%s5997 + $0x1d4] sm:$0xff]
        %v6069 = vld [vmem:[%s5997 + $0x1dc] sm:$0xf]
        %v6070 = vld [vmem:[%s5997 + $0x1e0] sm:$0xff]
        %v6071 = vld [vmem:[%s5997 + $0x1e8] sm:$0xff]
        %v6072 = vld [vmem:[%s5997 + $0x1f0] sm:$0xf]
        %v6073 = vld [vmem:[%s5997 + $0x1f4] sm:$0xff]
        %v6074 = vld [vmem:[%s5997 + $0x1fc] sm:$0xff]
        %v6075 = vld [vmem:[%s5997 + $0x204] sm:$0xf]
        %v6076 = vld [vmem:[%s5997 + $0x208] sm:$0xff]
        %v6077 = vld [vmem:[%s5997 + $0x210] sm:$0xff]
        %v6078 = vld [vmem:[%s5997 + $0x218] sm:$0xf]
        %v6079 = vld [vmem:[%s5997 + $0x21c] sm:$0xff]
        %v6080 = vld [vmem:[%s5997 + $0x224] sm:$0xff]
        %v6081 = vld [vmem:[%s5997 + $0x22c] sm:$0xf]
        %v6082 = vld [vmem:[%s5997 + $0x230] sm:$0xff]
        %v6083 = vld [vmem:[%s5997 + $0x238] sm:$0xff]
        %v6084 = vld [vmem:[%s5997 + $0x240] sm:$0xf]
        %v6085 = vld [vmem:[%s5997 + $0x244] sm:$0xff]
        %v6086 = vld [vmem:[%s5997 + $0x24c] sm:$0xff]
        %v6087 = vld [vmem:[%s5997 + $0x254] sm:$0xf]
        %v6088 = vld [vmem:[%s5997 + $0x258] sm:$0xff]
        %v6089 = vld [vmem:[%s5997 + $0x260] sm:$0xff]
        %v6090 = vld [vmem:[%s5997 + $0x268] sm:$0xf]
        %v6091 = vld [vmem:[%s5997 + $0x26c] sm:$0xff]
        %v6092 = vld [vmem:[%s5997 + $0x274] sm:$0xff]
        %v6093 = vld [vmem:[%s5997 + $0x27c] sm:$0xf]
        %v6094 = vld [vmem:[%s5997 + $0x280] sm:$0xff]
        %v6095 = vld [vmem:[%s5997 + $0x288] sm:$0xff]
        %v6096 = vld [vmem:[%s5997 + $0x290] sm:$0xf]
        %v6097 = vld [vmem:[%s5997 + $0x294] sm:$0xff]
        %v6098 = vld [vmem:[%s5997 + $0x29c] sm:$0xff]
        %v6099 = vld [vmem:[%s5997 + $0x2a4] sm:$0xf]
        %v6100 = vld [vmem:[%s5997 + $0x2a8] sm:$0xff]
        %v6101 = vld [vmem:[%s5997 + $0x2b0] sm:$0xff]
        %v6102 = vld [vmem:[%s5997 + $0x2b8] sm:$0xf]
        %v6103 = vld [vmem:[%s5997 + $0x2bc] sm:$0xff]
        %v6104 = vld [vmem:[%s5997 + $0x2c4] sm:$0xff]
        %v6105 = vld [vmem:[%s5997 + $0x2cc] sm:$0xf]
        %v6106 = vld [vmem:[%s5997 + $0x2d0] sm:$0xff]
        %v6107 = vld [vmem:[%s5997 + $0x2d8] sm:$0xff]
        %v6108 = vld [vmem:[%s5997 + $0x2e0] sm:$0xf]
        %v6109 = vld [vmem:[%s5997 + $0x2e4] sm:$0xff]
        %v6110 = vld [vmem:[%s5997 + $0x2ec] sm:$0xff]
        %v6111 = vld [vmem:[%s5997 + $0x2f4] sm:$0xf]
        %v6112 = vld [vmem:[%s5997 + $0x2f8] sm:$0xff]
        %v6113 = vld [vmem:[%s5997 + $0x300] sm:$0xff]
        %v6114 = vld [vmem:[%s5997 + $0x308] sm:$0xf]
        %v6115 = vld [vmem:[%s5997 + $0x30c] sm:$0xff]
        %v6116 = vld [vmem:[%s5997 + $0x314] sm:$0xff]
        %v6117 = vld [vmem:[%s5997 + $0x31c] sm:$0xf]
        %v6118 = vld [vmem:[%s5997 + $0x320] sm:$0xff]
        %v6119 = vld [vmem:[%s5997 + $0x328] sm:$0xff]
        %v6120 = vld [vmem:[%s5997 + $0x330] sm:$0xf]
        %v6121 = vld [vmem:[%s5997 + $0x334] sm:$0xff]
        %v6122 = vld [vmem:[%s5997 + $0x33c] sm:$0xff]
        %v6123 = vld [vmem:[%s5997 + $0x344] sm:$0xf]
        %v6124 = vld [vmem:[%s5997 + $0x348] sm:$0xff]
        %v6125 = vld [vmem:[%s5997 + $0x350] sm:$0xff]
        %v6126 = vld [vmem:[%s5997 + $0x358] sm:$0xf]
        %v6127 = vld [vmem:[%s5997 + $0x35c] sm:$0xff]
        %v6128 = vld [vmem:[%s5997 + $0x364] sm:$0xff]
        %v6129 = vld [vmem:[%s5997 + $0x36c] sm:$0xf]
        %v6130 = vld [vmem:[%s5997 + $0x370] sm:$0xff]
        %v6131 = vld [vmem:[%s5997 + $0x378] sm:$0xff]
        %v6132 = vld [vmem:[%s5997 + $0x380] sm:$0xf]
        %v6133 = vld [vmem:[%s5997 + $0x384] sm:$0xff]
        %v6134 = vld [vmem:[%s5997 + $0x38c] sm:$0xff]
        %v6135 = vld [vmem:[%s5997 + $0x394] sm:$0xf]
        %v6136 = vld [vmem:[%s5997 + $0x398] sm:$0xff]
        %v6137 = vld [vmem:[%s5997 + $0x3a0] sm:$0xff]
        %v6138 = vld [vmem:[%s5997 + $0x3a8] sm:$0xf]
        %v6139 = vld [vmem:[%s5997 + $0x3ac] sm:$0xff]
        %v6140 = vld [vmem:[%s5997 + $0x3b4] sm:$0xff]
        %v6141 = vld [vmem:[%s5997 + $0x3bc] sm:$0xf]
        %v6286 = vunpack.c.l.b16 %v5998
        %v6287 = vunpack.c.h.b16 %v5998
        %v6288 = vunpack.c.l.b16 %v5999
        %v6289 = vunpack.c.h.b16 %v5999
        %v6290 = vunpack.c.l.b16 %v6000
        %v6291 = vunpack.c.l.b16 %v6001
        %v6292 = vunpack.c.h.b16 %v6001
        %v6293 = vunpack.c.l.b16 %v6002
        %v6294 = vunpack.c.h.b16 %v6002
        %v6295 = vunpack.c.l.b16 %v6003
        %v6296 = vunpack.c.l.b16 %v6004
        %v6297 = vunpack.c.h.b16 %v6004
        %v6298 = vunpack.c.l.b16 %v6005
        %v6299 = vunpack.c.h.b16 %v6005
        %v6300 = vunpack.c.l.b16 %v6006
        %v6301 = vunpack.c.l.b16 %v6007
        %v6302 = vunpack.c.h.b16 %v6007
        %v6303 = vunpack.c.l.b16 %v6008
        %v6304 = vunpack.c.h.b16 %v6008
        %v6305 = vunpack.c.l.b16 %v6009
        %v6306 = vunpack.c.l.b16 %v6010
        %v6307 = vunpack.c.h.b16 %v6010
        %v6308 = vunpack.c.l.b16 %v6011
        %v6309 = vunpack.c.h.b16 %v6011
        %v6310 = vunpack.c.l.b16 %v6012
        %v6311 = vunpack.c.l.b16 %v6013
        %v6312 = vunpack.c.h.b16 %v6013
        %v6313 = vunpack.c.l.b16 %v6014
        %v6314 = vunpack.c.h.b16 %v6014
        %v6315 = vunpack.c.l.b16 %v6015
        %v6316 = vunpack.c.l.b16 %v6016
        %v6317 = vunpack.c.h.b16 %v6016
        %v6318 = vunpack.c.l.b16 %v6017
        %v6319 = vunpack.c.h.b16 %v6017
        %v6320 = vunpack.c.l.b16 %v6018
        %v6321 = vunpack.c.l.b16 %v6019
        %v6322 = vunpack.c.h.b16 %v6019
        %v6323 = vunpack.c.l.b16 %v6020
        %v6324 = vunpack.c.h.b16 %v6020
        %v6325 = vunpack.c.l.b16 %v6021
        %v6326 = vunpack.c.l.b16 %v6022
        %v6327 = vunpack.c.h.b16 %v6022
        %v6328 = vunpack.c.l.b16 %v6023
        %v6329 = vunpack.c.h.b16 %v6023
        %v6330 = vunpack.c.l.b16 %v6024
        %v6331 = vunpack.c.l.b16 %v6025
        %v6332 = vunpack.c.h.b16 %v6025
        %v6333 = vunpack.c.l.b16 %v6026
        %v6334 = vunpack.c.h.b16 %v6026
        %v6335 = vunpack.c.l.b16 %v6027
        %v6336 = vunpack.c.l.b16 %v6028
        %v6337 = vunpack.c.h.b16 %v6028
        %v6338 = vunpack.c.l.b16 %v6029
        %v6339 = vunpack.c.h.b16 %v6029
        %v6340 = vunpack.c.l.b16 %v6030
        %v6341 = vunpack.c.l.b16 %v6031
        %v6342 = vunpack.c.h.b16 %v6031
        %v6343 = vunpack.c.l.b16 %v6032
        %v6344 = vunpack.c.h.b16 %v6032
        %v6345 = vunpack.c.l.b16 %v6033
        %v6346 = vunpack.c.l.b16 %v6034
        %v6347 = vunpack.c.h.b16 %v6034
        %v6348 = vunpack.c.l.b16 %v6035
        %v6349 = vunpack.c.h.b16 %v6035
        %v6350 = vunpack.c.l.b16 %v6036
        %v6351 = vunpack.c.l.b16 %v6037
        %v6352 = vunpack.c.h.b16 %v6037
        %v6353 = vunpack.c.l.b16 %v6038
        %v6354 = vunpack.c.h.b16 %v6038
        %v6355 = vunpack.c.l.b16 %v6039
        %v6356 = vunpack.c.l.b16 %v6040
        %v6357 = vunpack.c.h.b16 %v6040
        %v6358 = vunpack.c.l.b16 %v6041
        %v6359 = vunpack.c.h.b16 %v6041
        %v6360 = vunpack.c.l.b16 %v6042
        %v6361 = vunpack.c.l.b16 %v6043
        %v6362 = vunpack.c.h.b16 %v6043
        %v6363 = vunpack.c.l.b16 %v6044
        %v6364 = vunpack.c.h.b16 %v6044
        %v6365 = vunpack.c.l.b16 %v6045
        %v6366 = vunpack.c.l.b16 %v6046
        %v6367 = vunpack.c.h.b16 %v6046
        %v6368 = vunpack.c.l.b16 %v6047
        %v6369 = vunpack.c.h.b16 %v6047
        %v6370 = vunpack.c.l.b16 %v6048
        %v6371 = vunpack.c.l.b16 %v6049
        %v6372 = vunpack.c.h.b16 %v6049
        %v6373 = vunpack.c.l.b16 %v6050
        %v6374 = vunpack.c.h.b16 %v6050
        %v6375 = vunpack.c.l.b16 %v6051
        %v6376 = vunpack.c.l.b16 %v6052
        %v6377 = vunpack.c.h.b16 %v6052
        %v6378 = vunpack.c.l.b16 %v6053
        %v6379 = vunpack.c.h.b16 %v6053
        %v6380 = vunpack.c.l.b16 %v6054
        %v6381 = vunpack.c.l.b16 %v6055
        %v6382 = vunpack.c.h.b16 %v6055
        %v6383 = vunpack.c.l.b16 %v6056
        %v6384 = vunpack.c.h.b16 %v6056
        %v6385 = vunpack.c.l.b16 %v6057
        %v6386 = vunpack.c.l.b16 %v6058
        %v6387 = vunpack.c.h.b16 %v6058
        %v6388 = vunpack.c.l.b16 %v6059
        %v6389 = vunpack.c.h.b16 %v6059
        %v6390 = vunpack.c.l.b16 %v6060
        %v6391 = vunpack.c.l.b16 %v6061
        %v6392 = vunpack.c.h.b16 %v6061
        %v6393 = vunpack.c.l.b16 %v6062
        %v6394 = vunpack.c.h.b16 %v6062
        %v6395 = vunpack.c.l.b16 %v6063
        %v6396 = vunpack.c.l.b16 %v6064
        %v6397 = vunpack.c.h.b16 %v6064
        %v6398 = vunpack.c.l.b16 %v6065
        %v6399 = vunpack.c.h.b16 %v6065
        %v6400 = vunpack.c.l.b16 %v6066
        %v6401 = vunpack.c.l.b16 %v6067
        %v6402 = vunpack.c.h.b16 %v6067
        %v6403 = vunpack.c.l.b16 %v6068
        %v6404 = vunpack.c.h.b16 %v6068
        %v6405 = vunpack.c.l.b16 %v6069
        %v6406 = vunpack.c.l.b16 %v6070
        %v6407 = vunpack.c.h.b16 %v6070
        %v6408 = vunpack.c.l.b16 %v6071
        %v6409 = vunpack.c.h.b16 %v6071
        %v6410 = vunpack.c.l.b16 %v6072
        %v6411 = vunpack.c.l.b16 %v6073
        %v6412 = vunpack.c.h.b16 %v6073
        %v6413 = vunpack.c.l.b16 %v6074
        %v6414 = vunpack.c.h.b16 %v6074
        %v6415 = vunpack.c.l.b16 %v6075
        %v6416 = vunpack.c.l.b16 %v6076
        %v6417 = vunpack.c.h.b16 %v6076
        %v6418 = vunpack.c.l.b16 %v6077
        %v6419 = vunpack.c.h.b16 %v6077
        %v6420 = vunpack.c.l.b16 %v6078
        %v6421 = vunpack.c.l.b16 %v6079
        %v6422 = vunpack.c.h.b16 %v6079
        %v6423 = vunpack.c.l.b16 %v6080
        %v6424 = vunpack.c.h.b16 %v6080
        %v6425 = vunpack.c.l.b16 %v6081
        %v6426 = vunpack.c.l.b16 %v6082
        %v6427 = vunpack.c.h.b16 %v6082
        %v6428 = vunpack.c.l.b16 %v6083
        %v6429 = vunpack.c.h.b16 %v6083
        %v6430 = vunpack.c.l.b16 %v6084
        %v6431 = vunpack.c.l.b16 %v6085
        %v6432 = vunpack.c.h.b16 %v6085
        %v6433 = vunpack.c.l.b16 %v6086
        %v6434 = vunpack.c.h.b16 %v6086
        %v6435 = vunpack.c.l.b16 %v6087
        %v6436 = vunpack.c.l.b16 %v6088
        %v6437 = vunpack.c.h.b16 %v6088
        %v6438 = vunpack.c.l.b16 %v6089
        %v6439 = vunpack.c.h.b16 %v6089
        %v6440 = vunpack.c.l.b16 %v6090
        %v6441 = vunpack.c.l.b16 %v6091
        %v6442 = vunpack.c.h.b16 %v6091
        %v6443 = vunpack.c.l.b16 %v6092
        %v6444 = vunpack.c.h.b16 %v6092
        %v6445 = vunpack.c.l.b16 %v6093
        %v6446 = vunpack.c.l.b16 %v6094
        %v6447 = vunpack.c.h.b16 %v6094
        %v6448 = vunpack.c.l.b16 %v6095
        %v6449 = vunpack.c.h.b16 %v6095
        %v6450 = vunpack.c.l.b16 %v6096
        %v6451 = vunpack.c.l.b16 %v6097
        %v6452 = vunpack.c.h.b16 %v6097
        %v6453 = vunpack.c.l.b16 %v6098
        %v6454 = vunpack.c.h.b16 %v6098
        %v6455 = vunpack.c.l.b16 %v6099
        %v6456 = vunpack.c.l.b16 %v6100
        %v6457 = vunpack.c.h.b16 %v6100
        %v6458 = vunpack.c.l.b16 %v6101
        %v6459 = vunpack.c.h.b16 %v6101
        %v6460 = vunpack.c.l.b16 %v6102
        %v6461 = vunpack.c.l.b16 %v6103
        %v6462 = vunpack.c.h.b16 %v6103
        %v6463 = vunpack.c.l.b16 %v6104
        %v6464 = vunpack.c.h.b16 %v6104
        %v6465 = vunpack.c.l.b16 %v6105
        %v6466 = vunpack.c.l.b16 %v6106
        %v6467 = vunpack.c.h.b16 %v6106
        %v6468 = vunpack.c.l.b16 %v6107
        %v6469 = vunpack.c.h.b16 %v6107
        %v6470 = vunpack.c.l.b16 %v6108
        %v6471 = vunpack.c.l.b16 %v6109
        %v6472 = vunpack.c.h.b16 %v6109
        %v6473 = vunpack.c.l.b16 %v6110
        %v6474 = vunpack.c.h.b16 %v6110
        %v6475 = vunpack.c.l.b16 %v6111
        %v6476 = vunpack.c.l.b16 %v6112
        %v6477 = vunpack.c.h.b16 %v6112
        %v6478 = vunpack.c.l.b16 %v6113
        %v6479 = vunpack.c.h.b16 %v6113
        %v6480 = vunpack.c.l.b16 %v6114
        %v6481 = vunpack.c.l.b16 %v6115
        %v6482 = vunpack.c.h.b16 %v6115
        %v6483 = vunpack.c.l.b16 %v6116
        %v6484 = vunpack.c.h.b16 %v6116
        %v6485 = vunpack.c.l.b16 %v6117
        %v6486 = vunpack.c.l.b16 %v6118
        %v6487 = vunpack.c.h.b16 %v6118
        %v6488 = vunpack.c.l.b16 %v6119
        %v6489 = vunpack.c.h.b16 %v6119
        %v6490 = vunpack.c.l.b16 %v6120
        %v6491 = vunpack.c.l.b16 %v6121
        %v6492 = vunpack.c.h.b16 %v6121
        %v6493 = vunpack.c.l.b16 %v6122
        %v6494 = vunpack.c.h.b16 %v6122
        %v6495 = vunpack.c.l.b16 %v6123
        %v6496 = vunpack.c.l.b16 %v6124
        %v6497 = vunpack.c.h.b16 %v6124
        %v6498 = vunpack.c.l.b16 %v6125
        %v6499 = vunpack.c.h.b16 %v6125
        %v6500 = vunpack.c.l.b16 %v6126
        %v6501 = vunpack.c.l.b16 %v6127
        %v6502 = vunpack.c.h.b16 %v6127
        %v6503 = vunpack.c.l.b16 %v6128
        %v6504 = vunpack.c.h.b16 %v6128
        %v6505 = vunpack.c.l.b16 %v6129
        %v6506 = vunpack.c.l.b16 %v6130
        %v6507 = vunpack.c.h.b16 %v6130
        %v6508 = vunpack.c.l.b16 %v6131
        %v6509 = vunpack.c.h.b16 %v6131
        %v6510 = vunpack.c.l.b16 %v6132
        %v6511 = vunpack.c.l.b16 %v6133
        %v6512 = vunpack.c.h.b16 %v6133
        %v6513 = vunpack.c.l.b16 %v6134
        %v6514 = vunpack.c.h.b16 %v6134
        %v6515 = vunpack.c.l.b16 %v6135
        %v6516 = vunpack.c.l.b16 %v6136
        %v6517 = vunpack.c.h.b16 %v6136
        %v6518 = vunpack.c.l.b16 %v6137
        %v6519 = vunpack.c.h.b16 %v6137
        %v6520 = vunpack.c.l.b16 %v6138
        %v6521 = vunpack.c.l.b16 %v6139
        %v6522 = vunpack.c.h.b16 %v6139
        %v6523 = vunpack.c.l.b16 %v6140
        %v6524 = vunpack.c.h.b16 %v6140
        %v6525 = vunpack.c.l.b16 %v6141
        %v6526 = vpack.c.b16 %v6291, %v6286
        %v6527 = vpack.c.b16 %v6292, %v6287
        %v6528 = vpack.c.b16 %v6293, %v6288
        %v6529 = vpack.c.b16 %v6294, %v6289
        %v6530 = vpack.c.b16 %v6295, %v6290
        %v6531 = vpack.c.b16 %v6301, %v6296
        %v6532 = vpack.c.b16 %v6302, %v6297
        %v6533 = vpack.c.b16 %v6303, %v6298
        %v6534 = vpack.c.b16 %v6304, %v6299
        %v6535 = vpack.c.b16 %v6305, %v6300
        %v6536 = vpack.c.b16 %v6311, %v6306
        %v6537 = vpack.c.b16 %v6312, %v6307
        %v6538 = vpack.c.b16 %v6313, %v6308
        %v6539 = vpack.c.b16 %v6314, %v6309
        %v6540 = vpack.c.b16 %v6315, %v6310
        %v6541 = vpack.c.b16 %v6321, %v6316
        %v6542 = vpack.c.b16 %v6322, %v6317
        %v6543 = vpack.c.b16 %v6323, %v6318
        %v6544 = vpack.c.b16 %v6324, %v6319
        %v6545 = vpack.c.b16 %v6325, %v6320
        %v6546 = vpack.c.b16 %v6331, %v6326
        %v6547 = vpack.c.b16 %v6332, %v6327
        %v6548 = vpack.c.b16 %v6333, %v6328
        %v6549 = vpack.c.b16 %v6334, %v6329
        %v6550 = vpack.c.b16 %v6335, %v6330
        %v6551 = vpack.c.b16 %v6341, %v6336
        %v6552 = vpack.c.b16 %v6342, %v6337
        %v6553 = vpack.c.b16 %v6343, %v6338
        %v6554 = vpack.c.b16 %v6344, %v6339
        %v6555 = vpack.c.b16 %v6345, %v6340
        %v6556 = vpack.c.b16 %v6351, %v6346
        %v6557 = vpack.c.b16 %v6352, %v6347
        %v6558 = vpack.c.b16 %v6353, %v6348
        %v6559 = vpack.c.b16 %v6354, %v6349
        %v6560 = vpack.c.b16 %v6355, %v6350
        %v6561 = vpack.c.b16 %v6361, %v6356
        %v6562 = vpack.c.b16 %v6362, %v6357
        %v6563 = vpack.c.b16 %v6363, %v6358
        %v6564 = vpack.c.b16 %v6364, %v6359
        %v6565 = vpack.c.b16 %v6365, %v6360
        %v6566 = vpack.c.b16 %v6371, %v6366
        %v6567 = vpack.c.b16 %v6372, %v6367
        %v6568 = vpack.c.b16 %v6373, %v6368
        %v6569 = vpack.c.b16 %v6374, %v6369
        %v6570 = vpack.c.b16 %v6375, %v6370
        %v6571 = vpack.c.b16 %v6381, %v6376
        %v6572 = vpack.c.b16 %v6382, %v6377
        %v6573 = vpack.c.b16 %v6383, %v6378
        %v6574 = vpack.c.b16 %v6384, %v6379
        %v6575 = vpack.c.b16 %v6385, %v6380
        %v6576 = vpack.c.b16 %v6391, %v6386
        %v6577 = vpack.c.b16 %v6392, %v6387
        %v6578 = vpack.c.b16 %v6393, %v6388
        %v6579 = vpack.c.b16 %v6394, %v6389
        %v6580 = vpack.c.b16 %v6395, %v6390
        %v6581 = vpack.c.b16 %v6401, %v6396
        %v6582 = vpack.c.b16 %v6402, %v6397
        %v6583 = vpack.c.b16 %v6403, %v6398
        %v6584 = vpack.c.b16 %v6404, %v6399
        %v6585 = vpack.c.b16 %v6405, %v6400
        %v6586 = vpack.c.b16 %v6411, %v6406
        %v6587 = vpack.c.b16 %v6412, %v6407
        %v6588 = vpack.c.b16 %v6413, %v6408
        %v6589 = vpack.c.b16 %v6414, %v6409
        %v6590 = vpack.c.b16 %v6415, %v6410
        %v6591 = vpack.c.b16 %v6421, %v6416
        %v6592 = vpack.c.b16 %v6422, %v6417
        %v6593 = vpack.c.b16 %v6423, %v6418
        %v6594 = vpack.c.b16 %v6424, %v6419
        %v6595 = vpack.c.b16 %v6425, %v6420
        %v6596 = vpack.c.b16 %v6431, %v6426
        %v6597 = vpack.c.b16 %v6432, %v6427
        %v6598 = vpack.c.b16 %v6433, %v6428
        %v6599 = vpack.c.b16 %v6434, %v6429
        %v6600 = vpack.c.b16 %v6435, %v6430
        %v6601 = vpack.c.b16 %v6441, %v6436
        %v6602 = vpack.c.b16 %v6442, %v6437
        %v6603 = vpack.c.b16 %v6443, %v6438
        %v6604 = vpack.c.b16 %v6444, %v6439
        %v6605 = vpack.c.b16 %v6445, %v6440
        %v6606 = vpack.c.b16 %v6451, %v6446
        %v6607 = vpack.c.b16 %v6452, %v6447
        %v6608 = vpack.c.b16 %v6453, %v6448
        %v6609 = vpack.c.b16 %v6454, %v6449
        %v6610 = vpack.c.b16 %v6455, %v6450
        %v6611 = vpack.c.b16 %v6461, %v6456
        %v6612 = vpack.c.b16 %v6462, %v6457
        %v6613 = vpack.c.b16 %v6463, %v6458
        %v6614 = vpack.c.b16 %v6464, %v6459
        %v6615 = vpack.c.b16 %v6465, %v6460
        %v6616 = vpack.c.b16 %v6471, %v6466
        %v6617 = vpack.c.b16 %v6472, %v6467
        %v6618 = vpack.c.b16 %v6473, %v6468
        %v6619 = vpack.c.b16 %v6474, %v6469
        %v6620 = vpack.c.b16 %v6475, %v6470
        %v6621 = vpack.c.b16 %v6481, %v6476
        %v6622 = vpack.c.b16 %v6482, %v6477
        %v6623 = vpack.c.b16 %v6483, %v6478
        %v6624 = vpack.c.b16 %v6484, %v6479
        %v6625 = vpack.c.b16 %v6485, %v6480
        %v6626 = vpack.c.b16 %v6491, %v6486
        %v6627 = vpack.c.b16 %v6492, %v6487
        %v6628 = vpack.c.b16 %v6493, %v6488
        %v6629 = vpack.c.b16 %v6494, %v6489
        %v6630 = vpack.c.b16 %v6495, %v6490
        %v6631 = vpack.c.b16 %v6501, %v6496
        %v6632 = vpack.c.b16 %v6502, %v6497
        %v6633 = vpack.c.b16 %v6503, %v6498
        %v6634 = vpack.c.b16 %v6504, %v6499
        %v6635 = vpack.c.b16 %v6505, %v6500
        %v6636 = vpack.c.b16 %v6511, %v6506
        %v6637 = vpack.c.b16 %v6512, %v6507
        %v6638 = vpack.c.b16 %v6513, %v6508
        %v6639 = vpack.c.b16 %v6514, %v6509
        %v6640 = vpack.c.b16 %v6515, %v6510
        %v6641 = vpack.c.b16 %v6521, %v6516
        %v6642 = vpack.c.b16 %v6522, %v6517
        %v6643 = vpack.c.b16 %v6523, %v6518
        %v6644 = vpack.c.b16 %v6524, %v6519
        %v6645 = vpack.c.b16 %v6525, %v6520
        %6766 = vmatpush.bf16.msra.mxu0 %v6561
        %6767 = vmatpush.bf16.msra.mxu0 %v6556
        %6768 = vmatpush.bf16.msra.mxu0 %v6551
        %6769 = vmatpush.bf16.msra.mxu0 %v6546
        %6770 = vmatpush.bf16.msra.mxu0 %v6541
        %6771 = vmatpush.bf16.msra.mxu0 %v6536
        %6772 = vmatpush.bf16.msra.mxu0 %v6531
        %6773 = vmatpush.bf16.msra.mxu0 %v6526
        %6774 = vmatmul.bf16.gmra.mxu0 %v3746
        %v6775 = vpop.f32.mrf.mxu0
        %v6776 = vadd.f32 0.0, %v6775
        %v6777 = vpop.f32.mrf.mxu0
        %v6778 = vadd.f32 0.0, %v6777
        %6779 = vmatmul.bf16.gmra.mxu0 %v3749
        %v6780 = vpop.f32.mrf.mxu0
        %v6781 = vadd.f32 0.0, %v6780
        %v6782 = vpop.f32.mrf.mxu0
        %v6783 = vadd.f32 0.0, %v6782
        %6784 = vmatmul.bf16.gmra.mxu0 %v3752
        %v6785 = vpop.f32.mrf.mxu0
        %v6786 = vadd.f32 0.0, %v6785
        %v6787 = vpop.f32.mrf.mxu0
        %v6788 = vadd.f32 0.0, %v6787
        %6789 = vdwg.mxu0
        %6790 = vmatpush.bf16.msra.mxu0 %v6601
        %6791 = vmatpush.bf16.msra.mxu0 %v6596
        %6792 = vmatpush.bf16.msra.mxu0 %v6591
        %6793 = vmatpush.bf16.msra.mxu0 %v6586
        %6794 = vmatpush.bf16.msra.mxu0 %v6581
        %6795 = vmatpush.bf16.msra.mxu0 %v6576
        %6796 = vmatpush.bf16.msra.mxu0 %v6571
        %6797 = vmatpush.bf16.msra.mxu0 %v6566
        %6798 = vmatmul.bf16.gmra.mxu0 %v3747
        %v6799 = vpop.f32.mrf.mxu0
        %v6800 = vadd.f32 %v6776, %v6799
        %v6801 = vpop.f32.mrf.mxu0
        %v6802 = vadd.f32 %v6778, %v6801
        %6803 = vmatmul.bf16.gmra.mxu0 %v3750
        %v6804 = vpop.f32.mrf.mxu0
        %v6805 = vadd.f32 %v6781, %v6804
        %v6806 = vpop.f32.mrf.mxu0
        %v6807 = vadd.f32 %v6783, %v6806
        %6808 = vmatmul.bf16.gmra.mxu0 %v3753
        %v6809 = vpop.f32.mrf.mxu0
        %v6810 = vadd.f32 %v6786, %v6809
        %v6811 = vpop.f32.mrf.mxu0
        %v6812 = vadd.f32 %v6788, %v6811
        %6813 = vdwg.mxu0
        %6814 = vmatpush.bf16.msra.mxu0 %v6641
        %6815 = vmatpush.bf16.msra.mxu0 %v6636
        %6816 = vmatpush.bf16.msra.mxu0 %v6631
        %6817 = vmatpush.bf16.msra.mxu0 %v6626
        %6818 = vmatpush.bf16.msra.mxu0 %v6621
        %6819 = vmatpush.bf16.msra.mxu0 %v6616
        %6820 = vmatpush.bf16.msra.mxu0 %v6611
        %6821 = vmatpush.bf16.msra.mxu0 %v6606
        %6822 = vmatmul.bf16.gmra.mxu0 %v3748
        %v6823 = vpop.f32.mrf.mxu0
        %v6824 = vadd.f32 %v6800, %v6823
        %v6825 = vpop.f32.mrf.mxu0
        %v6826 = vadd.f32 %v6802, %v6825
        %6827 = vmatmul.bf16.gmra.mxu0 %v3751
        %v6828 = vpop.f32.mrf.mxu0
        %v6829 = vadd.f32 %v6805, %v6828
        %v6830 = vpop.f32.mrf.mxu0
        %v6831 = vadd.f32 %v6807, %v6830
        %6832 = vmatmul.bf16.gmra.mxu0 %v3754
        %v6833 = vpop.f32.mrf.mxu0
        %v6834 = vadd.f32 %v6810, %v6833
        %v6835 = vpop.f32.mrf.mxu0
        %v6836 = vadd.f32 %v6812, %v6835
        %6837 = vdwg.mxu0
        %6838 = vmatpush.bf16.msra.mxu0 %v6562
        %6839 = vmatpush.bf16.msra.mxu0 %v6557
        %6840 = vmatpush.bf16.msra.mxu0 %v6552
        %6841 = vmatpush.bf16.msra.mxu0 %v6547
        %6842 = vmatpush.bf16.msra.mxu0 %v6542
        %6843 = vmatpush.bf16.msra.mxu0 %v6537
        %6844 = vmatpush.bf16.msra.mxu0 %v6532
        %6845 = vmatpush.bf16.msra.mxu0 %v6527
        %6846 = vmatmul.bf16.gmra.mxu0 %v3746
        %v6847 = vpop.f32.mrf.mxu0
        %v6848 = vadd.f32 0.0, %v6847
        %v6849 = vpop.f32.mrf.mxu0
        %v6850 = vadd.f32 0.0, %v6849
        %6851 = vmatmul.bf16.gmra.mxu0 %v3749
        %v6852 = vpop.f32.mrf.mxu0
        %v6853 = vadd.f32 0.0, %v6852
        %v6854 = vpop.f32.mrf.mxu0
        %v6855 = vadd.f32 0.0, %v6854
        %6856 = vmatmul.bf16.gmra.mxu0 %v3752
        %v6857 = vpop.f32.mrf.mxu0
        %v6858 = vadd.f32 0.0, %v6857
        %v6859 = vpop.f32.mrf.mxu0
        %v6860 = vadd.f32 0.0, %v6859
        %6861 = vdwg.mxu0
        %6862 = vmatpush.bf16.msra.mxu0 %v6602
        %6863 = vmatpush.bf16.msra.mxu0 %v6597
        %6864 = vmatpush.bf16.msra.mxu0 %v6592
        %6865 = vmatpush.bf16.msra.mxu0 %v6587
        %6866 = vmatpush.bf16.msra.mxu0 %v6582
        %6867 = vmatpush.bf16.msra.mxu0 %v6577
        %6868 = vmatpush.bf16.msra.mxu0 %v6572
        %6869 = vmatpush.bf16.msra.mxu0 %v6567
        %6870 = vmatmul.bf16.gmra.mxu0 %v3747
        %v6871 = vpop.f32.mrf.mxu0
        %v6872 = vadd.f32 %v6848, %v6871
        %v6873 = vpop.f32.mrf.mxu0
        %v6874 = vadd.f32 %v6850, %v6873
        %6875 = vmatmul.bf16.gmra.mxu0 %v3750
        %v6876 = vpop.f32.mrf.mxu0
        %v6877 = vadd.f32 %v6853, %v6876
        %v6878 = vpop.f32.mrf.mxu0
        %v6879 = vadd.f32 %v6855, %v6878
        %6880 = vmatmul.bf16.gmra.mxu0 %v3753
        %v6881 = vpop.f32.mrf.mxu0
        %v6882 = vadd.f32 %v6858, %v6881
        %v6883 = vpop.f32.mrf.mxu0
        %v6884 = vadd.f32 %v6860, %v6883
        %6885 = vdwg.mxu0
        %6886 = vmatpush.bf16.msra.mxu0 %v6642
        %6887 = vmatpush.bf16.msra.mxu0 %v6637
        %6888 = vmatpush.bf16.msra.mxu0 %v6632
        %6889 = vmatpush.bf16.msra.mxu0 %v6627
        %6890 = vmatpush.bf16.msra.mxu0 %v6622
        %6891 = vmatpush.bf16.msra.mxu0 %v6617
        %6892 = vmatpush.bf16.msra.mxu0 %v6612
        %6893 = vmatpush.bf16.msra.mxu0 %v6607
        %6894 = vmatmul.bf16.gmra.mxu0 %v3748
        %v6895 = vpop.f32.mrf.mxu0
        %v6896 = vadd.f32 %v6872, %v6895
        %v6897 = vpop.f32.mrf.mxu0
        %v6898 = vadd.f32 %v6874, %v6897
        %6899 = vmatmul.bf16.gmra.mxu0 %v3751
        %v6900 = vpop.f32.mrf.mxu0
        %v6901 = vadd.f32 %v6877, %v6900
        %v6902 = vpop.f32.mrf.mxu0
        %v6903 = vadd.f32 %v6879, %v6902
        %6904 = vmatmul.bf16.gmra.mxu0 %v3754
        %v6905 = vpop.f32.mrf.mxu0
        %v6906 = vadd.f32 %v6882, %v6905
        %v6907 = vpop.f32.mrf.mxu0
        %v6908 = vadd.f32 %v6884, %v6907
        %6909 = vdwg.mxu0
        %6910 = vmatpush.bf16.msra.mxu0 %v6563
        %6911 = vmatpush.bf16.msra.mxu0 %v6558
        %6912 = vmatpush.bf16.msra.mxu0 %v6553
        %6913 = vmatpush.bf16.msra.mxu0 %v6548
        %6914 = vmatpush.bf16.msra.mxu0 %v6543
        %6915 = vmatpush.bf16.msra.mxu0 %v6538
        %6916 = vmatpush.bf16.msra.mxu0 %v6533
        %6917 = vmatpush.bf16.msra.mxu0 %v6528
        %6918 = vmatmul.bf16.gmra.mxu0 %v3746
        %v6919 = vpop.f32.mrf.mxu0
        %v6920 = vadd.f32 0.0, %v6919
        %v6921 = vpop.f32.mrf.mxu0
        %v6922 = vadd.f32 0.0, %v6921
        %6923 = vmatmul.bf16.gmra.mxu0 %v3749
        %v6924 = vpop.f32.mrf.mxu0
        %v6925 = vadd.f32 0.0, %v6924
        %v6926 = vpop.f32.mrf.mxu0
        %v6927 = vadd.f32 0.0, %v6926
        %6928 = vmatmul.bf16.gmra.mxu0 %v3752
        %v6929 = vpop.f32.mrf.mxu0
        %v6930 = vadd.f32 0.0, %v6929
        %v6931 = vpop.f32.mrf.mxu0
        %v6932 = vadd.f32 0.0, %v6931
        %6933 = vdwg.mxu0
        %6934 = vmatpush.bf16.msra.mxu0 %v6603
        %6935 = vmatpush.bf16.msra.mxu0 %v6598
        %6936 = vmatpush.bf16.msra.mxu0 %v6593
        %6937 = vmatpush.bf16.msra.mxu0 %v6588
        %6938 = vmatpush.bf16.msra.mxu0 %v6583
        %6939 = vmatpush.bf16.msra.mxu0 %v6578
        %6940 = vmatpush.bf16.msra.mxu0 %v6573
        %6941 = vmatpush.bf16.msra.mxu0 %v6568
        %6942 = vmatmul.bf16.gmra.mxu0 %v3747
        %v6943 = vpop.f32.mrf.mxu0
        %v6944 = vadd.f32 %v6920, %v6943
        %v6945 = vpop.f32.mrf.mxu0
        %v6946 = vadd.f32 %v6922, %v6945
        %6947 = vmatmul.bf16.gmra.mxu0 %v3750
        %v6948 = vpop.f32.mrf.mxu0
        %v6949 = vadd.f32 %v6925, %v6948
        %v6950 = vpop.f32.mrf.mxu0
        %v6951 = vadd.f32 %v6927, %v6950
        %6952 = vmatmul.bf16.gmra.mxu0 %v3753
        %v6953 = vpop.f32.mrf.mxu0
        %v6954 = vadd.f32 %v6930, %v6953
        %v6955 = vpop.f32.mrf.mxu0
        %v6956 = vadd.f32 %v6932, %v6955
        %6957 = vdwg.mxu0
        %6958 = vmatpush.bf16.msra.mxu0 %v6643
        %6959 = vmatpush.bf16.msra.mxu0 %v6638
        %6960 = vmatpush.bf16.msra.mxu0 %v6633
        %6961 = vmatpush.bf16.msra.mxu0 %v6628
        %6962 = vmatpush.bf16.msra.mxu0 %v6623
        %6963 = vmatpush.bf16.msra.mxu0 %v6618
        %6964 = vmatpush.bf16.msra.mxu0 %v6613
        %6965 = vmatpush.bf16.msra.mxu0 %v6608
        %6966 = vmatmul.bf16.gmra.mxu0 %v3748
        %v6967 = vpop.f32.mrf.mxu0
        %v6968 = vadd.f32 %v6944, %v6967
        %v6969 = vpop.f32.mrf.mxu0
        %v6970 = vadd.f32 %v6946, %v6969
        %6971 = vmatmul.bf16.gmra.mxu0 %v3751
        %v6972 = vpop.f32.mrf.mxu0
        %v6973 = vadd.f32 %v6949, %v6972
        %v6974 = vpop.f32.mrf.mxu0
        %v6975 = vadd.f32 %v6951, %v6974
        %6976 = vmatmul.bf16.gmra.mxu0 %v3754
        %v6977 = vpop.f32.mrf.mxu0
        %v6978 = vadd.f32 %v6954, %v6977
        %v6979 = vpop.f32.mrf.mxu0
        %v6980 = vadd.f32 %v6956, %v6979
        %6981 = vdwg.mxu0
        %6982 = vmatpush.bf16.msra.mxu0 %v6564
        %6983 = vmatpush.bf16.msra.mxu0 %v6559
        %6984 = vmatpush.bf16.msra.mxu0 %v6554
        %6985 = vmatpush.bf16.msra.mxu0 %v6549
        %6986 = vmatpush.bf16.msra.mxu0 %v6544
        %6987 = vmatpush.bf16.msra.mxu0 %v6539
        %6988 = vmatpush.bf16.msra.mxu0 %v6534
        %6989 = vmatpush.bf16.msra.mxu0 %v6529
        %6990 = vmatmul.bf16.gmra.mxu0 %v3746
        %v6991 = vpop.f32.mrf.mxu0
        %v6992 = vadd.f32 0.0, %v6991
        %v6993 = vpop.f32.mrf.mxu0
        %v6994 = vadd.f32 0.0, %v6993
        %6995 = vmatmul.bf16.gmra.mxu0 %v3749
        %v6996 = vpop.f32.mrf.mxu0
        %v6997 = vadd.f32 0.0, %v6996
        %v6998 = vpop.f32.mrf.mxu0
        %v6999 = vadd.f32 0.0, %v6998
        %7000 = vmatmul.bf16.gmra.mxu0 %v3752
        %v7001 = vpop.f32.mrf.mxu0
        %v7002 = vadd.f32 0.0, %v7001
        %v7003 = vpop.f32.mrf.mxu0
        %v7004 = vadd.f32 0.0, %v7003
        %7005 = vdwg.mxu0
        %7006 = vmatpush.bf16.msra.mxu0 %v6604
        %7007 = vmatpush.bf16.msra.mxu0 %v6599
        %7008 = vmatpush.bf16.msra.mxu0 %v6594
        %7009 = vmatpush.bf16.msra.mxu0 %v6589
        %7010 = vmatpush.bf16.msra.mxu0 %v6584
        %7011 = vmatpush.bf16.msra.mxu0 %v6579
        %7012 = vmatpush.bf16.msra.mxu0 %v6574
        %7013 = vmatpush.bf16.msra.mxu0 %v6569
        %7014 = vmatmul.bf16.gmra.mxu0 %v3747
        %v7015 = vpop.f32.mrf.mxu0
        %v7016 = vadd.f32 %v6992, %v7015
        %v7017 = vpop.f32.mrf.mxu0
        %v7018 = vadd.f32 %v6994, %v7017
        %7019 = vmatmul.bf16.gmra.mxu0 %v3750
        %v7020 = vpop.f32.mrf.mxu0
        %v7021 = vadd.f32 %v6997, %v7020
        %v7022 = vpop.f32.mrf.mxu0
        %v7023 = vadd.f32 %v6999, %v7022
        %7024 = vmatmul.bf16.gmra.mxu0 %v3753
        %v7025 = vpop.f32.mrf.mxu0
        %v7026 = vadd.f32 %v7002, %v7025
        %v7027 = vpop.f32.mrf.mxu0
        %v7028 = vadd.f32 %v7004, %v7027
        %7029 = vdwg.mxu0
        %7030 = vmatpush.bf16.msra.mxu0 %v6644
        %7031 = vmatpush.bf16.msra.mxu0 %v6639
        %7032 = vmatpush.bf16.msra.mxu0 %v6634
        %7033 = vmatpush.bf16.msra.mxu0 %v6629
        %7034 = vmatpush.bf16.msra.mxu0 %v6624
        %7035 = vmatpush.bf16.msra.mxu0 %v6619
        %7036 = vmatpush.bf16.msra.mxu0 %v6614
        %7037 = vmatpush.bf16.msra.mxu0 %v6609
        %7038 = vmatmul.bf16.gmra.mxu0 %v3748
        %v7039 = vpop.f32.mrf.mxu0
        %v7040 = vadd.f32 %v7016, %v7039
        %v7041 = vpop.f32.mrf.mxu0
        %v7042 = vadd.f32 %v7018, %v7041
        %7043 = vmatmul.bf16.gmra.mxu0 %v3751
        %v7044 = vpop.f32.mrf.mxu0
        %v7045 = vadd.f32 %v7021, %v7044
        %v7046 = vpop.f32.mrf.mxu0
        %v7047 = vadd.f32 %v7023, %v7046
        %7048 = vmatmul.bf16.gmra.mxu0 %v3754
        %v7049 = vpop.f32.mrf.mxu0
        %v7050 = vadd.f32 %v7026, %v7049
        %v7051 = vpop.f32.mrf.mxu0
        %v7052 = vadd.f32 %v7028, %v7051
        %7053 = vdwg.mxu0
        %7054 = vmatpush.bf16.msra.mxu0 %v6565
        %7055 = vmatpush.bf16.msra.mxu0 %v6560
        %7056 = vmatpush.bf16.msra.mxu0 %v6555
        %7057 = vmatpush.bf16.msra.mxu0 %v6550
        %7058 = vmatpush.bf16.msra.mxu0 %v6545
        %7059 = vmatpush.bf16.msra.mxu0 %v6540
        %7060 = vmatpush.bf16.msra.mxu0 %v6535
        %7061 = vmatpush.bf16.msra.mxu0 %v6530
        %7062 = vmatmul.bf16.gmra.mxu0 %v3746
        %v7063 = vpop.f32.mrf.mxu0
        %v7064 = vadd.f32 0.0, %v7063
        %v7065 = vpop.f32.mrf.mxu0
        %v7066 = vadd.f32 0.0, %v7065
        %7067 = vmatmul.bf16.gmra.mxu0 %v3749
        %v7068 = vpop.f32.mrf.mxu0
        %v7069 = vadd.f32 0.0, %v7068
        %v7070 = vpop.f32.mrf.mxu0
        %v7071 = vadd.f32 0.0, %v7070
        %7072 = vmatmul.bf16.gmra.mxu0 %v3752
        %v7073 = vpop.f32.mrf.mxu0
        %v7074 = vadd.f32 0.0, %v7073
        %v7075 = vpop.f32.mrf.mxu0
        %v7076 = vadd.f32 0.0, %v7075
        %7077 = vdwg.mxu0
        %7078 = vmatpush.bf16.msra.mxu0 %v6605
        %7079 = vmatpush.bf16.msra.mxu0 %v6600
        %7080 = vmatpush.bf16.msra.mxu0 %v6595
        %7081 = vmatpush.bf16.msra.mxu0 %v6590
        %7082 = vmatpush.bf16.msra.mxu0 %v6585
        %7083 = vmatpush.bf16.msra.mxu0 %v6580
        %7084 = vmatpush.bf16.msra.mxu0 %v6575
        %7085 = vmatpush.bf16.msra.mxu0 %v6570
        %7086 = vmatmul.bf16.gmra.mxu0 %v3747
        %v7087 = vpop.f32.mrf.mxu0
        %v7088 = vadd.f32 %v7064, %v7087
        %v7089 = vpop.f32.mrf.mxu0
        %v7090 = vadd.f32 %v7066, %v7089
        %7091 = vmatmul.bf16.gmra.mxu0 %v3750
        %v7092 = vpop.f32.mrf.mxu0
        %v7093 = vadd.f32 %v7069, %v7092
        %v7094 = vpop.f32.mrf.mxu0
        %v7095 = vadd.f32 %v7071, %v7094
        %7096 = vmatmul.bf16.gmra.mxu0 %v3753
        %v7097 = vpop.f32.mrf.mxu0
        %v7098 = vadd.f32 %v7074, %v7097
        %v7099 = vpop.f32.mrf.mxu0
        %v7100 = vadd.f32 %v7076, %v7099
        %7101 = vdwg.mxu0
        %7102 = vmatpush.bf16.msra.mxu0 %v6645
        %7103 = vmatpush.bf16.msra.mxu0 %v6640
        %7104 = vmatpush.bf16.msra.mxu0 %v6635
        %7105 = vmatpush.bf16.msra.mxu0 %v6630
        %7106 = vmatpush.bf16.msra.mxu0 %v6625
        %7107 = vmatpush.bf16.msra.mxu0 %v6620
        %7108 = vmatpush.bf16.msra.mxu0 %v6615
        %7109 = vmatpush.bf16.msra.mxu0 %v6610
        %7110 = vmatmul.bf16.gmra.mxu0 %v3748
        %v7111 = vpop.f32.mrf.mxu0
        %v7112 = vadd.f32 %v7088, %v7111
        %v7113 = vpop.f32.mrf.mxu0
        %v7114 = vadd.f32 %v7090, %v7113
        %7115 = vmatmul.bf16.gmra.mxu0 %v3751
        %v7116 = vpop.f32.mrf.mxu0
        %v7117 = vadd.f32 %v7093, %v7116
        %v7118 = vpop.f32.mrf.mxu0
        %v7119 = vadd.f32 %v7095, %v7118
        %7120 = vmatmul.bf16.gmra.mxu0 %v3754
        %v7121 = vpop.f32.mrf.mxu0
        %v7122 = vadd.f32 %v7098, %v7121
        %v7123 = vpop.f32.mrf.mxu0
        %v7124 = vadd.f32 %v7100, %v7123
        %7125 = vdwg.mxu0
        %v7156 = vrot.slane %v5695, 1
        %v7157 = vrot.slane %v5697, 1
        %v7158 = vsel %vm2003, %v7156, %v7157
        %v7159 = vrot.slane %v5767, 1
        %v7160 = vrot.slane %v5769, 1
        %v7161 = vsel %vm2003, %v7159, %v7160
        %v7162 = vrot.slane %v5839, 1
        %v7163 = vrot.slane %v5841, 1
        %v7164 = vsel %vm2003, %v7162, %v7163
        %v7165 = vrot.slane %v5911, 1
        %v7166 = vrot.slane %v5913, 1
        %v7167 = vsel %vm2003, %v7165, %v7166
        %v7168 = vrot.slane %v5983, 1
        %v7169 = vrot.slane %v5985, 1
        %v7170 = vsel %vm2003, %v7168, %v7169
        %v7171 = vrot.slane %v5700, 1
        %v7172 = vsel %vm2003, %v7157, %v7171
        %v7173 = vrot.slane %v5772, 1
        %v7174 = vsel %vm2003, %v7160, %v7173
        %v7175 = vrot.slane %v5844, 1
        %v7176 = vsel %vm2003, %v7163, %v7175
        %v7177 = vrot.slane %v5916, 1
        %v7178 = vsel %vm2003, %v7166, %v7177
        %v7179 = vrot.slane %v5988, 1
        %v7180 = vsel %vm2003, %v7169, %v7179
        %v7181 = vrot.slane %v5702, 1
        %v7182 = vsel %vm2003, %v7171, %v7181
        %v7183 = vrot.slane %v5774, 1
        %v7184 = vsel %vm2003, %v7173, %v7183
        %v7185 = vrot.slane %v5846, 1
        %v7186 = vsel %vm2003, %v7175, %v7185
        %v7187 = vrot.slane %v5918, 1
        %v7188 = vsel %vm2003, %v7177, %v7187
        %v7189 = vrot.slane %v5990, 1
        %v7190 = vsel %vm2003, %v7179, %v7189
        %v7191 = vrot.slane %v5705, 1
        %v7192 = vsel %vm2003, %v7181, %v7191
        %v7193 = vrot.slane %v5777, 1
        %v7194 = vsel %vm2003, %v7183, %v7193
        %v7195 = vrot.slane %v5849, 1
        %v7196 = vsel %vm2003, %v7185, %v7195
        %v7197 = vrot.slane %v5921, 1
        %v7198 = vsel %vm2003, %v7187, %v7197
        %v7199 = vrot.slane %v5993, 1
        %v7200 = vsel %vm2003, %v7189, %v7199
        %v7201 = vrot.slane %v5707, 1
        %v7202 = vsel %vm2003, %v7191, %v7201
        %v7203 = vrot.slane %v5779, 1
        %v7204 = vsel %vm2003, %v7193, %v7203
        %v7205 = vrot.slane %v5851, 1
        %v7206 = vsel %vm2003, %v7195, %v7205
        %v7207 = vrot.slane %v5923, 1
        %v7208 = vsel %vm2003, %v7197, %v7207
        %v7209 = vrot.slane %v5995, 1
        %v7210 = vsel %vm2003, %v7199, %v7209
        %v7236 = vadd.f32 %v4579, %v7158
        %v7237 = vadd.f32 %v4648, %v7161
        %v7238 = vadd.f32 %v4717, %v7164
        %v7239 = vadd.f32 %v4786, %v7167
        %v7240 = vadd.f32 %v4855, %v7170
        %v7241 = vadd.f32 %v4581, %v7172
        %v7242 = vadd.f32 %v4650, %v7174
        %v7243 = vadd.f32 %v4719, %v7176
        %v7244 = vadd.f32 %v4788, %v7178
        %v7245 = vadd.f32 %v4857, %v7180
        %v7246 = vadd.f32 %v4584, %v7182
        %v7247 = vadd.f32 %v4653, %v7184
        %v7248 = vadd.f32 %v4722, %v7186
        %v7249 = vadd.f32 %v4791, %v7188
        %v7250 = vadd.f32 %v4860, %v7190
        %v7251 = vadd.f32 %v4586, %v7192
        %v7252 = vadd.f32 %v4655, %v7194
        %v7253 = vadd.f32 %v4724, %v7196
        %v7254 = vadd.f32 %v4793, %v7198
        %v7255 = vadd.f32 %v4862, %v7200
        %v7256 = vadd.f32 %v4589, %v7202
        %v7257 = vadd.f32 %v4658, %v7204
        %v7258 = vadd.f32 %v4727, %v7206
        %v7259 = vadd.f32 %v4796, %v7208
        %v7260 = vadd.f32 %v4865, %v7210
        %v7291 = vrot.slane %v6824, 2
        %v7292 = vrot.slane %v6826, 2
        %v7293 = vsel %vm2038, %v7291, %v7292
        %v7294 = vrot.slane %v6896, 2
        %v7295 = vrot.slane %v6898, 2
        %v7296 = vsel %vm2038, %v7294, %v7295
        %v7297 = vrot.slane %v6968, 2
        %v7298 = vrot.slane %v6970, 2
        %v7299 = vsel %vm2038, %v7297, %v7298
        %v7300 = vrot.slane %v7040, 2
        %v7301 = vrot.slane %v7042, 2
        %v7302 = vsel %vm2038, %v7300, %v7301
        %v7303 = vrot.slane %v7112, 2
        %v7304 = vrot.slane %v7114, 2
        %v7305 = vsel %vm2038, %v7303, %v7304
        %v7306 = vrot.slane %v6829, 2
        %v7307 = vsel %vm2038, %v7292, %v7306
        %v7308 = vrot.slane %v6901, 2
        %v7309 = vsel %vm2038, %v7295, %v7308
        %v7310 = vrot.slane %v6973, 2
        %v7311 = vsel %vm2038, %v7298, %v7310
        %v7312 = vrot.slane %v7045, 2
        %v7313 = vsel %vm2038, %v7301, %v7312
        %v7314 = vrot.slane %v7117, 2
        %v7315 = vsel %vm2038, %v7304, %v7314
        %v7316 = vrot.slane %v6831, 2
        %v7317 = vsel %vm2038, %v7306, %v7316
        %v7318 = vrot.slane %v6903, 2
        %v7319 = vsel %vm2038, %v7308, %v7318
        %v7320 = vrot.slane %v6975, 2
        %v7321 = vsel %vm2038, %v7310, %v7320
        %v7322 = vrot.slane %v7047, 2
        %v7323 = vsel %vm2038, %v7312, %v7322
        %v7324 = vrot.slane %v7119, 2
        %v7325 = vsel %vm2038, %v7314, %v7324
        %v7326 = vrot.slane %v6834, 2
        %v7327 = vsel %vm2038, %v7316, %v7326
        %v7328 = vrot.slane %v6906, 2
        %v7329 = vsel %vm2038, %v7318, %v7328
        %v7330 = vrot.slane %v6978, 2
        %v7331 = vsel %vm2038, %v7320, %v7330
        %v7332 = vrot.slane %v7050, 2
        %v7333 = vsel %vm2038, %v7322, %v7332
        %v7334 = vrot.slane %v7122, 2
        %v7335 = vsel %vm2038, %v7324, %v7334
        %v7336 = vrot.slane %v6836, 2
        %v7337 = vsel %vm2038, %v7326, %v7336
        %v7338 = vrot.slane %v6908, 2
        %v7339 = vsel %vm2038, %v7328, %v7338
        %v7340 = vrot.slane %v6980, 2
        %v7341 = vsel %vm2038, %v7330, %v7340
        %v7342 = vrot.slane %v7052, 2
        %v7343 = vsel %vm2038, %v7332, %v7342
        %v7344 = vrot.slane %v7124, 2
        %v7345 = vsel %vm2038, %v7334, %v7344
        %v7371 = vadd.f32 %v7236, %v7293
        %v7372 = vadd.f32 %v7237, %v7296
        %v7373 = vadd.f32 %v7238, %v7299
        %v7374 = vadd.f32 %v7239, %v7302
        %v7375 = vadd.f32 %v7240, %v7305
        %v7376 = vadd.f32 %v7241, %v7307
        %v7377 = vadd.f32 %v7242, %v7309
        %v7378 = vadd.f32 %v7243, %v7311
        %v7379 = vadd.f32 %v7244, %v7313
        %v7380 = vadd.f32 %v7245, %v7315
        %v7381 = vadd.f32 %v7246, %v7317
        %v7382 = vadd.f32 %v7247, %v7319
        %v7383 = vadd.f32 %v7248, %v7321
        %v7384 = vadd.f32 %v7249, %v7323
        %v7385 = vadd.f32 %v7250, %v7325
        %v7386 = vadd.f32 %v7251, %v7327
        %v7387 = vadd.f32 %v7252, %v7329
        %v7388 = vadd.f32 %v7253, %v7331
        %v7389 = vadd.f32 %v7254, %v7333
        %v7390 = vadd.f32 %v7255, %v7335
        %v7391 = vadd.f32 %v7256, %v7337
        %v7392 = vadd.f32 %v7257, %v7339
        %v7393 = vadd.f32 %v7258, %v7341
        %v7394 = vadd.f32 %v7259, %v7343
        %v7395 = vadd.f32 %v7260, %v7345
        %v7396 = vld [vmem:[#allocation20] sm:$0x1f]
        %v7398 = vperm.slane %v7396, 0
        %v7399 = vperm.slane %v7396, 1
        %v7400 = vperm.slane %v7396, 2
        %v7401 = vperm.slane %v7396, 3
        %v7402 = vperm.slane %v7396, 4
        %v7408 = vadd.f32 %v7371, %v7398
        %v7409 = vadd.f32 %v7372, %v7399
        %v7410 = vadd.f32 %v7373, %v7400
        %v7411 = vadd.f32 %v7374, %v7401
        %v7412 = vadd.f32 %v7375, %v7402
        %v7413 = vadd.f32 %v7376, %v7398
        %v7414 = vadd.f32 %v7377, %v7399
        %v7415 = vadd.f32 %v7378, %v7400
        %v7416 = vadd.f32 %v7379, %v7401
        %v7417 = vadd.f32 %v7380, %v7402
        %v7418 = vadd.f32 %v7381, %v7398
        %v7419 = vadd.f32 %v7382, %v7399
        %v7420 = vadd.f32 %v7383, %v7400
        %v7421 = vadd.f32 %v7384, %v7401
        %v7422 = vadd.f32 %v7385, %v7402
        %v7423 = vadd.f32 %v7386, %v7398
        %v7424 = vadd.f32 %v7387, %v7399
        %v7425 = vadd.f32 %v7388, %v7400
        %v7426 = vadd.f32 %v7389, %v7401
        %v7427 = vadd.f32 %v7390, %v7402
        %v7428 = vadd.f32 %v7391, %v7398
        %v7429 = vadd.f32 %v7392, %v7399
        %v7430 = vadd.f32 %v7393, %v7400
        %v7431 = vadd.f32 %v7394, %v7401
        %v7432 = vadd.f32 %v7395, %v7402
        %v7433 = vmax.f32 %v7408, 0.0
        %v7434 = vmax.f32 %v7409, 0.0
        %v7435 = vmax.f32 %v7410, 0.0
        %v7436 = vmax.f32 %v7411, 0.0
        %v7437 = vmax.f32 %v7412, 0.0
        %v7438 = vmax.f32 %v7413, 0.0
        %v7439 = vmax.f32 %v7414, 0.0
        %v7440 = vmax.f32 %v7415, 0.0
        %v7441 = vmax.f32 %v7416, 0.0
        %v7442 = vmax.f32 %v7417, 0.0
        %v7443 = vmax.f32 %v7418, 0.0
        %v7444 = vmax.f32 %v7419, 0.0
        %v7445 = vmax.f32 %v7420, 0.0
        %v7446 = vmax.f32 %v7421, 0.0
        %v7447 = vmax.f32 %v7422, 0.0
        %v7448 = vmax.f32 %v7423, 0.0
        %v7449 = vmax.f32 %v7424, 0.0
        %v7450 = vmax.f32 %v7425, 0.0
        %v7451 = vmax.f32 %v7426, 0.0
        %v7452 = vmax.f32 %v7427, 0.0
        %v7453 = vmax.f32 %v7428, 0.0
        %v7454 = vmax.f32 %v7429, 0.0
        %v7455 = vmax.f32 %v7430, 0.0
        %v7456 = vmax.f32 %v7431, 0.0
        %v7457 = vmax.f32 %v7432, 0.0
        %7458 = vst [vmem:[#allocation4] sm:$0xff] 0.0
        %7459 = vst [vmem:[#allocation4 + $0x8] sm:$0xff] 0.0
        %7460 = vst [vmem:[#allocation4 + $0x10] sm:$0xff] 0.0
        %7461 = vst [vmem:[#allocation4 + $0x18] sm:$0xff] 0.0
        %vm7462 = vcmask 654336
        %7463 = vst.msk [vmem:[#allocation4 + $0x20] sm:$0xff] %vm7462, 0.0
        %7464 = vst [vmem:[#allocation4 + $0x28] sm:$0xff] 0.0
        %7465 = vst [vmem:[#allocation4 + $0x30] sm:$0xff] 0.0
        %7466 = vst [vmem:[#allocation4 + $0x38] sm:$0xff] 0.0
        %7467 = vst [vmem:[#allocation4 + $0x40] sm:$0xff] 0.0
        %7468 = vst.msk [vmem:[#allocation4 + $0x48] sm:$0xff] %vm7462, 0.0
        %7469 = vst [vmem:[#allocation4 + $0x50] sm:$0xff] 0.0
        %7470 = vst [vmem:[#allocation4 + $0x58] sm:$0xff] 0.0
        %7471 = vst [vmem:[#allocation4 + $0x60] sm:$0xff] 0.0
        %7472 = vst [vmem:[#allocation4 + $0x68] sm:$0xff] 0.0
        %7473 = vst.msk [vmem:[#allocation4 + $0x70] sm:$0xff] %vm7462, 0.0
        %7474 = vst [vmem:[#allocation4 + $0x78] sm:$0xff] 0.0
        %7475 = vst [vmem:[#allocation4 + $0x80] sm:$0xff] 0.0
        %7476 = vst [vmem:[#allocation4 + $0x88] sm:$0xff] 0.0
        %7477 = vst [vmem:[#allocation4 + $0x90] sm:$0xff] 0.0
        %7478 = vst.msk [vmem:[#allocation4 + $0x98] sm:$0xff] %vm7462, 0.0
        %7479 = vst [vmem:[#allocation4 + $0xa0] sm:$0xff] 0.0
        %7480 = vst [vmem:[#allocation4 + $0xa8] sm:$0xff] 0.0
        %7481 = vst [vmem:[#allocation4 + $0xb0] sm:$0xff] 0.0
        %7482 = vst [vmem:[#allocation4 + $0xb8] sm:$0xff] 0.0
        %7483 = vst.msk [vmem:[#allocation4 + $0xc0] sm:$0xff] %vm7462, 0.0
        %7484 = vst [vmem:[#allocation4 + $0xc8] sm:$0xff] 0.0
        %7485 = vst [vmem:[#allocation4 + $0xd0] sm:$0xff] 0.0
        %7486 = vst [vmem:[#allocation4 + $0xd8] sm:$0xff] 0.0
        %7487 = vst [vmem:[#allocation4 + $0xe0] sm:$0xff] 0.0
        %7488 = vst.msk [vmem:[#allocation4 + $0xe8] sm:$0xff] %vm7462, 0.0
        %7489 = vst [vmem:[#allocation4 + $0xf0] sm:$0x3] 0.0
        %7490 = vst [vmem:[#allocation4 + $0xf8] sm:$0x3] 0.0
        %7491 = vst [vmem:[#allocation4 + $0x100] sm:$0x3] 0.0
        %7492 = vst [vmem:[#allocation4 + $0x108] sm:$0x3] 0.0
        %vm7493 = vcmask 648192
        %7494 = vst.msk [vmem:[#allocation4 + $0x110] sm:$0x3] %vm7493, 0.0
        %v7520 = vrot.slane %v7433, 3
        %v7521 = vrot.slane %v7434, 3
        %v7522 = vrot.slane %v7435, 3
        %v7523 = vrot.slane %v7436, 3
        %v7524 = vrot.slane %v7437, 3
        %v7525 = vrot.slane %v7438, 3
        %v7526 = vsel %vm2101, %v7520, %v7525
        %v7527 = vrot.slane %v7439, 3
        %v7528 = vsel %vm2101, %v7521, %v7527
        %v7529 = vrot.slane %v7440, 3
        %v7530 = vsel %vm2101, %v7522, %v7529
        %v7531 = vrot.slane %v7441, 3
        %v7532 = vsel %vm2101, %v7523, %v7531
        %v7533 = vrot.slane %v7442, 3
        %v7534 = vsel %vm2101, %v7524, %v7533
        %v7535 = vrot.slane %v7443, 3
        %v7536 = vsel %vm2101, %v7525, %v7535
        %v7537 = vrot.slane %v7444, 3
        %v7538 = vsel %vm2101, %v7527, %v7537
        %v7539 = vrot.slane %v7445, 3
        %v7540 = vsel %vm2101, %v7529, %v7539
        %v7541 = vrot.slane %v7446, 3
        %v7542 = vsel %vm2101, %v7531, %v7541
        %v7543 = vrot.slane %v7447, 3
        %v7544 = vsel %vm2101, %v7533, %v7543
        %v7545 = vrot.slane %v7448, 3
        %v7546 = vsel %vm2101, %v7535, %v7545
        %v7547 = vrot.slane %v7449, 3
        %v7548 = vsel %vm2101, %v7537, %v7547
        %v7549 = vrot.slane %v7450, 3
        %v7550 = vsel %vm2101, %v7539, %v7549
        %v7551 = vrot.slane %v7451, 3
        %v7552 = vsel %vm2101, %v7541, %v7551
        %v7553 = vrot.slane %v7452, 3
        %v7554 = vsel %vm2101, %v7543, %v7553
        %v7555 = vrot.slane %v7453, 3
        %v7556 = vsel %vm2101, %v7545, %v7555
        %v7557 = vrot.slane %v7454, 3
        %v7558 = vsel %vm2101, %v7547, %v7557
        %v7559 = vrot.slane %v7455, 3
        %v7560 = vsel %vm2101, %v7549, %v7559
        %v7561 = vrot.slane %v7456, 3
        %v7562 = vsel %vm2101, %v7551, %v7561
        %v7563 = vrot.slane %v7457, 3
        %v7564 = vsel %vm2101, %v7553, %v7563
        %7595 = vst [vmem:[#allocation4] sm:$0xe0] %v7520
        %7596 = vst [vmem:[#allocation4 + $0x8] sm:$0xe0] %v7521
        %7597 = vst [vmem:[#allocation4 + $0x10] sm:$0xe0] %v7522
        %7598 = vst [vmem:[#allocation4 + $0x18] sm:$0xe0] %v7523
        %vm7599 = vcmask 654341
        %7600 = vst.msk [vmem:[#allocation4 + $0x20] sm:$0xe0] %vm7599, %v7524
        %7601 = vst [vmem:[#allocation4 + $0x28] sm:$0xff] %v7526
        %7602 = vst [vmem:[#allocation4 + $0x30] sm:$0xff] %v7528
        %7603 = vst [vmem:[#allocation4 + $0x38] sm:$0xff] %v7530
        %7604 = vst [vmem:[#allocation4 + $0x40] sm:$0xff] %v7532
        %7605 = vst.msk [vmem:[#allocation4 + $0x48] sm:$0xff] %vm7462, %v7534
        %7606 = vst [vmem:[#allocation4 + $0x50] sm:$0xff] %v7536
        %7607 = vst [vmem:[#allocation4 + $0x58] sm:$0xff] %v7538
        %7608 = vst [vmem:[#allocation4 + $0x60] sm:$0xff] %v7540
        %7609 = vst [vmem:[#allocation4 + $0x68] sm:$0xff] %v7542
        %7610 = vst.msk [vmem:[#allocation4 + $0x70] sm:$0xff] %vm7462, %v7544
        %7611 = vst [vmem:[#allocation4 + $0x78] sm:$0xff] %v7546
        %7612 = vst [vmem:[#allocation4 + $0x80] sm:$0xff] %v7548
        %7613 = vst [vmem:[#allocation4 + $0x88] sm:$0xff] %v7550
        %7614 = vst [vmem:[#allocation4 + $0x90] sm:$0xff] %v7552
        %7615 = vst.msk [vmem:[#allocation4 + $0x98] sm:$0xff] %vm7462, %v7554
        %7616 = vst [vmem:[#allocation4 + $0xa0] sm:$0xff] %v7556
        %7617 = vst [vmem:[#allocation4 + $0xa8] sm:$0xff] %v7558
        %7618 = vst [vmem:[#allocation4 + $0xb0] sm:$0xff] %v7560
        %7619 = vst [vmem:[#allocation4 + $0xb8] sm:$0xff] %v7562
        %7620 = vst.msk [vmem:[#allocation4 + $0xc0] sm:$0xff] %vm7462, %v7564
        %7621 = vst [vmem:[#allocation4 + $0xc8] sm:$0x1f] %v7555
        %7622 = vst [vmem:[#allocation4 + $0xd0] sm:$0x1f] %v7557
        %7623 = vst [vmem:[#allocation4 + $0xd8] sm:$0x1f] %v7559
        %7624 = vst [vmem:[#allocation4 + $0xe0] sm:$0x1f] %v7561
        %vm7625 = vcmask 651264
        %7626 = vst.msk [vmem:[#allocation4 + $0xe8] sm:$0x1f] %vm7625, %v7563
        %v7627 = vld [vmem:[#allocation4] sm:$0xff]
        %v7628 = vld [vmem:[#allocation4 + $0x8] sm:$0xff]
        %v7629 = vld [vmem:[#allocation4 + $0x10] sm:$0xff]
        %v7630 = vld [vmem:[#allocation4 + $0x18] sm:$0xff]
        %v7631 = vld [vmem:[#allocation4 + $0x20] sm:$0xff]
        %v7632 = vld [vmem:[#allocation4 + $0x28] sm:$0xff]
        %v7633 = vld [vmem:[#allocation4 + $0x30] sm:$0xff]
        %v7634 = vld [vmem:[#allocation4 + $0x38] sm:$0xff]
        %v7635 = vld [vmem:[#allocation4 + $0x40] sm:$0xff]
        %v7636 = vld [vmem:[#allocation4 + $0x48] sm:$0xff]
        %v7637 = vld [vmem:[#allocation4 + $0x50] sm:$0xff]
        %v7638 = vld [vmem:[#allocation4 + $0x58] sm:$0xff]
        %v7639 = vld [vmem:[#allocation4 + $0x60] sm:$0xff]
        %v7640 = vld [vmem:[#allocation4 + $0x68] sm:$0xff]
        %v7641 = vld [vmem:[#allocation4 + $0x70] sm:$0xff]
        %v7642 = vld [vmem:[#allocation4 + $0x78] sm:$0xff]
        %v7643 = vld [vmem:[#allocation4 + $0x80] sm:$0xff]
        %v7644 = vld [vmem:[#allocation4 + $0x88] sm:$0xff]
        %v7645 = vld [vmem:[#allocation4 + $0x90] sm:$0xff]
        %v7646 = vld [vmem:[#allocation4 + $0x98] sm:$0xff]
        %v7647 = vld [vmem:[#allocation4 + $0xa0] sm:$0xff]
        %v7648 = vld [vmem:[#allocation4 + $0xa8] sm:$0xff]
        %v7649 = vld [vmem:[#allocation4 + $0xb0] sm:$0xff]
        %v7650 = vld [vmem:[#allocation4 + $0xb8] sm:$0xff]
        %v7651 = vld [vmem:[#allocation4 + $0xc0] sm:$0xff]
        %v7652 = vld [vmem:[#allocation4 + $0xc8] sm:$0xff]
        %v7653 = vld [vmem:[#allocation4 + $0xd0] sm:$0xff]
        %v7654 = vld [vmem:[#allocation4 + $0xd8] sm:$0xff]
        %v7655 = vld [vmem:[#allocation4 + $0xe0] sm:$0xff]
        %v7656 = vld [vmem:[#allocation4 + $0xe8] sm:$0xff]
        %v7657 = vld [vmem:[#allocation4 + $0xf0] sm:$0x3]
        %v7658 = vld [vmem:[#allocation4 + $0xf8] sm:$0x3]
        %v7659 = vld [vmem:[#allocation4 + $0x100] sm:$0x3]
        %v7660 = vld [vmem:[#allocation4 + $0x108] sm:$0x3]
        %v7661 = vld [vmem:[#allocation4 + $0x110] sm:$0x3]
        %v7662 = vpack.c.bf16 %v7632, %v7627
        %v7663 = vpack.c.bf16 %v7633, %v7628
        %v7664 = vpack.c.bf16 %v7634, %v7629
        %v7665 = vpack.c.bf16 %v7635, %v7630
        %v7666 = vpack.c.bf16 %v7636, %v7631
        %v7667 = vpack.c.bf16 %v7642, %v7637
        %v7668 = vpack.c.bf16 %v7643, %v7638
        %v7669 = vpack.c.bf16 %v7644, %v7639
        %v7670 = vpack.c.bf16 %v7645, %v7640
        %v7671 = vpack.c.bf16 %v7646, %v7641
        %v7672 = vpack.c.bf16 %v7652, %v7647
        %v7673 = vpack.c.bf16 %v7653, %v7648
        %v7674 = vpack.c.bf16 %v7654, %v7649
        %v7675 = vpack.c.bf16 %v7655, %v7650
        %v7676 = vpack.c.bf16 %v7656, %v7651
        %v7677 = vpack.c.bf16 %v7657, %v7657
        %v7678 = vpack.c.bf16 %v7658, %v7658
        %v7679 = vpack.c.bf16 %v7659, %v7659
        %v7680 = vpack.c.bf16 %v7660, %v7660
        %v7681 = vpack.c.bf16 %v7661, %v7661
        %v7682 = vld [vmem:[#allocation12] sm:$0xff]
        %v7683 = vld [vmem:[#allocation12 + $0x8] sm:$0xff]
        %v7684 = vld [vmem:[#allocation12 + $0x10] sm:$0xff]
        %v7685 = vld [vmem:[#allocation12 + $0x18] sm:$0xff]
        %v7686 = vld [vmem:[#allocation12 + $0x20] sm:$0xff]
        %v7687 = vld [vmem:[#allocation12 + $0x28] sm:$0xff]
        %v7688 = vld [vmem:[#allocation12 + $0x30] sm:$0xff]
        %v7689 = vld [vmem:[#allocation12 + $0x38] sm:$0xff]
        %v7690 = vld [vmem:[#allocation12 + $0x40] sm:$0xff]
        %v7691 = vld [vmem:[#allocation12 + $0x48] sm:$0xff]
        %v7692 = vld [vmem:[#allocation12 + $0x50] sm:$0xff]
        %v7693 = vld [vmem:[#allocation12 + $0x58] sm:$0xff]
        %v7694 = vld [vmem:[#allocation12 + $0x60] sm:$0xff]
        %v7695 = vld [vmem:[#allocation12 + $0x68] sm:$0xff]
        %v7696 = vld [vmem:[#allocation12 + $0x70] sm:$0xff]
        %v7697 = vld [vmem:[#allocation12 + $0x78] sm:$0xff]
        %v7698 = vld [vmem:[#allocation12 + $0x80] sm:$0xff]
        %v7699 = vld [vmem:[#allocation12 + $0x88] sm:$0xff]
        %v7700 = vld [vmem:[#allocation12 + $0x90] sm:$0xff]
        %v7701 = vld [vmem:[#allocation12 + $0x98] sm:$0xff]
        %v7702 = vld [vmem:[#allocation12 + $0xa0] sm:$0xff]
        %v7703 = vld [vmem:[#allocation12 + $0xa8] sm:$0xff]
        %v7704 = vld [vmem:[#allocation12 + $0xb0] sm:$0xff]
        %v7705 = vld [vmem:[#allocation12 + $0xb8] sm:$0xff]
        %v7706 = vld [vmem:[#allocation12 + $0xc0] sm:$0xff]
        %v7707 = vld [vmem:[#allocation12 + $0xc8] sm:$0xff]
        %v7708 = vld [vmem:[#allocation12 + $0xd0] sm:$0xff]
        %v7709 = vld [vmem:[#allocation12 + $0xd8] sm:$0xff]
        %v7710 = vld [vmem:[#allocation12 + $0xe0] sm:$0xff]
        %v7711 = vld [vmem:[#allocation12 + $0xe8] sm:$0xff]
        %v7712 = vld [vmem:[#allocation12 + $0xf0] sm:$0xff]
        %v7713 = vld [vmem:[#allocation12 + $0xf8] sm:$0xff]
        %v7714 = vld [vmem:[#allocation12 + $0x100] sm:$0xff]
        %v7715 = vld [vmem:[#allocation12 + $0x108] sm:$0xff]
        %v7716 = vld [vmem:[#allocation12 + $0x110] sm:$0xff]
        %v7717 = vld [vmem:[#allocation12 + $0x118] sm:$0xff]
        %v7718 = vld [vmem:[#allocation12 + $0x120] sm:$0xff]
        %v7719 = vld [vmem:[#allocation12 + $0x128] sm:$0xff]
        %v7720 = vld [vmem:[#allocation12 + $0x130] sm:$0xff]
        %v7721 = vld [vmem:[#allocation12 + $0x138] sm:$0xff]
        %v7722 = vld [vmem:[#allocation12 + $0x140] sm:$0xff]
        %v7723 = vld [vmem:[#allocation12 + $0x148] sm:$0xff]
        %v7724 = vld [vmem:[#allocation12 + $0x150] sm:$0xff]
        %v7725 = vld [vmem:[#allocation12 + $0x158] sm:$0xff]
        %v7726 = vld [vmem:[#allocation12 + $0x160] sm:$0xff]
        %v7727 = vld [vmem:[#allocation12 + $0x168] sm:$0xff]
        %v7728 = vld [vmem:[#allocation12 + $0x170] sm:$0xff]
        %v7729 = vld [vmem:[#allocation12 + $0x178] sm:$0xff]
        %v7730 = vld [vmem:[#allocation12 + $0x180] sm:$0xff]
        %v7731 = vld [vmem:[#allocation12 + $0x188] sm:$0xff]
        %v7732 = vld [vmem:[#allocation12 + $0x190] sm:$0xff]
        %v7733 = vld [vmem:[#allocation12 + $0x198] sm:$0xff]
        %v7734 = vld [vmem:[#allocation12 + $0x1a0] sm:$0xff]
        %v7735 = vld [vmem:[#allocation12 + $0x1a8] sm:$0xff]
        %v7736 = vld [vmem:[#allocation12 + $0x1b0] sm:$0xff]
        %v7737 = vld [vmem:[#allocation12 + $0x1b8] sm:$0xff]
        %v7738 = vld [vmem:[#allocation12 + $0x1c0] sm:$0xff]
        %v7739 = vld [vmem:[#allocation12 + $0x1c8] sm:$0xff]
        %v7740 = vld [vmem:[#allocation12 + $0x1d0] sm:$0xff]
        %v7741 = vld [vmem:[#allocation12 + $0x1d8] sm:$0xff]
        %v7742 = vld [vmem:[#allocation12 + $0x1e0] sm:$0xff]
        %v7743 = vld [vmem:[#allocation12 + $0x1e8] sm:$0xff]
        %v7744 = vld [vmem:[#allocation12 + $0x1f0] sm:$0xff]
        %v7745 = vld [vmem:[#allocation12 + $0x1f8] sm:$0xff]
        %v7746 = vld [vmem:[#allocation12 + $0x200] sm:$0xff]
        %v7747 = vld [vmem:[#allocation12 + $0x208] sm:$0xff]
        %v7748 = vld [vmem:[#allocation12 + $0x210] sm:$0xff]
        %v7749 = vld [vmem:[#allocation12 + $0x218] sm:$0xff]
        %v7750 = vld [vmem:[#allocation12 + $0x220] sm:$0xff]
        %v7751 = vld [vmem:[#allocation12 + $0x228] sm:$0xff]
        %v7752 = vld [vmem:[#allocation12 + $0x230] sm:$0xff]
        %v7753 = vld [vmem:[#allocation12 + $0x238] sm:$0xff]
        %v7754 = vld [vmem:[#allocation12 + $0x240] sm:$0xff]
        %v7755 = vld [vmem:[#allocation12 + $0x248] sm:$0xff]
        %v7830 = vunpack.c.l.b16 %v7682
        %v7831 = vunpack.c.h.b16 %v7682
        %v7832 = vunpack.c.l.b16 %v7683
        %v7833 = vunpack.c.h.b16 %v7683
        %v7834 = vunpack.c.l.b16 %v7684
        %v7835 = vunpack.c.h.b16 %v7684
        %v7836 = vunpack.c.l.b16 %v7685
        %v7837 = vunpack.c.h.b16 %v7685
        %v7838 = vunpack.c.l.b16 %v7686
        %v7839 = vunpack.c.h.b16 %v7686
        %v7840 = vunpack.c.l.b16 %v7687
        %v7841 = vunpack.c.h.b16 %v7687
        %v7842 = vunpack.c.l.b16 %v7688
        %v7843 = vunpack.c.h.b16 %v7688
        %v7844 = vunpack.c.l.b16 %v7689
        %v7845 = vunpack.c.h.b16 %v7689
        %v7846 = vunpack.c.l.b16 %v7690
        %v7847 = vunpack.c.h.b16 %v7690
        %v7848 = vunpack.c.l.b16 %v7691
        %v7849 = vunpack.c.h.b16 %v7691
        %v7850 = vunpack.c.l.b16 %v7692
        %v7851 = vunpack.c.h.b16 %v7692
        %v7852 = vunpack.c.l.b16 %v7693
        %v7853 = vunpack.c.h.b16 %v7693
        %v7854 = vunpack.c.l.b16 %v7694
        %v7855 = vunpack.c.h.b16 %v7694
        %v7856 = vunpack.c.l.b16 %v7695
        %v7857 = vunpack.c.h.b16 %v7695
        %v7858 = vunpack.c.l.b16 %v7696
        %v7859 = vunpack.c.h.b16 %v7696
        %v7860 = vunpack.c.l.b16 %v7697
        %v7861 = vunpack.c.h.b16 %v7697
        %v7862 = vunpack.c.l.b16 %v7698
        %v7863 = vunpack.c.h.b16 %v7698
        %v7864 = vunpack.c.l.b16 %v7699
        %v7865 = vunpack.c.h.b16 %v7699
        %v7866 = vunpack.c.l.b16 %v7700
        %v7867 = vunpack.c.h.b16 %v7700
        %v7868 = vunpack.c.l.b16 %v7701
        %v7869 = vunpack.c.h.b16 %v7701
        %v7870 = vunpack.c.l.b16 %v7702
        %v7871 = vunpack.c.h.b16 %v7702
        %v7872 = vunpack.c.l.b16 %v7703
        %v7873 = vunpack.c.h.b16 %v7703
        %v7874 = vunpack.c.l.b16 %v7704
        %v7875 = vunpack.c.h.b16 %v7704
        %v7876 = vunpack.c.l.b16 %v7705
        %v7877 = vunpack.c.h.b16 %v7705
        %v7878 = vunpack.c.l.b16 %v7706
        %v7879 = vunpack.c.h.b16 %v7706
        %v7880 = vunpack.c.l.b16 %v7707
        %v7881 = vunpack.c.h.b16 %v7707
        %v7882 = vunpack.c.l.b16 %v7708
        %v7883 = vunpack.c.h.b16 %v7708
        %v7884 = vunpack.c.l.b16 %v7709
        %v7885 = vunpack.c.h.b16 %v7709
        %v7886 = vunpack.c.l.b16 %v7710
        %v7887 = vunpack.c.h.b16 %v7710
        %v7888 = vunpack.c.l.b16 %v7711
        %v7889 = vunpack.c.h.b16 %v7711
        %v7890 = vunpack.c.l.b16 %v7712
        %v7891 = vunpack.c.h.b16 %v7712
        %v7892 = vunpack.c.l.b16 %v7713
        %v7893 = vunpack.c.h.b16 %v7713
        %v7894 = vunpack.c.l.b16 %v7714
        %v7895 = vunpack.c.h.b16 %v7714
        %v7896 = vunpack.c.l.b16 %v7715
        %v7897 = vunpack.c.h.b16 %v7715
        %v7898 = vunpack.c.l.b16 %v7716
        %v7899 = vunpack.c.h.b16 %v7716
        %v7900 = vunpack.c.l.b16 %v7717
        %v7901 = vunpack.c.h.b16 %v7717
        %v7902 = vunpack.c.l.b16 %v7718
        %v7903 = vunpack.c.h.b16 %v7718
        %v7904 = vunpack.c.l.b16 %v7719
        %v7905 = vunpack.c.h.b16 %v7719
        %v7906 = vunpack.c.l.b16 %v7720
        %v7907 = vunpack.c.h.b16 %v7720
        %v7908 = vunpack.c.l.b16 %v7721
        %v7909 = vunpack.c.h.b16 %v7721
        %v7910 = vunpack.c.l.b16 %v7722
        %v7911 = vunpack.c.h.b16 %v7722
        %v7912 = vunpack.c.l.b16 %v7723
        %v7913 = vunpack.c.h.b16 %v7723
        %v7914 = vunpack.c.l.b16 %v7724
        %v7915 = vunpack.c.h.b16 %v7724
        %v7916 = vunpack.c.l.b16 %v7725
        %v7917 = vunpack.c.h.b16 %v7725
        %v7918 = vunpack.c.l.b16 %v7726
        %v7919 = vunpack.c.h.b16 %v7726
        %v7920 = vunpack.c.l.b16 %v7727
        %v7921 = vunpack.c.h.b16 %v7727
        %v7922 = vunpack.c.l.b16 %v7728
        %v7923 = vunpack.c.h.b16 %v7728
        %v7924 = vunpack.c.l.b16 %v7729
        %v7925 = vunpack.c.h.b16 %v7729
        %v7926 = vunpack.c.l.b16 %v7730
        %v7927 = vunpack.c.h.b16 %v7730
        %v7928 = vunpack.c.l.b16 %v7731
        %v7929 = vunpack.c.h.b16 %v7731
        %v7930 = vunpack.c.l.b16 %v7732
        %v7931 = vunpack.c.h.b16 %v7732
        %v7932 = vunpack.c.l.b16 %v7733
        %v7933 = vunpack.c.h.b16 %v7733
        %v7934 = vunpack.c.l.b16 %v7734
        %v7935 = vunpack.c.h.b16 %v7734
        %v7936 = vunpack.c.l.b16 %v7735
        %v7937 = vunpack.c.h.b16 %v7735
        %v7938 = vunpack.c.l.b16 %v7736
        %v7939 = vunpack.c.h.b16 %v7736
        %v7940 = vunpack.c.l.b16 %v7737
        %v7941 = vunpack.c.h.b16 %v7737
        %v7942 = vunpack.c.l.b16 %v7738
        %v7943 = vunpack.c.h.b16 %v7738
        %v7944 = vunpack.c.l.b16 %v7739
        %v7945 = vunpack.c.h.b16 %v7739
        %v7946 = vunpack.c.l.b16 %v7740
        %v7947 = vunpack.c.h.b16 %v7740
        %v7948 = vunpack.c.l.b16 %v7741
        %v7949 = vunpack.c.h.b16 %v7741
        %v7950 = vunpack.c.l.b16 %v7742
        %v7951 = vunpack.c.h.b16 %v7742
        %v7952 = vunpack.c.l.b16 %v7743
        %v7953 = vunpack.c.h.b16 %v7743
        %v7954 = vunpack.c.l.b16 %v7744
        %v7955 = vunpack.c.h.b16 %v7744
        %v7956 = vunpack.c.l.b16 %v7745
        %v7957 = vunpack.c.h.b16 %v7745
        %v7958 = vunpack.c.l.b16 %v7746
        %v7959 = vunpack.c.h.b16 %v7746
        %v7960 = vunpack.c.l.b16 %v7747
        %v7961 = vunpack.c.h.b16 %v7747
        %v7962 = vunpack.c.l.b16 %v7748
        %v7963 = vunpack.c.h.b16 %v7748
        %v7964 = vunpack.c.l.b16 %v7749
        %v7965 = vunpack.c.h.b16 %v7749
        %v7966 = vunpack.c.l.b16 %v7750
        %v7967 = vunpack.c.h.b16 %v7750
        %v7968 = vunpack.c.l.b16 %v7751
        %v7969 = vunpack.c.h.b16 %v7751
        %v7970 = vunpack.c.l.b16 %v7752
        %v7971 = vunpack.c.h.b16 %v7752
        %v7972 = vunpack.c.l.b16 %v7753
        %v7973 = vunpack.c.h.b16 %v7753
        %v7974 = vunpack.c.l.b16 %v7754
        %v7975 = vunpack.c.h.b16 %v7754
        %v7976 = vunpack.c.l.b16 %v7755
        %v7977 = vunpack.c.h.b16 %v7755
        %v7978 = vpack.c.b16 %v7832, %v7830
        %v7979 = vpack.c.b16 %v7833, %v7831
        %v7980 = vpack.c.b16 %v7836, %v7834
        %v7981 = vpack.c.b16 %v7837, %v7835
        %v7982 = vpack.c.b16 %v7840, %v7838
        %v7983 = vpack.c.b16 %v7841, %v7839
        %v7984 = vpack.c.b16 %v7844, %v7842
        %v7985 = vpack.c.b16 %v7845, %v7843
        %v7986 = vpack.c.b16 %v7848, %v7846
        %v7987 = vpack.c.b16 %v7849, %v7847
        %v7988 = vpack.c.b16 %v7852, %v7850
        %v7989 = vpack.c.b16 %v7853, %v7851
        %v7990 = vpack.c.b16 %v7856, %v7854
        %v7991 = vpack.c.b16 %v7857, %v7855
        %v7992 = vpack.c.b16 %v7860, %v7858
        %v7993 = vpack.c.b16 %v7861, %v7859
        %v7994 = vpack.c.b16 %v7864, %v7862
        %v7995 = vpack.c.b16 %v7865, %v7863
        %v7996 = vpack.c.b16 %v7868, %v7866
        %v7997 = vpack.c.b16 %v7869, %v7867
        %v7998 = vpack.c.b16 %v7872, %v7870
        %v7999 = vpack.c.b16 %v7873, %v7871
        %v8000 = vpack.c.b16 %v7876, %v7874
        %v8001 = vpack.c.b16 %v7877, %v7875
        %v8002 = vpack.c.b16 %v7880, %v7878
        %v8003 = vpack.c.b16 %v7881, %v7879
        %v8004 = vpack.c.b16 %v7884, %v7882
        %v8005 = vpack.c.b16 %v7885, %v7883
        %v8006 = vpack.c.b16 %v7888, %v7886
        %v8007 = vpack.c.b16 %v7889, %v7887
        %v8008 = vpack.c.b16 %v7892, %v7890
        %v8009 = vpack.c.b16 %v7893, %v7891
        %v8010 = vpack.c.b16 %v7896, %v7894
        %v8011 = vpack.c.b16 %v7897, %v7895
        %v8012 = vpack.c.b16 %v7900, %v7898
        %v8013 = vpack.c.b16 %v7901, %v7899
        %v8014 = vpack.c.b16 %v7904, %v7902
        %v8015 = vpack.c.b16 %v7905, %v7903
        %v8016 = vpack.c.b16 %v7908, %v7906
        %v8017 = vpack.c.b16 %v7909, %v7907
        %v8018 = vpack.c.b16 %v7912, %v7910
        %v8019 = vpack.c.b16 %v7913, %v7911
        %v8020 = vpack.c.b16 %v7916, %v7914
        %v8021 = vpack.c.b16 %v7917, %v7915
        %v8022 = vpack.c.b16 %v7920, %v7918
        %v8023 = vpack.c.b16 %v7921, %v7919
        %v8024 = vpack.c.b16 %v7924, %v7922
        %v8025 = vpack.c.b16 %v7925, %v7923
        %v8026 = vpack.c.b16 %v7928, %v7926
        %v8027 = vpack.c.b16 %v7929, %v7927
        %v8028 = vpack.c.b16 %v7932, %v7930
        %v8029 = vpack.c.b16 %v7933, %v7931
        %v8030 = vpack.c.b16 %v7936, %v7934
        %v8031 = vpack.c.b16 %v7937, %v7935
        %v8032 = vpack.c.b16 %v7940, %v7938
        %v8033 = vpack.c.b16 %v7941, %v7939
        %v8034 = vpack.c.b16 %v7944, %v7942
        %v8035 = vpack.c.b16 %v7945, %v7943
        %v8036 = vpack.c.b16 %v7948, %v7946
        %v8037 = vpack.c.b16 %v7949, %v7947
        %v8038 = vpack.c.b16 %v7952, %v7950
        %v8039 = vpack.c.b16 %v7953, %v7951
        %v8040 = vpack.c.b16 %v7956, %v7954
        %v8041 = vpack.c.b16 %v7957, %v7955
        %v8042 = vpack.c.b16 %v7960, %v7958
        %v8043 = vpack.c.b16 %v7961, %v7959
        %v8044 = vpack.c.b16 %v7964, %v7962
        %v8045 = vpack.c.b16 %v7965, %v7963
        %v8046 = vpack.c.b16 %v7968, %v7966
        %v8047 = vpack.c.b16 %v7969, %v7967
        %v8048 = vpack.c.b16 %v7972, %v7970
        %v8049 = vpack.c.b16 %v7973, %v7971
        %v8050 = vpack.c.b16 %v7976, %v7974
        %v8051 = vpack.c.b16 %v7977, %v7975
        %v8127 = vsel %vm7462, %v7666, 0
        %v8130 = vsel %vm7462, %v7671, 0
        %v8133 = vsel %vm7462, %v7676, 0
        %v8136 = vsel %vm7462, %v7681, 0
        %8138 = vmatpush.bf16.msra.mxu0 %v7992
        %8139 = vmatpush.bf16.msra.mxu0 %v7990
        %8140 = vmatpush.bf16.msra.mxu0 %v7988
        %8141 = vmatpush.bf16.msra.mxu0 %v7986
        %8142 = vmatpush.bf16.msra.mxu0 %v7984
        %8143 = vmatpush.bf16.msra.mxu0 %v7982
        %8144 = vmatpush.bf16.msra.mxu0 %v7980
        %8145 = vmatpush.bf16.msra.mxu0 %v7978
        %8146 = vmatmul.bf16.gmra.mxu0 %v7662
        %v8147 = vpop.f32.mrf.mxu0
        %v8148 = vadd.f32 0.0, %v8147
        %v8149 = vpop.f32.mrf.mxu0
        %v8150 = vadd.f32 0.0, %v8149
        %8151 = vmatmul.bf16.gmra.mxu0 %v7667
        %v8152 = vpop.f32.mrf.mxu0
        %v8153 = vadd.f32 0.0, %v8152
        %v8154 = vpop.f32.mrf.mxu0
        %v8155 = vadd.f32 0.0, %v8154
        %8156 = vmatmul.bf16.gmra.mxu0 %v7672
        %v8157 = vpop.f32.mrf.mxu0
        %v8158 = vadd.f32 0.0, %v8157
        %v8159 = vpop.f32.mrf.mxu0
        %v8160 = vadd.f32 0.0, %v8159
        %8161 = vmatmul.bf16.gmra.mxu0 %v7677
        %v8162 = vpop.f32.mrf.mxu0
        %v8163 = vpop.f32.mrf.mxu0
        %8164 = vdwg.mxu0
        %8165 = vmatpush.bf16.msra.mxu0 %v8008
        %8166 = vmatpush.bf16.msra.mxu0 %v8006
        %8167 = vmatpush.bf16.msra.mxu0 %v8004
        %8168 = vmatpush.bf16.msra.mxu0 %v8002
        %8169 = vmatpush.bf16.msra.mxu0 %v8000
        %8170 = vmatpush.bf16.msra.mxu0 %v7998
        %8171 = vmatpush.bf16.msra.mxu0 %v7996
        %8172 = vmatpush.bf16.msra.mxu0 %v7994
        %8173 = vmatmul.bf16.gmra.mxu0 %v7663
        %v8174 = vpop.f32.mrf.mxu0
        %v8175 = vadd.f32 %v8148, %v8174
        %v8176 = vpop.f32.mrf.mxu0
        %v8177 = vadd.f32 %v8150, %v8176
        %8178 = vmatmul.bf16.gmra.mxu0 %v7668
        %v8179 = vpop.f32.mrf.mxu0
        %v8180 = vadd.f32 %v8153, %v8179
        %v8181 = vpop.f32.mrf.mxu0
        %v8182 = vadd.f32 %v8155, %v8181
        %8183 = vmatmul.bf16.gmra.mxu0 %v7673
        %v8184 = vpop.f32.mrf.mxu0
        %v8185 = vadd.f32 %v8158, %v8184
        %v8186 = vpop.f32.mrf.mxu0
        %v8187 = vadd.f32 %v8160, %v8186
        %8188 = vmatmul.bf16.gmra.mxu0 %v7678
        %v8189 = vpop.f32.mrf.mxu0
        %v8190 = vpop.f32.mrf.mxu0
        %8191 = vdwg.mxu0
        %8192 = vmatpush.bf16.msra.mxu0 %v8024
        %8193 = vmatpush.bf16.msra.mxu0 %v8022
        %8194 = vmatpush.bf16.msra.mxu0 %v8020
        %8195 = vmatpush.bf16.msra.mxu0 %v8018
        %8196 = vmatpush.bf16.msra.mxu0 %v8016
        %8197 = vmatpush.bf16.msra.mxu0 %v8014
        %8198 = vmatpush.bf16.msra.mxu0 %v8012
        %8199 = vmatpush.bf16.msra.mxu0 %v8010
        %8200 = vmatmul.bf16.gmra.mxu0 %v7664
        %v8201 = vpop.f32.mrf.mxu0
        %v8202 = vadd.f32 %v8175, %v8201
        %v8203 = vpop.f32.mrf.mxu0
        %v8204 = vadd.f32 %v8177, %v8203
        %8205 = vmatmul.bf16.gmra.mxu0 %v7669
        %v8206 = vpop.f32.mrf.mxu0
        %v8207 = vadd.f32 %v8180, %v8206
        %v8208 = vpop.f32.mrf.mxu0
        %v8209 = vadd.f32 %v8182, %v8208
        %8210 = vmatmul.bf16.gmra.mxu0 %v7674
        %v8211 = vpop.f32.mrf.mxu0
        %v8212 = vadd.f32 %v8185, %v8211
        %v8213 = vpop.f32.mrf.mxu0
        %v8214 = vadd.f32 %v8187, %v8213
        %8215 = vmatmul.bf16.gmra.mxu0 %v7679
        %v8216 = vpop.f32.mrf.mxu0
        %v8217 = vpop.f32.mrf.mxu0
        %8218 = vdwg.mxu0
        %8219 = vmatpush.bf16.msra.mxu0 %v8040
        %8220 = vmatpush.bf16.msra.mxu0 %v8038
        %8221 = vmatpush.bf16.msra.mxu0 %v8036
        %8222 = vmatpush.bf16.msra.mxu0 %v8034
        %8223 = vmatpush.bf16.msra.mxu0 %v8032
        %8224 = vmatpush.bf16.msra.mxu0 %v8030
        %8225 = vmatpush.bf16.msra.mxu0 %v8028
        %8226 = vmatpush.bf16.msra.mxu0 %v8026
        %8227 = vmatmul.bf16.gmra.mxu0 %v7665
        %v8228 = vpop.f32.mrf.mxu0
        %v8229 = vadd.f32 %v8202, %v8228
        %v8230 = vpop.f32.mrf.mxu0
        %v8231 = vadd.f32 %v8204, %v8230
        %8232 = vmatmul.bf16.gmra.mxu0 %v7670
        %v8233 = vpop.f32.mrf.mxu0
        %v8234 = vadd.f32 %v8207, %v8233
        %v8235 = vpop.f32.mrf.mxu0
        %v8236 = vadd.f32 %v8209, %v8235
        %8237 = vmatmul.bf16.gmra.mxu0 %v7675
        %v8238 = vpop.f32.mrf.mxu0
        %v8239 = vadd.f32 %v8212, %v8238
        %v8240 = vpop.f32.mrf.mxu0
        %v8241 = vadd.f32 %v8214, %v8240
        %8242 = vmatmul.bf16.gmra.mxu0 %v7680
        %v8243 = vpop.f32.mrf.mxu0
        %v8244 = vpop.f32.mrf.mxu0
        %8245 = vdwg.mxu0
        %8246 = vmatpush.bf16.msra.mxu0 0
        %8247 = vmatpush.bf16.msra.mxu0 0
        %8248 = vmatpush.bf16.msra.mxu0 0
        %8249 = vmatpush.bf16.msra.mxu0 %v8050
        %8250 = vmatpush.bf16.msra.mxu0 %v8048
        %8251 = vmatpush.bf16.msra.mxu0 %v8046
        %8252 = vmatpush.bf16.msra.mxu0 %v8044
        %8253 = vmatpush.bf16.msra.mxu0 %v8042
        %8254 = vmatmul.bf16.gmra.mxu0 %v8127
        %v8255 = vpop.f32.mrf.mxu0
        %v8256 = vadd.f32 %v8229, %v8255
        %v8257 = vpop.f32.mrf.mxu0
        %v8258 = vadd.f32 %v8231, %v8257
        %8259 = vmatmul.bf16.gmra.mxu0 %v8130
        %v8260 = vpop.f32.mrf.mxu0
        %v8261 = vadd.f32 %v8234, %v8260
        %v8262 = vpop.f32.mrf.mxu0
        %v8263 = vadd.f32 %v8236, %v8262
        %8264 = vmatmul.bf16.gmra.mxu0 %v8133
        %v8265 = vpop.f32.mrf.mxu0
        %v8266 = vadd.f32 %v8239, %v8265
        %v8267 = vpop.f32.mrf.mxu0
        %v8268 = vadd.f32 %v8241, %v8267
        %8269 = vmatmul.bf16.gmra.mxu0 %v8136
        %v8270 = vpop.f32.mrf.mxu0
        %v8271 = vpop.f32.mrf.mxu0
        %8272 = vdwg.mxu0
        %8273 = vmatpush.bf16.msra.mxu0 %v7993
        %8274 = vmatpush.bf16.msra.mxu0 %v7991
        %8275 = vmatpush.bf16.msra.mxu0 %v7989
        %8276 = vmatpush.bf16.msra.mxu0 %v7987
        %8277 = vmatpush.bf16.msra.mxu0 %v7985
        %8278 = vmatpush.bf16.msra.mxu0 %v7983
        %8279 = vmatpush.bf16.msra.mxu0 %v7981
        %8280 = vmatpush.bf16.msra.mxu0 %v7979
        %8281 = vmatmul.bf16.gmra.mxu0 %v7662
        %v8282 = vpop.f32.mrf.mxu0
        %v8283 = vadd.f32 0.0, %v8282
        %v8284 = vpop.f32.mrf.mxu0
        %v8285 = vadd.f32 0.0, %v8284
        %8286 = vmatmul.bf16.gmra.mxu0 %v7667
        %v8287 = vpop.f32.mrf.mxu0
        %v8288 = vadd.f32 0.0, %v8287
        %v8289 = vpop.f32.mrf.mxu0
        %v8290 = vadd.f32 0.0, %v8289
        %8291 = vmatmul.bf16.gmra.mxu0 %v7672
        %v8292 = vpop.f32.mrf.mxu0
        %v8293 = vadd.f32 0.0, %v8292
        %v8294 = vpop.f32.mrf.mxu0
        %v8295 = vadd.f32 0.0, %v8294
        %8296 = vmatmul.bf16.gmra.mxu0 %v7677
        %v8297 = vpop.f32.mrf.mxu0
        %v8298 = vpop.f32.mrf.mxu0
        %8299 = vdwg.mxu0
        %8300 = vmatpush.bf16.msra.mxu0 %v8009
        %8301 = vmatpush.bf16.msra.mxu0 %v8007
        %8302 = vmatpush.bf16.msra.mxu0 %v8005
        %8303 = vmatpush.bf16.msra.mxu0 %v8003
        %8304 = vmatpush.bf16.msra.mxu0 %v8001
        %8305 = vmatpush.bf16.msra.mxu0 %v7999
        %8306 = vmatpush.bf16.msra.mxu0 %v7997
        %8307 = vmatpush.bf16.msra.mxu0 %v7995
        %8308 = vmatmul.bf16.gmra.mxu0 %v7663
        %v8309 = vpop.f32.mrf.mxu0
        %v8310 = vadd.f32 %v8283, %v8309
        %v8311 = vpop.f32.mrf.mxu0
        %v8312 = vadd.f32 %v8285, %v8311
        %8313 = vmatmul.bf16.gmra.mxu0 %v7668
        %v8314 = vpop.f32.mrf.mxu0
        %v8315 = vadd.f32 %v8288, %v8314
        %v8316 = vpop.f32.mrf.mxu0
        %v8317 = vadd.f32 %v8290, %v8316
        %8318 = vmatmul.bf16.gmra.mxu0 %v7673
        %v8319 = vpop.f32.mrf.mxu0
        %v8320 = vadd.f32 %v8293, %v8319
        %v8321 = vpop.f32.mrf.mxu0
        %v8322 = vadd.f32 %v8295, %v8321
        %8323 = vmatmul.bf16.gmra.mxu0 %v7678
        %v8324 = vpop.f32.mrf.mxu0
        %v8325 = vpop.f32.mrf.mxu0
        %8326 = vdwg.mxu0
        %8327 = vmatpush.bf16.msra.mxu0 %v8025
        %8328 = vmatpush.bf16.msra.mxu0 %v8023
        %8329 = vmatpush.bf16.msra.mxu0 %v8021
        %8330 = vmatpush.bf16.msra.mxu0 %v8019
        %8331 = vmatpush.bf16.msra.mxu0 %v8017
        %8332 = vmatpush.bf16.msra.mxu0 %v8015
        %8333 = vmatpush.bf16.msra.mxu0 %v8013
        %8334 = vmatpush.bf16.msra.mxu0 %v8011
        %8335 = vmatmul.bf16.gmra.mxu0 %v7664
        %v8336 = vpop.f32.mrf.mxu0
        %v8337 = vadd.f32 %v8310, %v8336
        %v8338 = vpop.f32.mrf.mxu0
        %v8339 = vadd.f32 %v8312, %v8338
        %8340 = vmatmul.bf16.gmra.mxu0 %v7669
        %v8341 = vpop.f32.mrf.mxu0
        %v8342 = vadd.f32 %v8315, %v8341
        %v8343 = vpop.f32.mrf.mxu0
        %v8344 = vadd.f32 %v8317, %v8343
        %8345 = vmatmul.bf16.gmra.mxu0 %v7674
        %v8346 = vpop.f32.mrf.mxu0
        %v8347 = vadd.f32 %v8320, %v8346
        %v8348 = vpop.f32.mrf.mxu0
        %v8349 = vadd.f32 %v8322, %v8348
        %8350 = vmatmul.bf16.gmra.mxu0 %v7679
        %v8351 = vpop.f32.mrf.mxu0
        %v8352 = vpop.f32.mrf.mxu0
        %8353 = vdwg.mxu0
        %8354 = vmatpush.bf16.msra.mxu0 %v8041
        %8355 = vmatpush.bf16.msra.mxu0 %v8039
        %8356 = vmatpush.bf16.msra.mxu0 %v8037
        %8357 = vmatpush.bf16.msra.mxu0 %v8035
        %8358 = vmatpush.bf16.msra.mxu0 %v8033
        %8359 = vmatpush.bf16.msra.mxu0 %v8031
        %8360 = vmatpush.bf16.msra.mxu0 %v8029
        %8361 = vmatpush.bf16.msra.mxu0 %v8027
        %8362 = vmatmul.bf16.gmra.mxu0 %v7665
        %v8363 = vpop.f32.mrf.mxu0
        %v8364 = vadd.f32 %v8337, %v8363
        %v8365 = vpop.f32.mrf.mxu0
        %v8366 = vadd.f32 %v8339, %v8365
        %8367 = vmatmul.bf16.gmra.mxu0 %v7670
        %v8368 = vpop.f32.mrf.mxu0
        %v8369 = vadd.f32 %v8342, %v8368
        %v8370 = vpop.f32.mrf.mxu0
        %v8371 = vadd.f32 %v8344, %v8370
        %8372 = vmatmul.bf16.gmra.mxu0 %v7675
        %v8373 = vpop.f32.mrf.mxu0
        %v8374 = vadd.f32 %v8347, %v8373
        %v8375 = vpop.f32.mrf.mxu0
        %v8376 = vadd.f32 %v8349, %v8375
        %8377 = vmatmul.bf16.gmra.mxu0 %v7680
        %v8378 = vpop.f32.mrf.mxu0
        %v8379 = vpop.f32.mrf.mxu0
        %8380 = vdwg.mxu0
        %8381 = vmatpush.bf16.msra.mxu0 0
        %8382 = vmatpush.bf16.msra.mxu0 0
        %8383 = vmatpush.bf16.msra.mxu0 0
        %8384 = vmatpush.bf16.msra.mxu0 %v8051
        %8385 = vmatpush.bf16.msra.mxu0 %v8049
        %8386 = vmatpush.bf16.msra.mxu0 %v8047
        %8387 = vmatpush.bf16.msra.mxu0 %v8045
        %8388 = vmatpush.bf16.msra.mxu0 %v8043
        %8389 = vmatmul.bf16.gmra.mxu0 %v8127
        %v8390 = vpop.f32.mrf.mxu0
        %v8391 = vadd.f32 %v8364, %v8390
        %v8392 = vpop.f32.mrf.mxu0
        %v8393 = vadd.f32 %v8366, %v8392
        %8394 = vmatmul.bf16.gmra.mxu0 %v8130
        %v8395 = vpop.f32.mrf.mxu0
        %v8396 = vadd.f32 %v8369, %v8395
        %v8397 = vpop.f32.mrf.mxu0
        %v8398 = vadd.f32 %v8371, %v8397
        %8399 = vmatmul.bf16.gmra.mxu0 %v8133
        %v8400 = vpop.f32.mrf.mxu0
        %v8401 = vadd.f32 %v8374, %v8400
        %v8402 = vpop.f32.mrf.mxu0
        %v8403 = vadd.f32 %v8376, %v8402
        %8404 = vmatmul.bf16.gmra.mxu0 %v8136
        %v8405 = vpop.f32.mrf.mxu0
        %v8406 = vpop.f32.mrf.mxu0
        %8407 = vdwg.mxu0
        %s8408 = scalar_lea.vmem [#allocation12], 592
        %v8409 = vld [vmem:[%s8408] sm:$0xff]
        %v8410 = vld [vmem:[%s8408 + $0x8] sm:$0xff]
        %v8411 = vld [vmem:[%s8408 + $0x10] sm:$0xff]
        %v8412 = vld [vmem:[%s8408 + $0x18] sm:$0xff]
        %v8413 = vld [vmem:[%s8408 + $0x20] sm:$0xff]
        %v8414 = vld [vmem:[%s8408 + $0x28] sm:$0xff]
        %v8415 = vld [vmem:[%s8408 + $0x30] sm:$0xff]
        %v8416 = vld [vmem:[%s8408 + $0x38] sm:$0xff]
        %v8417 = vld [vmem:[%s8408 + $0x40] sm:$0xff]
        %v8418 = vld [vmem:[%s8408 + $0x48] sm:$0xff]
        %v8419 = vld [vmem:[%s8408 + $0x50] sm:$0xff]
        %v8420 = vld [vmem:[%s8408 + $0x58] sm:$0xff]
        %v8421 = vld [vmem:[%s8408 + $0x60] sm:$0xff]
        %v8422 = vld [vmem:[%s8408 + $0x68] sm:$0xff]
        %v8423 = vld [vmem:[%s8408 + $0x70] sm:$0xff]
        %v8424 = vld [vmem:[%s8408 + $0x78] sm:$0xff]
        %v8425 = vld [vmem:[%s8408 + $0x80] sm:$0xff]
        %v8426 = vld [vmem:[%s8408 + $0x88] sm:$0xff]
        %v8427 = vld [vmem:[%s8408 + $0x90] sm:$0xff]
        %v8428 = vld [vmem:[%s8408 + $0x98] sm:$0xff]
        %v8429 = vld [vmem:[%s8408 + $0xa0] sm:$0xff]
        %v8430 = vld [vmem:[%s8408 + $0xa8] sm:$0xff]
        %v8431 = vld [vmem:[%s8408 + $0xb0] sm:$0xff]
        %v8432 = vld [vmem:[%s8408 + $0xb8] sm:$0xff]
        %v8433 = vld [vmem:[%s8408 + $0xc0] sm:$0xff]
        %v8434 = vld [vmem:[%s8408 + $0xc8] sm:$0xff]
        %v8435 = vld [vmem:[%s8408 + $0xd0] sm:$0xff]
        %v8436 = vld [vmem:[%s8408 + $0xd8] sm:$0xff]
        %v8437 = vld [vmem:[%s8408 + $0xe0] sm:$0xff]
        %v8438 = vld [vmem:[%s8408 + $0xe8] sm:$0xff]
        %v8439 = vld [vmem:[%s8408 + $0xf0] sm:$0xff]
        %v8440 = vld [vmem:[%s8408 + $0xf8] sm:$0xff]
        %v8441 = vld [vmem:[%s8408 + $0x100] sm:$0xff]
        %v8442 = vld [vmem:[%s8408 + $0x108] sm:$0xff]
        %v8443 = vld [vmem:[%s8408 + $0x110] sm:$0xff]
        %v8444 = vld [vmem:[%s8408 + $0x118] sm:$0xff]
        %v8445 = vld [vmem:[%s8408 + $0x120] sm:$0xff]
        %v8446 = vld [vmem:[%s8408 + $0x128] sm:$0xff]
        %v8447 = vld [vmem:[%s8408 + $0x130] sm:$0xff]
        %v8448 = vld [vmem:[%s8408 + $0x138] sm:$0xff]
        %v8449 = vld [vmem:[%s8408 + $0x140] sm:$0xff]
        %v8450 = vld [vmem:[%s8408 + $0x148] sm:$0xff]
        %v8451 = vld [vmem:[%s8408 + $0x150] sm:$0xff]
        %v8452 = vld [vmem:[%s8408 + $0x158] sm:$0xff]
        %v8453 = vld [vmem:[%s8408 + $0x160] sm:$0xff]
        %v8454 = vld [vmem:[%s8408 + $0x168] sm:$0xff]
        %v8455 = vld [vmem:[%s8408 + $0x170] sm:$0xff]
        %v8456 = vld [vmem:[%s8408 + $0x178] sm:$0xff]
        %v8457 = vld [vmem:[%s8408 + $0x180] sm:$0xff]
        %v8458 = vld [vmem:[%s8408 + $0x188] sm:$0xff]
        %v8459 = vld [vmem:[%s8408 + $0x190] sm:$0xff]
        %v8460 = vld [vmem:[%s8408 + $0x198] sm:$0xff]
        %v8461 = vld [vmem:[%s8408 + $0x1a0] sm:$0xff]
        %v8462 = vld [vmem:[%s8408 + $0x1a8] sm:$0xff]
        %v8463 = vld [vmem:[%s8408 + $0x1b0] sm:$0xff]
        %v8464 = vld [vmem:[%s8408 + $0x1b8] sm:$0xff]
        %v8465 = vld [vmem:[%s8408 + $0x1c0] sm:$0xff]
        %v8466 = vld [vmem:[%s8408 + $0x1c8] sm:$0xff]
        %v8467 = vld [vmem:[%s8408 + $0x1d0] sm:$0xff]
        %v8468 = vld [vmem:[%s8408 + $0x1d8] sm:$0xff]
        %v8469 = vld [vmem:[%s8408 + $0x1e0] sm:$0xff]
        %v8470 = vld [vmem:[%s8408 + $0x1e8] sm:$0xff]
        %v8471 = vld [vmem:[%s8408 + $0x1f0] sm:$0xff]
        %v8472 = vld [vmem:[%s8408 + $0x1f8] sm:$0xff]
        %v8473 = vld [vmem:[%s8408 + $0x200] sm:$0xff]
        %v8474 = vld [vmem:[%s8408 + $0x208] sm:$0xff]
        %v8475 = vld [vmem:[%s8408 + $0x210] sm:$0xff]
        %v8476 = vld [vmem:[%s8408 + $0x218] sm:$0xff]
        %v8477 = vld [vmem:[%s8408 + $0x220] sm:$0xff]
        %v8478 = vld [vmem:[%s8408 + $0x228] sm:$0xff]
        %v8479 = vld [vmem:[%s8408 + $0x230] sm:$0xff]
        %v8480 = vld [vmem:[%s8408 + $0x238] sm:$0xff]
        %v8481 = vld [vmem:[%s8408 + $0x240] sm:$0xff]
        %v8482 = vld [vmem:[%s8408 + $0x248] sm:$0xff]
        %v8557 = vunpack.c.l.b16 %v8409
        %v8558 = vunpack.c.h.b16 %v8409
        %v8559 = vunpack.c.l.b16 %v8410
        %v8560 = vunpack.c.h.b16 %v8410
        %v8561 = vunpack.c.l.b16 %v8411
        %v8562 = vunpack.c.h.b16 %v8411
        %v8563 = vunpack.c.l.b16 %v8412
        %v8564 = vunpack.c.h.b16 %v8412
        %v8565 = vunpack.c.l.b16 %v8413
        %v8566 = vunpack.c.h.b16 %v8413
        %v8567 = vunpack.c.l.b16 %v8414
        %v8568 = vunpack.c.h.b16 %v8414
        %v8569 = vunpack.c.l.b16 %v8415
        %v8570 = vunpack.c.h.b16 %v8415
        %v8571 = vunpack.c.l.b16 %v8416
        %v8572 = vunpack.c.h.b16 %v8416
        %v8573 = vunpack.c.l.b16 %v8417
        %v8574 = vunpack.c.h.b16 %v8417
        %v8575 = vunpack.c.l.b16 %v8418
        %v8576 = vunpack.c.h.b16 %v8418
        %v8577 = vunpack.c.l.b16 %v8419
        %v8578 = vunpack.c.h.b16 %v8419
        %v8579 = vunpack.c.l.b16 %v8420
        %v8580 = vunpack.c.h.b16 %v8420
        %v8581 = vunpack.c.l.b16 %v8421
        %v8582 = vunpack.c.h.b16 %v8421
        %v8583 = vunpack.c.l.b16 %v8422
        %v8584 = vunpack.c.h.b16 %v8422
        %v8585 = vunpack.c.l.b16 %v8423
        %v8586 = vunpack.c.h.b16 %v8423
        %v8587 = vunpack.c.l.b16 %v8424
        %v8588 = vunpack.c.h.b16 %v8424
        %v8589 = vunpack.c.l.b16 %v8425
        %v8590 = vunpack.c.h.b16 %v8425
        %v8591 = vunpack.c.l.b16 %v8426
        %v8592 = vunpack.c.h.b16 %v8426
        %v8593 = vunpack.c.l.b16 %v8427
        %v8594 = vunpack.c.h.b16 %v8427
        %v8595 = vunpack.c.l.b16 %v8428
        %v8596 = vunpack.c.h.b16 %v8428
        %v8597 = vunpack.c.l.b16 %v8429
        %v8598 = vunpack.c.h.b16 %v8429
        %v8599 = vunpack.c.l.b16 %v8430
        %v8600 = vunpack.c.h.b16 %v8430
        %v8601 = vunpack.c.l.b16 %v8431
        %v8602 = vunpack.c.h.b16 %v8431
        %v8603 = vunpack.c.l.b16 %v8432
        %v8604 = vunpack.c.h.b16 %v8432
        %v8605 = vunpack.c.l.b16 %v8433
        %v8606 = vunpack.c.h.b16 %v8433
        %v8607 = vunpack.c.l.b16 %v8434
        %v8608 = vunpack.c.h.b16 %v8434
        %v8609 = vunpack.c.l.b16 %v8435
        %v8610 = vunpack.c.h.b16 %v8435
        %v8611 = vunpack.c.l.b16 %v8436
        %v8612 = vunpack.c.h.b16 %v8436
        %v8613 = vunpack.c.l.b16 %v8437
        %v8614 = vunpack.c.h.b16 %v8437
        %v8615 = vunpack.c.l.b16 %v8438
        %v8616 = vunpack.c.h.b16 %v8438
        %v8617 = vunpack.c.l.b16 %v8439
        %v8618 = vunpack.c.h.b16 %v8439
        %v8619 = vunpack.c.l.b16 %v8440
        %v8620 = vunpack.c.h.b16 %v8440
        %v8621 = vunpack.c.l.b16 %v8441
        %v8622 = vunpack.c.h.b16 %v8441
        %v8623 = vunpack.c.l.b16 %v8442
        %v8624 = vunpack.c.h.b16 %v8442
        %v8625 = vunpack.c.l.b16 %v8443
        %v8626 = vunpack.c.h.b16 %v8443
        %v8627 = vunpack.c.l.b16 %v8444
        %v8628 = vunpack.c.h.b16 %v8444
        %v8629 = vunpack.c.l.b16 %v8445
        %v8630 = vunpack.c.h.b16 %v8445
        %v8631 = vunpack.c.l.b16 %v8446
        %v8632 = vunpack.c.h.b16 %v8446
        %v8633 = vunpack.c.l.b16 %v8447
        %v8634 = vunpack.c.h.b16 %v8447
        %v8635 = vunpack.c.l.b16 %v8448
        %v8636 = vunpack.c.h.b16 %v8448
        %v8637 = vunpack.c.l.b16 %v8449
        %v8638 = vunpack.c.h.b16 %v8449
        %v8639 = vunpack.c.l.b16 %v8450
        %v8640 = vunpack.c.h.b16 %v8450
        %v8641 = vunpack.c.l.b16 %v8451
        %v8642 = vunpack.c.h.b16 %v8451
        %v8643 = vunpack.c.l.b16 %v8452
        %v8644 = vunpack.c.h.b16 %v8452
        %v8645 = vunpack.c.l.b16 %v8453
        %v8646 = vunpack.c.h.b16 %v8453
        %v8647 = vunpack.c.l.b16 %v8454
        %v8648 = vunpack.c.h.b16 %v8454
        %v8649 = vunpack.c.l.b16 %v8455
        %v8650 = vunpack.c.h.b16 %v8455
        %v8651 = vunpack.c.l.b16 %v8456
        %v8652 = vunpack.c.h.b16 %v8456
        %v8653 = vunpack.c.l.b16 %v8457
        %v8654 = vunpack.c.h.b16 %v8457
        %v8655 = vunpack.c.l.b16 %v8458
        %v8656 = vunpack.c.h.b16 %v8458
        %v8657 = vunpack.c.l.b16 %v8459
        %v8658 = vunpack.c.h.b16 %v8459
        %v8659 = vunpack.c.l.b16 %v8460
        %v8660 = vunpack.c.h.b16 %v8460
        %v8661 = vunpack.c.l.b16 %v8461
        %v8662 = vunpack.c.h.b16 %v8461
        %v8663 = vunpack.c.l.b16 %v8462
        %v8664 = vunpack.c.h.b16 %v8462
        %v8665 = vunpack.c.l.b16 %v8463
        %v8666 = vunpack.c.h.b16 %v8463
        %v8667 = vunpack.c.l.b16 %v8464
        %v8668 = vunpack.c.h.b16 %v8464
        %v8669 = vunpack.c.l.b16 %v8465
        %v8670 = vunpack.c.h.b16 %v8465
        %v8671 = vunpack.c.l.b16 %v8466
        %v8672 = vunpack.c.h.b16 %v8466
        %v8673 = vunpack.c.l.b16 %v8467
        %v8674 = vunpack.c.h.b16 %v8467
        %v8675 = vunpack.c.l.b16 %v8468
        %v8676 = vunpack.c.h.b16 %v8468
        %v8677 = vunpack.c.l.b16 %v8469
        %v8678 = vunpack.c.h.b16 %v8469
        %v8679 = vunpack.c.l.b16 %v8470
        %v8680 = vunpack.c.h.b16 %v8470
        %v8681 = vunpack.c.l.b16 %v8471
        %v8682 = vunpack.c.h.b16 %v8471
        %v8683 = vunpack.c.l.b16 %v8472
        %v8684 = vunpack.c.h.b16 %v8472
        %v8685 = vunpack.c.l.b16 %v8473
        %v8686 = vunpack.c.h.b16 %v8473
        %v8687 = vunpack.c.l.b16 %v8474
        %v8688 = vunpack.c.h.b16 %v8474
        %v8689 = vunpack.c.l.b16 %v8475
        %v8690 = vunpack.c.h.b16 %v8475
        %v8691 = vunpack.c.l.b16 %v8476
        %v8692 = vunpack.c.h.b16 %v8476
        %v8693 = vunpack.c.l.b16 %v8477
        %v8694 = vunpack.c.h.b16 %v8477
        %v8695 = vunpack.c.l.b16 %v8478
        %v8696 = vunpack.c.h.b16 %v8478
        %v8697 = vunpack.c.l.b16 %v8479
        %v8698 = vunpack.c.h.b16 %v8479
        %v8699 = vunpack.c.l.b16 %v8480
        %v8700 = vunpack.c.h.b16 %v8480
        %v8701 = vunpack.c.l.b16 %v8481
        %v8702 = vunpack.c.h.b16 %v8481
        %v8703 = vunpack.c.l.b16 %v8482
        %v8704 = vunpack.c.h.b16 %v8482
        %v8705 = vpack.c.b16 %v8559, %v8557
        %v8706 = vpack.c.b16 %v8560, %v8558
        %v8707 = vpack.c.b16 %v8563, %v8561
        %v8708 = vpack.c.b16 %v8564, %v8562
        %v8709 = vpack.c.b16 %v8567, %v8565
        %v8710 = vpack.c.b16 %v8568, %v8566
        %v8711 = vpack.c.b16 %v8571, %v8569
        %v8712 = vpack.c.b16 %v8572, %v8570
        %v8713 = vpack.c.b16 %v8575, %v8573
        %v8714 = vpack.c.b16 %v8576, %v8574
        %v8715 = vpack.c.b16 %v8579, %v8577
        %v8716 = vpack.c.b16 %v8580, %v8578
        %v8717 = vpack.c.b16 %v8583, %v8581
        %v8718 = vpack.c.b16 %v8584, %v8582
        %v8719 = vpack.c.b16 %v8587, %v8585
        %v8720 = vpack.c.b16 %v8588, %v8586
        %v8721 = vpack.c.b16 %v8591, %v8589
        %v8722 = vpack.c.b16 %v8592, %v8590
        %v8723 = vpack.c.b16 %v8595, %v8593
        %v8724 = vpack.c.b16 %v8596, %v8594
        %v8725 = vpack.c.b16 %v8599, %v8597
        %v8726 = vpack.c.b16 %v8600, %v8598
        %v8727 = vpack.c.b16 %v8603, %v8601
        %v8728 = vpack.c.b16 %v8604, %v8602
        %v8729 = vpack.c.b16 %v8607, %v8605
        %v8730 = vpack.c.b16 %v8608, %v8606
        %v8731 = vpack.c.b16 %v8611, %v8609
        %v8732 = vpack.c.b16 %v8612, %v8610
        %v8733 = vpack.c.b16 %v8615, %v8613
        %v8734 = vpack.c.b16 %v8616, %v8614
        %v8735 = vpack.c.b16 %v8619, %v8617
        %v8736 = vpack.c.b16 %v8620, %v8618
        %v8737 = vpack.c.b16 %v8623, %v8621
        %v8738 = vpack.c.b16 %v8624, %v8622
        %v8739 = vpack.c.b16 %v8627, %v8625
        %v8740 = vpack.c.b16 %v8628, %v8626
        %v8741 = vpack.c.b16 %v8631, %v8629
        %v8742 = vpack.c.b16 %v8632, %v8630
        %v8743 = vpack.c.b16 %v8635, %v8633
        %v8744 = vpack.c.b16 %v8636, %v8634
        %v8745 = vpack.c.b16 %v8639, %v8637
        %v8746 = vpack.c.b16 %v8640, %v8638
        %v8747 = vpack.c.b16 %v8643, %v8641
        %v8748 = vpack.c.b16 %v8644, %v8642
        %v8749 = vpack.c.b16 %v8647, %v8645
        %v8750 = vpack.c.b16 %v8648, %v8646
        %v8751 = vpack.c.b16 %v8651, %v8649
        %v8752 = vpack.c.b16 %v8652, %v8650
        %v8753 = vpack.c.b16 %v8655, %v8653
        %v8754 = vpack.c.b16 %v8656, %v8654
        %v8755 = vpack.c.b16 %v8659, %v8657
        %v8756 = vpack.c.b16 %v8660, %v8658
        %v8757 = vpack.c.b16 %v8663, %v8661
        %v8758 = vpack.c.b16 %v8664, %v8662
        %v8759 = vpack.c.b16 %v8667, %v8665
        %v8760 = vpack.c.b16 %v8668, %v8666
        %v8761 = vpack.c.b16 %v8671, %v8669
        %v8762 = vpack.c.b16 %v8672, %v8670
        %v8763 = vpack.c.b16 %v8675, %v8673
        %v8764 = vpack.c.b16 %v8676, %v8674
        %v8765 = vpack.c.b16 %v8679, %v8677
        %v8766 = vpack.c.b16 %v8680, %v8678
        %v8767 = vpack.c.b16 %v8683, %v8681
        %v8768 = vpack.c.b16 %v8684, %v8682
        %v8769 = vpack.c.b16 %v8687, %v8685
        %v8770 = vpack.c.b16 %v8688, %v8686
        %v8771 = vpack.c.b16 %v8691, %v8689
        %v8772 = vpack.c.b16 %v8692, %v8690
        %v8773 = vpack.c.b16 %v8695, %v8693
        %v8774 = vpack.c.b16 %v8696, %v8694
        %v8775 = vpack.c.b16 %v8699, %v8697
        %v8776 = vpack.c.b16 %v8700, %v8698
        %v8777 = vpack.c.b16 %v8703, %v8701
        %v8778 = vpack.c.b16 %v8704, %v8702
        %8853 = vmatpush.bf16.msra.mxu0 %v8719
        %8854 = vmatpush.bf16.msra.mxu0 %v8717
        %8855 = vmatpush.bf16.msra.mxu0 %v8715
        %8856 = vmatpush.bf16.msra.mxu0 %v8713
        %8857 = vmatpush.bf16.msra.mxu0 %v8711
        %8858 = vmatpush.bf16.msra.mxu0 %v8709
        %8859 = vmatpush.bf16.msra.mxu0 %v8707
        %8860 = vmatpush.bf16.msra.mxu0 %v8705
        %8861 = vmatmul.bf16.gmra.mxu0 %v7662
        %v8862 = vpop.f32.mrf.mxu0
        %v8863 = vadd.f32 0.0, %v8862
        %v8864 = vpop.f32.mrf.mxu0
        %v8865 = vadd.f32 0.0, %v8864
        %8866 = vmatmul.bf16.gmra.mxu0 %v7667
        %v8867 = vpop.f32.mrf.mxu0
        %v8868 = vadd.f32 0.0, %v8867
        %v8869 = vpop.f32.mrf.mxu0
        %v8870 = vadd.f32 0.0, %v8869
        %8871 = vmatmul.bf16.gmra.mxu0 %v7672
        %v8872 = vpop.f32.mrf.mxu0
        %v8873 = vadd.f32 0.0, %v8872
        %v8874 = vpop.f32.mrf.mxu0
        %v8875 = vadd.f32 0.0, %v8874
        %8876 = vmatmul.bf16.gmra.mxu0 %v7677
        %v8877 = vpop.f32.mrf.mxu0
        %v8878 = vadd.f32 0.0, %v8877
        %v8879 = vpop.f32.mrf.mxu0
        %8880 = vdwg.mxu0
        %8881 = vmatpush.bf16.msra.mxu0 %v8735
        %8882 = vmatpush.bf16.msra.mxu0 %v8733
        %8883 = vmatpush.bf16.msra.mxu0 %v8731
        %8884 = vmatpush.bf16.msra.mxu0 %v8729
        %8885 = vmatpush.bf16.msra.mxu0 %v8727
        %8886 = vmatpush.bf16.msra.mxu0 %v8725
        %8887 = vmatpush.bf16.msra.mxu0 %v8723
        %8888 = vmatpush.bf16.msra.mxu0 %v8721
        %8889 = vmatmul.bf16.gmra.mxu0 %v7663
        %v8890 = vpop.f32.mrf.mxu0
        %v8891 = vadd.f32 %v8863, %v8890
        %v8892 = vpop.f32.mrf.mxu0
        %v8893 = vadd.f32 %v8865, %v8892
        %8894 = vmatmul.bf16.gmra.mxu0 %v7668
        %v8895 = vpop.f32.mrf.mxu0
        %v8896 = vadd.f32 %v8868, %v8895
        %v8897 = vpop.f32.mrf.mxu0
        %v8898 = vadd.f32 %v8870, %v8897
        %8899 = vmatmul.bf16.gmra.mxu0 %v7673
        %v8900 = vpop.f32.mrf.mxu0
        %v8901 = vadd.f32 %v8873, %v8900
        %v8902 = vpop.f32.mrf.mxu0
        %v8903 = vadd.f32 %v8875, %v8902
        %8904 = vmatmul.bf16.gmra.mxu0 %v7678
        %v8905 = vpop.f32.mrf.mxu0
        %v8906 = vadd.f32 %v8878, %v8905
        %v8907 = vpop.f32.mrf.mxu0
        %8908 = vdwg.mxu0
        %8909 = vmatpush.bf16.msra.mxu0 %v8751
        %8910 = vmatpush.bf16.msra.mxu0 %v8749
        %8911 = vmatpush.bf16.msra.mxu0 %v8747
        %8912 = vmatpush.bf16.msra.mxu0 %v8745
        %8913 = vmatpush.bf16.msra.mxu0 %v8743
        %8914 = vmatpush.bf16.msra.mxu0 %v8741
        %8915 = vmatpush.bf16.msra.mxu0 %v8739
        %8916 = vmatpush.bf16.msra.mxu0 %v8737
        %8917 = vmatmul.bf16.gmra.mxu0 %v7664
        %v8918 = vpop.f32.mrf.mxu0
        %v8919 = vadd.f32 %v8891, %v8918
        %v8920 = vpop.f32.mrf.mxu0
        %v8921 = vadd.f32 %v8893, %v8920
        %8922 = vmatmul.bf16.gmra.mxu0 %v7669
        %v8923 = vpop.f32.mrf.mxu0
        %v8924 = vadd.f32 %v8896, %v8923
        %v8925 = vpop.f32.mrf.mxu0
        %v8926 = vadd.f32 %v8898, %v8925
        %8927 = vmatmul.bf16.gmra.mxu0 %v7674
        %v8928 = vpop.f32.mrf.mxu0
        %v8929 = vadd.f32 %v8901, %v8928
        %v8930 = vpop.f32.mrf.mxu0
        %v8931 = vadd.f32 %v8903, %v8930
        %8932 = vmatmul.bf16.gmra.mxu0 %v7679
        %v8933 = vpop.f32.mrf.mxu0
        %v8934 = vadd.f32 %v8906, %v8933
        %v8935 = vpop.f32.mrf.mxu0
        %8936 = vdwg.mxu0
        %8937 = vmatpush.bf16.msra.mxu0 %v8767
        %8938 = vmatpush.bf16.msra.mxu0 %v8765
        %8939 = vmatpush.bf16.msra.mxu0 %v8763
        %8940 = vmatpush.bf16.msra.mxu0 %v8761
        %8941 = vmatpush.bf16.msra.mxu0 %v8759
        %8942 = vmatpush.bf16.msra.mxu0 %v8757
        %8943 = vmatpush.bf16.msra.mxu0 %v8755
        %8944 = vmatpush.bf16.msra.mxu0 %v8753
        %8945 = vmatmul.bf16.gmra.mxu0 %v7665
        %v8946 = vpop.f32.mrf.mxu0
        %v8947 = vadd.f32 %v8919, %v8946
        %v8948 = vpop.f32.mrf.mxu0
        %v8949 = vadd.f32 %v8921, %v8948
        %8950 = vmatmul.bf16.gmra.mxu0 %v7670
        %v8951 = vpop.f32.mrf.mxu0
        %v8952 = vadd.f32 %v8924, %v8951
        %v8953 = vpop.f32.mrf.mxu0
        %v8954 = vadd.f32 %v8926, %v8953
        %8955 = vmatmul.bf16.gmra.mxu0 %v7675
        %v8956 = vpop.f32.mrf.mxu0
        %v8957 = vadd.f32 %v8929, %v8956
        %v8958 = vpop.f32.mrf.mxu0
        %v8959 = vadd.f32 %v8931, %v8958
        %8960 = vmatmul.bf16.gmra.mxu0 %v7680
        %v8961 = vpop.f32.mrf.mxu0
        %v8962 = vadd.f32 %v8934, %v8961
        %v8963 = vpop.f32.mrf.mxu0
        %8964 = vdwg.mxu0
        %8965 = vmatpush.bf16.msra.mxu0 0
        %8966 = vmatpush.bf16.msra.mxu0 0
        %8967 = vmatpush.bf16.msra.mxu0 0
        %8968 = vmatpush.bf16.msra.mxu0 %v8777
        %8969 = vmatpush.bf16.msra.mxu0 %v8775
        %8970 = vmatpush.bf16.msra.mxu0 %v8773
        %8971 = vmatpush.bf16.msra.mxu0 %v8771
        %8972 = vmatpush.bf16.msra.mxu0 %v8769
        %8973 = vmatmul.bf16.gmra.mxu0 %v8127
        %v8974 = vpop.f32.mrf.mxu0
        %v8975 = vadd.f32 %v8947, %v8974
        %v8976 = vpop.f32.mrf.mxu0
        %v8977 = vadd.f32 %v8949, %v8976
        %8978 = vmatmul.bf16.gmra.mxu0 %v8130
        %v8979 = vpop.f32.mrf.mxu0
        %v8980 = vadd.f32 %v8952, %v8979
        %v8981 = vpop.f32.mrf.mxu0
        %v8982 = vadd.f32 %v8954, %v8981
        %8983 = vmatmul.bf16.gmra.mxu0 %v8133
        %v8984 = vpop.f32.mrf.mxu0
        %v8985 = vadd.f32 %v8957, %v8984
        %v8986 = vpop.f32.mrf.mxu0
        %v8987 = vadd.f32 %v8959, %v8986
        %8988 = vmatmul.bf16.gmra.mxu0 %v8136
        %v8989 = vpop.f32.mrf.mxu0
        %v8990 = vadd.f32 %v8962, %v8989
        %v8991 = vpop.f32.mrf.mxu0
        %8992 = vdwg.mxu0
        %8993 = vmatpush.bf16.msra.mxu0 %v8720
        %8994 = vmatpush.bf16.msra.mxu0 %v8718
        %8995 = vmatpush.bf16.msra.mxu0 %v8716
        %8996 = vmatpush.bf16.msra.mxu0 %v8714
        %8997 = vmatpush.bf16.msra.mxu0 %v8712
        %8998 = vmatpush.bf16.msra.mxu0 %v8710
        %8999 = vmatpush.bf16.msra.mxu0 %v8708
        %9000 = vmatpush.bf16.msra.mxu0 %v8706
        %9001 = vmatmul.bf16.gmra.mxu0 %v7662
        %v9002 = vpop.f32.mrf.mxu0
        %v9003 = vadd.f32 0.0, %v9002
        %v9004 = vpop.f32.mrf.mxu0
        %v9005 = vadd.f32 0.0, %v9004
        %9006 = vmatmul.bf16.gmra.mxu0 %v7667
        %v9007 = vpop.f32.mrf.mxu0
        %v9008 = vadd.f32 0.0, %v9007
        %v9009 = vpop.f32.mrf.mxu0
        %v9010 = vadd.f32 0.0, %v9009
        %9011 = vmatmul.bf16.gmra.mxu0 %v7672
        %v9012 = vpop.f32.mrf.mxu0
        %v9013 = vadd.f32 0.0, %v9012
        %v9014 = vpop.f32.mrf.mxu0
        %v9015 = vadd.f32 0.0, %v9014
        %9016 = vmatmul.bf16.gmra.mxu0 %v7677
        %v9017 = vpop.f32.mrf.mxu0
        %v9018 = vadd.f32 0.0, %v9017
        %v9019 = vpop.f32.mrf.mxu0
        %9020 = vdwg.mxu0
        %9021 = vmatpush.bf16.msra.mxu0 %v8736
        %9022 = vmatpush.bf16.msra.mxu0 %v8734
        %9023 = vmatpush.bf16.msra.mxu0 %v8732
        %9024 = vmatpush.bf16.msra.mxu0 %v8730
        %9025 = vmatpush.bf16.msra.mxu0 %v8728
        %9026 = vmatpush.bf16.msra.mxu0 %v8726
        %9027 = vmatpush.bf16.msra.mxu0 %v8724
        %9028 = vmatpush.bf16.msra.mxu0 %v8722
        %9029 = vmatmul.bf16.gmra.mxu0 %v7663
        %v9030 = vpop.f32.mrf.mxu0
        %v9031 = vadd.f32 %v9003, %v9030
        %v9032 = vpop.f32.mrf.mxu0
        %v9033 = vadd.f32 %v9005, %v9032
        %9034 = vmatmul.bf16.gmra.mxu0 %v7668
        %v9035 = vpop.f32.mrf.mxu0
        %v9036 = vadd.f32 %v9008, %v9035
        %v9037 = vpop.f32.mrf.mxu0
        %v9038 = vadd.f32 %v9010, %v9037
        %9039 = vmatmul.bf16.gmra.mxu0 %v7673
        %v9040 = vpop.f32.mrf.mxu0
        %v9041 = vadd.f32 %v9013, %v9040
        %v9042 = vpop.f32.mrf.mxu0
        %v9043 = vadd.f32 %v9015, %v9042
        %9044 = vmatmul.bf16.gmra.mxu0 %v7678
        %v9045 = vpop.f32.mrf.mxu0
        %v9046 = vadd.f32 %v9018, %v9045
        %v9047 = vpop.f32.mrf.mxu0
        %9048 = vdwg.mxu0
        %9049 = vmatpush.bf16.msra.mxu0 %v8752
        %9050 = vmatpush.bf16.msra.mxu0 %v8750
        %9051 = vmatpush.bf16.msra.mxu0 %v8748
        %9052 = vmatpush.bf16.msra.mxu0 %v8746
        %9053 = vmatpush.bf16.msra.mxu0 %v8744
        %9054 = vmatpush.bf16.msra.mxu0 %v8742
        %9055 = vmatpush.bf16.msra.mxu0 %v8740
        %9056 = vmatpush.bf16.msra.mxu0 %v8738
        %9057 = vmatmul.bf16.gmra.mxu0 %v7664
        %v9058 = vpop.f32.mrf.mxu0
        %v9059 = vadd.f32 %v9031, %v9058
        %v9060 = vpop.f32.mrf.mxu0
        %v9061 = vadd.f32 %v9033, %v9060
        %9062 = vmatmul.bf16.gmra.mxu0 %v7669
        %v9063 = vpop.f32.mrf.mxu0
        %v9064 = vadd.f32 %v9036, %v9063
        %v9065 = vpop.f32.mrf.mxu0
        %v9066 = vadd.f32 %v9038, %v9065
        %9067 = vmatmul.bf16.gmra.mxu0 %v7674
        %v9068 = vpop.f32.mrf.mxu0
        %v9069 = vadd.f32 %v9041, %v9068
        %v9070 = vpop.f32.mrf.mxu0
        %v9071 = vadd.f32 %v9043, %v9070
        %9072 = vmatmul.bf16.gmra.mxu0 %v7679
        %v9073 = vpop.f32.mrf.mxu0
        %v9074 = vadd.f32 %v9046, %v9073
        %v9075 = vpop.f32.mrf.mxu0
        %9076 = vdwg.mxu0
        %9077 = vmatpush.bf16.msra.mxu0 %v8768
        %9078 = vmatpush.bf16.msra.mxu0 %v8766
        %9079 = vmatpush.bf16.msra.mxu0 %v8764
        %9080 = vmatpush.bf16.msra.mxu0 %v8762
        %9081 = vmatpush.bf16.msra.mxu0 %v8760
        %9082 = vmatpush.bf16.msra.mxu0 %v8758
        %9083 = vmatpush.bf16.msra.mxu0 %v8756
        %9084 = vmatpush.bf16.msra.mxu0 %v8754
        %9085 = vmatmul.bf16.gmra.mxu0 %v7665
        %v9086 = vpop.f32.mrf.mxu0
        %v9087 = vadd.f32 %v9059, %v9086
        %v9088 = vpop.f32.mrf.mxu0
        %v9089 = vadd.f32 %v9061, %v9088
        %9090 = vmatmul.bf16.gmra.mxu0 %v7670
        %v9091 = vpop.f32.mrf.mxu0
        %v9092 = vadd.f32 %v9064, %v9091
        %v9093 = vpop.f32.mrf.mxu0
        %v9094 = vadd.f32 %v9066, %v9093
        %9095 = vmatmul.bf16.gmra.mxu0 %v7675
        %v9096 = vpop.f32.mrf.mxu0
        %v9097 = vadd.f32 %v9069, %v9096
        %v9098 = vpop.f32.mrf.mxu0
        %v9099 = vadd.f32 %v9071, %v9098
        %9100 = vmatmul.bf16.gmra.mxu0 %v7680
        %v9101 = vpop.f32.mrf.mxu0
        %v9102 = vadd.f32 %v9074, %v9101
        %v9103 = vpop.f32.mrf.mxu0
        %9104 = vdwg.mxu0
        %9105 = vmatpush.bf16.msra.mxu0 0
        %9106 = vmatpush.bf16.msra.mxu0 0
        %9107 = vmatpush.bf16.msra.mxu0 0
        %9108 = vmatpush.bf16.msra.mxu0 %v8778
        %9109 = vmatpush.bf16.msra.mxu0 %v8776
        %9110 = vmatpush.bf16.msra.mxu0 %v8774
        %9111 = vmatpush.bf16.msra.mxu0 %v8772
        %9112 = vmatpush.bf16.msra.mxu0 %v8770
        %9113 = vmatmul.bf16.gmra.mxu0 %v8127
        %v9114 = vpop.f32.mrf.mxu0
        %v9115 = vadd.f32 %v9087, %v9114
        %v9116 = vpop.f32.mrf.mxu0
        %v9117 = vadd.f32 %v9089, %v9116
        %9118 = vmatmul.bf16.gmra.mxu0 %v8130
        %v9119 = vpop.f32.mrf.mxu0
        %v9120 = vadd.f32 %v9092, %v9119
        %v9121 = vpop.f32.mrf.mxu0
        %v9122 = vadd.f32 %v9094, %v9121
        %9123 = vmatmul.bf16.gmra.mxu0 %v8133
        %v9124 = vpop.f32.mrf.mxu0
        %v9125 = vadd.f32 %v9097, %v9124
        %v9126 = vpop.f32.mrf.mxu0
        %v9127 = vadd.f32 %v9099, %v9126
        %9128 = vmatmul.bf16.gmra.mxu0 %v8136
        %v9129 = vpop.f32.mrf.mxu0
        %v9130 = vadd.f32 %v9102, %v9129
        %v9131 = vpop.f32.mrf.mxu0
        %9132 = vdwg.mxu0
        %s9133 = scalar_lea.vmem [#allocation12], 1184
        %v9134 = vld [vmem:[%s9133] sm:$0xff]
        %v9135 = vld [vmem:[%s9133 + $0x8] sm:$0xff]
        %v9136 = vld [vmem:[%s9133 + $0x10] sm:$0xff]
        %v9137 = vld [vmem:[%s9133 + $0x18] sm:$0xff]
        %v9138 = vld [vmem:[%s9133 + $0x20] sm:$0xff]
        %v9139 = vld [vmem:[%s9133 + $0x28] sm:$0xff]
        %v9140 = vld [vmem:[%s9133 + $0x30] sm:$0xff]
        %v9141 = vld [vmem:[%s9133 + $0x38] sm:$0xff]
        %v9142 = vld [vmem:[%s9133 + $0x40] sm:$0xff]
        %v9143 = vld [vmem:[%s9133 + $0x48] sm:$0xff]
        %v9144 = vld [vmem:[%s9133 + $0x50] sm:$0xff]
        %v9145 = vld [vmem:[%s9133 + $0x58] sm:$0xff]
        %v9146 = vld [vmem:[%s9133 + $0x60] sm:$0xff]
        %v9147 = vld [vmem:[%s9133 + $0x68] sm:$0xff]
        %v9148 = vld [vmem:[%s9133 + $0x70] sm:$0xff]
        %v9149 = vld [vmem:[%s9133 + $0x78] sm:$0xff]
        %v9150 = vld [vmem:[%s9133 + $0x80] sm:$0xff]
        %v9151 = vld [vmem:[%s9133 + $0x88] sm:$0xff]
        %v9152 = vld [vmem:[%s9133 + $0x90] sm:$0xff]
        %v9153 = vld [vmem:[%s9133 + $0x98] sm:$0xff]
        %v9154 = vld [vmem:[%s9133 + $0xa0] sm:$0xff]
        %v9155 = vld [vmem:[%s9133 + $0xa8] sm:$0xff]
        %v9156 = vld [vmem:[%s9133 + $0xb0] sm:$0xff]
        %v9157 = vld [vmem:[%s9133 + $0xb8] sm:$0xff]
        %v9158 = vld [vmem:[%s9133 + $0xc0] sm:$0xff]
        %v9159 = vld [vmem:[%s9133 + $0xc8] sm:$0xff]
        %v9160 = vld [vmem:[%s9133 + $0xd0] sm:$0xff]
        %v9161 = vld [vmem:[%s9133 + $0xd8] sm:$0xff]
        %v9162 = vld [vmem:[%s9133 + $0xe0] sm:$0xff]
        %v9163 = vld [vmem:[%s9133 + $0xe8] sm:$0xff]
        %v9164 = vld [vmem:[%s9133 + $0xf0] sm:$0xff]
        %v9165 = vld [vmem:[%s9133 + $0xf8] sm:$0xff]
        %v9166 = vld [vmem:[%s9133 + $0x100] sm:$0xff]
        %v9167 = vld [vmem:[%s9133 + $0x108] sm:$0xff]
        %v9168 = vld [vmem:[%s9133 + $0x110] sm:$0xff]
        %v9169 = vld [vmem:[%s9133 + $0x118] sm:$0xff]
        %v9170 = vld [vmem:[%s9133 + $0x120] sm:$0xff]
        %v9171 = vld [vmem:[%s9133 + $0x128] sm:$0xff]
        %v9172 = vld [vmem:[%s9133 + $0x130] sm:$0xff]
        %v9173 = vld [vmem:[%s9133 + $0x138] sm:$0xff]
        %v9174 = vld [vmem:[%s9133 + $0x140] sm:$0xff]
        %v9175 = vld [vmem:[%s9133 + $0x148] sm:$0xff]
        %v9176 = vld [vmem:[%s9133 + $0x150] sm:$0xff]
        %v9177 = vld [vmem:[%s9133 + $0x158] sm:$0xff]
        %v9178 = vld [vmem:[%s9133 + $0x160] sm:$0xff]
        %v9179 = vld [vmem:[%s9133 + $0x168] sm:$0xff]
        %v9180 = vld [vmem:[%s9133 + $0x170] sm:$0xff]
        %v9181 = vld [vmem:[%s9133 + $0x178] sm:$0xff]
        %v9182 = vld [vmem:[%s9133 + $0x180] sm:$0xff]
        %v9183 = vld [vmem:[%s9133 + $0x188] sm:$0xff]
        %v9184 = vld [vmem:[%s9133 + $0x190] sm:$0xff]
        %v9185 = vld [vmem:[%s9133 + $0x198] sm:$0xff]
        %v9186 = vld [vmem:[%s9133 + $0x1a0] sm:$0xff]
        %v9187 = vld [vmem:[%s9133 + $0x1a8] sm:$0xff]
        %v9188 = vld [vmem:[%s9133 + $0x1b0] sm:$0xff]
        %v9189 = vld [vmem:[%s9133 + $0x1b8] sm:$0xff]
        %v9190 = vld [vmem:[%s9133 + $0x1c0] sm:$0xff]
        %v9191 = vld [vmem:[%s9133 + $0x1c8] sm:$0xff]
        %v9192 = vld [vmem:[%s9133 + $0x1d0] sm:$0xff]
        %v9193 = vld [vmem:[%s9133 + $0x1d8] sm:$0xff]
        %v9194 = vld [vmem:[%s9133 + $0x1e0] sm:$0xff]
        %v9195 = vld [vmem:[%s9133 + $0x1e8] sm:$0xff]
        %v9196 = vld [vmem:[%s9133 + $0x1f0] sm:$0xff]
        %v9197 = vld [vmem:[%s9133 + $0x1f8] sm:$0xff]
        %v9198 = vld [vmem:[%s9133 + $0x200] sm:$0xff]
        %v9199 = vld [vmem:[%s9133 + $0x208] sm:$0xff]
        %v9200 = vld [vmem:[%s9133 + $0x210] sm:$0xff]
        %v9201 = vld [vmem:[%s9133 + $0x218] sm:$0xff]
        %v9202 = vld [vmem:[%s9133 + $0x220] sm:$0xff]
        %v9203 = vld [vmem:[%s9133 + $0x228] sm:$0xff]
        %v9204 = vld [vmem:[%s9133 + $0x230] sm:$0xff]
        %v9205 = vld [vmem:[%s9133 + $0x238] sm:$0xff]
        %v9206 = vld [vmem:[%s9133 + $0x240] sm:$0xff]
        %v9207 = vld [vmem:[%s9133 + $0x248] sm:$0xff]
        %v9282 = vunpack.c.l.b16 %v9134
        %v9283 = vunpack.c.h.b16 %v9134
        %v9284 = vunpack.c.l.b16 %v9135
        %v9285 = vunpack.c.h.b16 %v9135
        %v9286 = vunpack.c.l.b16 %v9136
        %v9287 = vunpack.c.h.b16 %v9136
        %v9288 = vunpack.c.l.b16 %v9137
        %v9289 = vunpack.c.h.b16 %v9137
        %v9290 = vunpack.c.l.b16 %v9138
        %v9291 = vunpack.c.h.b16 %v9138
        %v9292 = vunpack.c.l.b16 %v9139
        %v9293 = vunpack.c.h.b16 %v9139
        %v9294 = vunpack.c.l.b16 %v9140
        %v9295 = vunpack.c.h.b16 %v9140
        %v9296 = vunpack.c.l.b16 %v9141
        %v9297 = vunpack.c.h.b16 %v9141
        %v9298 = vunpack.c.l.b16 %v9142
        %v9299 = vunpack.c.h.b16 %v9142
        %v9300 = vunpack.c.l.b16 %v9143
        %v9301 = vunpack.c.h.b16 %v9143
        %v9302 = vunpack.c.l.b16 %v9144
        %v9303 = vunpack.c.h.b16 %v9144
        %v9304 = vunpack.c.l.b16 %v9145
        %v9305 = vunpack.c.h.b16 %v9145
        %v9306 = vunpack.c.l.b16 %v9146
        %v9307 = vunpack.c.h.b16 %v9146
        %v9308 = vunpack.c.l.b16 %v9147
        %v9309 = vunpack.c.h.b16 %v9147
        %v9310 = vunpack.c.l.b16 %v9148
        %v9311 = vunpack.c.h.b16 %v9148
        %v9312 = vunpack.c.l.b16 %v9149
        %v9313 = vunpack.c.h.b16 %v9149
        %v9314 = vunpack.c.l.b16 %v9150
        %v9315 = vunpack.c.h.b16 %v9150
        %v9316 = vunpack.c.l.b16 %v9151
        %v9317 = vunpack.c.h.b16 %v9151
        %v9318 = vunpack.c.l.b16 %v9152
        %v9319 = vunpack.c.h.b16 %v9152
        %v9320 = vunpack.c.l.b16 %v9153
        %v9321 = vunpack.c.h.b16 %v9153
        %v9322 = vunpack.c.l.b16 %v9154
        %v9323 = vunpack.c.h.b16 %v9154
        %v9324 = vunpack.c.l.b16 %v9155
        %v9325 = vunpack.c.h.b16 %v9155
        %v9326 = vunpack.c.l.b16 %v9156
        %v9327 = vunpack.c.h.b16 %v9156
        %v9328 = vunpack.c.l.b16 %v9157
        %v9329 = vunpack.c.h.b16 %v9157
        %v9330 = vunpack.c.l.b16 %v9158
        %v9331 = vunpack.c.h.b16 %v9158
        %v9332 = vunpack.c.l.b16 %v9159
        %v9333 = vunpack.c.h.b16 %v9159
        %v9334 = vunpack.c.l.b16 %v9160
        %v9335 = vunpack.c.h.b16 %v9160
        %v9336 = vunpack.c.l.b16 %v9161
        %v9337 = vunpack.c.h.b16 %v9161
        %v9338 = vunpack.c.l.b16 %v9162
        %v9339 = vunpack.c.h.b16 %v9162
        %v9340 = vunpack.c.l.b16 %v9163
        %v9341 = vunpack.c.h.b16 %v9163
        %v9342 = vunpack.c.l.b16 %v9164
        %v9343 = vunpack.c.h.b16 %v9164
        %v9344 = vunpack.c.l.b16 %v9165
        %v9345 = vunpack.c.h.b16 %v9165
        %v9346 = vunpack.c.l.b16 %v9166
        %v9347 = vunpack.c.h.b16 %v9166
        %v9348 = vunpack.c.l.b16 %v9167
        %v9349 = vunpack.c.h.b16 %v9167
        %v9350 = vunpack.c.l.b16 %v9168
        %v9351 = vunpack.c.h.b16 %v9168
        %v9352 = vunpack.c.l.b16 %v9169
        %v9353 = vunpack.c.h.b16 %v9169
        %v9354 = vunpack.c.l.b16 %v9170
        %v9355 = vunpack.c.h.b16 %v9170
        %v9356 = vunpack.c.l.b16 %v9171
        %v9357 = vunpack.c.h.b16 %v9171
        %v9358 = vunpack.c.l.b16 %v9172
        %v9359 = vunpack.c.h.b16 %v9172
        %v9360 = vunpack.c.l.b16 %v9173
        %v9361 = vunpack.c.h.b16 %v9173
        %v9362 = vunpack.c.l.b16 %v9174
        %v9363 = vunpack.c.h.b16 %v9174
        %v9364 = vunpack.c.l.b16 %v9175
        %v9365 = vunpack.c.h.b16 %v9175
        %v9366 = vunpack.c.l.b16 %v9176
        %v9367 = vunpack.c.h.b16 %v9176
        %v9368 = vunpack.c.l.b16 %v9177
        %v9369 = vunpack.c.h.b16 %v9177
        %v9370 = vunpack.c.l.b16 %v9178
        %v9371 = vunpack.c.h.b16 %v9178
        %v9372 = vunpack.c.l.b16 %v9179
        %v9373 = vunpack.c.h.b16 %v9179
        %v9374 = vunpack.c.l.b16 %v9180
        %v9375 = vunpack.c.h.b16 %v9180
        %v9376 = vunpack.c.l.b16 %v9181
        %v9377 = vunpack.c.h.b16 %v9181
        %v9378 = vunpack.c.l.b16 %v9182
        %v9379 = vunpack.c.h.b16 %v9182
        %v9380 = vunpack.c.l.b16 %v9183
        %v9381 = vunpack.c.h.b16 %v9183
        %v9382 = vunpack.c.l.b16 %v9184
        %v9383 = vunpack.c.h.b16 %v9184
        %v9384 = vunpack.c.l.b16 %v9185
        %v9385 = vunpack.c.h.b16 %v9185
        %v9386 = vunpack.c.l.b16 %v9186
        %v9387 = vunpack.c.h.b16 %v9186
        %v9388 = vunpack.c.l.b16 %v9187
        %v9389 = vunpack.c.h.b16 %v9187
        %v9390 = vunpack.c.l.b16 %v9188
        %v9391 = vunpack.c.h.b16 %v9188
        %v9392 = vunpack.c.l.b16 %v9189
        %v9393 = vunpack.c.h.b16 %v9189
        %v9394 = vunpack.c.l.b16 %v9190
        %v9395 = vunpack.c.h.b16 %v9190
        %v9396 = vunpack.c.l.b16 %v9191
        %v9397 = vunpack.c.h.b16 %v9191
        %v9398 = vunpack.c.l.b16 %v9192
        %v9399 = vunpack.c.h.b16 %v9192
        %v9400 = vunpack.c.l.b16 %v9193
        %v9401 = vunpack.c.h.b16 %v9193
        %v9402 = vunpack.c.l.b16 %v9194
        %v9403 = vunpack.c.h.b16 %v9194
        %v9404 = vunpack.c.l.b16 %v9195
        %v9405 = vunpack.c.h.b16 %v9195
        %v9406 = vunpack.c.l.b16 %v9196
        %v9407 = vunpack.c.h.b16 %v9196
        %v9408 = vunpack.c.l.b16 %v9197
        %v9409 = vunpack.c.h.b16 %v9197
        %v9410 = vunpack.c.l.b16 %v9198
        %v9411 = vunpack.c.h.b16 %v9198
        %v9412 = vunpack.c.l.b16 %v9199
        %v9413 = vunpack.c.h.b16 %v9199
        %v9414 = vunpack.c.l.b16 %v9200
        %v9415 = vunpack.c.h.b16 %v9200
        %v9416 = vunpack.c.l.b16 %v9201
        %v9417 = vunpack.c.h.b16 %v9201
        %v9418 = vunpack.c.l.b16 %v9202
        %v9419 = vunpack.c.h.b16 %v9202
        %v9420 = vunpack.c.l.b16 %v9203
        %v9421 = vunpack.c.h.b16 %v9203
        %v9422 = vunpack.c.l.b16 %v9204
        %v9423 = vunpack.c.h.b16 %v9204
        %v9424 = vunpack.c.l.b16 %v9205
        %v9425 = vunpack.c.h.b16 %v9205
        %v9426 = vunpack.c.l.b16 %v9206
        %v9427 = vunpack.c.h.b16 %v9206
        %v9428 = vunpack.c.l.b16 %v9207
        %v9429 = vunpack.c.h.b16 %v9207
        %v9430 = vpack.c.b16 %v9284, %v9282
        %v9431 = vpack.c.b16 %v9285, %v9283
        %v9432 = vpack.c.b16 %v9288, %v9286
        %v9433 = vpack.c.b16 %v9289, %v9287
        %v9434 = vpack.c.b16 %v9292, %v9290
        %v9435 = vpack.c.b16 %v9293, %v9291
        %v9436 = vpack.c.b16 %v9296, %v9294
        %v9437 = vpack.c.b16 %v9297, %v9295
        %v9438 = vpack.c.b16 %v9300, %v9298
        %v9439 = vpack.c.b16 %v9301, %v9299
        %v9440 = vpack.c.b16 %v9304, %v9302
        %v9441 = vpack.c.b16 %v9305, %v9303
        %v9442 = vpack.c.b16 %v9308, %v9306
        %v9443 = vpack.c.b16 %v9309, %v9307
        %v9444 = vpack.c.b16 %v9312, %v9310
        %v9445 = vpack.c.b16 %v9313, %v9311
        %v9446 = vpack.c.b16 %v9316, %v9314
        %v9447 = vpack.c.b16 %v9317, %v9315
        %v9448 = vpack.c.b16 %v9320, %v9318
        %v9449 = vpack.c.b16 %v9321, %v9319
        %v9450 = vpack.c.b16 %v9324, %v9322
        %v9451 = vpack.c.b16 %v9325, %v9323
        %v9452 = vpack.c.b16 %v9328, %v9326
        %v9453 = vpack.c.b16 %v9329, %v9327
        %v9454 = vpack.c.b16 %v9332, %v9330
        %v9455 = vpack.c.b16 %v9333, %v9331
        %v9456 = vpack.c.b16 %v9336, %v9334
        %v9457 = vpack.c.b16 %v9337, %v9335
        %v9458 = vpack.c.b16 %v9340, %v9338
        %v9459 = vpack.c.b16 %v9341, %v9339
        %v9460 = vpack.c.b16 %v9344, %v9342
        %v9461 = vpack.c.b16 %v9345, %v9343
        %v9462 = vpack.c.b16 %v9348, %v9346
        %v9463 = vpack.c.b16 %v9349, %v9347
        %v9464 = vpack.c.b16 %v9352, %v9350
        %v9465 = vpack.c.b16 %v9353, %v9351
        %v9466 = vpack.c.b16 %v9356, %v9354
        %v9467 = vpack.c.b16 %v9357, %v9355
        %v9468 = vpack.c.b16 %v9360, %v9358
        %v9469 = vpack.c.b16 %v9361, %v9359
        %v9470 = vpack.c.b16 %v9364, %v9362
        %v9471 = vpack.c.b16 %v9365, %v9363
        %v9472 = vpack.c.b16 %v9368, %v9366
        %v9473 = vpack.c.b16 %v9369, %v9367
        %v9474 = vpack.c.b16 %v9372, %v9370
        %v9475 = vpack.c.b16 %v9373, %v9371
        %v9476 = vpack.c.b16 %v9376, %v9374
        %v9477 = vpack.c.b16 %v9377, %v9375
        %v9478 = vpack.c.b16 %v9380, %v9378
        %v9479 = vpack.c.b16 %v9381, %v9379
        %v9480 = vpack.c.b16 %v9384, %v9382
        %v9481 = vpack.c.b16 %v9385, %v9383
        %v9482 = vpack.c.b16 %v9388, %v9386
        %v9483 = vpack.c.b16 %v9389, %v9387
        %v9484 = vpack.c.b16 %v9392, %v9390
        %v9485 = vpack.c.b16 %v9393, %v9391
        %v9486 = vpack.c.b16 %v9396, %v9394
        %v9487 = vpack.c.b16 %v9397, %v9395
        %v9488 = vpack.c.b16 %v9400, %v9398
        %v9489 = vpack.c.b16 %v9401, %v9399
        %v9490 = vpack.c.b16 %v9404, %v9402
        %v9491 = vpack.c.b16 %v9405, %v9403
        %v9492 = vpack.c.b16 %v9408, %v9406
        %v9493 = vpack.c.b16 %v9409, %v9407
        %v9494 = vpack.c.b16 %v9412, %v9410
        %v9495 = vpack.c.b16 %v9413, %v9411
        %v9496 = vpack.c.b16 %v9416, %v9414
        %v9497 = vpack.c.b16 %v9417, %v9415
        %v9498 = vpack.c.b16 %v9420, %v9418
        %v9499 = vpack.c.b16 %v9421, %v9419
        %v9500 = vpack.c.b16 %v9424, %v9422
        %v9501 = vpack.c.b16 %v9425, %v9423
        %v9502 = vpack.c.b16 %v9428, %v9426
        %v9503 = vpack.c.b16 %v9429, %v9427
        %9578 = vmatpush.bf16.msra.mxu0 %v9444
        %9579 = vmatpush.bf16.msra.mxu0 %v9442
        %9580 = vmatpush.bf16.msra.mxu0 %v9440
        %9581 = vmatpush.bf16.msra.mxu0 %v9438
        %9582 = vmatpush.bf16.msra.mxu0 %v9436
        %9583 = vmatpush.bf16.msra.mxu0 %v9434
        %9584 = vmatpush.bf16.msra.mxu0 %v9432
        %9585 = vmatpush.bf16.msra.mxu0 %v9430
        %9586 = vmatmul.bf16.gmra.mxu0 %v7662
        %v9587 = vpop.f32.mrf.mxu0
        %v9588 = vadd.f32 0.0, %v9587
        %v9589 = vpop.f32.mrf.mxu0
        %v9590 = vadd.f32 0.0, %v9589
        %9591 = vmatmul.bf16.gmra.mxu0 %v7667
        %v9592 = vpop.f32.mrf.mxu0
        %v9593 = vadd.f32 0.0, %v9592
        %v9594 = vpop.f32.mrf.mxu0
        %v9595 = vadd.f32 0.0, %v9594
        %9596 = vmatmul.bf16.gmra.mxu0 %v7672
        %v9597 = vpop.f32.mrf.mxu0
        %v9598 = vadd.f32 0.0, %v9597
        %v9599 = vpop.f32.mrf.mxu0
        %v9600 = vadd.f32 0.0, %v9599
        %9601 = vmatmul.bf16.gmra.mxu0 %v7677
        %v9602 = vpop.f32.mrf.mxu0
        %v9603 = vadd.f32 0.0, %v9602
        %v9604 = vpop.f32.mrf.mxu0
        %9605 = vdwg.mxu0
        %9606 = vmatpush.bf16.msra.mxu0 %v9460
        %9607 = vmatpush.bf16.msra.mxu0 %v9458
        %9608 = vmatpush.bf16.msra.mxu0 %v9456
        %9609 = vmatpush.bf16.msra.mxu0 %v9454
        %9610 = vmatpush.bf16.msra.mxu0 %v9452
        %9611 = vmatpush.bf16.msra.mxu0 %v9450
        %9612 = vmatpush.bf16.msra.mxu0 %v9448
        %9613 = vmatpush.bf16.msra.mxu0 %v9446
        %9614 = vmatmul.bf16.gmra.mxu0 %v7663
        %v9615 = vpop.f32.mrf.mxu0
        %v9616 = vadd.f32 %v9588, %v9615
        %v9617 = vpop.f32.mrf.mxu0
        %v9618 = vadd.f32 %v9590, %v9617
        %9619 = vmatmul.bf16.gmra.mxu0 %v7668
        %v9620 = vpop.f32.mrf.mxu0
        %v9621 = vadd.f32 %v9593, %v9620
        %v9622 = vpop.f32.mrf.mxu0
        %v9623 = vadd.f32 %v9595, %v9622
        %9624 = vmatmul.bf16.gmra.mxu0 %v7673
        %v9625 = vpop.f32.mrf.mxu0
        %v9626 = vadd.f32 %v9598, %v9625
        %v9627 = vpop.f32.mrf.mxu0
        %v9628 = vadd.f32 %v9600, %v9627
        %9629 = vmatmul.bf16.gmra.mxu0 %v7678
        %v9630 = vpop.f32.mrf.mxu0
        %v9631 = vadd.f32 %v9603, %v9630
        %v9632 = vpop.f32.mrf.mxu0
        %9633 = vdwg.mxu0
        %9634 = vmatpush.bf16.msra.mxu0 %v9476
        %9635 = vmatpush.bf16.msra.mxu0 %v9474
        %9636 = vmatpush.bf16.msra.mxu0 %v9472
        %9637 = vmatpush.bf16.msra.mxu0 %v9470
        %9638 = vmatpush.bf16.msra.mxu0 %v9468
        %9639 = vmatpush.bf16.msra.mxu0 %v9466
        %9640 = vmatpush.bf16.msra.mxu0 %v9464
        %9641 = vmatpush.bf16.msra.mxu0 %v9462
        %9642 = vmatmul.bf16.gmra.mxu0 %v7664
        %v9643 = vpop.f32.mrf.mxu0
        %v9644 = vadd.f32 %v9616, %v9643
        %v9645 = vpop.f32.mrf.mxu0
        %v9646 = vadd.f32 %v9618, %v9645
        %9647 = vmatmul.bf16.gmra.mxu0 %v7669
        %v9648 = vpop.f32.mrf.mxu0
        %v9649 = vadd.f32 %v9621, %v9648
        %v9650 = vpop.f32.mrf.mxu0
        %v9651 = vadd.f32 %v9623, %v9650
        %9652 = vmatmul.bf16.gmra.mxu0 %v7674
        %v9653 = vpop.f32.mrf.mxu0
        %v9654 = vadd.f32 %v9626, %v9653
        %v9655 = vpop.f32.mrf.mxu0
        %v9656 = vadd.f32 %v9628, %v9655
        %9657 = vmatmul.bf16.gmra.mxu0 %v7679
        %v9658 = vpop.f32.mrf.mxu0
        %v9659 = vadd.f32 %v9631, %v9658
        %v9660 = vpop.f32.mrf.mxu0
        %9661 = vdwg.mxu0
        %9662 = vmatpush.bf16.msra.mxu0 %v9492
        %9663 = vmatpush.bf16.msra.mxu0 %v9490
        %9664 = vmatpush.bf16.msra.mxu0 %v9488
        %9665 = vmatpush.bf16.msra.mxu0 %v9486
        %9666 = vmatpush.bf16.msra.mxu0 %v9484
        %9667 = vmatpush.bf16.msra.mxu0 %v9482
        %9668 = vmatpush.bf16.msra.mxu0 %v9480
        %9669 = vmatpush.bf16.msra.mxu0 %v9478
        %9670 = vmatmul.bf16.gmra.mxu0 %v7665
        %v9671 = vpop.f32.mrf.mxu0
        %v9672 = vadd.f32 %v9644, %v9671
        %v9673 = vpop.f32.mrf.mxu0
        %v9674 = vadd.f32 %v9646, %v9673
        %9675 = vmatmul.bf16.gmra.mxu0 %v7670
        %v9676 = vpop.f32.mrf.mxu0
        %v9677 = vadd.f32 %v9649, %v9676
        %v9678 = vpop.f32.mrf.mxu0
        %v9679 = vadd.f32 %v9651, %v9678
        %9680 = vmatmul.bf16.gmra.mxu0 %v7675
        %v9681 = vpop.f32.mrf.mxu0
        %v9682 = vadd.f32 %v9654, %v9681
        %v9683 = vpop.f32.mrf.mxu0
        %v9684 = vadd.f32 %v9656, %v9683
        %9685 = vmatmul.bf16.gmra.mxu0 %v7680
        %v9686 = vpop.f32.mrf.mxu0
        %v9687 = vadd.f32 %v9659, %v9686
        %v9688 = vpop.f32.mrf.mxu0
        %9689 = vdwg.mxu0
        %9690 = vmatpush.bf16.msra.mxu0 0
        %9691 = vmatpush.bf16.msra.mxu0 0
        %9692 = vmatpush.bf16.msra.mxu0 0
        %9693 = vmatpush.bf16.msra.mxu0 %v9502
        %9694 = vmatpush.bf16.msra.mxu0 %v9500
        %9695 = vmatpush.bf16.msra.mxu0 %v9498
        %9696 = vmatpush.bf16.msra.mxu0 %v9496
        %9697 = vmatpush.bf16.msra.mxu0 %v9494
        %9698 = vmatmul.bf16.gmra.mxu0 %v8127
        %v9699 = vpop.f32.mrf.mxu0
        %v9700 = vadd.f32 %v9672, %v9699
        %v9701 = vpop.f32.mrf.mxu0
        %v9702 = vadd.f32 %v9674, %v9701
        %9703 = vmatmul.bf16.gmra.mxu0 %v8130
        %v9704 = vpop.f32.mrf.mxu0
        %v9705 = vadd.f32 %v9677, %v9704
        %v9706 = vpop.f32.mrf.mxu0
        %v9707 = vadd.f32 %v9679, %v9706
        %9708 = vmatmul.bf16.gmra.mxu0 %v8133
        %v9709 = vpop.f32.mrf.mxu0
        %v9710 = vadd.f32 %v9682, %v9709
        %v9711 = vpop.f32.mrf.mxu0
        %v9712 = vadd.f32 %v9684, %v9711
        %9713 = vmatmul.bf16.gmra.mxu0 %v8136
        %v9714 = vpop.f32.mrf.mxu0
        %v9715 = vadd.f32 %v9687, %v9714
        %v9716 = vpop.f32.mrf.mxu0
        %9717 = vdwg.mxu0
        %9718 = vmatpush.bf16.msra.mxu0 %v9445
        %9719 = vmatpush.bf16.msra.mxu0 %v9443
        %9720 = vmatpush.bf16.msra.mxu0 %v9441
        %9721 = vmatpush.bf16.msra.mxu0 %v9439
        %9722 = vmatpush.bf16.msra.mxu0 %v9437
        %9723 = vmatpush.bf16.msra.mxu0 %v9435
        %9724 = vmatpush.bf16.msra.mxu0 %v9433
        %9725 = vmatpush.bf16.msra.mxu0 %v9431
        %9726 = vmatmul.bf16.gmra.mxu0 %v7662
        %v9727 = vpop.f32.mrf.mxu0
        %v9728 = vadd.f32 0.0, %v9727
        %v9729 = vpop.f32.mrf.mxu0
        %v9730 = vadd.f32 0.0, %v9729
        %9731 = vmatmul.bf16.gmra.mxu0 %v7667
        %v9732 = vpop.f32.mrf.mxu0
        %v9733 = vadd.f32 0.0, %v9732
        %v9734 = vpop.f32.mrf.mxu0
        %v9735 = vadd.f32 0.0, %v9734
        %9736 = vmatmul.bf16.gmra.mxu0 %v7672
        %v9737 = vpop.f32.mrf.mxu0
        %v9738 = vadd.f32 0.0, %v9737
        %v9739 = vpop.f32.mrf.mxu0
        %v9740 = vadd.f32 0.0, %v9739
        %9741 = vmatmul.bf16.gmra.mxu0 %v7677
        %v9742 = vpop.f32.mrf.mxu0
        %v9743 = vadd.f32 0.0, %v9742
        %v9744 = vpop.f32.mrf.mxu0
        %9745 = vdwg.mxu0
        %9746 = vmatpush.bf16.msra.mxu0 %v9461
        %9747 = vmatpush.bf16.msra.mxu0 %v9459
        %9748 = vmatpush.bf16.msra.mxu0 %v9457
        %9749 = vmatpush.bf16.msra.mxu0 %v9455
        %9750 = vmatpush.bf16.msra.mxu0 %v9453
        %9751 = vmatpush.bf16.msra.mxu0 %v9451
        %9752 = vmatpush.bf16.msra.mxu0 %v9449
        %9753 = vmatpush.bf16.msra.mxu0 %v9447
        %9754 = vmatmul.bf16.gmra.mxu0 %v7663
        %v9755 = vpop.f32.mrf.mxu0
        %v9756 = vadd.f32 %v9728, %v9755
        %v9757 = vpop.f32.mrf.mxu0
        %v9758 = vadd.f32 %v9730, %v9757
        %9759 = vmatmul.bf16.gmra.mxu0 %v7668
        %v9760 = vpop.f32.mrf.mxu0
        %v9761 = vadd.f32 %v9733, %v9760
        %v9762 = vpop.f32.mrf.mxu0
        %v9763 = vadd.f32 %v9735, %v9762
        %9764 = vmatmul.bf16.gmra.mxu0 %v7673
        %v9765 = vpop.f32.mrf.mxu0
        %v9766 = vadd.f32 %v9738, %v9765
        %v9767 = vpop.f32.mrf.mxu0
        %v9768 = vadd.f32 %v9740, %v9767
        %9769 = vmatmul.bf16.gmra.mxu0 %v7678
        %v9770 = vpop.f32.mrf.mxu0
        %v9771 = vadd.f32 %v9743, %v9770
        %v9772 = vpop.f32.mrf.mxu0
        %9773 = vdwg.mxu0
        %9774 = vmatpush.bf16.msra.mxu0 %v9477
        %9775 = vmatpush.bf16.msra.mxu0 %v9475
        %9776 = vmatpush.bf16.msra.mxu0 %v9473
        %9777 = vmatpush.bf16.msra.mxu0 %v9471
        %9778 = vmatpush.bf16.msra.mxu0 %v9469
        %9779 = vmatpush.bf16.msra.mxu0 %v9467
        %9780 = vmatpush.bf16.msra.mxu0 %v9465
        %9781 = vmatpush.bf16.msra.mxu0 %v9463
        %9782 = vmatmul.bf16.gmra.mxu0 %v7664
        %v9783 = vpop.f32.mrf.mxu0
        %v9784 = vadd.f32 %v9756, %v9783
        %v9785 = vpop.f32.mrf.mxu0
        %v9786 = vadd.f32 %v9758, %v9785
        %9787 = vmatmul.bf16.gmra.mxu0 %v7669
        %v9788 = vpop.f32.mrf.mxu0
        %v9789 = vadd.f32 %v9761, %v9788
        %v9790 = vpop.f32.mrf.mxu0
        %v9791 = vadd.f32 %v9763, %v9790
        %9792 = vmatmul.bf16.gmra.mxu0 %v7674
        %v9793 = vpop.f32.mrf.mxu0
        %v9794 = vadd.f32 %v9766, %v9793
        %v9795 = vpop.f32.mrf.mxu0
        %v9796 = vadd.f32 %v9768, %v9795
        %9797 = vmatmul.bf16.gmra.mxu0 %v7679
        %v9798 = vpop.f32.mrf.mxu0
        %v9799 = vadd.f32 %v9771, %v9798
        %v9800 = vpop.f32.mrf.mxu0
        %9801 = vdwg.mxu0
        %9802 = vmatpush.bf16.msra.mxu0 %v9493
        %9803 = vmatpush.bf16.msra.mxu0 %v9491
        %9804 = vmatpush.bf16.msra.mxu0 %v9489
        %9805 = vmatpush.bf16.msra.mxu0 %v9487
        %9806 = vmatpush.bf16.msra.mxu0 %v9485
        %9807 = vmatpush.bf16.msra.mxu0 %v9483
        %9808 = vmatpush.bf16.msra.mxu0 %v9481
        %9809 = vmatpush.bf16.msra.mxu0 %v9479
        %9810 = vmatmul.bf16.gmra.mxu0 %v7665
        %v9811 = vpop.f32.mrf.mxu0
        %v9812 = vadd.f32 %v9784, %v9811
        %v9813 = vpop.f32.mrf.mxu0
        %v9814 = vadd.f32 %v9786, %v9813
        %9815 = vmatmul.bf16.gmra.mxu0 %v7670
        %v9816 = vpop.f32.mrf.mxu0
        %v9817 = vadd.f32 %v9789, %v9816
        %v9818 = vpop.f32.mrf.mxu0
        %v9819 = vadd.f32 %v9791, %v9818
        %9820 = vmatmul.bf16.gmra.mxu0 %v7675
        %v9821 = vpop.f32.mrf.mxu0
        %v9822 = vadd.f32 %v9794, %v9821
        %v9823 = vpop.f32.mrf.mxu0
        %v9824 = vadd.f32 %v9796, %v9823
        %9825 = vmatmul.bf16.gmra.mxu0 %v7680
        %v9826 = vpop.f32.mrf.mxu0
        %v9827 = vadd.f32 %v9799, %v9826
        %v9828 = vpop.f32.mrf.mxu0
        %9829 = vdwg.mxu0
        %9830 = vmatpush.bf16.msra.mxu0 0
        %9831 = vmatpush.bf16.msra.mxu0 0
        %9832 = vmatpush.bf16.msra.mxu0 0
        %9833 = vmatpush.bf16.msra.mxu0 %v9503
        %9834 = vmatpush.bf16.msra.mxu0 %v9501
        %9835 = vmatpush.bf16.msra.mxu0 %v9499
        %9836 = vmatpush.bf16.msra.mxu0 %v9497
        %9837 = vmatpush.bf16.msra.mxu0 %v9495
        %9838 = vmatmul.bf16.gmra.mxu0 %v8127
        %v9839 = vpop.f32.mrf.mxu0
        %v9840 = vadd.f32 %v9812, %v9839
        %v9841 = vpop.f32.mrf.mxu0
        %v9842 = vadd.f32 %v9814, %v9841
        %9843 = vmatmul.bf16.gmra.mxu0 %v8130
        %v9844 = vpop.f32.mrf.mxu0
        %v9845 = vadd.f32 %v9817, %v9844
        %v9846 = vpop.f32.mrf.mxu0
        %v9847 = vadd.f32 %v9819, %v9846
        %9848 = vmatmul.bf16.gmra.mxu0 %v8133
        %v9849 = vpop.f32.mrf.mxu0
        %v9850 = vadd.f32 %v9822, %v9849
        %v9851 = vpop.f32.mrf.mxu0
        %v9852 = vadd.f32 %v9824, %v9851
        %9853 = vmatmul.bf16.gmra.mxu0 %v8136
        %v9854 = vpop.f32.mrf.mxu0
        %v9855 = vadd.f32 %v9827, %v9854
        %v9856 = vpop.f32.mrf.mxu0
        %9857 = vdwg.mxu0
        %v9872 = vrot.slane %v8975, 1
        %v9873 = vrot.slane %v8977, 1
        %v9874 = vsel %vm2003, %v9872, %v9873
        %v9875 = vrot.slane %v9115, 1
        %v9876 = vrot.slane %v9117, 1
        %v9877 = vsel %vm2003, %v9875, %v9876
        %v9878 = vrot.slane %v8980, 1
        %v9879 = vsel %vm2003, %v9873, %v9878
        %v9880 = vrot.slane %v9120, 1
        %v9881 = vsel %vm2003, %v9876, %v9880
        %v9882 = vrot.slane %v8982, 1
        %v9883 = vsel %vm2003, %v9878, %v9882
        %v9884 = vrot.slane %v9122, 1
        %v9885 = vsel %vm2003, %v9880, %v9884
        %v9886 = vrot.slane %v8985, 1
        %v9887 = vsel %vm2003, %v9882, %v9886
        %v9888 = vrot.slane %v9125, 1
        %v9889 = vsel %vm2003, %v9884, %v9888
        %v9890 = vrot.slane %v8987, 1
        %v9891 = vsel %vm2003, %v9886, %v9890
        %v9892 = vrot.slane %v9127, 1
        %v9893 = vsel %vm2003, %v9888, %v9892
        %v9894 = vrot.slane %v8990, 1
        %v9895 = vsel %vm2003, %v9890, %v9894
        %v9896 = vrot.slane %v9130, 1
        %v9897 = vsel %vm2003, %v9892, %v9896
        %v9910 = vadd.f32 %v8256, %v9874
        %v9911 = vadd.f32 %v8391, %v9877
        %v9912 = vadd.f32 %v8258, %v9879
        %v9913 = vadd.f32 %v8393, %v9881
        %v9914 = vadd.f32 %v8261, %v9883
        %v9915 = vadd.f32 %v8396, %v9885
        %v9916 = vadd.f32 %v8263, %v9887
        %v9917 = vadd.f32 %v8398, %v9889
        %v9918 = vadd.f32 %v8266, %v9891
        %v9919 = vadd.f32 %v8401, %v9893
        %v9920 = vadd.f32 %v8268, %v9895
        %v9921 = vadd.f32 %v8403, %v9897
        %v9936 = vrot.slane %v9700, 2
        %v9937 = vrot.slane %v9702, 2
        %v9938 = vsel %vm2038, %v9936, %v9937
        %v9939 = vrot.slane %v9840, 2
        %v9940 = vrot.slane %v9842, 2
        %v9941 = vsel %vm2038, %v9939, %v9940
        %v9942 = vrot.slane %v9705, 2
        %v9943 = vsel %vm2038, %v9937, %v9942
        %v9944 = vrot.slane %v9845, 2
        %v9945 = vsel %vm2038, %v9940, %v9944
        %v9946 = vrot.slane %v9707, 2
        %v9947 = vsel %vm2038, %v9942, %v9946
        %v9948 = vrot.slane %v9847, 2
        %v9949 = vsel %vm2038, %v9944, %v9948
        %v9950 = vrot.slane %v9710, 2
        %v9951 = vsel %vm2038, %v9946, %v9950
        %v9952 = vrot.slane %v9850, 2
        %v9953 = vsel %vm2038, %v9948, %v9952
        %v9954 = vrot.slane %v9712, 2
        %v9955 = vsel %vm2038, %v9950, %v9954
        %v9956 = vrot.slane %v9852, 2
        %v9957 = vsel %vm2038, %v9952, %v9956
        %v9958 = vrot.slane %v9715, 2
        %v9959 = vsel %vm2038, %v9954, %v9958
        %v9960 = vrot.slane %v9855, 2
        %v9961 = vsel %vm2038, %v9956, %v9960
        %v9974 = vadd.f32 %v9910, %v9938
        %v9975 = vadd.f32 %v9911, %v9941
        %v9976 = vadd.f32 %v9912, %v9943
        %v9977 = vadd.f32 %v9913, %v9945
        %v9978 = vadd.f32 %v9914, %v9947
        %v9979 = vadd.f32 %v9915, %v9949
        %v9980 = vadd.f32 %v9916, %v9951
        %v9981 = vadd.f32 %v9917, %v9953
        %v9982 = vadd.f32 %v9918, %v9955
        %v9983 = vadd.f32 %v9919, %v9957
        %v9984 = vadd.f32 %v9920, %v9959
        %v9985 = vadd.f32 %v9921, %v9961
        %v9986 = vld [vmem:[#allocation21] sm:$0x3]
        %v9988 = vperm.slane %v9986, 0
        %v9989 = vperm.slane %v9986, 1
        %v9992 = vadd.f32 %v9974, %v9988
        %v9993 = vadd.f32 %v9975, %v9989
        %v9994 = vadd.f32 %v9976, %v9988
        %v9995 = vadd.f32 %v9977, %v9989
        %v9996 = vadd.f32 %v9978, %v9988
        %v9997 = vadd.f32 %v9979, %v9989
        %v9998 = vadd.f32 %v9980, %v9988
        %v9999 = vadd.f32 %v9981, %v9989
        %v10000 = vadd.f32 %v9982, %v9988
        %v10001 = vadd.f32 %v9983, %v9989
        %v10002 = vadd.f32 %v9984, %v9988
        %v10003 = vadd.f32 %v9985, %v9989
        %v10004 = vmax.f32 %v9992, 0.0
        %v10005 = vmax.f32 %v9993, 0.0
        %v10006 = vmax.f32 %v9994, 0.0
        %v10007 = vmax.f32 %v9995, 0.0
        %v10008 = vmax.f32 %v9996, 0.0
        %v10009 = vmax.f32 %v9997, 0.0
        %v10010 = vmax.f32 %v9998, 0.0
        %v10011 = vmax.f32 %v9999, 0.0
        %v10012 = vmax.f32 %v10000, 0.0
        %v10013 = vmax.f32 %v10001, 0.0
        %v10014 = vmax.f32 %v10002, 0.0
        %v10015 = vmax.f32 %v10003, 0.0
        %10016 = vst [vmem:[#allocation5] sm:$0xff] 0.0
        %10017 = vst.msk [vmem:[#allocation5 + $0x8] sm:$0xff] %vm7462, 0.0
        %10018 = vst [vmem:[#allocation5 + $0x10] sm:$0xff] 0.0
        %10019 = vst.msk [vmem:[#allocation5 + $0x18] sm:$0xff] %vm7462, 0.0
        %10020 = vst [vmem:[#allocation5 + $0x20] sm:$0xff] 0.0
        %10021 = vst.msk [vmem:[#allocation5 + $0x28] sm:$0xff] %vm7462, 0.0
        %10022 = vst [vmem:[#allocation5 + $0x30] sm:$0xff] 0.0
        %10023 = vst.msk [vmem:[#allocation5 + $0x38] sm:$0xff] %vm7462, 0.0
        %10024 = vst [vmem:[#allocation5 + $0x40] sm:$0xff] 0.0
        %10025 = vst.msk [vmem:[#allocation5 + $0x48] sm:$0xff] %vm7462, 0.0
        %10026 = vst [vmem:[#allocation5 + $0x50] sm:$0xff] 0.0
        %10027 = vst.msk [vmem:[#allocation5 + $0x58] sm:$0xff] %vm7462, 0.0
        %10028 = vst [vmem:[#allocation5 + $0x60] sm:$0xff] 0.0
        %10029 = vst.msk [vmem:[#allocation5 + $0x68] sm:$0xff] %vm7462, 0.0
        %10030 = vst [vmem:[#allocation5 + $0x70] sm:$0x3] 0.0
        %10031 = vst.msk [vmem:[#allocation5 + $0x78] sm:$0x3] %vm7493, 0.0
        %v10044 = vrot.slane %v10004, 3
        %v10045 = vrot.slane %v10005, 3
        %v10046 = vrot.slane %v10006, 3
        %v10047 = vsel %vm2101, %v10044, %v10046
        %v10048 = vrot.slane %v10007, 3
        %v10049 = vsel %vm2101, %v10045, %v10048
        %v10050 = vrot.slane %v10008, 3
        %v10051 = vsel %vm2101, %v10046, %v10050
        %v10052 = vrot.slane %v10009, 3
        %v10053 = vsel %vm2101, %v10048, %v10052
        %v10054 = vrot.slane %v10010, 3
        %v10055 = vsel %vm2101, %v10050, %v10054
        %v10056 = vrot.slane %v10011, 3
        %v10057 = vsel %vm2101, %v10052, %v10056
        %v10058 = vrot.slane %v10012, 3
        %v10059 = vsel %vm2101, %v10054, %v10058
        %v10060 = vrot.slane %v10013, 3
        %v10061 = vsel %vm2101, %v10056, %v10060
        %v10062 = vrot.slane %v10014, 3
        %v10063 = vsel %vm2101, %v10058, %v10062
        %v10064 = vrot.slane %v10015, 3
        %v10065 = vsel %vm2101, %v10060, %v10064
        %10080 = vst [vmem:[#allocation5] sm:$0xe0] %v10044
        %10081 = vst.msk [vmem:[#allocation5 + $0x8] sm:$0xe0] %vm7599, %v10045
        %10082 = vst [vmem:[#allocation5 + $0x10] sm:$0xff] %v10047
        %10083 = vst.msk [vmem:[#allocation5 + $0x18] sm:$0xff] %vm7462, %v10049
        %10084 = vst [vmem:[#allocation5 + $0x20] sm:$0xff] %v10051
        %10085 = vst.msk [vmem:[#allocation5 + $0x28] sm:$0xff] %vm7462, %v10053
        %10086 = vst [vmem:[#allocation5 + $0x30] sm:$0xff] %v10055
        %10087 = vst.msk [vmem:[#allocation5 + $0x38] sm:$0xff] %vm7462, %v10057
        %10088 = vst [vmem:[#allocation5 + $0x40] sm:$0xff] %v10059
        %10089 = vst.msk [vmem:[#allocation5 + $0x48] sm:$0xff] %vm7462, %v10061
        %10090 = vst [vmem:[#allocation5 + $0x50] sm:$0xff] %v10063
        %10091 = vst.msk [vmem:[#allocation5 + $0x58] sm:$0xff] %vm7462, %v10065
        %10092 = vst [vmem:[#allocation5 + $0x60] sm:$0x1f] %v10062
        %10093 = vst.msk [vmem:[#allocation5 + $0x68] sm:$0x1f] %vm7625, %v10064
        %v10094 = vld [vmem:[#allocation5] sm:$0xff]
        %v10095 = vld [vmem:[#allocation5 + $0x8] sm:$0xff]
        %v10096 = vld [vmem:[#allocation5 + $0x10] sm:$0xff]
        %v10097 = vld [vmem:[#allocation5 + $0x18] sm:$0xff]
        %v10098 = vld [vmem:[#allocation5 + $0x20] sm:$0xff]
        %v10099 = vld [vmem:[#allocation5 + $0x28] sm:$0xff]
        %v10100 = vld [vmem:[#allocation5 + $0x30] sm:$0xff]
        %v10101 = vld [vmem:[#allocation5 + $0x38] sm:$0xff]
        %v10102 = vld [vmem:[#allocation5 + $0x40] sm:$0xff]
        %v10103 = vld [vmem:[#allocation5 + $0x48] sm:$0xff]
        %v10104 = vld [vmem:[#allocation5 + $0x50] sm:$0xff]
        %v10105 = vld [vmem:[#allocation5 + $0x58] sm:$0xff]
        %v10106 = vld [vmem:[#allocation5 + $0x60] sm:$0xff]
        %v10107 = vld [vmem:[#allocation5 + $0x68] sm:$0xff]
        %v10108 = vld [vmem:[#allocation5 + $0x70] sm:$0x3]
        %v10109 = vld [vmem:[#allocation5 + $0x78] sm:$0x3]
        %v10110 = vpack.c.bf16 %v10096, %v10094
        %v10111 = vpack.c.bf16 %v10097, %v10095
        %v10112 = vpack.c.bf16 %v10100, %v10098
        %v10113 = vpack.c.bf16 %v10101, %v10099
        %v10114 = vpack.c.bf16 %v10104, %v10102
        %v10115 = vpack.c.bf16 %v10105, %v10103
        %v10116 = vpack.c.bf16 %v10108, %v10106
        %v10117 = vpack.c.bf16 %v10109, %v10107
        %v10118 = vld [vmem:[#allocation14] sm:$0xf]
        %v10119 = vld [vmem:[#allocation14 + $0x4] sm:$0xf]
        %v10120 = vld [vmem:[#allocation14 + $0x8] sm:$0xf]
        %v10121 = vld [vmem:[#allocation14 + $0xc] sm:$0xf]
        %v10122 = vld [vmem:[#allocation14 + $0x10] sm:$0xf]
        %v10123 = vld [vmem:[#allocation14 + $0x14] sm:$0xf]
        %v10124 = vld [vmem:[#allocation14 + $0x18] sm:$0xf]
        %v10125 = vld [vmem:[#allocation14 + $0x1c] sm:$0xf]
        %v10126 = vld [vmem:[#allocation14 + $0x20] sm:$0xf]
        %v10127 = vld [vmem:[#allocation14 + $0x24] sm:$0xf]
        %v10128 = vld [vmem:[#allocation14 + $0x28] sm:$0xf]
        %v10129 = vld [vmem:[#allocation14 + $0x2c] sm:$0xf]
        %v10130 = vld [vmem:[#allocation14 + $0x30] sm:$0xf]
        %v10131 = vld [vmem:[#allocation14 + $0x34] sm:$0xf]
        %v10132 = vld [vmem:[#allocation14 + $0x38] sm:$0xf]
        %v10133 = vld [vmem:[#allocation14 + $0x3c] sm:$0xf]
        %v10134 = vld [vmem:[#allocation14 + $0x40] sm:$0xf]
        %v10135 = vld [vmem:[#allocation14 + $0x44] sm:$0xf]
        %v10136 = vld [vmem:[#allocation14 + $0x48] sm:$0xf]
        %v10137 = vld [vmem:[#allocation14 + $0x4c] sm:$0xf]
        %v10138 = vld [vmem:[#allocation14 + $0x50] sm:$0xf]
        %v10139 = vld [vmem:[#allocation14 + $0x54] sm:$0xf]
        %v10140 = vld [vmem:[#allocation14 + $0x58] sm:$0xf]
        %v10141 = vld [vmem:[#allocation14 + $0x5c] sm:$0xf]
        %v10142 = vld [vmem:[#allocation14 + $0x60] sm:$0xf]
        %v10143 = vld [vmem:[#allocation14 + $0x64] sm:$0xf]
        %v10170 = vunpack.c.l.b16 %v10118
        %v10171 = vunpack.c.l.b16 %v10119
        %v10172 = vunpack.c.l.b16 %v10120
        %v10173 = vunpack.c.l.b16 %v10121
        %v10174 = vunpack.c.l.b16 %v10122
        %v10175 = vunpack.c.l.b16 %v10123
        %v10176 = vunpack.c.l.b16 %v10124
        %v10177 = vunpack.c.l.b16 %v10125
        %v10178 = vunpack.c.l.b16 %v10126
        %v10179 = vunpack.c.l.b16 %v10127
        %v10180 = vunpack.c.l.b16 %v10128
        %v10181 = vunpack.c.l.b16 %v10129
        %v10182 = vunpack.c.l.b16 %v10130
        %v10183 = vunpack.c.l.b16 %v10131
        %v10184 = vunpack.c.l.b16 %v10132
        %v10185 = vunpack.c.l.b16 %v10133
        %v10186 = vunpack.c.l.b16 %v10134
        %v10187 = vunpack.c.l.b16 %v10135
        %v10188 = vunpack.c.l.b16 %v10136
        %v10189 = vunpack.c.l.b16 %v10137
        %v10190 = vunpack.c.l.b16 %v10138
        %v10191 = vunpack.c.l.b16 %v10139
        %v10192 = vunpack.c.l.b16 %v10140
        %v10193 = vunpack.c.l.b16 %v10141
        %v10194 = vunpack.c.l.b16 %v10142
        %v10195 = vunpack.c.l.b16 %v10143
        %v10196 = vpack.c.b16 %v10171, %v10170
        %v10197 = vpack.c.b16 %v10173, %v10172
        %v10198 = vpack.c.b16 %v10175, %v10174
        %v10199 = vpack.c.b16 %v10177, %v10176
        %v10200 = vpack.c.b16 %v10179, %v10178
        %v10201 = vpack.c.b16 %v10181, %v10180
        %v10202 = vpack.c.b16 %v10183, %v10182
        %v10203 = vpack.c.b16 %v10185, %v10184
        %v10204 = vpack.c.b16 %v10187, %v10186
        %v10205 = vpack.c.b16 %v10189, %v10188
        %v10206 = vpack.c.b16 %v10191, %v10190
        %v10207 = vpack.c.b16 %v10193, %v10192
        %v10208 = vpack.c.b16 %v10195, %v10194
        %v10223 = vsel %vm7462, %v10111, 0
        %v10226 = vsel %vm7462, %v10113, 0
        %v10229 = vsel %vm7462, %v10115, 0
        %v10232 = vsel %vm7462, %v10117, 0
        %10234 = vmatpush.bf16.msra.mxu0 %v10203
        %10235 = vmatpush.bf16.msra.mxu0 %v10202
        %10236 = vmatpush.bf16.msra.mxu0 %v10201
        %10237 = vmatpush.bf16.msra.mxu0 %v10200
        %10238 = vmatpush.bf16.msra.mxu0 %v10199
        %10239 = vmatpush.bf16.msra.mxu0 %v10198
        %10240 = vmatpush.bf16.msra.mxu0 %v10197
        %10241 = vmatpush.bf16.msra.mxu0 %v10196
        %10242 = vmatmul.bf16.gmra.mxu0 %v10110
        %v10243 = vpop.f32.mrf.mxu0
        %v10244 = vadd.f32 0.0, %v10243
        %v10245 = vpop.f32.mrf.mxu0
        %v10246 = vadd.f32 0.0, %v10245
        %10247 = vmatmul.bf16.gmra.mxu0 %v10112
        %v10248 = vpop.f32.mrf.mxu0
        %v10249 = vadd.f32 0.0, %v10248
        %v10250 = vpop.f32.mrf.mxu0
        %v10251 = vadd.f32 0.0, %v10250
        %10252 = vmatmul.bf16.gmra.mxu0 %v10114
        %v10253 = vpop.f32.mrf.mxu0
        %v10254 = vadd.f32 0.0, %v10253
        %v10255 = vpop.f32.mrf.mxu0
        %v10256 = vadd.f32 0.0, %v10255
        %10257 = vmatmul.bf16.gmra.mxu0 %v10116
        %v10258 = vpop.f32.mrf.mxu0
        %v10259 = vadd.f32 0.0, %v10258
        %v10260 = vpop.f32.mrf.mxu0
        %10261 = vdwg.mxu0
        %10262 = vmatpush.bf16.msra.mxu0 0
        %10263 = vmatpush.bf16.msra.mxu0 0
        %10264 = vmatpush.bf16.msra.mxu0 0
        %10265 = vmatpush.bf16.msra.mxu0 %v10208
        %10266 = vmatpush.bf16.msra.mxu0 %v10207
        %10267 = vmatpush.bf16.msra.mxu0 %v10206
        %10268 = vmatpush.bf16.msra.mxu0 %v10205
        %10269 = vmatpush.bf16.msra.mxu0 %v10204
        %10270 = vmatmul.bf16.gmra.mxu0 %v10223
        %v10271 = vpop.f32.mrf.mxu0
        %v10272 = vadd.f32 %v10244, %v10271
        %v10273 = vpop.f32.mrf.mxu0
        %v10274 = vadd.f32 %v10246, %v10273
        %10275 = vmatmul.bf16.gmra.mxu0 %v10226
        %v10276 = vpop.f32.mrf.mxu0
        %v10277 = vadd.f32 %v10249, %v10276
        %v10278 = vpop.f32.mrf.mxu0
        %v10279 = vadd.f32 %v10251, %v10278
        %10280 = vmatmul.bf16.gmra.mxu0 %v10229
        %v10281 = vpop.f32.mrf.mxu0
        %v10282 = vadd.f32 %v10254, %v10281
        %v10283 = vpop.f32.mrf.mxu0
        %v10284 = vadd.f32 %v10256, %v10283
        %10285 = vmatmul.bf16.gmra.mxu0 %v10232
        %v10286 = vpop.f32.mrf.mxu0
        %v10287 = vadd.f32 %v10259, %v10286
        %v10288 = vpop.f32.mrf.mxu0
        %10289 = vdwg.mxu0
        %s10290 = scalar_lea.vmem [#allocation14], 104
        %v10291 = vld [vmem:[%s10290] sm:$0xf]
        %v10292 = vld [vmem:[%s10290 + $0x4] sm:$0xf]
        %v10293 = vld [vmem:[%s10290 + $0x8] sm:$0xf]
        %v10294 = vld [vmem:[%s10290 + $0xc] sm:$0xf]
        %v10295 = vld [vmem:[%s10290 + $0x10] sm:$0xf]
        %v10296 = vld [vmem:[%s10290 + $0x14] sm:$0xf]
        %v10297 = vld [vmem:[%s10290 + $0x18] sm:$0xf]
        %v10298 = vld [vmem:[%s10290 + $0x1c] sm:$0xf]
        %v10299 = vld [vmem:[%s10290 + $0x20] sm:$0xf]
        %v10300 = vld [vmem:[%s10290 + $0x24] sm:$0xf]
        %v10301 = vld [vmem:[%s10290 + $0x28] sm:$0xf]
        %v10302 = vld [vmem:[%s10290 + $0x2c] sm:$0xf]
        %v10303 = vld [vmem:[%s10290 + $0x30] sm:$0xf]
        %v10304 = vld [vmem:[%s10290 + $0x34] sm:$0xf]
        %v10305 = vld [vmem:[%s10290 + $0x38] sm:$0xf]
        %v10306 = vld [vmem:[%s10290 + $0x3c] sm:$0xf]
        %v10307 = vld [vmem:[%s10290 + $0x40] sm:$0xf]
        %v10308 = vld [vmem:[%s10290 + $0x44] sm:$0xf]
        %v10309 = vld [vmem:[%s10290 + $0x48] sm:$0xf]
        %v10310 = vld [vmem:[%s10290 + $0x4c] sm:$0xf]
        %v10311 = vld [vmem:[%s10290 + $0x50] sm:$0xf]
        %v10312 = vld [vmem:[%s10290 + $0x54] sm:$0xf]
        %v10313 = vld [vmem:[%s10290 + $0x58] sm:$0xf]
        %v10314 = vld [vmem:[%s10290 + $0x5c] sm:$0xf]
        %v10315 = vld [vmem:[%s10290 + $0x60] sm:$0xf]
        %v10316 = vld [vmem:[%s10290 + $0x64] sm:$0xf]
        %v10343 = vunpack.c.l.b16 %v10291
        %v10344 = vunpack.c.l.b16 %v10292
        %v10345 = vunpack.c.l.b16 %v10293
        %v10346 = vunpack.c.l.b16 %v10294
        %v10347 = vunpack.c.l.b16 %v10295
        %v10348 = vunpack.c.l.b16 %v10296
        %v10349 = vunpack.c.l.b16 %v10297
        %v10350 = vunpack.c.l.b16 %v10298
        %v10351 = vunpack.c.l.b16 %v10299
        %v10352 = vunpack.c.l.b16 %v10300
        %v10353 = vunpack.c.l.b16 %v10301
        %v10354 = vunpack.c.l.b16 %v10302
        %v10355 = vunpack.c.l.b16 %v10303
        %v10356 = vunpack.c.l.b16 %v10304
        %v10357 = vunpack.c.l.b16 %v10305
        %v10358 = vunpack.c.l.b16 %v10306
        %v10359 = vunpack.c.l.b16 %v10307
        %v10360 = vunpack.c.l.b16 %v10308
        %v10361 = vunpack.c.l.b16 %v10309
        %v10362 = vunpack.c.l.b16 %v10310
        %v10363 = vunpack.c.l.b16 %v10311
        %v10364 = vunpack.c.l.b16 %v10312
        %v10365 = vunpack.c.l.b16 %v10313
        %v10366 = vunpack.c.l.b16 %v10314
        %v10367 = vunpack.c.l.b16 %v10315
        %v10368 = vunpack.c.l.b16 %v10316
        %v10369 = vpack.c.b16 %v10344, %v10343
        %v10370 = vpack.c.b16 %v10346, %v10345
        %v10371 = vpack.c.b16 %v10348, %v10347
        %v10372 = vpack.c.b16 %v10350, %v10349
        %v10373 = vpack.c.b16 %v10352, %v10351
        %v10374 = vpack.c.b16 %v10354, %v10353
        %v10375 = vpack.c.b16 %v10356, %v10355
        %v10376 = vpack.c.b16 %v10358, %v10357
        %v10377 = vpack.c.b16 %v10360, %v10359
        %v10378 = vpack.c.b16 %v10362, %v10361
        %v10379 = vpack.c.b16 %v10364, %v10363
        %v10380 = vpack.c.b16 %v10366, %v10365
        %v10381 = vpack.c.b16 %v10368, %v10367
        %10395 = vmatpush.bf16.msra.mxu0 %v10376
        %10396 = vmatpush.bf16.msra.mxu0 %v10375
        %10397 = vmatpush.bf16.msra.mxu0 %v10374
        %10398 = vmatpush.bf16.msra.mxu0 %v10373
        %10399 = vmatpush.bf16.msra.mxu0 %v10372
        %10400 = vmatpush.bf16.msra.mxu0 %v10371
        %10401 = vmatpush.bf16.msra.mxu0 %v10370
        %10402 = vmatpush.bf16.msra.mxu0 %v10369
        %10403 = vmatmul.bf16.gmra.mxu0 %v10110
        %v10404 = vpop.f32.mrf.mxu0
        %v10405 = vadd.f32 0.0, %v10404
        %v10406 = vpop.f32.mrf.mxu0
        %v10407 = vadd.f32 0.0, %v10406
        %10408 = vmatmul.bf16.gmra.mxu0 %v10112
        %v10409 = vpop.f32.mrf.mxu0
        %v10410 = vadd.f32 0.0, %v10409
        %v10411 = vpop.f32.mrf.mxu0
        %v10412 = vadd.f32 0.0, %v10411
        %10413 = vmatmul.bf16.gmra.mxu0 %v10114
        %v10414 = vpop.f32.mrf.mxu0
        %v10415 = vadd.f32 0.0, %v10414
        %v10416 = vpop.f32.mrf.mxu0
        %v10417 = vadd.f32 0.0, %v10416
        %10418 = vmatmul.bf16.gmra.mxu0 %v10116
        %v10419 = vpop.f32.mrf.mxu0
        %v10420 = vadd.f32 0.0, %v10419
        %v10421 = vpop.f32.mrf.mxu0
        %v10422 = vadd.f32 0.0, %v10421
        %10423 = vdwg.mxu0
        %10424 = vmatpush.bf16.msra.mxu0 0
        %10425 = vmatpush.bf16.msra.mxu0 0
        %10426 = vmatpush.bf16.msra.mxu0 0
        %10427 = vmatpush.bf16.msra.mxu0 %v10381
        %10428 = vmatpush.bf16.msra.mxu0 %v10380
        %10429 = vmatpush.bf16.msra.mxu0 %v10379
        %10430 = vmatpush.bf16.msra.mxu0 %v10378
        %10431 = vmatpush.bf16.msra.mxu0 %v10377
        %10432 = vmatmul.bf16.gmra.mxu0 %v10223
        %v10433 = vpop.f32.mrf.mxu0
        %v10434 = vadd.f32 %v10405, %v10433
        %v10435 = vpop.f32.mrf.mxu0
        %v10436 = vadd.f32 %v10407, %v10435
        %10437 = vmatmul.bf16.gmra.mxu0 %v10226
        %v10438 = vpop.f32.mrf.mxu0
        %v10439 = vadd.f32 %v10410, %v10438
        %v10440 = vpop.f32.mrf.mxu0
        %v10441 = vadd.f32 %v10412, %v10440
        %10442 = vmatmul.bf16.gmra.mxu0 %v10229
        %v10443 = vpop.f32.mrf.mxu0
        %v10444 = vadd.f32 %v10415, %v10443
        %v10445 = vpop.f32.mrf.mxu0
        %v10446 = vadd.f32 %v10417, %v10445
        %10447 = vmatmul.bf16.gmra.mxu0 %v10232
        %v10448 = vpop.f32.mrf.mxu0
        %v10449 = vadd.f32 %v10420, %v10448
        %v10450 = vpop.f32.mrf.mxu0
        %v10451 = vadd.f32 %v10422, %v10450
        %10452 = vdwg.mxu0
        %s10453 = scalar_lea.vmem [#allocation14], 208
        %v10454 = vld [vmem:[%s10453] sm:$0xf]
        %v10455 = vld [vmem:[%s10453 + $0x4] sm:$0xf]
        %v10456 = vld [vmem:[%s10453 + $0x8] sm:$0xf]
        %v10457 = vld [vmem:[%s10453 + $0xc] sm:$0xf]
        %v10458 = vld [vmem:[%s10453 + $0x10] sm:$0xf]
        %v10459 = vld [vmem:[%s10453 + $0x14] sm:$0xf]
        %v10460 = vld [vmem:[%s10453 + $0x18] sm:$0xf]
        %v10461 = vld [vmem:[%s10453 + $0x1c] sm:$0xf]
        %v10462 = vld [vmem:[%s10453 + $0x20] sm:$0xf]
        %v10463 = vld [vmem:[%s10453 + $0x24] sm:$0xf]
        %v10464 = vld [vmem:[%s10453 + $0x28] sm:$0xf]
        %v10465 = vld [vmem:[%s10453 + $0x2c] sm:$0xf]
        %v10466 = vld [vmem:[%s10453 + $0x30] sm:$0xf]
        %v10467 = vld [vmem:[%s10453 + $0x34] sm:$0xf]
        %v10468 = vld [vmem:[%s10453 + $0x38] sm:$0xf]
        %v10469 = vld [vmem:[%s10453 + $0x3c] sm:$0xf]
        %v10470 = vld [vmem:[%s10453 + $0x40] sm:$0xf]
        %v10471 = vld [vmem:[%s10453 + $0x44] sm:$0xf]
        %v10472 = vld [vmem:[%s10453 + $0x48] sm:$0xf]
        %v10473 = vld [vmem:[%s10453 + $0x4c] sm:$0xf]
        %v10474 = vld [vmem:[%s10453 + $0x50] sm:$0xf]
        %v10475 = vld [vmem:[%s10453 + $0x54] sm:$0xf]
        %v10476 = vld [vmem:[%s10453 + $0x58] sm:$0xf]
        %v10477 = vld [vmem:[%s10453 + $0x5c] sm:$0xf]
        %v10478 = vld [vmem:[%s10453 + $0x60] sm:$0xf]
        %v10479 = vld [vmem:[%s10453 + $0x64] sm:$0xf]
        %v10506 = vunpack.c.l.b16 %v10454
        %v10507 = vunpack.c.l.b16 %v10455
        %v10508 = vunpack.c.l.b16 %v10456
        %v10509 = vunpack.c.l.b16 %v10457
        %v10510 = vunpack.c.l.b16 %v10458
        %v10511 = vunpack.c.l.b16 %v10459
        %v10512 = vunpack.c.l.b16 %v10460
        %v10513 = vunpack.c.l.b16 %v10461
        %v10514 = vunpack.c.l.b16 %v10462
        %v10515 = vunpack.c.l.b16 %v10463
        %v10516 = vunpack.c.l.b16 %v10464
        %v10517 = vunpack.c.l.b16 %v10465
        %v10518 = vunpack.c.l.b16 %v10466
        %v10519 = vunpack.c.l.b16 %v10467
        %v10520 = vunpack.c.l.b16 %v10468
        %v10521 = vunpack.c.l.b16 %v10469
        %v10522 = vunpack.c.l.b16 %v10470
        %v10523 = vunpack.c.l.b16 %v10471
        %v10524 = vunpack.c.l.b16 %v10472
        %v10525 = vunpack.c.l.b16 %v10473
        %v10526 = vunpack.c.l.b16 %v10474
        %v10527 = vunpack.c.l.b16 %v10475
        %v10528 = vunpack.c.l.b16 %v10476
        %v10529 = vunpack.c.l.b16 %v10477
        %v10530 = vunpack.c.l.b16 %v10478
        %v10531 = vunpack.c.l.b16 %v10479
        %v10532 = vpack.c.b16 %v10507, %v10506
        %v10533 = vpack.c.b16 %v10509, %v10508
        %v10534 = vpack.c.b16 %v10511, %v10510
        %v10535 = vpack.c.b16 %v10513, %v10512
        %v10536 = vpack.c.b16 %v10515, %v10514
        %v10537 = vpack.c.b16 %v10517, %v10516
        %v10538 = vpack.c.b16 %v10519, %v10518
        %v10539 = vpack.c.b16 %v10521, %v10520
        %v10540 = vpack.c.b16 %v10523, %v10522
        %v10541 = vpack.c.b16 %v10525, %v10524
        %v10542 = vpack.c.b16 %v10527, %v10526
        %v10543 = vpack.c.b16 %v10529, %v10528
        %v10544 = vpack.c.b16 %v10531, %v10530
        %10558 = vmatpush.bf16.msra.mxu0 %v10539
        %10559 = vmatpush.bf16.msra.mxu0 %v10538
        %10560 = vmatpush.bf16.msra.mxu0 %v10537
        %10561 = vmatpush.bf16.msra.mxu0 %v10536
        %10562 = vmatpush.bf16.msra.mxu0 %v10535
        %10563 = vmatpush.bf16.msra.mxu0 %v10534
        %10564 = vmatpush.bf16.msra.mxu0 %v10533
        %10565 = vmatpush.bf16.msra.mxu0 %v10532
        %10566 = vmatmul.bf16.gmra.mxu0 %v10110
        %v10567 = vpop.f32.mrf.mxu0
        %v10568 = vadd.f32 0.0, %v10567
        %v10569 = vpop.f32.mrf.mxu0
        %v10570 = vadd.f32 0.0, %v10569
        %10571 = vmatmul.bf16.gmra.mxu0 %v10112
        %v10572 = vpop.f32.mrf.mxu0
        %v10573 = vadd.f32 0.0, %v10572
        %v10574 = vpop.f32.mrf.mxu0
        %v10575 = vadd.f32 0.0, %v10574
        %10576 = vmatmul.bf16.gmra.mxu0 %v10114
        %v10577 = vpop.f32.mrf.mxu0
        %v10578 = vadd.f32 0.0, %v10577
        %v10579 = vpop.f32.mrf.mxu0
        %v10580 = vadd.f32 0.0, %v10579
        %10581 = vmatmul.bf16.gmra.mxu0 %v10116
        %v10582 = vpop.f32.mrf.mxu0
        %v10583 = vadd.f32 0.0, %v10582
        %v10584 = vpop.f32.mrf.mxu0
        %v10585 = vadd.f32 0.0, %v10584
        %10586 = vdwg.mxu0
        %10587 = vmatpush.bf16.msra.mxu0 0
        %10588 = vmatpush.bf16.msra.mxu0 0
        %10589 = vmatpush.bf16.msra.mxu0 0
        %10590 = vmatpush.bf16.msra.mxu0 %v10544
        %10591 = vmatpush.bf16.msra.mxu0 %v10543
        %10592 = vmatpush.bf16.msra.mxu0 %v10542
        %10593 = vmatpush.bf16.msra.mxu0 %v10541
        %10594 = vmatpush.bf16.msra.mxu0 %v10540
        %10595 = vmatmul.bf16.gmra.mxu0 %v10223
        %v10596 = vpop.f32.mrf.mxu0
        %v10597 = vadd.f32 %v10568, %v10596
        %v10598 = vpop.f32.mrf.mxu0
        %v10599 = vadd.f32 %v10570, %v10598
        %10600 = vmatmul.bf16.gmra.mxu0 %v10226
        %v10601 = vpop.f32.mrf.mxu0
        %v10602 = vadd.f32 %v10573, %v10601
        %v10603 = vpop.f32.mrf.mxu0
        %v10604 = vadd.f32 %v10575, %v10603
        %10605 = vmatmul.bf16.gmra.mxu0 %v10229
        %v10606 = vpop.f32.mrf.mxu0
        %v10607 = vadd.f32 %v10578, %v10606
        %v10608 = vpop.f32.mrf.mxu0
        %v10609 = vadd.f32 %v10580, %v10608
        %10610 = vmatmul.bf16.gmra.mxu0 %v10232
        %v10611 = vpop.f32.mrf.mxu0
        %v10612 = vadd.f32 %v10583, %v10611
        %v10613 = vpop.f32.mrf.mxu0
        %v10614 = vadd.f32 %v10585, %v10613
        %10615 = vdwg.mxu0
        %v10624 = vrot.slane %v10434, 1
        %v10625 = vrot.slane %v10436, 1
        %v10626 = vsel %vm2003, %v10624, %v10625
        %v10627 = vrot.slane %v10439, 1
        %v10628 = vsel %vm2003, %v10625, %v10627
        %v10629 = vrot.slane %v10441, 1
        %v10630 = vsel %vm2003, %v10627, %v10629
        %v10631 = vrot.slane %v10444, 1
        %v10632 = vsel %vm2003, %v10629, %v10631
        %v10633 = vrot.slane %v10446, 1
        %v10634 = vsel %vm2003, %v10631, %v10633
        %v10635 = vrot.slane %v10449, 1
        %v10636 = vsel %vm2003, %v10633, %v10635
        %v10637 = vrot.slane %v10451, 1
        %v10638 = vsel %vm2003, %v10635, %v10637
        %v10646 = vadd.f32 %v10272, %v10626
        %v10647 = vadd.f32 %v10274, %v10628
        %v10648 = vadd.f32 %v10277, %v10630
        %v10649 = vadd.f32 %v10279, %v10632
        %v10650 = vadd.f32 %v10282, %v10634
        %v10651 = vadd.f32 %v10284, %v10636
        %v10652 = vadd.f32 %v10287, %v10638
        %v10661 = vrot.slane %v10597, 2
        %v10662 = vrot.slane %v10599, 2
        %v10663 = vsel %vm2038, %v10661, %v10662
        %v10664 = vrot.slane %v10602, 2
        %v10665 = vsel %vm2038, %v10662, %v10664
        %v10666 = vrot.slane %v10604, 2
        %v10667 = vsel %vm2038, %v10664, %v10666
        %v10668 = vrot.slane %v10607, 2
        %v10669 = vsel %vm2038, %v10666, %v10668
        %v10670 = vrot.slane %v10609, 2
        %v10671 = vsel %vm2038, %v10668, %v10670
        %v10672 = vrot.slane %v10612, 2
        %v10673 = vsel %vm2038, %v10670, %v10672
        %v10674 = vrot.slane %v10614, 2
        %v10675 = vsel %vm2038, %v10672, %v10674
        %v10683 = vadd.f32 %v10646, %v10663
        %v10684 = vadd.f32 %v10647, %v10665
        %v10685 = vadd.f32 %v10648, %v10667
        %v10686 = vadd.f32 %v10649, %v10669
        %v10687 = vadd.f32 %v10650, %v10671
        %v10688 = vadd.f32 %v10651, %v10673
        %v10689 = vadd.f32 %v10652, %v10675
        %v10690 = vld [vmem:[#allocation23] sm:$0x1]
        %v10692 = vperm.slane %v10690, 0
        %v10694 = vadd.f32 %v10683, %v10692
        %v10695 = vadd.f32 %v10684, %v10692
        %v10696 = vadd.f32 %v10685, %v10692
        %v10697 = vadd.f32 %v10686, %v10692
        %v10698 = vadd.f32 %v10687, %v10692
        %v10699 = vadd.f32 %v10688, %v10692
        %v10700 = vadd.f32 %v10689, %v10692
        %v10701 = vmax.f32 %v10694, 0.0
        %v10702 = vmax.f32 %v10695, 0.0
        %v10703 = vmax.f32 %v10696, 0.0
        %v10704 = vmax.f32 %v10697, 0.0
        %v10705 = vmax.f32 %v10698, 0.0
        %v10706 = vmax.f32 %v10699, 0.0
        %v10707 = vmax.f32 %v10700, 0.0
        %vm10708 = vcmask 490496
        %10709 = vst.msk [vmem:[#allocation6] sm:$0xff] %vm10708, 0.0
        %10710 = vst.msk [vmem:[#allocation6 + $0x8] sm:$0xff] %vm10708, 0.0
        %10711 = vst.msk [vmem:[#allocation6 + $0x10] sm:$0xff] %vm10708, 0.0
        %10712 = vst.msk [vmem:[#allocation6 + $0x18] sm:$0xff] %vm10708, 0.0
        %10713 = vst.msk [vmem:[#allocation6 + $0x20] sm:$0xff] %vm10708, 0.0
        %10714 = vst.msk [vmem:[#allocation6 + $0x28] sm:$0xff] %vm10708, 0.0
        %10715 = vst.msk [vmem:[#allocation6 + $0x30] sm:$0xff] %vm10708, 0.0
        %10716 = vst.msk [vmem:[#allocation6 + $0x38] sm:$0xff] %vm10708, 0.0
        %vm10717 = vcmask 484352
        %10718 = vst.msk [vmem:[#allocation6 + $0x40] sm:$0x3] %vm10717, 0.0
        %10719 = vst.msk [vmem:[#allocation6 + $0x5] sm:$0xff] %vm10708, %v10701
        %10720 = vst.msk [vmem:[#allocation6 + $0xd] sm:$0xff] %vm10708, %v10702
        %10721 = vst.msk [vmem:[#allocation6 + $0x15] sm:$0xff] %vm10708, %v10703
        %10722 = vst.msk [vmem:[#allocation6 + $0x1d] sm:$0xff] %vm10708, %v10704
        %10723 = vst.msk [vmem:[#allocation6 + $0x25] sm:$0xff] %vm10708, %v10705
        %10724 = vst.msk [vmem:[#allocation6 + $0x2d] sm:$0xff] %vm10708, %v10706
        %10725 = vst.msk [vmem:[#allocation6 + $0x35] sm:$0xff] %vm10708, %v10707
        %v10726 = vld [vmem:[#allocation6] sm:$0xff]
        %v10727 = vld [vmem:[#allocation6 + $0x8] sm:$0xff]
        %v10728 = vld [vmem:[#allocation6 + $0x10] sm:$0xff]
        %v10729 = vld [vmem:[#allocation6 + $0x18] sm:$0xff]
        %v10730 = vld [vmem:[#allocation6 + $0x20] sm:$0xff]
        %v10731 = vld [vmem:[#allocation6 + $0x28] sm:$0xff]
        %v10732 = vld [vmem:[#allocation6 + $0x30] sm:$0xff]
        %v10733 = vld [vmem:[#allocation6 + $0x38] sm:$0xff]
        %v10734 = vld [vmem:[#allocation6 + $0x40] sm:$0x3]
        %v10735 = vpack.c.bf16 %v10727, %v10726
        %v10736 = vpack.c.bf16 %v10729, %v10728
        %v10737 = vpack.c.bf16 %v10731, %v10730
        %v10738 = vpack.c.bf16 %v10733, %v10732
        %v10739 = vpack.c.bf16 %v10734, %v10734
        %v10740 = vld [vmem:[#allocation15] sm:$0xf]
        %v10741 = vld [vmem:[#allocation15 + $0x4] sm:$0xf]
        %v10742 = vld [vmem:[#allocation15 + $0x8] sm:$0xf]
        %v10743 = vld [vmem:[#allocation15 + $0xc] sm:$0xf]
        %v10744 = vld [vmem:[#allocation15 + $0x10] sm:$0xf]
        %v10745 = vld [vmem:[#allocation15 + $0x14] sm:$0xf]
        %v10746 = vld [vmem:[#allocation15 + $0x18] sm:$0xf]
        %v10747 = vld [vmem:[#allocation15 + $0x1c] sm:$0x3]
        %v10756 = vunpack.c.l.b16 %v10740
        %v10757 = vunpack.c.l.b16 %v10741
        %v10758 = vunpack.c.l.b16 %v10742
        %v10759 = vunpack.c.l.b16 %v10743
        %v10760 = vunpack.c.l.b16 %v10744
        %v10761 = vunpack.c.l.b16 %v10745
        %v10762 = vunpack.c.l.b16 %v10746
        %v10763 = vunpack.c.l.b16 %v10747
        %v10764 = vpack.c.b16 %v10757, %v10756
        %v10765 = vpack.c.b16 %v10759, %v10758
        %v10766 = vpack.c.b16 %v10761, %v10760
        %v10767 = vpack.c.b16 %v10763, %v10762
        %v10772 = vsel %vm10708, %v10735, 0
        %v10775 = vsel %vm10708, %v10736, 0
        %v10778 = vsel %vm10708, %v10737, 0
        %v10781 = vsel %vm10708, %v10738, 0
        %v10784 = vsel %vm10708, %v10739, 0
        %v10787 = vsel %vm2038, %v10767, 0
        %10789 = vmatpush.bf16.msra.mxu0 0
        %10790 = vmatpush.bf16.msra.mxu0 0
        %10791 = vmatpush.bf16.msra.mxu0 0
        %10792 = vmatpush.bf16.msra.mxu0 0
        %10793 = vmatpush.bf16.msra.mxu0 %v10787
        %10794 = vmatpush.bf16.msra.mxu0 %v10766
        %10795 = vmatpush.bf16.msra.mxu0 %v10765
        %10796 = vmatpush.bf16.msra.mxu0 %v10764
        %10797 = vmatmul.bf16.gmra.mxu0 %v10772
        %v10798 = vpop.f32.mrf.mxu0
        %v10799 = vadd.f32 0.0, %v10798
        %v10800 = vpop.f32.mrf.mxu0
        %v10801 = vadd.f32 0.0, %v10800
        %10802 = vmatmul.bf16.gmra.mxu0 %v10775
        %v10803 = vpop.f32.mrf.mxu0
        %v10804 = vadd.f32 0.0, %v10803
        %v10805 = vpop.f32.mrf.mxu0
        %v10806 = vadd.f32 0.0, %v10805
        %10807 = vmatmul.bf16.gmra.mxu0 %v10778
        %v10808 = vpop.f32.mrf.mxu0
        %v10809 = vadd.f32 0.0, %v10808
        %v10810 = vpop.f32.mrf.mxu0
        %v10811 = vadd.f32 0.0, %v10810
        %10812 = vmatmul.bf16.gmra.mxu0 %v10781
        %v10813 = vpop.f32.mrf.mxu0
        %v10814 = vadd.f32 0.0, %v10813
        %v10815 = vpop.f32.mrf.mxu0
        %v10816 = vadd.f32 0.0, %v10815
        %10817 = vmatmul.bf16.gmra.mxu0 %v10784
        %v10818 = vpop.f32.mrf.mxu0
        %v10819 = vpop.f32.mrf.mxu0
        %10820 = vdwg.mxu0
        %s10821 = scalar_lea.vmem [#allocation15], 32
        %v10822 = vld [vmem:[%s10821] sm:$0xf]
        %v10823 = vld [vmem:[%s10821 + $0x4] sm:$0xf]
        %v10824 = vld [vmem:[%s10821 + $0x8] sm:$0xf]
        %v10825 = vld [vmem:[%s10821 + $0xc] sm:$0xf]
        %v10826 = vld [vmem:[%s10821 + $0x10] sm:$0xf]
        %v10827 = vld [vmem:[%s10821 + $0x14] sm:$0xf]
        %v10828 = vld [vmem:[%s10821 + $0x18] sm:$0xf]
        %v10829 = vld [vmem:[%s10821 + $0x1c] sm:$0x3]
        %v10838 = vunpack.c.l.b16 %v10822
        %v10839 = vunpack.c.l.b16 %v10823
        %v10840 = vunpack.c.l.b16 %v10824
        %v10841 = vunpack.c.l.b16 %v10825
        %v10842 = vunpack.c.l.b16 %v10826
        %v10843 = vunpack.c.l.b16 %v10827
        %v10844 = vunpack.c.l.b16 %v10828
        %v10845 = vunpack.c.l.b16 %v10829
        %v10846 = vpack.c.b16 %v10839, %v10838
        %v10847 = vpack.c.b16 %v10841, %v10840
        %v10848 = vpack.c.b16 %v10843, %v10842
        %v10849 = vpack.c.b16 %v10845, %v10844
        %v10854 = vsel %vm2038, %v10849, 0
        %10856 = vmatpush.bf16.msra.mxu0 0
        %10857 = vmatpush.bf16.msra.mxu0 0
        %10858 = vmatpush.bf16.msra.mxu0 0
        %10859 = vmatpush.bf16.msra.mxu0 0
        %10860 = vmatpush.bf16.msra.mxu0 %v10854
        %10861 = vmatpush.bf16.msra.mxu0 %v10848
        %10862 = vmatpush.bf16.msra.mxu0 %v10847
        %10863 = vmatpush.bf16.msra.mxu0 %v10846
        %10864 = vmatmul.bf16.gmra.mxu0 %v10772
        %v10865 = vpop.f32.mrf.mxu0
        %v10866 = vadd.f32 0.0, %v10865
        %v10867 = vpop.f32.mrf.mxu0
        %v10868 = vadd.f32 0.0, %v10867
        %10869 = vmatmul.bf16.gmra.mxu0 %v10775
        %v10870 = vpop.f32.mrf.mxu0
        %v10871 = vadd.f32 0.0, %v10870
        %v10872 = vpop.f32.mrf.mxu0
        %v10873 = vadd.f32 0.0, %v10872
        %10874 = vmatmul.bf16.gmra.mxu0 %v10778
        %v10875 = vpop.f32.mrf.mxu0
        %v10876 = vadd.f32 0.0, %v10875
        %v10877 = vpop.f32.mrf.mxu0
        %v10878 = vadd.f32 0.0, %v10877
        %10879 = vmatmul.bf16.gmra.mxu0 %v10781
        %v10880 = vpop.f32.mrf.mxu0
        %v10881 = vadd.f32 0.0, %v10880
        %v10882 = vpop.f32.mrf.mxu0
        %v10883 = vadd.f32 0.0, %v10882
        %10884 = vmatmul.bf16.gmra.mxu0 %v10784
        %v10885 = vpop.f32.mrf.mxu0
        %v10886 = vadd.f32 0.0, %v10885
        %v10887 = vpop.f32.mrf.mxu0
        %10888 = vdwg.mxu0
        %s10889 = scalar_lea.vmem [#allocation15], 64
        %v10890 = vld [vmem:[%s10889] sm:$0xf]
        %v10891 = vld [vmem:[%s10889 + $0x4] sm:$0xf]
        %v10892 = vld [vmem:[%s10889 + $0x8] sm:$0xf]
        %v10893 = vld [vmem:[%s10889 + $0xc] sm:$0xf]
        %v10894 = vld [vmem:[%s10889 + $0x10] sm:$0xf]
        %v10895 = vld [vmem:[%s10889 + $0x14] sm:$0xf]
        %v10896 = vld [vmem:[%s10889 + $0x18] sm:$0xf]
        %v10897 = vld [vmem:[%s10889 + $0x1c] sm:$0x3]
        %v10906 = vunpack.c.l.b16 %v10890
        %v10907 = vunpack.c.l.b16 %v10891
        %v10908 = vunpack.c.l.b16 %v10892
        %v10909 = vunpack.c.l.b16 %v10893
        %v10910 = vunpack.c.l.b16 %v10894
        %v10911 = vunpack.c.l.b16 %v10895
        %v10912 = vunpack.c.l.b16 %v10896
        %v10913 = vunpack.c.l.b16 %v10897
        %v10914 = vpack.c.b16 %v10907, %v10906
        %v10915 = vpack.c.b16 %v10909, %v10908
        %v10916 = vpack.c.b16 %v10911, %v10910
        %v10917 = vpack.c.b16 %v10913, %v10912
        %v10922 = vsel %vm2038, %v10917, 0
        %10924 = vmatpush.bf16.msra.mxu0 0
        %10925 = vmatpush.bf16.msra.mxu0 0
        %10926 = vmatpush.bf16.msra.mxu0 0
        %10927 = vmatpush.bf16.msra.mxu0 0
        %10928 = vmatpush.bf16.msra.mxu0 %v10922
        %10929 = vmatpush.bf16.msra.mxu0 %v10916
        %10930 = vmatpush.bf16.msra.mxu0 %v10915
        %10931 = vmatpush.bf16.msra.mxu0 %v10914
        %10932 = vmatmul.bf16.gmra.mxu0 %v10772
        %v10933 = vpop.f32.mrf.mxu0
        %v10934 = vadd.f32 0.0, %v10933
        %v10935 = vpop.f32.mrf.mxu0
        %v10936 = vadd.f32 0.0, %v10935
        %10937 = vmatmul.bf16.gmra.mxu0 %v10775
        %v10938 = vpop.f32.mrf.mxu0
        %v10939 = vadd.f32 0.0, %v10938
        %v10940 = vpop.f32.mrf.mxu0
        %v10941 = vadd.f32 0.0, %v10940
        %10942 = vmatmul.bf16.gmra.mxu0 %v10778
        %v10943 = vpop.f32.mrf.mxu0
        %v10944 = vadd.f32 0.0, %v10943
        %v10945 = vpop.f32.mrf.mxu0
        %v10946 = vadd.f32 0.0, %v10945
        %10947 = vmatmul.bf16.gmra.mxu0 %v10781
        %v10948 = vpop.f32.mrf.mxu0
        %v10949 = vadd.f32 0.0, %v10948
        %v10950 = vpop.f32.mrf.mxu0
        %v10951 = vadd.f32 0.0, %v10950
        %10952 = vmatmul.bf16.gmra.mxu0 %v10784
        %v10953 = vpop.f32.mrf.mxu0
        %v10954 = vadd.f32 0.0, %v10953
        %v10955 = vpop.f32.mrf.mxu0
        %10956 = vdwg.mxu0
        %v10966 = vrot.slane %v10866, 1
        %v10967 = vrot.slane %v10868, 1
        %v10968 = vsel %vm2003, %v10966, %v10967
        %v10969 = vrot.slane %v10871, 1
        %v10970 = vsel %vm2003, %v10967, %v10969
        %v10971 = vrot.slane %v10873, 1
        %v10972 = vsel %vm2003, %v10969, %v10971
        %v10973 = vrot.slane %v10876, 1
        %v10974 = vsel %vm2003, %v10971, %v10973
        %v10975 = vrot.slane %v10878, 1
        %v10976 = vsel %vm2003, %v10973, %v10975
        %v10977 = vrot.slane %v10881, 1
        %v10978 = vsel %vm2003, %v10975, %v10977
        %v10979 = vrot.slane %v10883, 1
        %v10980 = vsel %vm2003, %v10977, %v10979
        %v10981 = vrot.slane %v10886, 1
        %v10982 = vsel %vm2003, %v10979, %v10981
        %v10991 = vadd.f32 %v10799, %v10968
        %v10992 = vadd.f32 %v10801, %v10970
        %v10993 = vadd.f32 %v10804, %v10972
        %v10994 = vadd.f32 %v10806, %v10974
        %v10995 = vadd.f32 %v10809, %v10976
        %v10996 = vadd.f32 %v10811, %v10978
        %v10997 = vadd.f32 %v10814, %v10980
        %v10998 = vadd.f32 %v10816, %v10982
        %v11008 = vrot.slane %v10934, 2
        %v11009 = vrot.slane %v10936, 2
        %v11010 = vsel %vm2038, %v11008, %v11009
        %v11011 = vrot.slane %v10939, 2
        %v11012 = vsel %vm2038, %v11009, %v11011
        %v11013 = vrot.slane %v10941, 2
        %v11014 = vsel %vm2038, %v11011, %v11013
        %v11015 = vrot.slane %v10944, 2
        %v11016 = vsel %vm2038, %v11013, %v11015
        %v11017 = vrot.slane %v10946, 2
        %v11018 = vsel %vm2038, %v11015, %v11017
        %v11019 = vrot.slane %v10949, 2
        %v11020 = vsel %vm2038, %v11017, %v11019
        %v11021 = vrot.slane %v10951, 2
        %v11022 = vsel %vm2038, %v11019, %v11021
        %v11023 = vrot.slane %v10954, 2
        %v11024 = vsel %vm2038, %v11021, %v11023
        %v11033 = vadd.f32 %v10991, %v11010
        %v11034 = vadd.f32 %v10992, %v11012
        %v11035 = vadd.f32 %v10993, %v11014
        %v11036 = vadd.f32 %v10994, %v11016
        %v11037 = vadd.f32 %v10995, %v11018
        %v11038 = vadd.f32 %v10996, %v11020
        %v11039 = vadd.f32 %v10997, %v11022
        %v11040 = vadd.f32 %v10998, %v11024
        %v11041 = vld [vmem:[#allocation24] sm:$0x1]
        %v11043 = vperm.slane %v11041, 0
        %v11045 = vadd.f32 %v11033, %v11043
        %v11046 = vadd.f32 %v11034, %v11043
        %v11047 = vadd.f32 %v11035, %v11043
        %v11048 = vadd.f32 %v11036, %v11043
        %v11049 = vadd.f32 %v11037, %v11043
        %v11050 = vadd.f32 %v11038, %v11043
        %v11051 = vadd.f32 %v11039, %v11043
        %v11052 = vadd.f32 %v11040, %v11043
        %v11053 = vmax.f32 %v11045, 0.0
        %v11054 = vmax.f32 %v11046, 0.0
        %v11055 = vmax.f32 %v11047, 0.0
        %v11056 = vmax.f32 %v11048, 0.0
        %v11057 = vmax.f32 %v11049, 0.0
        %v11058 = vmax.f32 %v11050, 0.0
        %v11059 = vmax.f32 %v11051, 0.0
        %v11060 = vmax.f32 %v11052, 0.0
        %v11061 = vld [vmem:[#allocation26] sm:$0xf]
        %v11062 = vpack.c.bf16 %v11054, %v11053
        %v11063 = vpack.c.bf16 %v11056, %v11055
        %v11064 = vpack.c.bf16 %v11058, %v11057
        %v11065 = vpack.c.bf16 %v11060, %v11059
        %vm11066 = vcmask 523264
        %v11068 = vsel %vm11066, %v11061, 0
        %11070 = vmatpush.bf16.msra.mxu0 0
        %11071 = vmatpush.bf16.msra.mxu0 0
        %11072 = vmatpush.bf16.msra.mxu0 0
        %11073 = vmatpush.bf16.msra.mxu0 0
        %11074 = vmatpush.bf16.msra.mxu0 %v11065
        %11075 = vmatpush.bf16.msra.mxu0 %v11064
        %11076 = vmatpush.bf16.msra.mxu0 %v11063
        %11077 = vmatpush.bf16.msra.mxu0 %v11062
        %11078 = vmatmul.bf16.gmra.mxu0 %v11068
        %v11079 = vpop.f32.mrf.mxu0
        %v11080 = vadd.f32 0.0, %v11079
        %v11081 = vpop.f32.mrf.mxu0
        %11082 = vdwg.mxu0
        %v11083 = vpack.c.bf16 %v11080, %v11080
        %v11084 = vld [vmem:[#allocation27] sm:$0xf]
        %v11085 = vld [vmem:[#allocation27 + $0x4] sm:$0xf]
        %v11086 = vld [vmem:[#allocation29] sm:$0x1]
        %v11088 = vperm.slane %v11086, 0
        %v11092 = vunpack.c.l.b16 %v11084
        %v11093 = vunpack.c.l.b16 %v11085
        %v11094 = vpack.c.b16 %v11093, %v11092
        %vm11096 = vcmask 130048
        %v11098 = vsel %vm11096, %v11083, 0
        %11100 = vmatpush.bf16.msra.mxu0 0
        %11101 = vmatpush.bf16.msra.mxu0 0
        %11102 = vmatpush.bf16.msra.mxu0 0
        %11103 = vmatpush.bf16.msra.mxu0 0
        %11104 = vmatpush.bf16.msra.mxu0 0
        %11105 = vmatpush.bf16.msra.mxu0 0
        %11106 = vmatpush.bf16.msra.mxu0 0
        %11107 = vmatpush.bf16.msra.mxu0 %v11094
        %11108 = vmatmul.bf16.gmra.mxu0 %v11098
        %v11109 = vpop.f32.mrf.mxu0
        %v11110 = vadd.f32 %v11088, %v11109
        %v11111 = vpop.f32.mrf.mxu0
        %11112 = vdwg.mxu0
        %v11113 = vmax.f32 %v11110, 0.0
        %vm11114 = vcmask 48128
        %11115 = vst.msk [vmem:[%s751] sm:$0xff] %vm11114, %v11113
        %p11116 = scmp.lt.s32.totalorder %s35, 1
        %s11117 = scalar_select %p11116, %s35, 1
        %s11118 = smul.addr %s11117, 8
        %s11119 = scalar_lea.vmem %s16, %s11118
        // Predicated region
        $region145: #{forward.1} parent=83 // pred_check
          %p11120 = pneg %p394
        $region146: #{forward.1} parent=83 // pred_check_branch
          %11122 = sbr.rel (%p11120) target = $region148
        $region147: #{forward.1} parent=83 // pred_region
          _
        $region148: #{forward.1} parent=83 // pred_fallthru
          _
      $region84: #{forward.1} parent=5 // pred_fallthru
        _
      %p11123 = scmp.le.s32.totalorder 2, %s30
      // Predicated region
      $region149: #{forward.1} parent=5 // pred_check
        %p11124 = pneg %p11123
      $region150: #{forward.1} parent=5 // pred_check_branch
        %11126 = sbr.rel (%p11124) target = $region152
      $region151: #{forward.1} parent=5 // pred_region
        %s11127 = ssub.s32 %s30, 2
        // Predicated region
        $region153: #{forward.1} parent=151 // pred_check
          %p11128 = pneg %p400
        $region154: #{forward.1} parent=151 // pred_check_branch
          %11130 = sbr.rel (%p11128) target = $region156
        $region155: #{forward.1} parent=151 // pred_region
          %p11131 = scmp.lt.s32.totalorder %s36, 1
          %s11132 = scalar_select %p11131, %s36, 1
          %s11133 = smul.addr %s11132, 8
          %s11134 = scalar_lea.vmem %s16, %s11133
        $region156: #{forward.1} parent=151 // pred_fallthru
          _
      $region152: #{forward.1} parent=5 // pred_fallthru
        _
    $region6: #{forward.1} parent=1 // loop_footer
      %s34 = sadd.s32 1, %s30
    $region7: #{forward.1} parent=1 // loop_footer_branch
      %29 = sbr.rel target = $region3
    $region8: #{forward.1} parent=1 // loop_exit
      _
    %11135 = vsyncpa [#allocation8], 1
    %s11136 = scalar_lea.sflag [#allocation8], 1
    %11137 = vsyncpa %s11136, 1
    %11138 = vsyncpa [#allocation10], 1
    %11139 = vsyncpa [#allocation13], 1
    %11140 = vsyncpa [#allocation16], 1
    %11141 = vsyncpa [#allocation19], 1
    %11142 = vsyncpa [#allocation22], 1
    %11143 = vsyncpa [#allocation25], 1
    %11144 = vsyncpa [#allocation28], 1

</llo_original>
